<compile_context>
chip_gen: v7x
topology: tpu7x:2x2x1
jax: 0.10.0
libtpu: 0.0.40
codegen_flags: <defaults>
</compile_context>

<pallas_src>
import math

import jax
import jax.numpy as jnp
from jax.experimental import pallas as pl
from jax.experimental.pallas import tpu as pltpu

ALPHA = 0.2              # LeakyReLU slope used by GoAL / AL / SAL
PAD_OUT = 128            # lane-padded width for the final 2-class logits
GA_COLS = 128            # lane-padded column count for the packed GoAL/AL weights
VMEM_LIMIT = 32 * 1024 * 1024


def _lrelu(x, alpha=ALPHA):
    return jnp.where(x > 0, x, alpha * x)


# ----------------------------------------------------------------------------
# Kernel 1: GoAL attribute pooling + AL per-token scores.
# grid = (attr, batch_split); each step handles a whole (Bb, L, H) slab.
# The three per-attribute weight vectors (goal_a, al_word, al_attr) live in the
# first 3 lanes of a (H, 128) matrix so the token projections are ONE MXU matmul.
def _goal_al_kernel(emb_ref, wga_ref, attr_ref, score_ref):
    x = emb_ref[0]                                        # (Bb, L, H) f32
    Bb, L, H = x.shape
    wga = wga_ref[0]                                      # (H, 128): cols 0/1/2 used

    x2d = x.reshape(Bb * L, H)
    proj = jnp.dot(x2d, wga, preferred_element_type=jnp.float32)    # (Bb*L, 128) MXU
    proj3 = proj.reshape(Bb, L, GA_COLS)
    e_goal = _lrelu(proj3[:, :, 0])                       # (Bb, L)  x . goal_a
    word = proj3[:, :, 1]                                 # (Bb, L)  x . al_word

    # GoAL: softmax over tokens, weighted pool (MXU), relu.
    e_goal = e_goal - jnp.max(e_goal, axis=-1, keepdims=True)
    w = jnp.exp(e_goal)
    w = w / jnp.sum(w, axis=-1, keepdims=True)            # (Bb, L)
    pooled = jnp.einsum('bql,blh->bqh', w[:, None, :], x,
                        preferred_element_type=jnp.float32)[:, 0, :]   # (Bb, H)
    pooled = jnp.maximum(pooled, 0.0)
    attr_ref[...] = pooled[None]                          # (1, Bb, H)

    # AL: e = leakyrelu([word_emb ; attr_emb] @ a)  (split weight instead of concat)
    ctx = jnp.dot(pooled, wga, preferred_element_type=jnp.float32)[:, 2:3]   # (Bb, 1)
    score_ref[...] = _lrelu(word + ctx)[None]             # (1, Bb, L)


def goal_al_call(emb_all, wga, nb):
    A_, B_, L_, H_ = emb_all.shape
    Bb = B_ // nb
    return pl.pallas_call(
        _goal_al_kernel,
        out_shape=(jax.ShapeDtypeStruct((A_, B_, H_), jnp.float32),
                   jax.ShapeDtypeStruct((A_, B_, L_), jnp.float32)),
        grid=(A_, nb),
        in_specs=[
            pl.BlockSpec((1, Bb, L_, H_), lambda a, j: (a, j, 0, 0)),
            pl.BlockSpec((1, H_, GA_COLS), lambda a, j: (a, 0, 0)),
        ],
        out_specs=(
            pl.BlockSpec((1, Bb, H_), lambda a, j: (a, j, 0)),
            pl.BlockSpec((1, Bb, L_), lambda a, j: (a, j, 0)),
        ),
        compiler_params=pltpu.CompilerParams(
            dimension_semantics=("parallel", "parallel"),
            vmem_limit_bytes=VMEM_LIMIT),
    )(emb_all, wga)


# ----------------------------------------------------------------------------
# Kernel 2: fused attribute-softmax gather + embedding augmentation + synthetic
# single-layer encoder (CLS path only) + SAL + final fc.
# grid = (batch_split, attr) with the attribute axis LAST and "arbitrary":
# pooled CLS rows accumulate in VMEM scratch; SAL+fc run on the last attribute step.
def _fused_encoder_kernel(emb_ref, ids_ref, score_ref, maskg_ref, attrs_ref,
                          wq_ref, wkv_ref, w1_ref, w2_ref,
                          sal_ref, wfc_ref, bfc_ref,
                          logits_ref, pooled_acc):
    a_cur = pl.program_id(1)
    A = ids_ref.shape[0]
    x = emb_ref[0]                                        # (Bb, L, H) f32
    Bb, L, H = x.shape

    # ---- attribute softmax at this attribute's token positions (no vocab map) ----
    # Reproduces: scatter scores into a (A,B,V) map (last write wins), softmax over
    # attributes, multiply by masks, gather back at xs_p[a_cur].
    ids_self = ids_ref[a_cur]                             # (Bb, L) int32
    l2_iota = jax.lax.broadcasted_iota(jnp.int32, (Bb, L, L), 2)
    s_parts = []
    for a in range(A):                                    # A is small and static
        ids_a = ids_ref[a]                                # (Bb, L)
        sc_a = score_ref[a]                               # (Bb, L)
        match = ids_self[:, :, None] == ids_a[:, None, :]            # (Bb, L, L)
        best = jnp.max(jnp.where(match, l2_iota, -1), axis=-1)       # last match or -1
        lw = (l2_iota == best[:, :, None]).astype(jnp.float32)       # one-hot / zero
        s_parts.append(jnp.sum(lw * sc_a[:, None, :], axis=-1))      # (Bb, L)
    a_iota = jax.lax.broadcasted_iota(jnp.int32, (Bb, L, A), 2)
    s_g = jnp.zeros((Bb, L, A), jnp.float32)
    for a in range(A):
        s_g = jnp.where(a_iota == a, s_parts[a][:, :, None], s_g)
    s_g = s_g - jnp.max(s_g, axis=-1, keepdims=True)
    pg = jnp.exp(s_g)
    g = (pg / jnp.sum(pg, axis=-1, keepdims=True)) * maskg_ref[0]     # (Bb, L, A)

    # ---- embedding augmentation: words_emb[b] += attns[b][x[b]] @ attr_outputs[b] ----
    x = x + jnp.einsum('bla,bah->blh', g, attrs_ref[...],
                       preferred_element_type=jnp.float32)            # MXU contraction

    # ---- synthetic single-layer encoder, CLS row only (bf16 MXU, f32 accum) ----
    xb2d = x.astype(jnp.bfloat16).reshape(Bb * L, H)
    kv = jnp.dot(xb2d, wkv_ref[...], preferred_element_type=jnp.float32)   # (Bb*L, 2H)
    k3 = kv[:, :H].reshape(Bb, L, H)
    v3 = kv[:, H:].reshape(Bb, L, H)
    x_cls = x[:, 0, :]                                                     # (Bb, H)
    q = jnp.dot(x_cls.astype(jnp.bfloat16), wq_ref[...],
                preferred_element_type=jnp.float32)                        # CLS rows only
    s = jnp.einsum('bqh,bkh->bqk', q[:, None, :], k3,
                   preferred_element_type=jnp.float32) * (1.0 / math.sqrt(H))
    s = s - jnp.max(s, axis=-1, keepdims=True)
    pr = jnp.exp(s)
    pr = pr / jnp.sum(pr, axis=-1, keepdims=True)                          # (Bb, 1, L)
    ao = jnp.einsum('bqk,bkh->bqh', pr, v3,
                    preferred_element_type=jnp.float32)[:, 0, :]           # (Bb, H)
    x2 = x_cls + ao
    h1 = jax.nn.gelu(jnp.dot(x2.astype(jnp.bfloat16), w1_ref[...],
                             preferred_element_type=jnp.float32),
                     approximate=True)                                     # (Bb, F)
    ycls = x2 + jnp.dot(h1.astype(jnp.bfloat16), w2_ref[...],
                        preferred_element_type=jnp.float32)                # (Bb, H)
    pooled_acc[a_cur] = ycls
    # dropout(p=0.1) is identity in eval mode.

    # ---- SAL struct attention over attributes + final fc (epilogue) ----
    @pl.when(a_cur == pl.num_programs(1) - 1)
    def _():
        sal = sal_ref[...]                                # (A+1, H)
        a_self = sal[0:1, :]
        t_ent = jnp.zeros((Bb, 1), jnp.float32)
        e_self = []
        for a in range(A):
            pa = pooled_acc[a]                            # (Bb, H)
            e_self.append(jnp.sum(pa * a_self, axis=-1, keepdims=True))
            t_ent = t_ent + jnp.sum(pa * sal[a + 1:a + 2, :], axis=-1, keepdims=True)
        e = [_lrelu(es + t_ent) for es in e_self]
        m = e[0]
        for ea in e[1:]:
            m = jnp.maximum(m, ea)
        pz = [jnp.exp(ea - m) for ea in e]
        z = pz[0]
        for pa_ in pz[1:]:
            z = z + pa_
        inv_z = 1.0 / z
        entity = jnp.zeros((Bb, sal.shape[1]), jnp.float32)
        for a in range(A):
            entity = entity + (pz[a] * inv_z) * pooled_acc[a]
        logits_ref[...] = (jnp.dot(entity, wfc_ref[...],
                                   preferred_element_type=jnp.float32)
                           + bfc_ref[...])


def encode_call(emb_all, ids, scores, mask_g, attrs_bah, p, nb):
    A_, B_, L_, H_ = emb_all.shape
    F_ = p['w1'].shape[1]
    Bb = B_ // nb
    return pl.pallas_call(
        _fused_encoder_kernel,
        out_shape=jax.ShapeDtypeStruct((B_, PAD_OUT), jnp.float32),
        grid=(nb, A_),
        in_specs=[
            pl.BlockSpec((1, Bb, L_, H_), lambda j, a: (a, j, 0, 0)),   # word embeddings
            pl.BlockSpec((A_, Bb, L_), lambda j, a: (0, j, 0)),         # token ids (all attrs)
            pl.BlockSpec((A_, Bb, L_), lambda j, a: (0, j, 0)),         # AL scores (all attrs)
            pl.BlockSpec((1, Bb, L_, A_), lambda j, a: (a, j, 0, 0)),   # masks gathered at ids
            pl.BlockSpec((Bb, A_, H_), lambda j, a: (j, 0, 0)),         # GoAL pooled attrs
            pl.BlockSpec((H_, H_), lambda j, a: (0, 0)),                # wq
            pl.BlockSpec((H_, 2 * H_), lambda j, a: (0, 0)),            # fused wkv
            pl.BlockSpec((H_, F_), lambda j, a: (0, 0)),                # ffn w1
            pl.BlockSpec((F_, H_), lambda j, a: (0, 0)),                # ffn w2
            pl.BlockSpec((A_ + 1, H_), lambda j, a: (0, 0)),            # SAL weights
            pl.BlockSpec((H_, PAD_OUT), lambda j, a: (0, 0)),           # fc weight (padded)
            pl.BlockSpec((1, PAD_OUT), lambda j, a: (0, 0)),            # fc bias (padded)
        ],
        out_specs=pl.BlockSpec((Bb, PAD_OUT), lambda j, a: (j, 0)),
        scratch_shapes=[pltpu.VMEM((A_, Bb, H_), jnp.float32)],
        compiler_params=pltpu.CompilerParams(
            dimension_semantics=("parallel", "arbitrary"),
            vmem_limit_bytes=VMEM_LIMIT),
    )(emb_all, ids, scores, mask_g, attrs_bah,
      p['wq'], p['wkv'], p['w1'], p['w2'],
      p['sal_a'], p['wfc_pad'], p['bfc_pad'])


# ----------------------------------------------------------------------------
def init_params(key, A_, V_, H_, F_):
    ks = jax.random.split(key, 10)

    def xavier(k, shape, gain=1.414):
        bound = gain * math.sqrt(6.0 / sum(shape))
        return jax.random.uniform(k, shape, jnp.float32, -bound, bound)

    goal_a = xavier(ks[1], (A_, H_))                 # GoAL a: (H,1) per attribute
    al_a = xavier(ks[2], (A_, 2 * H_))               # AL   a: (2H,1) per attribute
    # Pack goal_a / al_word / al_attr into the first 3 lanes of a (H, 128) matrix
    # so kernel 1 computes all token projections with a single MXU matmul.
    wga = jnp.zeros((A_, H_, GA_COLS), jnp.float32)
    wga = wga.at[:, :, 0].set(goal_a)
    wga = wga.at[:, :, 1].set(al_a[:, :H_])
    wga = wga.at[:, :, 2].set(al_a[:, H_:])

    wk = xavier(ks[5], (H_, H_), 1.0)
    wv = xavier(ks[6], (H_, H_), 1.0)
    wfc = xavier(ks[9], (H_, 2), 1.0)
    bfc = jnp.zeros((2,), jnp.float32)
    return {
        'emb':    0.02 * jax.random.normal(ks[0], (V_, H_), jnp.float32),
        'wga':    wga,
        'sal_a':  xavier(ks[3], (A_ + 1, H_)),       # SAL a: (H*(A+1),1) reshaped
        # encoder weights stored in bf16 for the MXU; accumulation stays f32 in-kernel.
        'wq':     xavier(ks[4], (H_, H_), 1.0).astype(jnp.bfloat16),
        'wkv':    jnp.concatenate([wk, wv], axis=1).astype(jnp.bfloat16),
        'w1':     xavier(ks[7], (H_, F_), 1.0).astype(jnp.bfloat16),
        'w2':     xavier(ks[8], (F_, H_), 1.0).astype(jnp.bfloat16),
        # final fc, lane-padded once at init.
        'wfc_pad': jnp.zeros((H_, PAD_OUT), jnp.float32).at[:, :2].set(wfc),
        'bfc_pad': jnp.zeros((1, PAD_OUT), jnp.float32).at[:, :2].set(bfc[None, :]),
    }


def tran_hgat_forward(params, xs, y, masks):
    """xs: (B, A, L) int32 token ids; y: (B,) labels; masks: (B, A, V) float32."""
    B_, A_, L_ = xs.shape
    V_, H_ = params['emb'].shape

    # Megacore batch split only when each half still fills MXU/sublane tiles
    # (Bb >= 16); otherwise keep the whole batch in one block.
    nb = 2 if (B_ % 16 == 0 and B_ // 2 >= 16) else 1

    xs_p = jnp.transpose(xs, (1, 0, 2))                 # == xs.permute(1,0,2): (A, B, L)
    emb_all = params['emb'][xs_p]                       # word embeddings (A, B, L, H)

    # --- GoAL pooled attribute embeddings + AL token scores (Pallas) ---
    attr_emb, scores = goal_al_call(emb_all, params['wga'], nb)      # (A,B,H), (A,B,L)

    # masks gathered at every attribute's token positions (the only vocab-sized read
    # besides the embedding lookup): mask_g[a', b, l, a] = masks[b, a, xs_p[a', b, l]]
    b_idx = jnp.arange(B_)[None, :, None]
    mask_g = masks[b_idx, :, xs_p]                      # (A, B, L, A)

    attrs_bah = jnp.transpose(attr_emb, (1, 0, 2))      # (B, A, H), tiny

    # --- fused attribute-softmax gather + augmentation + encoder + SAL + fc ---
    logits_pad = encode_call(emb_all, xs_p, scores, mask_g, attrs_bah, params, nb)

    logits = logits_pad[:, :2]
    y_hat = jnp.argmax(logits, axis=-1)
    return logits, y, y_hat


if __name__ == "__main__":
    # Small synthetic shapes (hidden 128 stands in for BERT's 768).
    B, A, L, V, H, F = 8, 3, 16, 128, 128, 256

    key = jax.random.PRNGKey(0)
    k_xs, k_y, k_m, k_p = jax.random.split(key, 4)
    xs = jax.random.randint(k_xs, (B, A, L), 0, V, dtype=jnp.int32)
    y = jax.random.randint(k_y, (B,), 0, 2, dtype=jnp.int32)
    masks = (jax.random.uniform(k_m, (B, A, V)) > 0.5).astype(jnp.float32)
    params = init_params(k_p, A, V, H, F)

    logits, y_out, y_hat = jax.jit(tran_hgat_forward)(params, xs, y, masks)
    jax.block_until_ready((logits, y_out, y_hat))
    assert logits.shape == (B, 2) and y_hat.shape == (B,)
    print("KERNEL_OK")
</pallas_src>

<mosaic_0001>
module attributes {stable_mosaic.version = 11 : i64} {
  func.func @_goal_al_kernel(%arg0: i32, %arg1: i32, %arg2: memref<1x8x16x128xf32, #tpu.memory_space<vmem>>, %arg3: memref<1x128x128xf32, #tpu.memory_space<vmem>>, %arg4: memref<1x8x128xf32, #tpu.memory_space<vmem>>, %arg5: memref<1x8x16xf32, #tpu.memory_space<vmem>>) attributes {dimension_semantics = [#tpu.dimension_semantics<parallel>, #tpu.dimension_semantics<parallel>], iteration_bounds = array<i64: 3, 1>, scalar_prefetch = 0 : i64, scratch_operands = 0 : i64, tpu.core_type = #tpu.core_type<tc>, window_params = [{transform_indices = @transform_0, window_bounds = array<i64: 1, 8, 16, 128>}, {transform_indices = @transform_1, window_bounds = array<i64: 1, 128, 128>}, {transform_indices = @transform_2, window_bounds = array<i64: 1, 8, 128>}, {transform_indices = @transform_3, window_bounds = array<i64: 1, 8, 16>}]} {
    %c0 = arith.constant 0 : index
    %c0_0 = arith.constant 0 : index
    %c0_1 = arith.constant 0 : index
    %c0_2 = arith.constant 0 : index
    %0 = vector.load %arg2[%c0, %c0_0, %c0_1, %c0_2] : memref<1x8x16x128xf32, #tpu.memory_space<vmem>>, vector<1x8x16x128xf32>
    %1 = vector.shape_cast %0 : vector<1x8x16x128xf32> to vector<8x16x128xf32>
    %c0_3 = arith.constant 0 : index
    %c0_4 = arith.constant 0 : index
    %c0_5 = arith.constant 0 : index
    %2 = vector.load %arg3[%c0_3, %c0_4, %c0_5] : memref<1x128x128xf32, #tpu.memory_space<vmem>>, vector<1x128x128xf32>
    %3 = vector.shape_cast %2 : vector<1x128x128xf32> to vector<128x128xf32>
    %4 = vector.shape_cast %1 : vector<8x16x128xf32> to vector<128x128xf32>
    %cst = arith.constant dense<0.000000e+00> : vector<128x128xf32>
    %5 = tpu.matmul %4, %3, %cst {dimension_numbers = #tpu.dot_dimension_numbers<[1], [0], [0], [1], [0, 0, 1, 1], [], []>} : vector<128x128xf32>, vector<128x128xf32>, vector<128x128xf32> -> vector<128x128xf32>
    %6 = vector.shape_cast %5 : vector<128x128xf32> to vector<8x16x128xf32>
    %7 = vector.extract_strided_slice %6 {offsets = [0, 0, 0], sizes = [8, 16, 1], strides = [1, 1, 1]} : vector<8x16x128xf32> to vector<8x16x1xf32>
    %8 = vector.shape_cast %7 : vector<8x16x1xf32> to vector<8x16xf32>
    %cst_6 = arith.constant 0.000000e+00 : f32
    %9 = vector.broadcast %cst_6 : f32 to vector<8x16xf32>
    %10 = arith.cmpf ogt, %8, %9 : vector<8x16xf32>
    %cst_7 = arith.constant 2.000000e-01 : f32
    %11 = vector.broadcast %cst_7 : f32 to vector<8x16xf32>
    %12 = arith.mulf %11, %8 : vector<8x16xf32>
    %13 = arith.select %10, %8, %12 : vector<8x16xi1>, vector<8x16xf32>
    %14 = vector.extract_strided_slice %6 {offsets = [0, 0, 1], sizes = [8, 16, 1], strides = [1, 1, 1]} : vector<8x16x128xf32> to vector<8x16x1xf32>
    %15 = vector.shape_cast %14 : vector<8x16x1xf32> to vector<8x16xf32>
    %cst_8 = arith.constant dense<0xFF800000> : vector<8xf32>
    %16 = vector.multi_reduction <maximumf>, %13, %cst_8 [1] : vector<8x16xf32> to vector<8xf32>
    %17 = vector.shape_cast %16 : vector<8xf32> to vector<8x1xf32>
    %18 = vector.broadcast %17 : vector<8x1xf32> to vector<8x16xf32>
    %19 = arith.subf %13, %18 : vector<8x16xf32>
    %20 = math.exp %19 : vector<8x16xf32>
    %cst_9 = arith.constant dense<0.000000e+00> : vector<8xf32>
    %21 = vector.multi_reduction <add>, %20, %cst_9 [1] : vector<8x16xf32> to vector<8xf32>
    %22 = vector.shape_cast %21 : vector<8xf32> to vector<8x1xf32>
    %23 = vector.broadcast %22 : vector<8x1xf32> to vector<8x16xf32>
    %24 = arith.divf %20, %23 : vector<8x16xf32>
    %25 = vector.shape_cast %24 : vector<8x16xf32> to vector<8x1x16xf32>
    "tpu.trace_start"() <{level = 10 : i32, message = "bql,blh->bqh"}> : () -> ()
    %cst_10 = arith.constant dense<0.000000e+00> : vector<8x1x128xf32>
    %26 = tpu.matmul %25, %1, %cst_10 {dimension_numbers = #tpu.dot_dimension_numbers<[2], [1], [1], [2], [0, 0, 0, 1, 1, 2], [0], [0]>} : vector<8x1x16xf32>, vector<8x16x128xf32>, vector<8x1x128xf32> -> vector<8x1x128xf32>
    "tpu.trace_stop"() : () -> ()
    %27 = vector.shape_cast %26 : vector<8x1x128xf32> to vector<8x128xf32>
    %cst_11 = arith.constant 0.000000e+00 : f32
    %28 = vector.broadcast %cst_11 : f32 to vector<8x128xf32>
    %29 = arith.maximumf %27, %28 : vector<8x128xf32>
    %30 = vector.shape_cast %29 : vector<8x128xf32> to vector<1x8x128xf32>
    %c0_12 = arith.constant 0 : index
    %c0_13 = arith.constant 0 : index
    %c0_14 = arith.constant 0 : index
    %31 = vector.load %arg4[%c0_12, %c0_13, %c0_14] : memref<1x8x128xf32, #tpu.memory_space<vmem>>, vector<1x8x128xf32>
    tpu.vector_store %arg4[%c0_12, %c0_13, %c0_14], %30 {strides = array<i32>} : memref<1x8x128xf32, #tpu.memory_space<vmem>>, vector<1x8x128xf32>,
    %cst_15 = arith.constant dense<0.000000e+00> : vector<8x128xf32>
    %32 = tpu.matmul %29, %3, %cst_15 {dimension_numbers = #tpu.dot_dimension_numbers<[1], [0], [0], [1], [0, 0, 1, 1], [], []>} : vector<8x128xf32>, vector<128x128xf32>, vector<8x128xf32> -> vector<8x128xf32>
    %33 = vector.extract_strided_slice %32 {offsets = [0, 2], sizes = [8, 1], strides = [1, 1]} : vector<8x128xf32> to vector<8x1xf32>
    %34 = vector.broadcast %33 : vector<8x1xf32> to vector<8x16xf32>
    %35 = arith.addf %15, %34 : vector<8x16xf32>
    %cst_16 = arith.constant 0.000000e+00 : f32
    %36 = vector.broadcast %cst_16 : f32 to vector<8x16xf32>
    %37 = arith.cmpf ogt, %35, %36 : vector<8x16xf32>
    %cst_17 = arith.constant 2.000000e-01 : f32
    %38 = vector.broadcast %cst_17 : f32 to vector<8x16xf32>
    %39 = arith.mulf %38, %35 : vector<8x16xf32>
    %40 = arith.select %37, %35, %39 : vector<8x16xi1>, vector<8x16xf32>
    %41 = vector.shape_cast %40 : vector<8x16xf32> to vector<1x8x16xf32>
    %c0_18 = arith.constant 0 : index
    %c0_19 = arith.constant 0 : index
    %c0_20 = arith.constant 0 : index
    %42 = vector.load %arg5[%c0_18, %c0_19, %c0_20] : memref<1x8x16xf32, #tpu.memory_space<vmem>>, vector<1x8x16xf32>
    tpu.vector_store %arg5[%c0_18, %c0_19, %c0_20], %41 {strides = array<i32>} : memref<1x8x16xf32, #tpu.memory_space<vmem>>, vector<1x8x16xf32>,
    return
  }
  func.func @transform_0(%arg0: i32, %arg1: i32) -> (i32, i32, i32, i32) {
    %c0_i32 = arith.constant 0 : i32
    %c0_i32_0 = arith.constant 0 : i32
    %c0_i32_1 = arith.constant 0 : i32
    return %arg0, %arg1, %c0_i32, %c0_i32_0 : i32, i32, i32, i32
  }
  func.func @transform_1(%arg0: i32, %arg1: i32) -> (i32, i32, i32) {
    %c0_i32 = arith.constant 0 : i32
    %c0_i32_0 = arith.constant 0 : i32
    %c0_i32_1 = arith.constant 0 : i32
    return %arg0, %c0_i32, %c0_i32_0 : i32, i32, i32
  }
  func.func @transform_2(%arg0: i32, %arg1: i32) -> (i32, i32, i32) {
    %c0_i32 = arith.constant 0 : i32
    %c0_i32_0 = arith.constant 0 : i32
    return %arg0, %arg1, %c0_i32 : i32, i32, i32
  }
  func.func @transform_3(%arg0: i32, %arg1: i32) -> (i32, i32, i32) {
    %c0_i32 = arith.constant 0 : i32
    %c0_i32_0 = arith.constant 0 : i32
    return %arg0, %arg1, %c0_i32 : i32, i32, i32
  }
}

module attributes {stable_mosaic.version = 11 : i64} {
  func.func @_fused_encoder_kernel(%arg0: i32, %arg1: i32, %arg2: memref<1x8x16x128xf32, #tpu.memory_space<vmem>>, %arg3: memref<3x8x16xi32, #tpu.memory_space<vmem>>, %arg4: memref<3x8x16xf32, #tpu.memory_space<vmem>>, %arg5: memref<1x8x16x3xf32, #tpu.memory_space<vmem>>, %arg6: memref<8x3x128xf32, #tpu.memory_space<vmem>>, %arg7: memref<128x128xbf16, #tpu.memory_space<vmem>>, %arg8: memref<128x256xbf16, #tpu.memory_space<vmem>>, %arg9: memref<128x256xbf16, #tpu.memory_space<vmem>>, %arg10: memref<256x128xbf16, #tpu.memory_space<vmem>>, %arg11: memref<4x128xf32, #tpu.memory_space<vmem>>, %arg12: memref<128x128xf32, #tpu.memory_space<vmem>>, %arg13: memref<1x128xf32, #tpu.memory_space<vmem>>, %arg14: memref<8x128xf32, #tpu.memory_space<vmem>>, %arg15: memref<3x8x128xf32, #tpu.memory_space<vmem>>) attributes {dimension_semantics = [#tpu.dimension_semantics<parallel>, #tpu.dimension_semantics<arbitrary>], iteration_bounds = array<i64: 1, 3>, scalar_prefetch = 0 : i64, scratch_operands = 1 : i64, tpu.core_type = #tpu.core_type<tc>, window_params = [{transform_indices = @transform_0, window_bounds = array<i64: 1, 8, 16, 128>}, {transform_indices = @transform_1, window_bounds = array<i64: 3, 8, 16>}, {transform_indices = @transform_2, window_bounds = array<i64: 3, 8, 16>}, {transform_indices = @transform_3, window_bounds = array<i64: 1, 8, 16, 3>}, {transform_indices = @transform_4, window_bounds = array<i64: 8, 3, 128>}, {pipeline_mode = #tpu.pipeline_mode<synchronous>, transform_indices = @transform_5, window_bounds = array<i64: 128, 128>}, {pipeline_mode = #tpu.pipeline_mode<synchronous>, transform_indices = @transform_6, window_bounds = array<i64: 128, 256>}, {pipeline_mode = #tpu.pipeline_mode<synchronous>, transform_indices = @transform_7, window_bounds = array<i64: 128, 256>}, {pipeline_mode = #tpu.pipeline_mode<synchronous>, transform_indices = @transform_8, window_bounds = array<i64: 256, 128>}, {pipeline_mode = #tpu.pipeline_mode<synchronous>, transform_indices = @transform_9, window_bounds = array<i64: 4, 128>}, {pipeline_mode = #tpu.pipeline_mode<synchronous>, transform_indices = @transform_10, window_bounds = array<i64: 128, 128>}, {pipeline_mode = #tpu.pipeline_mode<synchronous>, transform_indices = @transform_11, window_bounds = array<i64: 1, 128>}, {transform_indices = @transform_12, window_bounds = array<i64: 8, 128>}]} {
    %c0 = arith.constant 0 : index
    %c0_0 = arith.constant 0 : index
    %c0_1 = arith.constant 0 : index
    %c0_2 = arith.constant 0 : index
    %0 = vector.load %arg2[%c0, %c0_0, %c0_1, %c0_2] : memref<1x8x16x128xf32, #tpu.memory_space<vmem>>, vector<1x8x16x128xf32>
    %1 = vector.shape_cast %0 : vector<1x8x16x128xf32> to vector<8x16x128xf32>
    %2 = arith.index_cast %arg1 : i32 to index
    %c0_3 = arith.constant 0 : index
    %c0_4 = arith.constant 0 : index
    %3 = vector.load %arg3[%2, %c0_3, %c0_4] : memref<3x8x16xi32, #tpu.memory_space<vmem>>, vector<1x8x16xi32>
    %4 = vector.shape_cast %3 : vector<1x8x16xi32> to vector<8x16xi32>
    %5 = tpu.iota {dimensions = array<i32: 2>} : vector<8x16x16xi32>
    %c0_5 = arith.constant 0 : index
    %c0_6 = arith.constant 0 : index
    %c0_7 = arith.constant 0 : index
    %6 = vector.load %arg3[%c0_5, %c0_6, %c0_7] : memref<3x8x16xi32, #tpu.memory_space<vmem>>, vector<1x8x16xi32>
    %7 = vector.shape_cast %6 : vector<1x8x16xi32> to vector<8x16xi32>
    %c0_8 = arith.constant 0 : index
    %c0_9 = arith.constant 0 : index
    %c0_10 = arith.constant 0 : index
    %8 = vector.load %arg4[%c0_8, %c0_9, %c0_10] : memref<3x8x16xf32, #tpu.memory_space<vmem>>, vector<1x8x16xf32>
    %9 = vector.shape_cast %8 : vector<1x8x16xf32> to vector<8x16xf32>
    %10 = vector.shape_cast %4 : vector<8x16xi32> to vector<8x16x1xi32>
    %11 = vector.shape_cast %7 : vector<8x16xi32> to vector<8x1x16xi32>
    %12 = vector.broadcast %10 : vector<8x16x1xi32> to vector<8x16x16xi32>
    %13 = vector.broadcast %11 : vector<8x1x16xi32> to vector<8x16x16xi32>
    %14 = arith.cmpi eq, %12, %13 : vector<8x16x16xi32>
    %c-1_i32 = arith.constant -1 : i32
    %15 = vector.broadcast %c-1_i32 : i32 to vector<8x16x16xi32>
    %16 = arith.select %14, %5, %15 : vector<8x16x16xi1>, vector<8x16x16xi32>
    %cst = arith.constant dense<-2147483648> : vector<8x16xi32>
    %17 = vector.multi_reduction <maxsi>, %16, %cst [2] : vector<8x16x16xi32> to vector<8x16xi32>
    %18 = vector.shape_cast %17 : vector<8x16xi32> to vector<8x16x1xi32>
    %19 = vector.broadcast %18 : vector<8x16x1xi32> to vector<8x16x16xi32>
    %20 = arith.cmpi eq, %5, %19 : vector<8x16x16xi32>
    %21 = arith.extui %20 : vector<8x16x16xi1> to vector<8x16x16xi32>
    %22 = arith.sitofp %21 : vector<8x16x16xi32> to vector<8x16x16xf32>
    %23 = vector.shape_cast %9 : vector<8x16xf32> to vector<8x1x16xf32>
    %24 = vector.broadcast %23 : vector<8x1x16xf32> to vector<8x16x16xf32>
    %25 = arith.mulf %22, %24 : vector<8x16x16xf32>
    %cst_11 = arith.constant dense<0.000000e+00> : vector<8x16xf32>
    %26 = vector.multi_reduction <add>, %25, %cst_11 [2] : vector<8x16x16xf32> to vector<8x16xf32>
    %c1 = arith.constant 1 : index
    %c0_12 = arith.constant 0 : index
    %c0_13 = arith.constant 0 : index
    %27 = vector.load %arg3[%c1, %c0_12, %c0_13] : memref<3x8x16xi32, #tpu.memory_space<vmem>>, vector<1x8x16xi32>
    %28 = vector.shape_cast %27 : vector<1x8x16xi32> to vector<8x16xi32>
    %c1_14 = arith.constant 1 : index
    %c0_15 = arith.constant 0 : index
    %c0_16 = arith.constant 0 : index
    %29 = vector.load %arg4[%c1_14, %c0_15, %c0_16] : memref<3x8x16xf32, #tpu.memory_space<vmem>>, vector<1x8x16xf32>
    %30 = vector.shape_cast %29 : vector<1x8x16xf32> to vector<8x16xf32>
    %31 = vector.shape_cast %4 : vector<8x16xi32> to vector<8x16x1xi32>
    %32 = vector.shape_cast %28 : vector<8x16xi32> to vector<8x1x16xi32>
    %33 = vector.broadcast %31 : vector<8x16x1xi32> to vector<8x16x16xi32>
    %34 = vector.broadcast %32 : vector<8x1x16xi32> to vector<8x16x16xi32>
    %35 = arith.cmpi eq, %33, %34 : vector<8x16x16xi32>
    %c-1_i32_17 = arith.constant -1 : i32
    %36 = vector.broadcast %c-1_i32_17 : i32 to vector<8x16x16xi32>
    %37 = arith.select %35, %5, %36 : vector<8x16x16xi1>, vector<8x16x16xi32>
    %cst_18 = arith.constant dense<-2147483648> : vector<8x16xi32>
    %38 = vector.multi_reduction <maxsi>, %37, %cst_18 [2] : vector<8x16x16xi32> to vector<8x16xi32>
    %39 = vector.shape_cast %38 : vector<8x16xi32> to vector<8x16x1xi32>
    %40 = vector.broadcast %39 : vector<8x16x1xi32> to vector<8x16x16xi32>
    %41 = arith.cmpi eq, %5, %40 : vector<8x16x16xi32>
    %42 = arith.extui %41 : vector<8x16x16xi1> to vector<8x16x16xi32>
    %43 = arith.sitofp %42 : vector<8x16x16xi32> to vector<8x16x16xf32>
    %44 = vector.shape_cast %30 : vector<8x16xf32> to vector<8x1x16xf32>
    %45 = vector.broadcast %44 : vector<8x1x16xf32> to vector<8x16x16xf32>
    %46 = arith.mulf %43, %45 : vector<8x16x16xf32>
    %cst_19 = arith.constant dense<0.000000e+00> : vector<8x16xf32>
    %47 = vector.multi_reduction <add>, %46, %cst_19 [2] : vector<8x16x16xf32> to vector<8x16xf32>
    %c2 = arith.constant 2 : index
    %c0_20 = arith.constant 0 : index
    %c0_21 = arith.constant 0 : index
    %48 = vector.load %arg3[%c2, %c0_20, %c0_21] : memref<3x8x16xi32, #tpu.memory_space<vmem>>, vector<1x8x16xi32>
    %49 = vector.shape_cast %48 : vector<1x8x16xi32> to vector<8x16xi32>
    %c2_22 = arith.constant 2 : index
    %c0_23 = arith.constant 0 : index
    %c0_24 = arith.constant 0 : index
    %50 = vector.load %arg4[%c2_22, %c0_23, %c0_24] : memref<3x8x16xf32, #tpu.memory_space<vmem>>, vector<1x8x16xf32>
    %51 = vector.shape_cast %50 : vector<1x8x16xf32> to vector<8x16xf32>
    %52 = vector.shape_cast %4 : vector<8x16xi32> to vector<8x16x1xi32>
    %53 = vector.shape_cast %49 : vector<8x16xi32> to vector<8x1x16xi32>
    %54 = vector.broadcast %52 : vector<8x16x1xi32> to vector<8x16x16xi32>
    %55 = vector.broadcast %53 : vector<8x1x16xi32> to vector<8x16x16xi32>
    %56 = arith.cmpi eq, %54, %55 : vector<8x16x16xi32>
    %c-1_i32_25 = arith.constant -1 : i32
    %57 = vector.broadcast %c-1_i32_25 : i32 to vector<8x16x16xi32>
    %58 = arith.select %56, %5, %57 : vector<8x16x16xi1>, vector<8x16x16xi32>
    %cst_26 = arith.constant dense<-2147483648> : vector<8x16xi32>
    %59 = vector.multi_reduction <maxsi>, %58, %cst_26 [2] : vector<8x16x16xi32> to vector<8x16xi32>
    %60 = vector.shape_cast %59 : vector<8x16xi32> to vector<8x16x1xi32>
    %61 = vector.broadcast %60 : vector<8x16x1xi32> to vector<8x16x16xi32>
    %62 = arith.cmpi eq, %5, %61 : vector<8x16x16xi32>
    %63 = arith.extui %62 : vector<8x16x16xi1> to vector<8x16x16xi32>
    %64 = arith.sitofp %63 : vector<8x16x16xi32> to vector<8x16x16xf32>
    %65 = vector.shape_cast %51 : vector<8x16xf32> to vector<8x1x16xf32>
    %66 = vector.broadcast %65 : vector<8x1x16xf32> to vector<8x16x16xf32>
    %67 = arith.mulf %64, %66 : vector<8x16x16xf32>
    %cst_27 = arith.constant dense<0.000000e+00> : vector<8x16xf32>
    %68 = vector.multi_reduction <add>, %67, %cst_27 [2] : vector<8x16x16xf32> to vector<8x16xf32>
    %69 = tpu.iota {dimensions = array<i32: 2>} : vector<8x16x3xi32>
    %cst_28 = arith.constant 0.000000e+00 : f32
    %70 = vector.broadcast %cst_28 : f32 to vector<8x16x3xf32>
    %c0_i32 = arith.constant 0 : i32
    %71 = vector.broadcast %c0_i32 : i32 to vector<8x16x3xi32>
    %72 = arith.cmpi eq, %69, %71 : vector<8x16x3xi32>
    %73 = vector.shape_cast %26 : vector<8x16xf32> to vector<8x16x1xf32>
    %74 = vector.shape_cast %73 : vector<8x16x1xf32> to vector<8x16x1xf32>
    %75 = vector.broadcast %74 : vector<8x16x1xf32> to vector<8x16x3xf32>
    %76 = arith.select %72, %75, %70 : vector<8x16x3xi1>, vector<8x16x3xf32>
    %c1_i32 = arith.constant 1 : i32
    %77 = vector.broadcast %c1_i32 : i32 to vector<8x16x3xi32>
    %78 = arith.cmpi eq, %69, %77 : vector<8x16x3xi32>
    %79 = vector.shape_cast %47 : vector<8x16xf32> to vector<8x16x1xf32>
    %80 = vector.shape_cast %79 : vector<8x16x1xf32> to vector<8x16x1xf32>
    %81 = vector.broadcast %80 : vector<8x16x1xf32> to vector<8x16x3xf32>
    %82 = arith.select %78, %81, %76 : vector<8x16x3xi1>, vector<8x16x3xf32>
    %c2_i32 = arith.constant 2 : i32
    %83 = vector.broadcast %c2_i32 : i32 to vector<8x16x3xi32>
    %84 = arith.cmpi eq, %69, %83 : vector<8x16x3xi32>
    %85 = vector.shape_cast %68 : vector<8x16xf32> to vector<8x16x1xf32>
    %86 = vector.shape_cast %85 : vector<8x16x1xf32> to vector<8x16x1xf32>
    %87 = vector.broadcast %86 : vector<8x16x1xf32> to vector<8x16x3xf32>
    %88 = arith.select %84, %87, %82 : vector<8x16x3xi1>, vector<8x16x3xf32>
    %cst_29 = arith.constant dense<0xFF800000> : vector<8x16xf32>
    %89 = vector.multi_reduction <maximumf>, %88, %cst_29 [2] : vector<8x16x3xf32> to vector<8x16xf32>
    %90 = vector.shape_cast %89 : vector<8x16xf32> to vector<8x16x1xf32>
    %91 = vector.broadcast %90 : vector<8x16x1xf32> to vector<8x16x3xf32>
    %92 = arith.subf %88, %91 : vector<8x16x3xf32>
    %93 = math.exp %92 : vector<8x16x3xf32>
    %cst_30 = arith.constant dense<0.000000e+00> : vector<8x16xf32>
    %94 = vector.multi_reduction <add>, %93, %cst_30 [2] : vector<8x16x3xf32> to vector<8x16xf32>
    %95 = vector.shape_cast %94 : vector<8x16xf32> to vector<8x16x1xf32>
    %96 = vector.broadcast %95 : vector<8x16x1xf32> to vector<8x16x3xf32>
    %97 = arith.divf %93, %96 : vector<8x16x3xf32>
    %c0_31 = arith.constant 0 : index
    %c0_32 = arith.constant 0 : index
    %c0_33 = arith.constant 0 : index
    %c0_34 = arith.constant 0 : index
    %98 = vector.load %arg5[%c0_31, %c0_32, %c0_33, %c0_34] : memref<1x8x16x3xf32, #tpu.memory_space<vmem>>, vector<1x8x16x3xf32>
    %99 = vector.shape_cast %98 : vector<1x8x16x3xf32> to vector<8x16x3xf32>
    %100 = arith.mulf %97, %99 : vector<8x16x3xf32>
    %c0_35 = arith.constant 0 : index
    %c0_36 = arith.constant 0 : index
    %c0_37 = arith.constant 0 : index
    %101 = vector.load %arg6[%c0_35, %c0_36, %c0_37] : memref<8x3x128xf32, #tpu.memory_space<vmem>>, vector<8x3x128xf32>
    "tpu.trace_start"() <{level = 10 : i32, message = "bla,bah->blh"}> : () -> ()
    %cst_38 = arith.constant dense<0.000000e+00> : vector<8x16x128xf32>
    %102 = tpu.matmul %100, %101, %cst_38 {dimension_numbers = #tpu.dot_dimension_numbers<[2], [1], [1], [2], [0, 0, 0, 1, 1, 2], [0], [0]>} : vector<8x16x3xf32>, vector<8x3x128xf32>, vector<8x16x128xf32> -> vector<8x16x128xf32>
    "tpu.trace_stop"() : () -> ()
    %103 = arith.addf %1, %102 : vector<8x16x128xf32>
    %104 = arith.truncf %103 : vector<8x16x128xf32> to vector<8x16x128xbf16>
    %105 = vector.shape_cast %104 : vector<8x16x128xbf16> to vector<128x128xbf16>
    %c0_39 = arith.constant 0 : index
    %c0_40 = arith.constant 0 : index
    %106 = vector.load %arg8[%c0_39, %c0_40] : memref<128x256xbf16, #tpu.memory_space<vmem>>, vector<128x256xbf16>
    %cst_41 = arith.constant dense<0.000000e+00> : vector<128x256xf32>
    %107 = tpu.matmul %105, %106, %cst_41 {dimension_numbers = #tpu.dot_dimension_numbers<[1], [0], [0], [1], [0, 0, 1, 1], [], []>} : vector<128x128xbf16>, vector<128x256xbf16>, vector<128x256xf32> -> vector<128x256xf32>
    %108 = vector.extract_strided_slice %107 {offsets = [0, 0], sizes = [128, 128], strides = [1, 1]} : vector<128x256xf32> to vector<128x128xf32>
    %109 = vector.shape_cast %108 : vector<128x128xf32> to vector<8x16x128xf32>
    %110 = vector.extract_strided_slice %107 {offsets = [0, 128], sizes = [128, 128], strides = [1, 1]} : vector<128x256xf32> to vector<128x128xf32>
    %111 = vector.shape_cast %110 : vector<128x128xf32> to vector<8x16x128xf32>
    %112 = vector.extract_strided_slice %103 {offsets = [0, 0, 0], sizes = [8, 1, 128], strides = [1, 1, 1]} : vector<8x16x128xf32> to vector<8x1x128xf32>
    %113 = vector.shape_cast %112 : vector<8x1x128xf32> to vector<8x128xf32>
    %114 = arith.truncf %113 : vector<8x128xf32> to vector<8x128xbf16>
    %c0_42 = arith.constant 0 : index
    %c0_43 = arith.constant 0 : index
    %115 = vector.load %arg7[%c0_42, %c0_43] : memref<128x128xbf16, #tpu.memory_space<vmem>>, vector<128x128xbf16>
    %cst_44 = arith.constant dense<0.000000e+00> : vector<8x128xf32>
    %116 = tpu.matmul %114, %115, %cst_44 {dimension_numbers = #tpu.dot_dimension_numbers<[1], [0], [0], [1], [0, 0, 1, 1], [], []>} : vector<8x128xbf16>, vector<128x128xbf16>, vector<8x128xf32> -> vector<8x128xf32>
    %117 = vector.shape_cast %116 : vector<8x128xf32> to vector<8x1x128xf32>
    "tpu.trace_start"() <{level = 10 : i32, message = "bqh,bkh->bqk"}> : () -> ()
    %cst_45 = arith.constant dense<0.000000e+00> : vector<8x1x16xf32>
    %118 = tpu.matmul %117, %109, %cst_45 {dimension_numbers = #tpu.dot_dimension_numbers<[2], [2], [1], [1], [0, 0, 0, 1, 1, 1], [0], [0]>} : vector<8x1x128xf32>, vector<8x16x128xf32>, vector<8x1x16xf32> -> vector<8x1x16xf32>
    "tpu.trace_stop"() : () -> ()
    %cst_46 = arith.constant 0.0883883461 : f32
    %119 = vector.broadcast %cst_46 : f32 to vector<8x1x16xf32>
    %120 = arith.mulf %118, %119 : vector<8x1x16xf32>
    %cst_47 = arith.constant dense<0xFF800000> : vector<8x1xf32>
    %121 = vector.multi_reduction <maximumf>, %120, %cst_47 [2] : vector<8x1x16xf32> to vector<8x1xf32>
    %122 = vector.shape_cast %121 : vector<8x1xf32> to vector<8x1x1xf32>
    %123 = vector.broadcast %122 : vector<8x1x1xf32> to vector<8x1x16xf32>
    %124 = arith.subf %120, %123 : vector<8x1x16xf32>
    %125 = math.exp %124 : vector<8x1x16xf32>
    %cst_48 = arith.constant dense<0.000000e+00> : vector<8x1xf32>
    %126 = vector.multi_reduction <add>, %125, %cst_48 [2] : vector<8x1x16xf32> to vector<8x1xf32>
    %127 = vector.shape_cast %126 : vector<8x1xf32> to vector<8x1x1xf32>
    %128 = vector.broadcast %127 : vector<8x1x1xf32> to vector<8x1x16xf32>
    %129 = arith.divf %125, %128 : vector<8x1x16xf32>
    "tpu.trace_start"() <{level = 10 : i32, message = "bqk,bkh->bqh"}> : () -> ()
    %cst_49 = arith.constant dense<0.000000e+00> : vector<8x1x128xf32>
    %130 = tpu.matmul %129, %111, %cst_49 {dimension_numbers = #tpu.dot_dimension_numbers<[2], [1], [1], [2], [0, 0, 0, 1, 1, 2], [0], [0]>} : vector<8x1x16xf32>, vector<8x16x128xf32>, vector<8x1x128xf32> -> vector<8x1x128xf32>
    "tpu.trace_stop"() : () -> ()
    %131 = vector.shape_cast %130 : vector<8x1x128xf32> to vector<8x128xf32>
    %132 = arith.addf %113, %131 : vector<8x128xf32>
    %133 = arith.truncf %132 : vector<8x128xf32> to vector<8x128xbf16>
    %c0_50 = arith.constant 0 : index
    %c0_51 = arith.constant 0 : index
    %134 = vector.load %arg9[%c0_50, %c0_51] : memref<128x256xbf16, #tpu.memory_space<vmem>>, vector<128x256xbf16>
    %cst_52 = arith.constant dense<0.000000e+00> : vector<8x256xf32>
    %135 = tpu.matmul %133, %134, %cst_52 {dimension_numbers = #tpu.dot_dimension_numbers<[1], [0], [0], [1], [0, 0, 1, 1], [], []>} : vector<8x128xbf16>, vector<128x256xbf16>, vector<8x256xf32> -> vector<8x256xf32>
    %136 = arith.mulf %135, %135 : vector<8x256xf32>
    %137 = arith.mulf %135, %136 : vector<8x256xf32>
    %cst_53 = arith.constant 4.471500e-02 : f32
    %138 = vector.broadcast %cst_53 : f32 to vector<8x256xf32>
    %139 = arith.mulf %138, %137 : vector<8x256xf32>
    %140 = arith.addf %135, %139 : vector<8x256xf32>
    %cst_54 = arith.constant 0.797884583 : f32
    %141 = vector.broadcast %cst_54 : f32 to vector<8x256xf32>
    %142 = arith.mulf %141, %140 : vector<8x256xf32>
    %143 = math.tanh %142 : vector<8x256xf32>
    %cst_55 = arith.constant 1.000000e+00 : f32
    %144 = vector.broadcast %cst_55 : f32 to vector<8x256xf32>
    %145 = arith.addf %144, %143 : vector<8x256xf32>
    %cst_56 = arith.constant 5.000000e-01 : f32
    %146 = vector.broadcast %cst_56 : f32 to vector<8x256xf32>
    %147 = arith.mulf %146, %145 : vector<8x256xf32>
    %148 = arith.mulf %135, %147 : vector<8x256xf32>
    %149 = arith.truncf %148 : vector<8x256xf32> to vector<8x256xbf16>
    %c0_57 = arith.constant 0 : index
    %c0_58 = arith.constant 0 : index
    %150 = vector.load %arg10[%c0_57, %c0_58] : memref<256x128xbf16, #tpu.memory_space<vmem>>, vector<256x128xbf16>
    %cst_59 = arith.constant dense<0.000000e+00> : vector<8x128xf32>
    %151 = tpu.matmul %149, %150, %cst_59 {dimension_numbers = #tpu.dot_dimension_numbers<[1], [0], [0], [1], [0, 0, 1, 1], [], []>} : vector<8x256xbf16>, vector<256x128xbf16>, vector<8x128xf32> -> vector<8x128xf32>
    %152 = arith.addf %132, %151 : vector<8x128xf32>
    %153 = arith.index_cast %arg1 : i32 to index
    %c0_60 = arith.constant 0 : index
    %c0_61 = arith.constant 0 : index
    %154 = vector.load %arg15[%153, %c0_60, %c0_61] : memref<3x8x128xf32, #tpu.memory_space<vmem>>, vector<1x8x128xf32>
    %155 = vector.shape_cast %154 : vector<1x8x128xf32> to vector<8x128xf32>
    %156 = vector.shape_cast %152 : vector<8x128xf32> to vector<1x8x128xf32>
    tpu.vector_store %arg15[%153, %c0_60, %c0_61], %156 {strides = array<i32>} : memref<3x8x128xf32, #tpu.memory_space<vmem>>, vector<1x8x128xf32>,
    %c2_i32_62 = arith.constant 2 : i32
    %157 = arith.cmpi eq, %arg1, %c2_i32_62 : i32
    %158 = arith.extui %157 : i1 to i32
    %c0_i32_63 = arith.constant 0 : i32
    %159 = arith.cmpi ne, %158, %c0_i32_63 : i32
    scf.if %159 {
      %c0_64 = arith.constant 0 : index
      %c0_65 = arith.constant 0 : index
      %160 = vector.load %arg11[%c0_64, %c0_65] : memref<4x128xf32, #tpu.memory_space<vmem>>, vector<4x128xf32>
      %161 = vector.extract_strided_slice %160 {offsets = [0, 0], sizes = [1, 128], strides = [1, 1]} : vector<4x128xf32> to vector<1x128xf32>
      %cst_66 = arith.constant 0.000000e+00 : f32
      %162 = vector.broadcast %cst_66 : f32 to vector<8x1xf32>
      %c0_67 = arith.constant 0 : index
      %c0_68 = arith.constant 0 : index
      %c0_69 = arith.constant 0 : index
      %163 = vector.load %arg15[%c0_67, %c0_68, %c0_69] : memref<3x8x128xf32, #tpu.memory_space<vmem>>, vector<1x8x128xf32>
      %164 = vector.shape_cast %163 : vector<1x8x128xf32> to vector<8x128xf32>
      %165 = vector.broadcast %161 : vector<1x128xf32> to vector<8x128xf32>
      %166 = arith.mulf %164, %165 : vector<8x128xf32>
      %cst_70 = arith.constant dense<0.000000e+00> : vector<8xf32>
      %167 = vector.multi_reduction <add>, %166, %cst_70 [1] : vector<8x128xf32> to vector<8xf32>
      %168 = vector.shape_cast %167 : vector<8xf32> to vector<8x1xf32>
      %169 = vector.extract_strided_slice %160 {offsets = [1, 0], sizes = [1, 128], strides = [1, 1]} : vector<4x128xf32> to vector<1x128xf32>
      %170 = vector.broadcast %169 : vector<1x128xf32> to vector<8x128xf32>
      %171 = arith.mulf %164, %170 : vector<8x128xf32>
      %cst_71 = arith.constant dense<0.000000e+00> : vector<8xf32>
      %172 = vector.multi_reduction <add>, %171, %cst_71 [1] : vector<8x128xf32> to vector<8xf32>
      %173 = vector.shape_cast %172 : vector<8xf32> to vector<8x1xf32>
      %174 = arith.addf %162, %173 : vector<8x1xf32>
      %c1_72 = arith.constant 1 : index
      %c0_73 = arith.constant 0 : index
      %c0_74 = arith.constant 0 : index
      %175 = vector.load %arg15[%c1_72, %c0_73, %c0_74] : memref<3x8x128xf32, #tpu.memory_space<vmem>>, vector<1x8x128xf32>
      %176 = vector.shape_cast %175 : vector<1x8x128xf32> to vector<8x128xf32>
      %177 = vector.broadcast %161 : vector<1x128xf32> to vector<8x128xf32>
      %178 = arith.mulf %176, %177 : vector<8x128xf32>
      %cst_75 = arith.constant dense<0.000000e+00> : vector<8xf32>
      %179 = vector.multi_reduction <add>, %178, %cst_75 [1] : vector<8x128xf32> to vector<8xf32>
      %180 = vector.shape_cast %179 : vector<8xf32> to vector<8x1xf32>
      %181 = vector.extract_strided_slice %160 {offsets = [2, 0], sizes = [1, 128], strides = [1, 1]} : vector<4x128xf32> to vector<1x128xf32>
      %182 = vector.broadcast %181 : vector<1x128xf32> to vector<8x128xf32>
      %183 = arith.mulf %176, %182 : vector<8x128xf32>
      %cst_76 = arith.constant dense<0.000000e+00> : vector<8xf32>
      %184 = vector.multi_reduction <add>, %183, %cst_76 [1] : vector<8x128xf32> to vector<8xf32>
      %185 = vector.shape_cast %184 : vector<8xf32> to vector<8x1xf32>
      %186 = arith.addf %174, %185 : vector<8x1xf32>
      %c2_77 = arith.constant 2 : index
      %c0_78 = arith.constant 0 : index
      %c0_79 = arith.constant 0 : index
      %187 = vector.load %arg15[%c2_77, %c0_78, %c0_79] : memref<3x8x128xf32, #tpu.memory_space<vmem>>, vector<1x8x128xf32>
      %188 = vector.shape_cast %187 : vector<1x8x128xf32> to vector<8x128xf32>
      %189 = vector.broadcast %161 : vector<1x128xf32> to vector<8x128xf32>
      %190 = arith.mulf %188, %189 : vector<8x128xf32>
      %cst_80 = arith.constant dense<0.000000e+00> : vector<8xf32>
      %191 = vector.multi_reduction <add>, %190, %cst_80 [1] : vector<8x128xf32> to vector<8xf32>
      %192 = vector.shape_cast %191 : vector<8xf32> to vector<8x1xf32>
      %193 = vector.extract_strided_slice %160 {offsets = [3, 0], sizes = [1, 128], strides = [1, 1]} : vector<4x128xf32> to vector<1x128xf32>
      %194 = vector.broadcast %193 : vector<1x128xf32> to vector<8x128xf32>
      %195 = arith.mulf %188, %194 : vector<8x128xf32>
      %cst_81 = arith.constant dense<0.000000e+00> : vector<8xf32>
      %196 = vector.multi_reduction <add>, %195, %cst_81 [1] : vector<8x128xf32> to vector<8xf32>
      %197 = vector.shape_cast %196 : vector<8xf32> to vector<8x1xf32>
      %198 = arith.addf %186, %197 : vector<8x1xf32>
      %199 = arith.addf %168, %198 : vector<8x1xf32>
      %cst_82 = arith.constant 0.000000e+00 : f32
      %200 = vector.broadcast %cst_82 : f32 to vector<8x1xf32>
      %201 = arith.cmpf ogt, %199, %200 : vector<8x1xf32>
      %cst_83 = arith.constant 2.000000e-01 : f32
      %202 = vector.broadcast %cst_83 : f32 to vector<8x1xf32>
      %203 = arith.mulf %202, %199 : vector<8x1xf32>
      %204 = arith.select %201, %199, %203 : vector<8x1xi1>, vector<8x1xf32>
      %205 = arith.addf %180, %198 : vector<8x1xf32>
      %cst_84 = arith.constant 0.000000e+00 : f32
      %206 = vector.broadcast %cst_84 : f32 to vector<8x1xf32>
      %207 = arith.cmpf ogt, %205, %206 : vector<8x1xf32>
      %cst_85 = arith.constant 2.000000e-01 : f32
      %208 = vector.broadcast %cst_85 : f32 to vector<8x1xf32>
      %209 = arith.mulf %208, %205 : vector<8x1xf32>
      %210 = arith.select %207, %205, %209 : vector<8x1xi1>, vector<8x1xf32>
      %211 = arith.addf %192, %198 : vector<8x1xf32>
      %cst_86 = arith.constant 0.000000e+00 : f32
      %212 = vector.broadcast %cst_86 : f32 to vector<8x1xf32>
      %213 = arith.cmpf ogt, %211, %212 : vector<8x1xf32>
      %cst_87 = arith.constant 2.000000e-01 : f32
      %214 = vector.broadcast %cst_87 : f32 to vector<8x1xf32>
      %215 = arith.mulf %214, %211 : vector<8x1xf32>
      %216 = arith.select %213, %211, %215 : vector<8x1xi1>, vector<8x1xf32>
      %217 = arith.maximumf %204, %210 : vector<8x1xf32>
      %218 = arith.maximumf %217, %216 : vector<8x1xf32>
      %219 = arith.subf %204, %218 : vector<8x1xf32>
      %220 = math.exp %219 : vector<8x1xf32>
      %221 = arith.subf %210, %218 : vector<8x1xf32>
      %222 = math.exp %221 : vector<8x1xf32>
      %223 = arith.subf %216, %218 : vector<8x1xf32>
      %224 = math.exp %223 : vector<8x1xf32>
      %225 = arith.addf %220, %222 : vector<8x1xf32>
      %226 = arith.addf %225, %224 : vector<8x1xf32>
      %cst_88 = arith.constant 1.000000e+00 : f32
      %227 = vector.broadcast %cst_88 : f32 to vector<8x1xf32>
      %228 = arith.divf %227, %226 : vector<8x1xf32>
      %cst_89 = arith.constant 0.000000e+00 : f32
      %229 = vector.broadcast %cst_89 : f32 to vector<8x128xf32>
      %230 = arith.mulf %220, %228 : vector<8x1xf32>
      %c0_90 = arith.constant 0 : index
      %c0_91 = arith.constant 0 : index
      %c0_92 = arith.constant 0 : index
      %231 = vector.load %arg15[%c0_90, %c0_91, %c0_92] : memref<3x8x128xf32, #tpu.memory_space<vmem>>, vector<1x8x128xf32>
      %232 = vector.shape_cast %231 : vector<1x8x128xf32> to vector<8x128xf32>
      %233 = vector.broadcast %230 : vector<8x1xf32> to vector<8x128xf32>
      %234 = arith.mulf %233, %232 : vector<8x128xf32>
      %235 = arith.addf %229, %234 : vector<8x128xf32>
      %236 = arith.mulf %222, %228 : vector<8x1xf32>
      %c1_93 = arith.constant 1 : index
      %c0_94 = arith.constant 0 : index
      %c0_95 = arith.constant 0 : index
      %237 = vector.load %arg15[%c1_93, %c0_94, %c0_95] : memref<3x8x128xf32, #tpu.memory_space<vmem>>, vector<1x8x128xf32>
      %238 = vector.shape_cast %237 : vector<1x8x128xf32> to vector<8x128xf32>
      %239 = vector.broadcast %236 : vector<8x1xf32> to vector<8x128xf32>
      %240 = arith.mulf %239, %238 : vector<8x128xf32>
      %241 = arith.addf %235, %240 : vector<8x128xf32>
      %242 = arith.mulf %224, %228 : vector<8x1xf32>
      %c2_96 = arith.constant 2 : index
      %c0_97 = arith.constant 0 : index
      %c0_98 = arith.constant 0 : index
      %243 = vector.load %arg15[%c2_96, %c0_97, %c0_98] : memref<3x8x128xf32, #tpu.memory_space<vmem>>, vector<1x8x128xf32>
      %244 = vector.shape_cast %243 : vector<1x8x128xf32> to vector<8x128xf32>
      %245 = vector.broadcast %242 : vector<8x1xf32> to vector<8x128xf32>
      %246 = arith.mulf %245, %244 : vector<8x128xf32>
      %247 = arith.addf %241, %246 : vector<8x128xf32>
      %c0_99 = arith.constant 0 : index
      %c0_100 = arith.constant 0 : index
      %248 = vector.load %arg12[%c0_99, %c0_100] : memref<128x128xf32, #tpu.memory_space<vmem>>, vector<128x128xf32>
      %cst_101 = arith.constant dense<0.000000e+00> : vector<8x128xf32>
      %249 = tpu.matmul %247, %248, %cst_101 {dimension_numbers = #tpu.dot_dimension_numbers<[1], [0], [0], [1], [0, 0, 1, 1], [], []>} : vector<8x128xf32>, vector<128x128xf32>, vector<8x128xf32> -> vector<8x128xf32>
      %c0_102 = arith.constant 0 : index
      %c0_103 = arith.constant 0 : index
      %250 = vector.load %arg13[%c0_102, %c0_103] : memref<1x128xf32, #tpu.memory_space<vmem>>, vector<1x128xf32>
      %251 = vector.broadcast %250 : vector<1x128xf32> to vector<8x128xf32>
      %252 = arith.addf %249, %251 : vector<8x128xf32>
      %c0_104 = arith.constant 0 : index
      %c0_105 = arith.constant 0 : index
      %253 = vector.load %arg14[%c0_104, %c0_105] : memref<8x128xf32, #tpu.memory_space<vmem>>, vector<8x128xf32>
      tpu.vector_store %arg14[%c0_104, %c0_105], %252 {strides = array<i32>} : memref<8x128xf32, #tpu.memory_space<vmem>>, vector<8x128xf32>,
    } else {
    }
    return
  }
  func.func @transform_0(%arg0: i32, %arg1: i32) -> (i32, i32, i32, i32) {
    %c0_i32 = arith.constant 0 : i32
    %c0_i32_0 = arith.constant 0 : i32
    %c0_i32_1 = arith.constant 0 : i32
    return %arg1, %arg0, %c0_i32, %c0_i32_0 : i32, i32, i32, i32
  }
  func.func @transform_1(%arg0: i32, %arg1: i32) -> (i32, i32, i32) {
    %c0_i32 = arith.constant 0 : i32
    %c0_i32_0 = arith.constant 0 : i32
    %c0_i32_1 = arith.constant 0 : i32
    return %c0_i32, %arg0, %c0_i32_0 : i32, i32, i32
  }
  func.func @transform_2(%arg0: i32, %arg1: i32) -> (i32, i32, i32) {
    %c0_i32 = arith.constant 0 : i32
    %c0_i32_0 = arith.constant 0 : i32
    %c0_i32_1 = arith.constant 0 : i32
    return %c0_i32, %arg0, %c0_i32_0 : i32, i32, i32
  }
  func.func @transform_3(%arg0: i32, %arg1: i32) -> (i32, i32, i32, i32) {
    %c0_i32 = arith.constant 0 : i32
    %c0_i32_0 = arith.constant 0 : i32
    %c0_i32_1 = arith.constant 0 : i32
    return %arg1, %arg0, %c0_i32, %c0_i32_0 : i32, i32, i32, i32
  }
  func.func @transform_4(%arg0: i32, %arg1: i32) -> (i32, i32, i32) {
    %c0_i32 = arith.constant 0 : i32
    %c0_i32_0 = arith.constant 0 : i32
    %c0_i32_1 = arith.constant 0 : i32
    return %arg0, %c0_i32, %c0_i32_0 : i32, i32, i32
  }
  func.func @transform_5(%arg0: i32, %arg1: i32) -> (i32, i32) {
    %c0_i32 = arith.constant 0 : i32
    %c0_i32_0 = arith.constant 0 : i32
    %c0_i32_1 = arith.constant 0 : i32
    return %c0_i32, %c0_i32_0 : i32, i32
  }
  func.func @transform_6(%arg0: i32, %arg1: i32) -> (i32, i32) {
    %c0_i32 = arith.constant 0 : i32
    %c0_i32_0 = arith.constant 0 : i32
    %c0_i32_1 = arith.constant 0 : i32
    return %c0_i32, %c0_i32_0 : i32, i32
  }
  func.func @transform_7(%arg0: i32, %arg1: i32) -> (i32, i32) {
    %c0_i32 = arith.constant 0 : i32
    %c0_i32_0 = arith.constant 0 : i32
    %c0_i32_1 = arith.constant 0 : i32
    return %c0_i32, %c0_i32_0 : i32, i32
  }
  func.func @transform_8(%arg0: i32, %arg1: i32) -> (i32, i32) {
    %c0_i32 = arith.constant 0 : i32
    %c0_i32_0 = arith.constant 0 : i32
    %c0_i32_1 = arith.constant 0 : i32
    return %c0_i32, %c0_i32_0 : i32, i32
  }
  func.func @transform_9(%arg0: i32, %arg1: i32) -> (i32, i32) {
    %c0_i32 = arith.constant 0 : i32
    %c0_i32_0 = arith.constant 0 : i32
    %c0_i32_1 = arith.constant 0 : i32
    return %c0_i32, %c0_i32_0 : i32, i32
  }
  func.func @transform_10(%arg0: i32, %arg1: i32) -> (i32, i32) {
    %c0_i32 = arith.constant 0 : i32
    %c0_i32_0 = arith.constant 0 : i32
    %c0_i32_1 = arith.constant 0 : i32
    return %c0_i32, %c0_i32_0 : i32, i32
  }
  func.func @transform_11(%arg0: i32, %arg1: i32) -> (i32, i32) {
    %c0_i32 = arith.constant 0 : i32
    %c0_i32_0 = arith.constant 0 : i32
    %c0_i32_1 = arith.constant 0 : i32
    return %c0_i32, %c0_i32_0 : i32, i32
  }
  func.func @transform_12(%arg0: i32, %arg1: i32) -> (i32, i32) {
    %c0_i32 = arith.constant 0 : i32
    %c0_i32_0 = arith.constant 0 : i32
    return %arg0, %c0_i32 : i32, i32
  }
}

</mosaic_0001>

<llo_original>
// kernel: tran_hgat_forward.2
$region0: #{tran_hgat_forward.2}
  #allocation0 [shape = 'u32[]', space=smem, size = 0x4, offset = 0x4, fixed_abs, tag = 'smem constant byte address 0x4 - core index']
  #allocation1 [shape = 'u32[144,128]{1,0:T(1,128)}', space=vmem, size = 0x12000, scoped, tag = 'internal scratch']
  %s0 = inlined_call_operand.vmem [shape: f32[3,8,16,128], index: 0, kind: input, shape index: {}]
  %s1 = inlined_call_operand.vmem [shape: f32[3,128,128], index: 1, kind: input, shape index: {}]
  %s2 = inlined_call_operand.vmem [shape: f32[3,8,128], index: 2, kind: output, shape index: {0}]
  %s3 = inlined_call_operand.vmem [shape: f32[3,8,16], index: 3, kind: output, shape index: {1}]
  %4 = xla_tuple %s2, %s3
  %s5 = sld [smem:[#allocation0]]
  $region49: #{tran_hgat_forward.2} parent=0
    _
  %s7 = ssub.s32 1, %s5
  %s8 = scalar_select 0, %s7, %s5
  loop: start=0, step=1, limit=5
  $region2: #{tran_hgat_forward.2} parent=0 // loop_pre_header
    _
  $region3: #{tran_hgat_forward.2} parent=0 // loop_header
    %s10 = sphi 0, %s14
    %p11 = scmp.ge.s32.totalorder %s10, 5
    %s17 = sphi 0, %s29
    %s18 = sphi 0, %s25
    %s19 = sphi 0, %s17
    %s20 = sphi 0, %s18
    %s21 = sphi 0, %s19
    %s22 = sphi 0, %s20
    %s34 = sphi 0, %s36
    %s37 = sphi 0, %s34
    %s38 = sphi 0, %s37
    %s54 = sphi 0, %s38
    %s60 = sphi 0, %s62
    %s63 = sphi 0, %s60
    %s64 = sphi 0, %s63
    %s80 = sphi 0, %s64
    %s88 = sphi 0, %s90
    %s91 = sphi 0, %s88
    %s92 = sphi 0, %s91
    %s108 = sphi 0, %s92
    %s116 = sphi 0, %s118
    %s119 = sphi 0, %s116
    %s120 = sphi 0, %s119
    %s136 = sphi 0, %s120
  $region4: #{tran_hgat_forward.2} parent=0 // loop_header_branch
    %13 = sbr.rel (%p11) target = $region8
  $region5: #{tran_hgat_forward.2} parent=0 // loop_body
    %s15 = ssub.s32 %s10, 1
    %s16 = ssub.s32 %s10, 2
    %s23 = sadd.s32 1, %s18
    %p24 = scmp.ge.s32.totalorder %s23, 1
    %s25 = scalar_select %p24, 0, %s23
    %s26 = sadd.s32 1, %s17
    %s27 = scalar_select %p24, %s26, %s17
    %p28 = scmp.ge.s32.totalorder %s27, 3
    %s29 = scalar_select %p28, 0, %s27
    %s30 = ssub.s32 %s17, %s29
    %s31 = ssub.s32 %s18, %s25
    %s32 = sor.u32 %s30, %s31
    %p33 = scmp.eq.s32.totalorder %s32, 0
    %s35 = sadd.s32 %s34, 1
    %s36 = scalar_select %p33, %s34, %s35
    %p39 = pneg %p33
    %p40 = scmp.eq.s32.totalorder %s10, 2
    %p41 = por %p39, %p40
    %p42 = scmp.ne.s32.totalorder %s34, %s37
    %p43 = scmp.eq.s32.totalorder %s10, 0
    %p44 = por %p42, %p43
    %p45 = scmp.ne.s32.totalorder %s34, %s37
    %p46 = scmp.eq.s32.totalorder %s15, 2
    %p47 = por %p45, %p46
    %p48 = scmp.ne.s32.totalorder %s37, %s38
    %p49 = scmp.eq.s32.totalorder %s15, 0
    %p50 = por %p48, %p49
    %p51 = scmp.ne.s32.totalorder %s37, %s38
    %p52 = scmp.eq.s32.totalorder %s16, 2
    %p53 = por %p51, %p52
    %p55 = scmp.ne.s32.totalorder %s38, %s54
    %p56 = scmp.eq.s32.totalorder %s16, 0
    %p57 = por %p55, %p56
    %s58 = ssub.s32 %s17, %s29
    %p59 = scmp.eq.s32.totalorder %s58, 0
    %s61 = sadd.s32 %s60, 1
    %s62 = scalar_select %p59, %s60, %s61
    %p65 = pneg %p59
    %p66 = scmp.eq.s32.totalorder %s10, 2
    %p67 = por %p65, %p66
    %p68 = scmp.ne.s32.totalorder %s60, %s63
    %p69 = scmp.eq.s32.totalorder %s10, 0
    %p70 = por %p68, %p69
    %p71 = scmp.ne.s32.totalorder %s60, %s63
    %p72 = scmp.eq.s32.totalorder %s15, 2
    %p73 = por %p71, %p72
    %p74 = scmp.ne.s32.totalorder %s63, %s64
    %p75 = scmp.eq.s32.totalorder %s15, 0
    %p76 = por %p74, %p75
    %p77 = scmp.ne.s32.totalorder %s63, %s64
    %p78 = scmp.eq.s32.totalorder %s16, 2
    %p79 = por %p77, %p78
    %p81 = scmp.ne.s32.totalorder %s64, %s80
    %p82 = scmp.eq.s32.totalorder %s16, 0
    %p83 = por %p81, %p82
    %s84 = ssub.s32 %s17, %s29
    %s85 = ssub.s32 %s18, %s25
    %s86 = sor.u32 %s84, %s85
    %p87 = scmp.eq.s32.totalorder %s86, 0
    %s89 = sadd.s32 %s88, 1
    %s90 = scalar_select %p87, %s88, %s89
    %p93 = pneg %p87
    %p94 = scmp.eq.s32.totalorder %s10, 2
    %p95 = por %p93, %p94
    %p96 = scmp.ne.s32.totalorder %s88, %s91
    %p97 = scmp.eq.s32.totalorder %s10, 0
    %p98 = por %p96, %p97
    %p99 = scmp.ne.s32.totalorder %s88, %s91
    %p100 = scmp.eq.s32.totalorder %s15, 2
    %p101 = por %p99, %p100
    %p102 = scmp.ne.s32.totalorder %s91, %s92
    %p103 = scmp.eq.s32.totalorder %s15, 0
    %p104 = por %p102, %p103
    %p105 = scmp.ne.s32.totalorder %s91, %s92
    %p106 = scmp.eq.s32.totalorder %s16, 2
    %p107 = por %p105, %p106
    %p109 = scmp.ne.s32.totalorder %s92, %s108
    %p110 = scmp.eq.s32.totalorder %s16, 0
    %p111 = por %p109, %p110
    %s112 = ssub.s32 %s17, %s29
    %s113 = ssub.s32 %s18, %s25
    %s114 = sor.u32 %s112, %s113
    %p115 = scmp.eq.s32.totalorder %s114, 0
    %s117 = sadd.s32 %s116, 1
    %s118 = scalar_select %p115, %s116, %s117
    %p121 = pneg %p115
    %p122 = scmp.eq.s32.totalorder %s10, 2
    %p123 = por %p121, %p122
    %p124 = scmp.ne.s32.totalorder %s116, %s119
    %p125 = scmp.eq.s32.totalorder %s10, 0
    %p126 = por %p124, %p125
    %p127 = scmp.ne.s32.totalorder %s116, %s119
    %p128 = scmp.eq.s32.totalorder %s15, 2
    %p129 = por %p127, %p128
    %p130 = scmp.ne.s32.totalorder %s119, %s120
    %p131 = scmp.eq.s32.totalorder %s15, 0
    %p132 = por %p130, %p131
    %p133 = scmp.ne.s32.totalorder %s119, %s120
    %p134 = scmp.eq.s32.totalorder %s16, 2
    %p135 = por %p133, %p134
    %p137 = scmp.ne.s32.totalorder %s120, %s136
    %p138 = scmp.eq.s32.totalorder %s16, 0
    %p139 = por %p137, %p138
    %p140 = scmp.le.s32.totalorder 1, %s10
    %p141 = scmp.lt.s32.totalorder %s10, 4
    %p142 = pnand %p140, %p141
    %p143 = pneg %p142
    // Predicated region
    $region9: #{tran_hgat_forward.2} parent=5 // pred_check
      _
    $region10: #{tran_hgat_forward.2} parent=5 // pred_check_branch
      %145 = sbr.rel (%p142) target = $region12
    $region11: #{tran_hgat_forward.2} parent=5 // pred_region
      %s146 = ssub.s32 %s10, 1
    $region12: #{tran_hgat_forward.2} parent=5 // pred_fallthru
      _
    %p147 = scmp.lt.s32.totalorder %s10, 3
    // Predicated region
    $region13: #{tran_hgat_forward.2} parent=5 // pred_check
      %p148 = pneg %p147
    $region14: #{tran_hgat_forward.2} parent=5 // pred_check_branch
      %150 = sbr.rel (%p148) target = $region16
    $region15: #{tran_hgat_forward.2} parent=5 // pred_region
      // Predicated region
      $region17: #{tran_hgat_forward.2} parent=15 // pred_check
        %p151 = pneg %p44
      $region18: #{tran_hgat_forward.2} parent=15 // pred_check_branch
        %153 = sbr.rel (%p151) target = $region20
      $region19: #{tran_hgat_forward.2} parent=15 // pred_region
        %s154 = smul.u32 8, %s18
        %p155 = scmp.lt.s32.totalorder %s17, 2
        %s156 = scalar_select %p155, %s17, 2
        %p157 = scmp.lt.s32.totalorder %s154, 7
        %s158 = scalar_select %p157, %s154, 7
        %s159 = smul.addr %s158, 2
        %s160 = smul.addr %s156, 16
        %s161 = sadd.s32 %s159, %s160
        %s162 = smul.addr %s161, 8
        %s163 = scalar_lea.vmem %s0, %s162
        %s164 = smul.u32 8, %s18
      $region20: #{tran_hgat_forward.2} parent=15 // pred_fallthru
        _
      // Predicated region
      $region21: #{tran_hgat_forward.2} parent=15 // pred_check
        %p165 = pneg %p70
      $region22: #{tran_hgat_forward.2} parent=15 // pred_check_branch
        %167 = sbr.rel (%p165) target = $region24
      $region23: #{tran_hgat_forward.2} parent=15 // pred_region
        %p168 = scmp.lt.s32.totalorder %s17, 2
        %s169 = scalar_select %p168, %s17, 2
        %s170 = smul.addr %s169, 16
        %s171 = smul.addr %s170, 8
        %s172 = scalar_lea.vmem %s1, %s171
      $region24: #{tran_hgat_forward.2} parent=15 // pred_fallthru
        _
    $region16: #{tran_hgat_forward.2} parent=5 // pred_fallthru
      _
    %p173 = scmp.le.s32.totalorder 1, %s10
    %p174 = scmp.lt.s32.totalorder %s10, 4
    %p175 = pnand %p173, %p174
    %p176 = pneg %p175
    // Predicated region
    $region25: #{tran_hgat_forward.2} parent=5 // pred_check
      _
    $region26: #{tran_hgat_forward.2} parent=5 // pred_check_branch
      %178 = sbr.rel (%p175) target = $region28
    $region27: #{tran_hgat_forward.2} parent=5 // pred_region
      %s179 = ssub.s32 %s10, 1
      %s180 = smul.u32 8, %s20
      %p181 = scmp.lt.s32.totalorder %s19, 2
      %s182 = scalar_select %p181, %s19, 2
      %p183 = scmp.lt.s32.totalorder %s180, 7
      %s184 = scalar_select %p183, %s180, 7
      %s185 = smul.addr %s184, 2
      %s186 = smul.addr %s182, 16
      %s187 = sadd.s32 %s185, %s186
      %s188 = smul.addr %s187, 8
      %s189 = scalar_lea.vmem %s0, %s188
      %p190 = pneg %p50
      %p191 = pneg %p47
      %p192 = scmp.lt.s32.totalorder %s19, 2
      %s193 = scalar_select %p192, %s19, 2
      %s194 = smul.addr %s193, 16
      %s195 = smul.addr %s194, 8
      %s196 = scalar_lea.vmem %s1, %s195
      %p197 = pneg %p76
      %p198 = pneg %p73
      %p199 = pneg %p104
      %p200 = pneg %p101
      %p201 = scmp.lt.s32.totalorder %s19, 2
      %s202 = scalar_select %p201, %s19, 2
      %p203 = scmp.lt.s32.totalorder %s20, 0
      %s204 = scalar_select %p203, %s20, 0
      %s205 = sadd.s32 %s204, %s202
      %s206 = smul.addr %s205, 8
      %s207 = scalar_lea.vmem %s2, %s206
      %p208 = pneg %p132
      %p209 = pneg %p129
      %p210 = scmp.lt.s32.totalorder %s19, 2
      %s211 = scalar_select %p210, %s19, 2
      %p212 = scmp.lt.s32.totalorder %s20, 0
      %s213 = scalar_select %p212, %s20, 0
      %s214 = sadd.s32 %s213, %s211
      %s215 = smul.addr %s214, 8
      %s216 = scalar_lea.vmem %s3, %s215
      %s217 = smul.u32 8, %s20
      %p218 = scmp.lt.s32.totalorder %s19, 2
      %s219 = scalar_select %p218, %s19, 2
      %p220 = scmp.lt.s32.totalorder %s217, 7
      %s221 = scalar_select %p220, %s217, 7
      %s222 = smul.addr %s221, 2
      %s223 = smul.addr %s219, 16
      %s224 = sadd.s32 %s222, %s223
      %s225 = smul.addr %s224, 8
      %s226 = scalar_lea.vmem %s0, %s225
      %s227 = smul.u32 8, %s20
      %p228 = scmp.lt.s32.totalorder %s19, 2
      %s229 = scalar_select %p228, %s19, 2
      %s230 = smul.addr %s229, 16
      %s231 = smul.addr %s230, 8
      %s232 = scalar_lea.vmem %s1, %s231
      %p233 = scmp.lt.s32.totalorder %s19, 2
      %s234 = scalar_select %p233, %s19, 2
      %p235 = scmp.lt.s32.totalorder %s20, 0
      %s236 = scalar_select %p235, %s20, 0
      %s237 = sadd.s32 %s236, %s234
      %s238 = smul.addr %s237, 8
      %s239 = scalar_lea.vmem %s2, %s238
      %p240 = scmp.lt.s32.totalorder %s19, 2
      %s241 = scalar_select %p240, %s19, 2
      %p242 = scmp.lt.s32.totalorder %s20, 0
      %s243 = scalar_select %p242, %s20, 0
      %s244 = sadd.s32 %s243, %s241
      %s245 = smul.addr %s244, 8
      %s246 = scalar_lea.vmem %s3, %s245
      %v247 = vld [vmem:[%s226] sm:$0xff]
      %v248 = vld [vmem:[%s226 + $0x8] sm:$0xff]
      %v249 = vld [vmem:[%s226 + $0x10] sm:$0xff]
      %v250 = vld [vmem:[%s226 + $0x18] sm:$0xff]
      %v251 = vld [vmem:[%s226 + $0x20] sm:$0xff]
      %v252 = vld [vmem:[%s226 + $0x28] sm:$0xff]
      %v253 = vld [vmem:[%s226 + $0x30] sm:$0xff]
      %v254 = vld [vmem:[%s226 + $0x38] sm:$0xff]
      %v255 = vld [vmem:[%s226 + $0x40] sm:$0xff]
      %v256 = vld [vmem:[%s226 + $0x48] sm:$0xff]
      %v257 = vld [vmem:[%s226 + $0x50] sm:$0xff]
      %v258 = vld [vmem:[%s226 + $0x58] sm:$0xff]
      %v259 = vld [vmem:[%s226 + $0x60] sm:$0xff]
      %v260 = vld [vmem:[%s226 + $0x68] sm:$0xff]
      %v261 = vld [vmem:[%s226 + $0x70] sm:$0xff]
      %v262 = vld [vmem:[%s226 + $0x78] sm:$0xff]
      %v263 = vld [vmem:[%s232] sm:$0xff]
      %v264 = vld [vmem:[%s232 + $0x8] sm:$0xff]
      %v265 = vld [vmem:[%s232 + $0x10] sm:$0xff]
      %v266 = vld [vmem:[%s232 + $0x18] sm:$0xff]
      %v267 = vld [vmem:[%s232 + $0x20] sm:$0xff]
      %v268 = vld [vmem:[%s232 + $0x28] sm:$0xff]
      %v269 = vld [vmem:[%s232 + $0x30] sm:$0xff]
      %v270 = vld [vmem:[%s232 + $0x38] sm:$0xff]
      %v271 = vld [vmem:[%s232 + $0x40] sm:$0xff]
      %v272 = vld [vmem:[%s232 + $0x48] sm:$0xff]
      %v273 = vld [vmem:[%s232 + $0x50] sm:$0xff]
      %v274 = vld [vmem:[%s232 + $0x58] sm:$0xff]
      %v275 = vld [vmem:[%s232 + $0x60] sm:$0xff]
      %v276 = vld [vmem:[%s232 + $0x68] sm:$0xff]
      %v277 = vld [vmem:[%s232 + $0x70] sm:$0xff]
      %v278 = vld [vmem:[%s232 + $0x78] sm:$0xff]
      %279 = vmatprep.subr.mxu0 0.0
      %280 = vmatpush1.msra.mxu0 %v263
      %281 = vmatprep.subr.mxu0 0.0
      %282 = vmatpush1.msra.mxu0 %v264
      %283 = vmatprep.subr.mxu0 0.0
      %284 = vmatpush1.msra.mxu0 %v265
      %285 = vmatprep.subr.mxu0 0.0
      %286 = vmatpush1.msra.mxu0 %v266
      %287 = vmatprep.subr.mxu0 0.0
      %288 = vmatpush1.msra.mxu0 %v267
      %289 = vmatprep.subr.mxu0 0.0
      %290 = vmatpush1.msra.mxu0 %v268
      %291 = vmatprep.subr.mxu0 0.0
      %292 = vmatpush1.msra.mxu0 %v269
      %293 = vmatprep.subr.mxu0 0.0
      %294 = vmatpush1.msra.mxu0 %v270
      %295 = vmatprep.subr.mxu0 0.0
      %296 = vmatpush1.msra.mxu0 %v271
      %297 = vmatprep.subr.mxu0 0.0
      %298 = vmatpush1.msra.mxu0 %v272
      %299 = vmatprep.subr.mxu0 0.0
      %300 = vmatpush1.msra.mxu0 %v273
      %301 = vmatprep.subr.mxu0 0.0
      %302 = vmatpush1.msra.mxu0 %v274
      %303 = vmatprep.subr.mxu0 0.0
      %304 = vmatpush1.msra.mxu0 %v275
      %305 = vmatprep.subr.mxu0 0.0
      %306 = vmatpush1.msra.mxu0 %v276
      %307 = vmatprep.subr.mxu0 0.0
      %308 = vmatpush1.msra.mxu0 %v277
      %309 = vmatprep.subr.mxu0 0.0
      %310 = vmatpush1.msra.mxu0 %v278
      %311 = vmatprep.subr.mxu0 0.0
      %312 = vmatpush1.msra.mxu0 0.0
      %313 = vmatprep.subr.mxu0 0.0
      %314 = vmatpush1.msra.mxu0 0.0
      %315 = vmatprep.subr.mxu0 0.0
      %316 = vmatpush1.msra.mxu0 0.0
      %317 = vmatprep.subr.mxu0 0.0
      %318 = vmatpush1.msra.mxu0 0.0
      %319 = vmatprep.subr.mxu0 0.0
      %320 = vmatpush1.msra.mxu0 0.0
      %321 = vmatprep.subr.mxu0 0.0
      %322 = vmatpush1.msra.mxu0 0.0
      %323 = vmatprep.subr.mxu0 0.0
      %324 = vmatpush1.msra.mxu0 0.0
      %325 = vmatprep.subr.mxu0 0.0
      %326 = vmatpush1.msra.mxu0 0.0
      %327 = vmatprep.subr.mxu0 0.0
      %328 = vmatpush1.msra.mxu0 0.0
      %329 = vmatprep.subr.mxu0 0.0
      %330 = vmatpush1.msra.mxu0 0.0
      %331 = vmatprep.subr.mxu0 0.0
      %332 = vmatpush1.msra.mxu0 0.0
      %333 = vmatprep.subr.mxu0 0.0
      %334 = vmatpush1.msra.mxu0 0.0
      %335 = vmatprep.subr.mxu0 0.0
      %336 = vmatpush1.msra.mxu0 0.0
      %337 = vmatprep.subr.mxu0 0.0
      %338 = vmatpush1.msra.mxu0 0.0
      %339 = vmatprep.subr.mxu0 0.0
      %340 = vmatpush1.msra.mxu0 0.0
      %341 = vmatprep.subr.mxu0 0.0
      %342 = vmatpush1.msra.mxu0 0.0
      %343 = vmatprep.mubr.f32.mxu0 0.0
      %344 = vmatmul.mubr.f32.gmra.mrb[0].mxu0 %v247
      %v345 = vpop.f32.mrb[0].mxu0
      %v346 = vadd.f32 0.0, %v345
      %v347 = vpop.f32.mrb[0].mxu0
      %348 = vmatprep.mubr.f32.mxu0 0.0
      %349 = vmatmul.mubr.f32.gmra.mrb[0].mxu0 %v248
      %v350 = vpop.f32.mrb[0].mxu0
      %v351 = vadd.f32 0.0, %v350
      %v352 = vpop.f32.mrb[0].mxu0
      %353 = vmatprep.mubr.f32.mxu0 0.0
      %354 = vmatmul.mubr.f32.gmra.mrb[0].mxu0 %v249
      %v355 = vpop.f32.mrb[0].mxu0
      %v356 = vadd.f32 0.0, %v355
      %v357 = vpop.f32.mrb[0].mxu0
      %358 = vmatprep.mubr.f32.mxu0 0.0
      %359 = vmatmul.mubr.f32.gmra.mrb[0].mxu0 %v250
      %v360 = vpop.f32.mrb[0].mxu0
      %v361 = vadd.f32 0.0, %v360
      %v362 = vpop.f32.mrb[0].mxu0
      %363 = vmatprep.mubr.f32.mxu0 0.0
      %364 = vmatmul.mubr.f32.gmra.mrb[0].mxu0 %v251
      %v365 = vpop.f32.mrb[0].mxu0
      %v366 = vadd.f32 0.0, %v365
      %v367 = vpop.f32.mrb[0].mxu0
      %368 = vmatprep.mubr.f32.mxu0 0.0
      %369 = vmatmul.mubr.f32.gmra.mrb[0].mxu0 %v252
      %v370 = vpop.f32.mrb[0].mxu0
      %v371 = vadd.f32 0.0, %v370
      %v372 = vpop.f32.mrb[0].mxu0
      %373 = vmatprep.mubr.f32.mxu0 0.0
      %374 = vmatmul.mubr.f32.gmra.mrb[0].mxu0 %v253
      %v375 = vpop.f32.mrb[0].mxu0
      %v376 = vadd.f32 0.0, %v375
      %v377 = vpop.f32.mrb[0].mxu0
      %378 = vmatprep.mubr.f32.mxu0 0.0
      %379 = vmatmul.mubr.f32.gmra.mrb[0].mxu0 %v254
      %v380 = vpop.f32.mrb[0].mxu0
      %v381 = vadd.f32 0.0, %v380
      %v382 = vpop.f32.mrb[0].mxu0
      %383 = vmatprep.mubr.f32.mxu0 0.0
      %384 = vmatmul.mubr.f32.gmra.mrb[0].mxu0 %v255
      %v385 = vpop.f32.mrb[0].mxu0
      %v386 = vadd.f32 0.0, %v385
      %v387 = vpop.f32.mrb[0].mxu0
      %388 = vmatprep.mubr.f32.mxu0 0.0
      %389 = vmatmul.mubr.f32.gmra.mrb[0].mxu0 %v256
      %v390 = vpop.f32.mrb[0].mxu0
      %v391 = vadd.f32 0.0, %v390
      %v392 = vpop.f32.mrb[0].mxu0
      %393 = vmatprep.mubr.f32.mxu0 0.0
      %394 = vmatmul.mubr.f32.gmra.mrb[0].mxu0 %v257
      %v395 = vpop.f32.mrb[0].mxu0
      %v396 = vadd.f32 0.0, %v395
      %v397 = vpop.f32.mrb[0].mxu0
      %398 = vmatprep.mubr.f32.mxu0 0.0
      %399 = vmatmul.mubr.f32.gmra.mrb[0].mxu0 %v258
      %v400 = vpop.f32.mrb[0].mxu0
      %v401 = vadd.f32 0.0, %v400
      %v402 = vpop.f32.mrb[0].mxu0
      %403 = vmatprep.mubr.f32.mxu0 0.0
      %404 = vmatmul.mubr.f32.gmra.mrb[0].mxu0 %v259
      %v405 = vpop.f32.mrb[0].mxu0
      %v406 = vadd.f32 0.0, %v405
      %v407 = vpop.f32.mrb[0].mxu0
      %408 = vmatprep.mubr.f32.mxu0 0.0
      %409 = vmatmul.mubr.f32.gmra.mrb[0].mxu0 %v260
      %v410 = vpop.f32.mrb[0].mxu0
      %v411 = vadd.f32 0.0, %v410
      %v412 = vpop.f32.mrb[0].mxu0
      %413 = vmatprep.mubr.f32.mxu0 0.0
      %414 = vmatmul.mubr.f32.gmra.mrb[0].mxu0 %v261
      %v415 = vpop.f32.mrb[0].mxu0
      %v416 = vadd.f32 0.0, %v415
      %v417 = vpop.f32.mrb[0].mxu0
      %418 = vmatprep.mubr.f32.mxu0 0.0
      %419 = vmatmul.mubr.f32.gmra.mrb[0].mxu0 %v262
      %v420 = vpop.f32.mrb[0].mxu0
      %v421 = vadd.f32 0.0, %v420
      %v422 = vpop.f32.mrb[0].mxu0
      %423 = vdwg.mxu0
      %vm424 = vcmp.gt.f32.partialorder %v346, 0.0
      %vm425 = vcmp.gt.f32.partialorder %v351, 0.0
      %vm426 = vcmp.gt.f32.partialorder %v356, 0.0
      %vm427 = vcmp.gt.f32.partialorder %v361, 0.0
      %vm428 = vcmp.gt.f32.partialorder %v366, 0.0
      %vm429 = vcmp.gt.f32.partialorder %v371, 0.0
      %vm430 = vcmp.gt.f32.partialorder %v376, 0.0
      %vm431 = vcmp.gt.f32.partialorder %v381, 0.0
      %vm432 = vcmp.gt.f32.partialorder %v386, 0.0
      %vm433 = vcmp.gt.f32.partialorder %v391, 0.0
      %vm434 = vcmp.gt.f32.partialorder %v396, 0.0
      %vm435 = vcmp.gt.f32.partialorder %v401, 0.0
      %vm436 = vcmp.gt.f32.partialorder %v406, 0.0
      %vm437 = vcmp.gt.f32.partialorder %v411, 0.0
      %vm438 = vcmp.gt.f32.partialorder %v416, 0.0
      %vm439 = vcmp.gt.f32.partialorder %v421, 0.0
      %v440 = vmul.f32 %v346, 0.2
      %v441 = vmul.f32 %v351, 0.2
      %v442 = vmul.f32 %v356, 0.2
      %v443 = vmul.f32 %v361, 0.2
      %v444 = vmul.f32 %v366, 0.2
      %v445 = vmul.f32 %v371, 0.2
      %v446 = vmul.f32 %v376, 0.2
      %v447 = vmul.f32 %v381, 0.2
      %v448 = vmul.f32 %v386, 0.2
      %v449 = vmul.f32 %v391, 0.2
      %v450 = vmul.f32 %v396, 0.2
      %v451 = vmul.f32 %v401, 0.2
      %v452 = vmul.f32 %v406, 0.2
      %v453 = vmul.f32 %v411, 0.2
      %v454 = vmul.f32 %v416, 0.2
      %v455 = vmul.f32 %v421, 0.2
      %v456 = vsel %vm424, %v346, %v440
      %v457 = vsel %vm425, %v351, %v441
      %v458 = vsel %vm426, %v356, %v442
      %v459 = vsel %vm427, %v361, %v443
      %v460 = vsel %vm428, %v366, %v444
      %v461 = vsel %vm429, %v371, %v445
      %v462 = vsel %vm430, %v376, %v446
      %v463 = vsel %vm431, %v381, %v447
      %v464 = vsel %vm432, %v386, %v448
      %v465 = vsel %vm433, %v391, %v449
      %v466 = vsel %vm434, %v396, %v450
      %v467 = vsel %vm435, %v401, %v451
      %v468 = vsel %vm436, %v406, %v452
      %v469 = vsel %vm437, %v411, %v453
      %v470 = vsel %vm438, %v416, %v454
      %v471 = vsel %vm439, %v421, %v455
      %488 = vset.pattern.permute.xlu0 0
      %489 = vperm.xlu0 %488, %v456
      %v490 = vpop.permute.xlu0 %489
      %491 = vset.pattern.permute.xlu0 0
      %492 = vperm.xlu0 %491, %v457
      %v493 = vpop.permute.xlu0 %492
      %494 = vset.pattern.permute.xlu0 0
      %495 = vperm.xlu0 %494, %v458
      %v496 = vpop.permute.xlu0 %495
      %497 = vset.pattern.permute.xlu0 0
      %498 = vperm.xlu0 %497, %v459
      %v499 = vpop.permute.xlu0 %498
      %500 = vset.pattern.permute.xlu0 0
      %501 = vperm.xlu0 %500, %v460
      %v502 = vpop.permute.xlu0 %501
      %503 = vset.pattern.permute.xlu0 0
      %504 = vperm.xlu0 %503, %v461
      %v505 = vpop.permute.xlu0 %504
      %506 = vset.pattern.permute.xlu0 0
      %507 = vperm.xlu0 %506, %v462
      %v508 = vpop.permute.xlu0 %507
      %509 = vset.pattern.permute.xlu0 0
      %510 = vperm.xlu0 %509, %v463
      %v511 = vpop.permute.xlu0 %510
      %512 = vset.pattern.permute.xlu0 0
      %513 = vperm.xlu0 %512, %v464
      %v514 = vpop.permute.xlu0 %513
      %515 = vset.pattern.permute.xlu0 0
      %516 = vperm.xlu0 %515, %v465
      %v517 = vpop.permute.xlu0 %516
      %518 = vset.pattern.permute.xlu0 0
      %519 = vperm.xlu0 %518, %v466
      %v520 = vpop.permute.xlu0 %519
      %521 = vset.pattern.permute.xlu0 0
      %522 = vperm.xlu0 %521, %v467
      %v523 = vpop.permute.xlu0 %522
      %524 = vset.pattern.permute.xlu0 0
      %525 = vperm.xlu0 %524, %v468
      %v526 = vpop.permute.xlu0 %525
      %527 = vset.pattern.permute.xlu0 0
      %528 = vperm.xlu0 %527, %v469
      %v529 = vpop.permute.xlu0 %528
      %530 = vset.pattern.permute.xlu0 0
      %531 = vperm.xlu0 %530, %v470
      %v532 = vpop.permute.xlu0 %531
      %533 = vset.pattern.permute.xlu0 0
      %534 = vperm.xlu0 %533, %v471
      %v535 = vpop.permute.xlu0 %534
      %v536 = vlaneseq
      %v537 = vand.u32 %v536, 127
      %v538 = vlaneseq
      %v539 = vshrl.u32 %v538, 7
      %v540 = vsub.s32 %v537, %v539
      %v541 = vrot.slane %v490, %v540
      %v542 = vadd.s32 %v537, 4294967288
      %v543 = vlaneseq
      %v544 = vshrl.u32 %v543, 7
      %v545 = vsub.s32 %v542, %v544
      %v546 = vrot.slane %v493, %v545
      %vm547 = vcmask 130112
      %v548 = vsel %vm547, %v546, %v541
      %v549 = vlaneseq
      %v550 = vshrl.u32 %v549, 7
      %v551 = vsub.s32 %v537, %v550
      %v552 = vrot.slane %v496, %v551
      %v553 = vlaneseq
      %v554 = vshrl.u32 %v553, 7
      %v555 = vsub.s32 %v542, %v554
      %v556 = vrot.slane %v499, %v555
      %v557 = vsel %vm547, %v556, %v552
      %v558 = vlaneseq
      %v559 = vshrl.u32 %v558, 7
      %v560 = vsub.s32 %v537, %v559
      %v561 = vrot.slane %v502, %v560
      %v562 = vlaneseq
      %v563 = vshrl.u32 %v562, 7
      %v564 = vsub.s32 %v542, %v563
      %v565 = vrot.slane %v505, %v564
      %v566 = vsel %vm547, %v565, %v561
      %v567 = vlaneseq
      %v568 = vshrl.u32 %v567, 7
      %v569 = vsub.s32 %v537, %v568
      %v570 = vrot.slane %v508, %v569
      %v571 = vlaneseq
      %v572 = vshrl.u32 %v571, 7
      %v573 = vsub.s32 %v542, %v572
      %v574 = vrot.slane %v511, %v573
      %v575 = vsel %vm547, %v574, %v570
      %v576 = vlaneseq
      %v577 = vshrl.u32 %v576, 7
      %v578 = vsub.s32 %v537, %v577
      %v579 = vrot.slane %v514, %v578
      %v580 = vlaneseq
      %v581 = vshrl.u32 %v580, 7
      %v582 = vsub.s32 %v542, %v581
      %v583 = vrot.slane %v517, %v582
      %v584 = vsel %vm547, %v583, %v579
      %v585 = vlaneseq
      %v586 = vshrl.u32 %v585, 7
      %v587 = vsub.s32 %v537, %v586
      %v588 = vrot.slane %v520, %v587
      %v589 = vlaneseq
      %v590 = vshrl.u32 %v589, 7
      %v591 = vsub.s32 %v542, %v590
      %v592 = vrot.slane %v523, %v591
      %v593 = vsel %vm547, %v592, %v588
      %v594 = vlaneseq
      %v595 = vshrl.u32 %v594, 7
      %v596 = vsub.s32 %v537, %v595
      %v597 = vrot.slane %v526, %v596
      %v598 = vlaneseq
      %v599 = vshrl.u32 %v598, 7
      %v600 = vsub.s32 %v542, %v599
      %v601 = vrot.slane %v529, %v600
      %v602 = vsel %vm547, %v601, %v597
      %v603 = vlaneseq
      %v604 = vshrl.u32 %v603, 7
      %v605 = vsub.s32 %v537, %v604
      %v606 = vrot.slane %v532, %v605
      %v607 = vlaneseq
      %v608 = vshrl.u32 %v607, 7
      %v609 = vsub.s32 %v542, %v608
      %v610 = vrot.slane %v535, %v609
      %v611 = vsel %vm547, %v610, %v606
      %vm612 = vcmask 1041409
      %v613 = vsel %vm612, %v557, %v548
      %vm614 = vcmask 1042434
      %v615 = vsel %vm614, %v566, %v613
      %vm616 = vcmask 1043459
      %v617 = vsel %vm616, %v575, %v615
      %vm618 = vcmask 1044484
      %v619 = vsel %vm618, %v584, %v617
      %vm620 = vcmask 1045509
      %v621 = vsel %vm620, %v593, %v619
      %vm622 = vcmask 1046534
      %v623 = vsel %vm622, %v602, %v621
      %vm624 = vcmask 1047559
      %v625 = vsel %vm624, %v611, %v623
      %vm627 = vcmask 130048
      %v628 = vsel %vm627, %v625, -inf
      %629 = vmax.xlane.f32.xlu0 %v628
      %v630 = vpop.xlane.xlu0 %629
      %v632 = vlaneseq
      %v633 = vshrl.u32 %v632, 7
      %v634 = vsub.s32 0, %v633
      %v635 = vrot.slane %v630, %v634
      %v636 = vlaneseq
      %v637 = vshrl.u32 %v636, 7
      %v638 = vsub.s32 1, %v637
      %v639 = vrot.slane %v630, %v638
      %v640 = vlaneseq
      %v641 = vshrl.u32 %v640, 7
      %v642 = vsub.s32 2, %v641
      %v643 = vrot.slane %v630, %v642
      %v644 = vlaneseq
      %v645 = vshrl.u32 %v644, 7
      %v646 = vsub.s32 3, %v645
      %v647 = vrot.slane %v630, %v646
      %v648 = vlaneseq
      %v649 = vshrl.u32 %v648, 7
      %v650 = vsub.s32 4, %v649
      %v651 = vrot.slane %v630, %v650
      %v652 = vlaneseq
      %v653 = vshrl.u32 %v652, 7
      %v654 = vsub.s32 5, %v653
      %v655 = vrot.slane %v630, %v654
      %v656 = vlaneseq
      %v657 = vshrl.u32 %v656, 7
      %v658 = vsub.s32 6, %v657
      %v659 = vrot.slane %v630, %v658
      %v660 = vlaneseq
      %v661 = vshrl.u32 %v660, 7
      %v662 = vsub.s32 7, %v661
      %v663 = vrot.slane %v630, %v662
      %v672 = vsub.f32 %v456, %v635
      %v673 = vsub.f32 %v457, %v635
      %v674 = vsub.f32 %v458, %v639
      %v675 = vsub.f32 %v459, %v639
      %v676 = vsub.f32 %v460, %v643
      %v677 = vsub.f32 %v461, %v643
      %v678 = vsub.f32 %v462, %v647
      %v679 = vsub.f32 %v463, %v647
      %v680 = vsub.f32 %v464, %v651
      %v681 = vsub.f32 %v465, %v651
      %v682 = vsub.f32 %v466, %v655
      %v683 = vsub.f32 %v467, %v655
      %v684 = vsub.f32 %v468, %v659
      %v685 = vsub.f32 %v469, %v659
      %v686 = vsub.f32 %v470, %v663
      %v687 = vsub.f32 %v471, %v663
      %v688 = vmul.f32 %v672, 1.442695
      %v689 = vpow.pop %v688
      %v690 = vmul.f32 %v673, 1.442695
      %v691 = vpow.pop %v690
      %v692 = vmul.f32 %v674, 1.442695
      %v693 = vpow.pop %v692
      %v694 = vmul.f32 %v675, 1.442695
      %v695 = vpow.pop %v694
      %v696 = vmul.f32 %v676, 1.442695
      %v697 = vpow.pop %v696
      %v698 = vmul.f32 %v677, 1.442695
      %v699 = vpow.pop %v698
      %v700 = vmul.f32 %v678, 1.442695
      %v701 = vpow.pop %v700
      %v702 = vmul.f32 %v679, 1.442695
      %v703 = vpow.pop %v702
      %v704 = vmul.f32 %v680, 1.442695
      %v705 = vpow.pop %v704
      %v706 = vmul.f32 %v681, 1.442695
      %v707 = vpow.pop %v706
      %v708 = vmul.f32 %v682, 1.442695
      %v709 = vpow.pop %v708
      %v710 = vmul.f32 %v683, 1.442695
      %v711 = vpow.pop %v710
      %v712 = vmul.f32 %v684, 1.442695
      %v713 = vpow.pop %v712
      %v714 = vmul.f32 %v685, 1.442695
      %v715 = vpow.pop %v714
      %v716 = vmul.f32 %v686, 1.442695
      %v717 = vpow.pop %v716
      %v718 = vmul.f32 %v687, 1.442695
      %v719 = vpow.pop %v718
      %736 = vset.pattern.permute.xlu0 0
      %737 = vperm.xlu0 %736, %v689
      %v738 = vpop.permute.xlu0 %737
      %739 = vset.pattern.permute.xlu0 0
      %740 = vperm.xlu0 %739, %v691
      %v741 = vpop.permute.xlu0 %740
      %742 = vset.pattern.permute.xlu0 0
      %743 = vperm.xlu0 %742, %v693
      %v744 = vpop.permute.xlu0 %743
      %745 = vset.pattern.permute.xlu0 0
      %746 = vperm.xlu0 %745, %v695
      %v747 = vpop.permute.xlu0 %746
      %748 = vset.pattern.permute.xlu0 0
      %749 = vperm.xlu0 %748, %v697
      %v750 = vpop.permute.xlu0 %749
      %751 = vset.pattern.permute.xlu0 0
      %752 = vperm.xlu0 %751, %v699
      %v753 = vpop.permute.xlu0 %752
      %754 = vset.pattern.permute.xlu0 0
      %755 = vperm.xlu0 %754, %v701
      %v756 = vpop.permute.xlu0 %755
      %757 = vset.pattern.permute.xlu0 0
      %758 = vperm.xlu0 %757, %v703
      %v759 = vpop.permute.xlu0 %758
      %760 = vset.pattern.permute.xlu0 0
      %761 = vperm.xlu0 %760, %v705
      %v762 = vpop.permute.xlu0 %761
      %763 = vset.pattern.permute.xlu0 0
      %764 = vperm.xlu0 %763, %v707
      %v765 = vpop.permute.xlu0 %764
      %766 = vset.pattern.permute.xlu0 0
      %767 = vperm.xlu0 %766, %v709
      %v768 = vpop.permute.xlu0 %767
      %769 = vset.pattern.permute.xlu0 0
      %770 = vperm.xlu0 %769, %v711
      %v771 = vpop.permute.xlu0 %770
      %772 = vset.pattern.permute.xlu0 0
      %773 = vperm.xlu0 %772, %v713
      %v774 = vpop.permute.xlu0 %773
      %775 = vset.pattern.permute.xlu0 0
      %776 = vperm.xlu0 %775, %v715
      %v777 = vpop.permute.xlu0 %776
      %778 = vset.pattern.permute.xlu0 0
      %779 = vperm.xlu0 %778, %v717
      %v780 = vpop.permute.xlu0 %779
      %781 = vset.pattern.permute.xlu0 0
      %782 = vperm.xlu0 %781, %v719
      %v783 = vpop.permute.xlu0 %782
      %v784 = vlaneseq
      %v785 = vshrl.u32 %v784, 7
      %v786 = vsub.s32 %v537, %v785
      %v787 = vrot.slane %v738, %v786
      %v788 = vlaneseq
      %v789 = vshrl.u32 %v788, 7
      %v790 = vsub.s32 %v542, %v789
      %v791 = vrot.slane %v741, %v790
      %v792 = vsel %vm547, %v791, %v787
      %v793 = vlaneseq
      %v794 = vshrl.u32 %v793, 7
      %v795 = vsub.s32 %v537, %v794
      %v796 = vrot.slane %v744, %v795
      %v797 = vlaneseq
      %v798 = vshrl.u32 %v797, 7
      %v799 = vsub.s32 %v542, %v798
      %v800 = vrot.slane %v747, %v799
      %v801 = vsel %vm547, %v800, %v796
      %v802 = vlaneseq
      %v803 = vshrl.u32 %v802, 7
      %v804 = vsub.s32 %v537, %v803
      %v805 = vrot.slane %v750, %v804
      %v806 = vlaneseq
      %v807 = vshrl.u32 %v806, 7
      %v808 = vsub.s32 %v542, %v807
      %v809 = vrot.slane %v753, %v808
      %v810 = vsel %vm547, %v809, %v805
      %v811 = vlaneseq
      %v812 = vshrl.u32 %v811, 7
      %v813 = vsub.s32 %v537, %v812
      %v814 = vrot.slane %v756, %v813
      %v815 = vlaneseq
      %v816 = vshrl.u32 %v815, 7
      %v817 = vsub.s32 %v542, %v816
      %v818 = vrot.slane %v759, %v817
      %v819 = vsel %vm547, %v818, %v814
      %v820 = vlaneseq
      %v821 = vshrl.u32 %v820, 7
      %v822 = vsub.s32 %v537, %v821
      %v823 = vrot.slane %v762, %v822
      %v824 = vlaneseq
      %v825 = vshrl.u32 %v824, 7
      %v826 = vsub.s32 %v542, %v825
      %v827 = vrot.slane %v765, %v826
      %v828 = vsel %vm547, %v827, %v823
      %v829 = vlaneseq
      %v830 = vshrl.u32 %v829, 7
      %v831 = vsub.s32 %v537, %v830
      %v832 = vrot.slane %v768, %v831
      %v833 = vlaneseq
      %v834 = vshrl.u32 %v833, 7
      %v835 = vsub.s32 %v542, %v834
      %v836 = vrot.slane %v771, %v835
      %v837 = vsel %vm547, %v836, %v832
      %v838 = vlaneseq
      %v839 = vshrl.u32 %v838, 7
      %v840 = vsub.s32 %v537, %v839
      %v841 = vrot.slane %v774, %v840
      %v842 = vlaneseq
      %v843 = vshrl.u32 %v842, 7
      %v844 = vsub.s32 %v542, %v843
      %v845 = vrot.slane %v777, %v844
      %v846 = vsel %vm547, %v845, %v841
      %v847 = vlaneseq
      %v848 = vshrl.u32 %v847, 7
      %v849 = vsub.s32 %v537, %v848
      %v850 = vrot.slane %v780, %v849
      %v851 = vlaneseq
      %v852 = vshrl.u32 %v851, 7
      %v853 = vsub.s32 %v542, %v852
      %v854 = vrot.slane %v783, %v853
      %v855 = vsel %vm547, %v854, %v850
      %v856 = vsel %vm612, %v801, %v792
      %v857 = vsel %vm614, %v810, %v856
      %v858 = vsel %vm616, %v819, %v857
      %v859 = vsel %vm618, %v828, %v858
      %v860 = vsel %vm620, %v837, %v859
      %v861 = vsel %vm622, %v846, %v860
      %v862 = vsel %vm624, %v855, %v861
      %v864 = vsel %vm627, %v862, 0.0
      %865 = vadd.xlane.f32.xlu0 %v864
      %v866 = vpop.xlane.xlu0 %865
      %v868 = vlaneseq
      %v869 = vshrl.u32 %v868, 7
      %v870 = vsub.s32 0, %v869
      %v871 = vrot.slane %v866, %v870
      %v872 = vlaneseq
      %v873 = vshrl.u32 %v872, 7
      %v874 = vsub.s32 1, %v873
      %v875 = vrot.slane %v866, %v874
      %v876 = vlaneseq
      %v877 = vshrl.u32 %v876, 7
      %v878 = vsub.s32 2, %v877
      %v879 = vrot.slane %v866, %v878
      %v880 = vlaneseq
      %v881 = vshrl.u32 %v880, 7
      %v882 = vsub.s32 3, %v881
      %v883 = vrot.slane %v866, %v882
      %v884 = vlaneseq
      %v885 = vshrl.u32 %v884, 7
      %v886 = vsub.s32 4, %v885
      %v887 = vrot.slane %v866, %v886
      %v888 = vlaneseq
      %v889 = vshrl.u32 %v888, 7
      %v890 = vsub.s32 5, %v889
      %v891 = vrot.slane %v866, %v890
      %v892 = vlaneseq
      %v893 = vshrl.u32 %v892, 7
      %v894 = vsub.s32 6, %v893
      %v895 = vrot.slane %v866, %v894
      %v896 = vlaneseq
      %v897 = vshrl.u32 %v896, 7
      %v898 = vsub.s32 7, %v897
      %v899 = vrot.slane %v866, %v898
      %v908 = vrcp.pop %v871
      %v909 = vmul.f32 %v689, %v908
      %v910 = vmul.f32 %v691, %v908
      %v911 = vrcp.pop %v875
      %v912 = vmul.f32 %v693, %v911
      %v913 = vmul.f32 %v695, %v911
      %v914 = vrcp.pop %v879
      %v915 = vmul.f32 %v697, %v914
      %v916 = vmul.f32 %v699, %v914
      %v917 = vrcp.pop %v883
      %v918 = vmul.f32 %v701, %v917
      %v919 = vmul.f32 %v703, %v917
      %v920 = vrcp.pop %v887
      %v921 = vmul.f32 %v705, %v920
      %v922 = vmul.f32 %v707, %v920
      %v923 = vrcp.pop %v891
      %v924 = vmul.f32 %v709, %v923
      %v925 = vmul.f32 %v711, %v923
      %v926 = vrcp.pop %v895
      %v927 = vmul.f32 %v713, %v926
      %v928 = vmul.f32 %v715, %v926
      %v929 = vrcp.pop %v899
      %v930 = vmul.f32 %v717, %v929
      %v931 = vmul.f32 %v719, %v929
      %934 = vset.pattern.permute.xlu0 0
      %935 = vperm.xlu0 %934, %v909
      %v936 = vpop.permute.xlu0 %935
      %937 = vset.pattern.permute.xlu0 0
      %938 = vperm.xlu0 %937, %v910
      %v939 = vpop.permute.xlu0 %938
      %v940 = vlaneseq
      %v941 = vshrl.u32 %v940, 7
      %v942 = vsub.s32 %v537, %v941
      %v943 = vrot.slane %v936, %v942
      %v944 = vlaneseq
      %v945 = vshrl.u32 %v944, 7
      %v946 = vsub.s32 %v542, %v945
      %v947 = vrot.slane %v939, %v946
      %v948 = vsel %vm547, %v947, %v943
      %v949 = vsel %vm627, %v948, 0
      %951 = vmatprep.subr.mxu0 0.0
      %952 = vmatpush1.msra.mxu0 %v247
      %953 = vmatprep.subr.mxu0 0.0
      %954 = vmatpush1.msra.mxu0 %v248
      %955 = vmatprep.subr.mxu0 0.0
      %956 = vmatpush1.msra.mxu0 0.0
      %957 = vmatprep.subr.mxu0 0.0
      %958 = vmatpush1.msra.mxu0 0.0
      %959 = vmatprep.subr.mxu0 0.0
      %960 = vmatpush1.msra.mxu0 0.0
      %961 = vmatprep.subr.mxu0 0.0
      %962 = vmatpush1.msra.mxu0 0.0
      %963 = vmatprep.subr.mxu0 0.0
      %964 = vmatpush1.msra.mxu0 0.0
      %965 = vmatprep.subr.mxu0 0.0
      %966 = vmatpush1.msra.mxu0 0.0
      %967 = vmatprep.subr.mxu0 0.0
      %968 = vmatpush1.msra.mxu0 0.0
      %969 = vmatprep.subr.mxu0 0.0
      %970 = vmatpush1.msra.mxu0 0.0
      %971 = vmatprep.subr.mxu0 0.0
      %972 = vmatpush1.msra.mxu0 0.0
      %973 = vmatprep.subr.mxu0 0.0
      %974 = vmatpush1.msra.mxu0 0.0
      %975 = vmatprep.subr.mxu0 0.0
      %976 = vmatpush1.msra.mxu0 0.0
      %977 = vmatprep.subr.mxu0 0.0
      %978 = vmatpush1.msra.mxu0 0.0
      %979 = vmatprep.subr.mxu0 0.0
      %980 = vmatpush1.msra.mxu0 0.0
      %981 = vmatprep.subr.mxu0 0.0
      %982 = vmatpush1.msra.mxu0 0.0
      %983 = vmatprep.subr.mxu0 0.0
      %984 = vmatpush1.msra.mxu0 0.0
      %985 = vmatprep.subr.mxu0 0.0
      %986 = vmatpush1.msra.mxu0 0.0
      %987 = vmatprep.subr.mxu0 0.0
      %988 = vmatpush1.msra.mxu0 0.0
      %989 = vmatprep.subr.mxu0 0.0
      %990 = vmatpush1.msra.mxu0 0.0
      %991 = vmatprep.subr.mxu0 0.0
      %992 = vmatpush1.msra.mxu0 0.0
      %993 = vmatprep.subr.mxu0 0.0
      %994 = vmatpush1.msra.mxu0 0.0
      %995 = vmatprep.subr.mxu0 0.0
      %996 = vmatpush1.msra.mxu0 0.0
      %997 = vmatprep.subr.mxu0 0.0
      %998 = vmatpush1.msra.mxu0 0.0
      %999 = vmatprep.subr.mxu0 0.0
      %1000 = vmatpush1.msra.mxu0 0.0
      %1001 = vmatprep.subr.mxu0 0.0
      %1002 = vmatpush1.msra.mxu0 0.0
      %1003 = vmatprep.subr.mxu0 0.0
      %1004 = vmatpush1.msra.mxu0 0.0
      %1005 = vmatprep.subr.mxu0 0.0
      %1006 = vmatpush1.msra.mxu0 0.0
      %1007 = vmatprep.subr.mxu0 0.0
      %1008 = vmatpush1.msra.mxu0 0.0
      %1009 = vmatprep.subr.mxu0 0.0
      %1010 = vmatpush1.msra.mxu0 0.0
      %1011 = vmatprep.subr.mxu0 0.0
      %1012 = vmatpush1.msra.mxu0 0.0
      %1013 = vmatprep.subr.mxu0 0.0
      %1014 = vmatpush1.msra.mxu0 0.0
      %1015 = vmatprep.mubr.f32.mxu0 0.0
      %1016 = vmatmul.mubr.f32.gmra.mrb[0].mxu0 %v949
      %v1017 = vpop.f32.mrb[0].mxu0
      %v1018 = vadd.f32 0.0, %v1017
      %v1019 = vpop.f32.mrb[0].mxu0
      %1020 = vdwg.mxu0
      %1023 = vset.pattern.permute.xlu0 0
      %1024 = vperm.xlu0 %1023, %v912
      %v1025 = vpop.permute.xlu0 %1024
      %1026 = vset.pattern.permute.xlu0 0
      %1027 = vperm.xlu0 %1026, %v913
      %v1028 = vpop.permute.xlu0 %1027
      %v1029 = vlaneseq
      %v1030 = vshrl.u32 %v1029, 7
      %v1031 = vsub.s32 %v537, %v1030
      %v1032 = vrot.slane %v1025, %v1031
      %v1033 = vlaneseq
      %v1034 = vshrl.u32 %v1033, 7
      %v1035 = vsub.s32 %v542, %v1034
      %v1036 = vrot.slane %v1028, %v1035
      %v1037 = vsel %vm547, %v1036, %v1032
      %v1038 = vsel %vm627, %v1037, 0
      %1040 = vmatprep.subr.mxu0 0.0
      %1041 = vmatpush1.msra.mxu0 %v249
      %1042 = vmatprep.subr.mxu0 0.0
      %1043 = vmatpush1.msra.mxu0 %v250
      %1044 = vmatprep.subr.mxu0 0.0
      %1045 = vmatpush1.msra.mxu0 0.0
      %1046 = vmatprep.subr.mxu0 0.0
      %1047 = vmatpush1.msra.mxu0 0.0
      %1048 = vmatprep.subr.mxu0 0.0
      %1049 = vmatpush1.msra.mxu0 0.0
      %1050 = vmatprep.subr.mxu0 0.0
      %1051 = vmatpush1.msra.mxu0 0.0
      %1052 = vmatprep.subr.mxu0 0.0
      %1053 = vmatpush1.msra.mxu0 0.0
      %1054 = vmatprep.subr.mxu0 0.0
      %1055 = vmatpush1.msra.mxu0 0.0
      %1056 = vmatprep.subr.mxu0 0.0
      %1057 = vmatpush1.msra.mxu0 0.0
      %1058 = vmatprep.subr.mxu0 0.0
      %1059 = vmatpush1.msra.mxu0 0.0
      %1060 = vmatprep.subr.mxu0 0.0
      %1061 = vmatpush1.msra.mxu0 0.0
      %1062 = vmatprep.subr.mxu0 0.0
      %1063 = vmatpush1.msra.mxu0 0.0
      %1064 = vmatprep.subr.mxu0 0.0
      %1065 = vmatpush1.msra.mxu0 0.0
      %1066 = vmatprep.subr.mxu0 0.0
      %1067 = vmatpush1.msra.mxu0 0.0
      %1068 = vmatprep.subr.mxu0 0.0
      %1069 = vmatpush1.msra.mxu0 0.0
      %1070 = vmatprep.subr.mxu0 0.0
      %1071 = vmatpush1.msra.mxu0 0.0
      %1072 = vmatprep.subr.mxu0 0.0
      %1073 = vmatpush1.msra.mxu0 0.0
      %1074 = vmatprep.subr.mxu0 0.0
      %1075 = vmatpush1.msra.mxu0 0.0
      %1076 = vmatprep.subr.mxu0 0.0
      %1077 = vmatpush1.msra.mxu0 0.0
      %1078 = vmatprep.subr.mxu0 0.0
      %1079 = vmatpush1.msra.mxu0 0.0
      %1080 = vmatprep.subr.mxu0 0.0
      %1081 = vmatpush1.msra.mxu0 0.0
      %1082 = vmatprep.subr.mxu0 0.0
      %1083 = vmatpush1.msra.mxu0 0.0
      %1084 = vmatprep.subr.mxu0 0.0
      %1085 = vmatpush1.msra.mxu0 0.0
      %1086 = vmatprep.subr.mxu0 0.0
      %1087 = vmatpush1.msra.mxu0 0.0
      %1088 = vmatprep.subr.mxu0 0.0
      %1089 = vmatpush1.msra.mxu0 0.0
      %1090 = vmatprep.subr.mxu0 0.0
      %1091 = vmatpush1.msra.mxu0 0.0
      %1092 = vmatprep.subr.mxu0 0.0
      %1093 = vmatpush1.msra.mxu0 0.0
      %1094 = vmatprep.subr.mxu0 0.0
      %1095 = vmatpush1.msra.mxu0 0.0
      %1096 = vmatprep.subr.mxu0 0.0
      %1097 = vmatpush1.msra.mxu0 0.0
      %1098 = vmatprep.subr.mxu0 0.0
      %1099 = vmatpush1.msra.mxu0 0.0
      %1100 = vmatprep.subr.mxu0 0.0
      %1101 = vmatpush1.msra.mxu0 0.0
      %1102 = vmatprep.subr.mxu0 0.0
      %1103 = vmatpush1.msra.mxu0 0.0
      %1104 = vmatprep.mubr.f32.mxu0 0.0
      %1105 = vmatmul.mubr.f32.gmra.mrb[0].mxu0 %v1038
      %v1106 = vpop.f32.mrb[0].mxu0
      %v1107 = vadd.f32 0.0, %v1106
      %v1108 = vpop.f32.mrb[0].mxu0
      %1109 = vdwg.mxu0
      %1112 = vset.pattern.permute.xlu0 0
      %1113 = vperm.xlu0 %1112, %v915
      %v1114 = vpop.permute.xlu0 %1113
      %1115 = vset.pattern.permute.xlu0 0
      %1116 = vperm.xlu0 %1115, %v916
      %v1117 = vpop.permute.xlu0 %1116
      %v1118 = vlaneseq
      %v1119 = vshrl.u32 %v1118, 7
      %v1120 = vsub.s32 %v537, %v1119
      %v1121 = vrot.slane %v1114, %v1120
      %v1122 = vlaneseq
      %v1123 = vshrl.u32 %v1122, 7
      %v1124 = vsub.s32 %v542, %v1123
      %v1125 = vrot.slane %v1117, %v1124
      %v1126 = vsel %vm547, %v1125, %v1121
      %v1127 = vsel %vm627, %v1126, 0
      %1129 = vmatprep.subr.mxu0 0.0
      %1130 = vmatpush1.msra.mxu0 %v251
      %1131 = vmatprep.subr.mxu0 0.0
      %1132 = vmatpush1.msra.mxu0 %v252
      %1133 = vmatprep.subr.mxu0 0.0
      %1134 = vmatpush1.msra.mxu0 0.0
      %1135 = vmatprep.subr.mxu0 0.0
      %1136 = vmatpush1.msra.mxu0 0.0
      %1137 = vmatprep.subr.mxu0 0.0
      %1138 = vmatpush1.msra.mxu0 0.0
      %1139 = vmatprep.subr.mxu0 0.0
      %1140 = vmatpush1.msra.mxu0 0.0
      %1141 = vmatprep.subr.mxu0 0.0
      %1142 = vmatpush1.msra.mxu0 0.0
      %1143 = vmatprep.subr.mxu0 0.0
      %1144 = vmatpush1.msra.mxu0 0.0
      %1145 = vmatprep.subr.mxu0 0.0
      %1146 = vmatpush1.msra.mxu0 0.0
      %1147 = vmatprep.subr.mxu0 0.0
      %1148 = vmatpush1.msra.mxu0 0.0
      %1149 = vmatprep.subr.mxu0 0.0
      %1150 = vmatpush1.msra.mxu0 0.0
      %1151 = vmatprep.subr.mxu0 0.0
      %1152 = vmatpush1.msra.mxu0 0.0
      %1153 = vmatprep.subr.mxu0 0.0
      %1154 = vmatpush1.msra.mxu0 0.0
      %1155 = vmatprep.subr.mxu0 0.0
      %1156 = vmatpush1.msra.mxu0 0.0
      %1157 = vmatprep.subr.mxu0 0.0
      %1158 = vmatpush1.msra.mxu0 0.0
      %1159 = vmatprep.subr.mxu0 0.0
      %1160 = vmatpush1.msra.mxu0 0.0
      %1161 = vmatprep.subr.mxu0 0.0
      %1162 = vmatpush1.msra.mxu0 0.0
      %1163 = vmatprep.subr.mxu0 0.0
      %1164 = vmatpush1.msra.mxu0 0.0
      %1165 = vmatprep.subr.mxu0 0.0
      %1166 = vmatpush1.msra.mxu0 0.0
      %1167 = vmatprep.subr.mxu0 0.0
      %1168 = vmatpush1.msra.mxu0 0.0
      %1169 = vmatprep.subr.mxu0 0.0
      %1170 = vmatpush1.msra.mxu0 0.0
      %1171 = vmatprep.subr.mxu0 0.0
      %1172 = vmatpush1.msra.mxu0 0.0
      %1173 = vmatprep.subr.mxu0 0.0
      %1174 = vmatpush1.msra.mxu0 0.0
      %1175 = vmatprep.subr.mxu0 0.0
      %1176 = vmatpush1.msra.mxu0 0.0
      %1177 = vmatprep.subr.mxu0 0.0
      %1178 = vmatpush1.msra.mxu0 0.0
      %1179 = vmatprep.subr.mxu0 0.0
      %1180 = vmatpush1.msra.mxu0 0.0
      %1181 = vmatprep.subr.mxu0 0.0
      %1182 = vmatpush1.msra.mxu0 0.0
      %1183 = vmatprep.subr.mxu0 0.0
      %1184 = vmatpush1.msra.mxu0 0.0
      %1185 = vmatprep.subr.mxu0 0.0
      %1186 = vmatpush1.msra.mxu0 0.0
      %1187 = vmatprep.subr.mxu0 0.0
      %1188 = vmatpush1.msra.mxu0 0.0
      %1189 = vmatprep.subr.mxu0 0.0
      %1190 = vmatpush1.msra.mxu0 0.0
      %1191 = vmatprep.subr.mxu0 0.0
      %1192 = vmatpush1.msra.mxu0 0.0
      %1193 = vmatprep.mubr.f32.mxu0 0.0
      %1194 = vmatmul.mubr.f32.gmra.mrb[0].mxu0 %v1127
      %v1195 = vpop.f32.mrb[0].mxu0
      %v1196 = vadd.f32 0.0, %v1195
      %v1197 = vpop.f32.mrb[0].mxu0
      %1198 = vdwg.mxu0
      %1201 = vset.pattern.permute.xlu0 0
      %1202 = vperm.xlu0 %1201, %v918
      %v1203 = vpop.permute.xlu0 %1202
      %1204 = vset.pattern.permute.xlu0 0
      %1205 = vperm.xlu0 %1204, %v919
      %v1206 = vpop.permute.xlu0 %1205
      %v1207 = vlaneseq
      %v1208 = vshrl.u32 %v1207, 7
      %v1209 = vsub.s32 %v537, %v1208
      %v1210 = vrot.slane %v1203, %v1209
      %v1211 = vlaneseq
      %v1212 = vshrl.u32 %v1211, 7
      %v1213 = vsub.s32 %v542, %v1212
      %v1214 = vrot.slane %v1206, %v1213
      %v1215 = vsel %vm547, %v1214, %v1210
      %v1216 = vsel %vm627, %v1215, 0
      %1218 = vmatprep.subr.mxu0 0.0
      %1219 = vmatpush1.msra.mxu0 %v253
      %1220 = vmatprep.subr.mxu0 0.0
      %1221 = vmatpush1.msra.mxu0 %v254
      %1222 = vmatprep.subr.mxu0 0.0
      %1223 = vmatpush1.msra.mxu0 0.0
      %1224 = vmatprep.subr.mxu0 0.0
      %1225 = vmatpush1.msra.mxu0 0.0
      %1226 = vmatprep.subr.mxu0 0.0
      %1227 = vmatpush1.msra.mxu0 0.0
      %1228 = vmatprep.subr.mxu0 0.0
      %1229 = vmatpush1.msra.mxu0 0.0
      %1230 = vmatprep.subr.mxu0 0.0
      %1231 = vmatpush1.msra.mxu0 0.0
      %1232 = vmatprep.subr.mxu0 0.0
      %1233 = vmatpush1.msra.mxu0 0.0
      %1234 = vmatprep.subr.mxu0 0.0
      %1235 = vmatpush1.msra.mxu0 0.0
      %1236 = vmatprep.subr.mxu0 0.0
      %1237 = vmatpush1.msra.mxu0 0.0
      %1238 = vmatprep.subr.mxu0 0.0
      %1239 = vmatpush1.msra.mxu0 0.0
      %1240 = vmatprep.subr.mxu0 0.0
      %1241 = vmatpush1.msra.mxu0 0.0
      %1242 = vmatprep.subr.mxu0 0.0
      %1243 = vmatpush1.msra.mxu0 0.0
      %1244 = vmatprep.subr.mxu0 0.0
      %1245 = vmatpush1.msra.mxu0 0.0
      %1246 = vmatprep.subr.mxu0 0.0
      %1247 = vmatpush1.msra.mxu0 0.0
      %1248 = vmatprep.subr.mxu0 0.0
      %1249 = vmatpush1.msra.mxu0 0.0
      %1250 = vmatprep.subr.mxu0 0.0
      %1251 = vmatpush1.msra.mxu0 0.0
      %1252 = vmatprep.subr.mxu0 0.0
      %1253 = vmatpush1.msra.mxu0 0.0
      %1254 = vmatprep.subr.mxu0 0.0
      %1255 = vmatpush1.msra.mxu0 0.0
      %1256 = vmatprep.subr.mxu0 0.0
      %1257 = vmatpush1.msra.mxu0 0.0
      %1258 = vmatprep.subr.mxu0 0.0
      %1259 = vmatpush1.msra.mxu0 0.0
      %1260 = vmatprep.subr.mxu0 0.0
      %1261 = vmatpush1.msra.mxu0 0.0
      %1262 = vmatprep.subr.mxu0 0.0
      %1263 = vmatpush1.msra.mxu0 0.0
      %1264 = vmatprep.subr.mxu0 0.0
      %1265 = vmatpush1.msra.mxu0 0.0
      %1266 = vmatprep.subr.mxu0 0.0
      %1267 = vmatpush1.msra.mxu0 0.0
      %1268 = vmatprep.subr.mxu0 0.0
      %1269 = vmatpush1.msra.mxu0 0.0
      %1270 = vmatprep.subr.mxu0 0.0
      %1271 = vmatpush1.msra.mxu0 0.0
      %1272 = vmatprep.subr.mxu0 0.0
      %1273 = vmatpush1.msra.mxu0 0.0
      %1274 = vmatprep.subr.mxu0 0.0
      %1275 = vmatpush1.msra.mxu0 0.0
      %1276 = vmatprep.subr.mxu0 0.0
      %1277 = vmatpush1.msra.mxu0 0.0
      %1278 = vmatprep.subr.mxu0 0.0
      %1279 = vmatpush1.msra.mxu0 0.0
      %1280 = vmatprep.subr.mxu0 0.0
      %1281 = vmatpush1.msra.mxu0 0.0
      %1282 = vmatprep.mubr.f32.mxu0 0.0
      %1283 = vmatmul.mubr.f32.gmra.mrb[0].mxu0 %v1216
      %v1284 = vpop.f32.mrb[0].mxu0
      %v1285 = vadd.f32 0.0, %v1284
      %v1286 = vpop.f32.mrb[0].mxu0
      %1287 = vdwg.mxu0
      %1290 = vset.pattern.permute.xlu0 0
      %1291 = vperm.xlu0 %1290, %v921
      %v1292 = vpop.permute.xlu0 %1291
      %1293 = vset.pattern.permute.xlu0 0
      %1294 = vperm.xlu0 %1293, %v922
      %v1295 = vpop.permute.xlu0 %1294
      %v1296 = vlaneseq
      %v1297 = vshrl.u32 %v1296, 7
      %v1298 = vsub.s32 %v537, %v1297
      %v1299 = vrot.slane %v1292, %v1298
      %v1300 = vlaneseq
      %v1301 = vshrl.u32 %v1300, 7
      %v1302 = vsub.s32 %v542, %v1301
      %v1303 = vrot.slane %v1295, %v1302
      %v1304 = vsel %vm547, %v1303, %v1299
      %v1305 = vsel %vm627, %v1304, 0
      %1307 = vmatprep.subr.mxu0 0.0
      %1308 = vmatpush1.msra.mxu0 %v255
      %1309 = vmatprep.subr.mxu0 0.0
      %1310 = vmatpush1.msra.mxu0 %v256
      %1311 = vmatprep.subr.mxu0 0.0
      %1312 = vmatpush1.msra.mxu0 0.0
      %1313 = vmatprep.subr.mxu0 0.0
      %1314 = vmatpush1.msra.mxu0 0.0
      %1315 = vmatprep.subr.mxu0 0.0
      %1316 = vmatpush1.msra.mxu0 0.0
      %1317 = vmatprep.subr.mxu0 0.0
      %1318 = vmatpush1.msra.mxu0 0.0
      %1319 = vmatprep.subr.mxu0 0.0
      %1320 = vmatpush1.msra.mxu0 0.0
      %1321 = vmatprep.subr.mxu0 0.0
      %1322 = vmatpush1.msra.mxu0 0.0
      %1323 = vmatprep.subr.mxu0 0.0
      %1324 = vmatpush1.msra.mxu0 0.0
      %1325 = vmatprep.subr.mxu0 0.0
      %1326 = vmatpush1.msra.mxu0 0.0
      %1327 = vmatprep.subr.mxu0 0.0
      %1328 = vmatpush1.msra.mxu0 0.0
      %1329 = vmatprep.subr.mxu0 0.0
      %1330 = vmatpush1.msra.mxu0 0.0
      %1331 = vmatprep.subr.mxu0 0.0
      %1332 = vmatpush1.msra.mxu0 0.0
      %1333 = vmatprep.subr.mxu0 0.0
      %1334 = vmatpush1.msra.mxu0 0.0
      %1335 = vmatprep.subr.mxu0 0.0
      %1336 = vmatpush1.msra.mxu0 0.0
      %1337 = vmatprep.subr.mxu0 0.0
      %1338 = vmatpush1.msra.mxu0 0.0
      %1339 = vmatprep.subr.mxu0 0.0
      %1340 = vmatpush1.msra.mxu0 0.0
      %1341 = vmatprep.subr.mxu0 0.0
      %1342 = vmatpush1.msra.mxu0 0.0
      %1343 = vmatprep.subr.mxu0 0.0
      %1344 = vmatpush1.msra.mxu0 0.0
      %1345 = vmatprep.subr.mxu0 0.0
      %1346 = vmatpush1.msra.mxu0 0.0
      %1347 = vmatprep.subr.mxu0 0.0
      %1348 = vmatpush1.msra.mxu0 0.0
      %1349 = vmatprep.subr.mxu0 0.0
      %1350 = vmatpush1.msra.mxu0 0.0
      %1351 = vmatprep.subr.mxu0 0.0
      %1352 = vmatpush1.msra.mxu0 0.0
      %1353 = vmatprep.subr.mxu0 0.0
      %1354 = vmatpush1.msra.mxu0 0.0
      %1355 = vmatprep.subr.mxu0 0.0
      %1356 = vmatpush1.msra.mxu0 0.0
      %1357 = vmatprep.subr.mxu0 0.0
      %1358 = vmatpush1.msra.mxu0 0.0
      %1359 = vmatprep.subr.mxu0 0.0
      %1360 = vmatpush1.msra.mxu0 0.0
      %1361 = vmatprep.subr.mxu0 0.0
      %1362 = vmatpush1.msra.mxu0 0.0
      %1363 = vmatprep.subr.mxu0 0.0
      %1364 = vmatpush1.msra.mxu0 0.0
      %1365 = vmatprep.subr.mxu0 0.0
      %1366 = vmatpush1.msra.mxu0 0.0
      %1367 = vmatprep.subr.mxu0 0.0
      %1368 = vmatpush1.msra.mxu0 0.0
      %1369 = vmatprep.subr.mxu0 0.0
      %1370 = vmatpush1.msra.mxu0 0.0
      %1371 = vmatprep.mubr.f32.mxu0 0.0
      %1372 = vmatmul.mubr.f32.gmra.mrb[0].mxu0 %v1305
      %v1373 = vpop.f32.mrb[0].mxu0
      %v1374 = vadd.f32 0.0, %v1373
      %v1375 = vpop.f32.mrb[0].mxu0
      %1376 = vdwg.mxu0
      %1379 = vset.pattern.permute.xlu0 0
      %1380 = vperm.xlu0 %1379, %v924
      %v1381 = vpop.permute.xlu0 %1380
      %1382 = vset.pattern.permute.xlu0 0
      %1383 = vperm.xlu0 %1382, %v925
      %v1384 = vpop.permute.xlu0 %1383
      %v1385 = vlaneseq
      %v1386 = vshrl.u32 %v1385, 7
      %v1387 = vsub.s32 %v537, %v1386
      %v1388 = vrot.slane %v1381, %v1387
      %v1389 = vlaneseq
      %v1390 = vshrl.u32 %v1389, 7
      %v1391 = vsub.s32 %v542, %v1390
      %v1392 = vrot.slane %v1384, %v1391
      %v1393 = vsel %vm547, %v1392, %v1388
      %v1394 = vsel %vm627, %v1393, 0
      %1396 = vmatprep.subr.mxu0 0.0
      %1397 = vmatpush1.msra.mxu0 %v257
      %1398 = vmatprep.subr.mxu0 0.0
      %1399 = vmatpush1.msra.mxu0 %v258
      %1400 = vmatprep.subr.mxu0 0.0
      %1401 = vmatpush1.msra.mxu0 0.0
      %1402 = vmatprep.subr.mxu0 0.0
      %1403 = vmatpush1.msra.mxu0 0.0
      %1404 = vmatprep.subr.mxu0 0.0
      %1405 = vmatpush1.msra.mxu0 0.0
      %1406 = vmatprep.subr.mxu0 0.0
      %1407 = vmatpush1.msra.mxu0 0.0
      %1408 = vmatprep.subr.mxu0 0.0
      %1409 = vmatpush1.msra.mxu0 0.0
      %1410 = vmatprep.subr.mxu0 0.0
      %1411 = vmatpush1.msra.mxu0 0.0
      %1412 = vmatprep.subr.mxu0 0.0
      %1413 = vmatpush1.msra.mxu0 0.0
      %1414 = vmatprep.subr.mxu0 0.0
      %1415 = vmatpush1.msra.mxu0 0.0
      %1416 = vmatprep.subr.mxu0 0.0
      %1417 = vmatpush1.msra.mxu0 0.0
      %1418 = vmatprep.subr.mxu0 0.0
      %1419 = vmatpush1.msra.mxu0 0.0
      %1420 = vmatprep.subr.mxu0 0.0
      %1421 = vmatpush1.msra.mxu0 0.0
      %1422 = vmatprep.subr.mxu0 0.0
      %1423 = vmatpush1.msra.mxu0 0.0
      %1424 = vmatprep.subr.mxu0 0.0
      %1425 = vmatpush1.msra.mxu0 0.0
      %1426 = vmatprep.subr.mxu0 0.0
      %1427 = vmatpush1.msra.mxu0 0.0
      %1428 = vmatprep.subr.mxu0 0.0
      %1429 = vmatpush1.msra.mxu0 0.0
      %1430 = vmatprep.subr.mxu0 0.0
      %1431 = vmatpush1.msra.mxu0 0.0
      %1432 = vmatprep.subr.mxu0 0.0
      %1433 = vmatpush1.msra.mxu0 0.0
      %1434 = vmatprep.subr.mxu0 0.0
      %1435 = vmatpush1.msra.mxu0 0.0
      %1436 = vmatprep.subr.mxu0 0.0
      %1437 = vmatpush1.msra.mxu0 0.0
      %1438 = vmatprep.subr.mxu0 0.0
      %1439 = vmatpush1.msra.mxu0 0.0
      %1440 = vmatprep.subr.mxu0 0.0
      %1441 = vmatpush1.msra.mxu0 0.0
      %1442 = vmatprep.subr.mxu0 0.0
      %1443 = vmatpush1.msra.mxu0 0.0
      %1444 = vmatprep.subr.mxu0 0.0
      %1445 = vmatpush1.msra.mxu0 0.0
      %1446 = vmatprep.subr.mxu0 0.0
      %1447 = vmatpush1.msra.mxu0 0.0
      %1448 = vmatprep.subr.mxu0 0.0
      %1449 = vmatpush1.msra.mxu0 0.0
      %1450 = vmatprep.subr.mxu0 0.0
      %1451 = vmatpush1.msra.mxu0 0.0
      %1452 = vmatprep.subr.mxu0 0.0
      %1453 = vmatpush1.msra.mxu0 0.0
      %1454 = vmatprep.subr.mxu0 0.0
      %1455 = vmatpush1.msra.mxu0 0.0
      %1456 = vmatprep.subr.mxu0 0.0
      %1457 = vmatpush1.msra.mxu0 0.0
      %1458 = vmatprep.subr.mxu0 0.0
      %1459 = vmatpush1.msra.mxu0 0.0
      %1460 = vmatprep.mubr.f32.mxu0 0.0
      %1461 = vmatmul.mubr.f32.gmra.mrb[0].mxu0 %v1394
      %v1462 = vpop.f32.mrb[0].mxu0
      %v1463 = vadd.f32 0.0, %v1462
      %v1464 = vpop.f32.mrb[0].mxu0
      %1465 = vdwg.mxu0
      %1468 = vset.pattern.permute.xlu0 0
      %1469 = vperm.xlu0 %1468, %v927
      %v1470 = vpop.permute.xlu0 %1469
      %1471 = vset.pattern.permute.xlu0 0
      %1472 = vperm.xlu0 %1471, %v928
      %v1473 = vpop.permute.xlu0 %1472
      %v1474 = vlaneseq
      %v1475 = vshrl.u32 %v1474, 7
      %v1476 = vsub.s32 %v537, %v1475
      %v1477 = vrot.slane %v1470, %v1476
      %v1478 = vlaneseq
      %v1479 = vshrl.u32 %v1478, 7
      %v1480 = vsub.s32 %v542, %v1479
      %v1481 = vrot.slane %v1473, %v1480
      %v1482 = vsel %vm547, %v1481, %v1477
      %v1483 = vsel %vm627, %v1482, 0
      %1485 = vmatprep.subr.mxu0 0.0
      %1486 = vmatpush1.msra.mxu0 %v259
      %1487 = vmatprep.subr.mxu0 0.0
      %1488 = vmatpush1.msra.mxu0 %v260
      %1489 = vmatprep.subr.mxu0 0.0
      %1490 = vmatpush1.msra.mxu0 0.0
      %1491 = vmatprep.subr.mxu0 0.0
      %1492 = vmatpush1.msra.mxu0 0.0
      %1493 = vmatprep.subr.mxu0 0.0
      %1494 = vmatpush1.msra.mxu0 0.0
      %1495 = vmatprep.subr.mxu0 0.0
      %1496 = vmatpush1.msra.mxu0 0.0
      %1497 = vmatprep.subr.mxu0 0.0
      %1498 = vmatpush1.msra.mxu0 0.0
      %1499 = vmatprep.subr.mxu0 0.0
      %1500 = vmatpush1.msra.mxu0 0.0
      %1501 = vmatprep.subr.mxu0 0.0
      %1502 = vmatpush1.msra.mxu0 0.0
      %1503 = vmatprep.subr.mxu0 0.0
      %1504 = vmatpush1.msra.mxu0 0.0
      %1505 = vmatprep.subr.mxu0 0.0
      %1506 = vmatpush1.msra.mxu0 0.0
      %1507 = vmatprep.subr.mxu0 0.0
      %1508 = vmatpush1.msra.mxu0 0.0
      %1509 = vmatprep.subr.mxu0 0.0
      %1510 = vmatpush1.msra.mxu0 0.0
      %1511 = vmatprep.subr.mxu0 0.0
      %1512 = vmatpush1.msra.mxu0 0.0
      %1513 = vmatprep.subr.mxu0 0.0
      %1514 = vmatpush1.msra.mxu0 0.0
      %1515 = vmatprep.subr.mxu0 0.0
      %1516 = vmatpush1.msra.mxu0 0.0
      %1517 = vmatprep.subr.mxu0 0.0
      %1518 = vmatpush1.msra.mxu0 0.0
      %1519 = vmatprep.subr.mxu0 0.0
      %1520 = vmatpush1.msra.mxu0 0.0
      %1521 = vmatprep.subr.mxu0 0.0
      %1522 = vmatpush1.msra.mxu0 0.0
      %1523 = vmatprep.subr.mxu0 0.0
      %1524 = vmatpush1.msra.mxu0 0.0
      %1525 = vmatprep.subr.mxu0 0.0
      %1526 = vmatpush1.msra.mxu0 0.0
      %1527 = vmatprep.subr.mxu0 0.0
      %1528 = vmatpush1.msra.mxu0 0.0
      %1529 = vmatprep.subr.mxu0 0.0
      %1530 = vmatpush1.msra.mxu0 0.0
      %1531 = vmatprep.subr.mxu0 0.0
      %1532 = vmatpush1.msra.mxu0 0.0
      %1533 = vmatprep.subr.mxu0 0.0
      %1534 = vmatpush1.msra.mxu0 0.0
      %1535 = vmatprep.subr.mxu0 0.0
      %1536 = vmatpush1.msra.mxu0 0.0
      %1537 = vmatprep.subr.mxu0 0.0
      %1538 = vmatpush1.msra.mxu0 0.0
      %1539 = vmatprep.subr.mxu0 0.0
      %1540 = vmatpush1.msra.mxu0 0.0
      %1541 = vmatprep.subr.mxu0 0.0
      %1542 = vmatpush1.msra.mxu0 0.0
      %1543 = vmatprep.subr.mxu0 0.0
      %1544 = vmatpush1.msra.mxu0 0.0
      %1545 = vmatprep.subr.mxu0 0.0
      %1546 = vmatpush1.msra.mxu0 0.0
      %1547 = vmatprep.subr.mxu0 0.0
      %1548 = vmatpush1.msra.mxu0 0.0
      %1549 = vmatprep.mubr.f32.mxu0 0.0
      %1550 = vmatmul.mubr.f32.gmra.mrb[0].mxu0 %v1483
      %v1551 = vpop.f32.mrb[0].mxu0
      %v1552 = vadd.f32 0.0, %v1551
      %v1553 = vpop.f32.mrb[0].mxu0
      %1554 = vdwg.mxu0
      %1557 = vset.pattern.permute.xlu0 0
      %1558 = vperm.xlu0 %1557, %v930
      %v1559 = vpop.permute.xlu0 %1558
      %1560 = vset.pattern.permute.xlu0 0
      %1561 = vperm.xlu0 %1560, %v931
      %v1562 = vpop.permute.xlu0 %1561
      %v1563 = vlaneseq
      %v1564 = vshrl.u32 %v1563, 7
      %v1565 = vsub.s32 %v537, %v1564
      %v1566 = vrot.slane %v1559, %v1565
      %v1567 = vlaneseq
      %v1568 = vshrl.u32 %v1567, 7
      %v1569 = vsub.s32 %v542, %v1568
      %v1570 = vrot.slane %v1562, %v1569
      %v1571 = vsel %vm547, %v1570, %v1566
      %v1572 = vsel %vm627, %v1571, 0
      %1574 = vmatprep.subr.mxu0 0.0
      %1575 = vmatpush1.msra.mxu0 %v261
      %1576 = vmatprep.subr.mxu0 0.0
      %1577 = vmatpush1.msra.mxu0 %v262
      %1578 = vmatprep.subr.mxu0 0.0
      %1579 = vmatpush1.msra.mxu0 0.0
      %1580 = vmatprep.subr.mxu0 0.0
      %1581 = vmatpush1.msra.mxu0 0.0
      %1582 = vmatprep.subr.mxu0 0.0
      %1583 = vmatpush1.msra.mxu0 0.0
      %1584 = vmatprep.subr.mxu0 0.0
      %1585 = vmatpush1.msra.mxu0 0.0
      %1586 = vmatprep.subr.mxu0 0.0
      %1587 = vmatpush1.msra.mxu0 0.0
      %1588 = vmatprep.subr.mxu0 0.0
      %1589 = vmatpush1.msra.mxu0 0.0
      %1590 = vmatprep.subr.mxu0 0.0
      %1591 = vmatpush1.msra.mxu0 0.0
      %1592 = vmatprep.subr.mxu0 0.0
      %1593 = vmatpush1.msra.mxu0 0.0
      %1594 = vmatprep.subr.mxu0 0.0
      %1595 = vmatpush1.msra.mxu0 0.0
      %1596 = vmatprep.subr.mxu0 0.0
      %1597 = vmatpush1.msra.mxu0 0.0
      %1598 = vmatprep.subr.mxu0 0.0
      %1599 = vmatpush1.msra.mxu0 0.0
      %1600 = vmatprep.subr.mxu0 0.0
      %1601 = vmatpush1.msra.mxu0 0.0
      %1602 = vmatprep.subr.mxu0 0.0
      %1603 = vmatpush1.msra.mxu0 0.0
      %1604 = vmatprep.subr.mxu0 0.0
      %1605 = vmatpush1.msra.mxu0 0.0
      %1606 = vmatprep.subr.mxu0 0.0
      %1607 = vmatpush1.msra.mxu0 0.0
      %1608 = vmatprep.subr.mxu0 0.0
      %1609 = vmatpush1.msra.mxu0 0.0
      %1610 = vmatprep.subr.mxu0 0.0
      %1611 = vmatpush1.msra.mxu0 0.0
      %1612 = vmatprep.subr.mxu0 0.0
      %1613 = vmatpush1.msra.mxu0 0.0
      %1614 = vmatprep.subr.mxu0 0.0
      %1615 = vmatpush1.msra.mxu0 0.0
      %1616 = vmatprep.subr.mxu0 0.0
      %1617 = vmatpush1.msra.mxu0 0.0
      %1618 = vmatprep.subr.mxu0 0.0
      %1619 = vmatpush1.msra.mxu0 0.0
      %1620 = vmatprep.subr.mxu0 0.0
      %1621 = vmatpush1.msra.mxu0 0.0
      %1622 = vmatprep.subr.mxu0 0.0
      %1623 = vmatpush1.msra.mxu0 0.0
      %1624 = vmatprep.subr.mxu0 0.0
      %1625 = vmatpush1.msra.mxu0 0.0
      %1626 = vmatprep.subr.mxu0 0.0
      %1627 = vmatpush1.msra.mxu0 0.0
      %1628 = vmatprep.subr.mxu0 0.0
      %1629 = vmatpush1.msra.mxu0 0.0
      %1630 = vmatprep.subr.mxu0 0.0
      %1631 = vmatpush1.msra.mxu0 0.0
      %1632 = vmatprep.subr.mxu0 0.0
      %1633 = vmatpush1.msra.mxu0 0.0
      %1634 = vmatprep.subr.mxu0 0.0
      %1635 = vmatpush1.msra.mxu0 0.0
      %1636 = vmatprep.subr.mxu0 0.0
      %1637 = vmatpush1.msra.mxu0 0.0
      %1638 = vmatprep.mubr.f32.mxu0 0.0
      %1639 = vmatmul.mubr.f32.gmra.mrb[0].mxu0 %v1572
      %v1640 = vpop.f32.mrb[0].mxu0
      %v1641 = vadd.f32 0.0, %v1640
      %v1642 = vpop.f32.mrb[0].mxu0
      %1643 = vdwg.mxu0
      %v1644 = vmax.f32 %v1018, 0.0
      %v1645 = vmax.f32 %v1107, 0.0
      %v1646 = vmax.f32 %v1196, 0.0
      %v1647 = vmax.f32 %v1285, 0.0
      %v1648 = vmax.f32 %v1374, 0.0
      %v1649 = vmax.f32 %v1463, 0.0
      %v1650 = vmax.f32 %v1552, 0.0
      %v1651 = vmax.f32 %v1641, 0.0
      %v1660 = vrot.slane %v1645, 7
      %v1661 = vsel %vm612, %v1660, %v1644
      %v1662 = vrot.slane %v1646, 6
      %v1663 = vsel %vm614, %v1662, %v1661
      %v1664 = vrot.slane %v1647, 5
      %v1665 = vsel %vm616, %v1664, %v1663
      %v1666 = vrot.slane %v1648, 4
      %v1667 = vsel %vm618, %v1666, %v1665
      %v1668 = vrot.slane %v1649, 3
      %v1669 = vsel %vm620, %v1668, %v1667
      %v1670 = vrot.slane %v1650, 2
      %v1671 = vsel %vm622, %v1670, %v1669
      %v1672 = vrot.slane %v1651, 1
      %v1673 = vsel %vm624, %v1672, %v1671
      %1675 = vst [vmem:[%s239] sm:$0xff] %v1673
      %1676 = vmatprep.subr.mxu0 0.0
      %1677 = vmatpush1.msra.mxu0 %v263
      %1678 = vmatprep.subr.mxu0 0.0
      %1679 = vmatpush1.msra.mxu0 %v264
      %1680 = vmatprep.subr.mxu0 0.0
      %1681 = vmatpush1.msra.mxu0 %v265
      %1682 = vmatprep.subr.mxu0 0.0
      %1683 = vmatpush1.msra.mxu0 %v266
      %1684 = vmatprep.subr.mxu0 0.0
      %1685 = vmatpush1.msra.mxu0 %v267
      %1686 = vmatprep.subr.mxu0 0.0
      %1687 = vmatpush1.msra.mxu0 %v268
      %1688 = vmatprep.subr.mxu0 0.0
      %1689 = vmatpush1.msra.mxu0 %v269
      %1690 = vmatprep.subr.mxu0 0.0
      %1691 = vmatpush1.msra.mxu0 %v270
      %1692 = vmatprep.subr.mxu0 0.0
      %1693 = vmatpush1.msra.mxu0 %v271
      %1694 = vmatprep.subr.mxu0 0.0
      %1695 = vmatpush1.msra.mxu0 %v272
      %1696 = vmatprep.subr.mxu0 0.0
      %1697 = vmatpush1.msra.mxu0 %v273
      %1698 = vmatprep.subr.mxu0 0.0
      %1699 = vmatpush1.msra.mxu0 %v274
      %1700 = vmatprep.subr.mxu0 0.0
      %1701 = vmatpush1.msra.mxu0 %v275
      %1702 = vmatprep.subr.mxu0 0.0
      %1703 = vmatpush1.msra.mxu0 %v276
      %1704 = vmatprep.subr.mxu0 0.0
      %1705 = vmatpush1.msra.mxu0 %v277
      %1706 = vmatprep.subr.mxu0 0.0
      %1707 = vmatpush1.msra.mxu0 %v278
      %1708 = vmatprep.subr.mxu0 0.0
      %1709 = vmatpush1.msra.mxu0 0.0
      %1710 = vmatprep.subr.mxu0 0.0
      %1711 = vmatpush1.msra.mxu0 0.0
      %1712 = vmatprep.subr.mxu0 0.0
      %1713 = vmatpush1.msra.mxu0 0.0
      %1714 = vmatprep.subr.mxu0 0.0
      %1715 = vmatpush1.msra.mxu0 0.0
      %1716 = vmatprep.subr.mxu0 0.0
      %1717 = vmatpush1.msra.mxu0 0.0
      %1718 = vmatprep.subr.mxu0 0.0
      %1719 = vmatpush1.msra.mxu0 0.0
      %1720 = vmatprep.subr.mxu0 0.0
      %1721 = vmatpush1.msra.mxu0 0.0
      %1722 = vmatprep.subr.mxu0 0.0
      %1723 = vmatpush1.msra.mxu0 0.0
      %1724 = vmatprep.subr.mxu0 0.0
      %1725 = vmatpush1.msra.mxu0 0.0
      %1726 = vmatprep.subr.mxu0 0.0
      %1727 = vmatpush1.msra.mxu0 0.0
      %1728 = vmatprep.subr.mxu0 0.0
      %1729 = vmatpush1.msra.mxu0 0.0
      %1730 = vmatprep.subr.mxu0 0.0
      %1731 = vmatpush1.msra.mxu0 0.0
      %1732 = vmatprep.subr.mxu0 0.0
      %1733 = vmatpush1.msra.mxu0 0.0
      %1734 = vmatprep.subr.mxu0 0.0
      %1735 = vmatpush1.msra.mxu0 0.0
      %1736 = vmatprep.subr.mxu0 0.0
      %1737 = vmatpush1.msra.mxu0 0.0
      %1738 = vmatprep.subr.mxu0 0.0
      %1739 = vmatpush1.msra.mxu0 0.0
      %1740 = vmatprep.mubr.f32.mxu0 0.0
      %1741 = vmatmul.mubr.f32.gmra.mrb[0].mxu0 %v1673
      %v1742 = vpop.f32.mrb[0].mxu0
      %v1743 = vadd.f32 0.0, %v1742
      %v1744 = vpop.f32.mrb[0].mxu0
      %1745 = vdwg.mxu0
      %1747 = vset.pattern.permute.xlu0 2
      %1748 = vperm.xlu0 %1747, %v1743
      %v1749 = vpop.permute.xlu0 %1748
      %v1750 = vlaneseq
      %v1751 = vshrl.u32 %v1750, 7
      %v1752 = vsub.s32 0, %v1751
      %v1753 = vrot.slane %v1749, %v1752
      %v1754 = vlaneseq
      %v1755 = vshrl.u32 %v1754, 7
      %v1756 = vsub.s32 1, %v1755
      %v1757 = vrot.slane %v1749, %v1756
      %v1758 = vlaneseq
      %v1759 = vshrl.u32 %v1758, 7
      %v1760 = vsub.s32 2, %v1759
      %v1761 = vrot.slane %v1749, %v1760
      %v1762 = vlaneseq
      %v1763 = vshrl.u32 %v1762, 7
      %v1764 = vsub.s32 3, %v1763
      %v1765 = vrot.slane %v1749, %v1764
      %v1766 = vlaneseq
      %v1767 = vshrl.u32 %v1766, 7
      %v1768 = vsub.s32 4, %v1767
      %v1769 = vrot.slane %v1749, %v1768
      %v1770 = vlaneseq
      %v1771 = vshrl.u32 %v1770, 7
      %v1772 = vsub.s32 5, %v1771
      %v1773 = vrot.slane %v1749, %v1772
      %v1774 = vlaneseq
      %v1775 = vshrl.u32 %v1774, 7
      %v1776 = vsub.s32 6, %v1775
      %v1777 = vrot.slane %v1749, %v1776
      %v1778 = vlaneseq
      %v1779 = vshrl.u32 %v1778, 7
      %v1780 = vsub.s32 7, %v1779
      %v1781 = vrot.slane %v1749, %v1780
      %v1790 = vadd.f32 %v346, %v1753
      %v1791 = vadd.f32 %v351, %v1753
      %v1792 = vadd.f32 %v356, %v1757
      %v1793 = vadd.f32 %v361, %v1757
      %v1794 = vadd.f32 %v366, %v1761
      %v1795 = vadd.f32 %v371, %v1761
      %v1796 = vadd.f32 %v376, %v1765
      %v1797 = vadd.f32 %v381, %v1765
      %v1798 = vadd.f32 %v386, %v1769
      %v1799 = vadd.f32 %v391, %v1769
      %v1800 = vadd.f32 %v396, %v1773
      %v1801 = vadd.f32 %v401, %v1773
      %v1802 = vadd.f32 %v406, %v1777
      %v1803 = vadd.f32 %v411, %v1777
      %v1804 = vadd.f32 %v416, %v1781
      %v1805 = vadd.f32 %v421, %v1781
      %vm1806 = vcmp.gt.f32.partialorder %v1790, 0.0
      %vm1807 = vcmp.gt.f32.partialorder %v1791, 0.0
      %vm1808 = vcmp.gt.f32.partialorder %v1792, 0.0
      %vm1809 = vcmp.gt.f32.partialorder %v1793, 0.0
      %vm1810 = vcmp.gt.f32.partialorder %v1794, 0.0
      %vm1811 = vcmp.gt.f32.partialorder %v1795, 0.0
      %vm1812 = vcmp.gt.f32.partialorder %v1796, 0.0
      %vm1813 = vcmp.gt.f32.partialorder %v1797, 0.0
      %vm1814 = vcmp.gt.f32.partialorder %v1798, 0.0
      %vm1815 = vcmp.gt.f32.partialorder %v1799, 0.0
      %vm1816 = vcmp.gt.f32.partialorder %v1800, 0.0
      %vm1817 = vcmp.gt.f32.partialorder %v1801, 0.0
      %vm1818 = vcmp.gt.f32.partialorder %v1802, 0.0
      %vm1819 = vcmp.gt.f32.partialorder %v1803, 0.0
      %vm1820 = vcmp.gt.f32.partialorder %v1804, 0.0
      %vm1821 = vcmp.gt.f32.partialorder %v1805, 0.0
      %v1822 = vmul.f32 %v1790, 0.2
      %v1823 = vmul.f32 %v1791, 0.2
      %v1824 = vmul.f32 %v1792, 0.2
      %v1825 = vmul.f32 %v1793, 0.2
      %v1826 = vmul.f32 %v1794, 0.2
      %v1827 = vmul.f32 %v1795, 0.2
      %v1828 = vmul.f32 %v1796, 0.2
      %v1829 = vmul.f32 %v1797, 0.2
      %v1830 = vmul.f32 %v1798, 0.2
      %v1831 = vmul.f32 %v1799, 0.2
      %v1832 = vmul.f32 %v1800, 0.2
      %v1833 = vmul.f32 %v1801, 0.2
      %v1834 = vmul.f32 %v1802, 0.2
      %v1835 = vmul.f32 %v1803, 0.2
      %v1836 = vmul.f32 %v1804, 0.2
      %v1837 = vmul.f32 %v1805, 0.2
      %v1838 = vsel %vm1806, %v1790, %v1822
      %v1839 = vsel %vm1807, %v1791, %v1823
      %v1840 = vsel %vm1808, %v1792, %v1824
      %v1841 = vsel %vm1809, %v1793, %v1825
      %v1842 = vsel %vm1810, %v1794, %v1826
      %v1843 = vsel %vm1811, %v1795, %v1827
      %v1844 = vsel %vm1812, %v1796, %v1828
      %v1845 = vsel %vm1813, %v1797, %v1829
      %v1846 = vsel %vm1814, %v1798, %v1830
      %v1847 = vsel %vm1815, %v1799, %v1831
      %v1848 = vsel %vm1816, %v1800, %v1832
      %v1849 = vsel %vm1817, %v1801, %v1833
      %v1850 = vsel %vm1818, %v1802, %v1834
      %v1851 = vsel %vm1819, %v1803, %v1835
      %v1852 = vsel %vm1820, %v1804, %v1836
      %v1853 = vsel %vm1821, %v1805, %v1837
      %1870 = vset.pattern.permute.xlu0 1
      %1871 = vperm.xlu0 %1870, %v1838
      %v1872 = vpop.permute.xlu0 %1871
      %1873 = vset.pattern.permute.xlu0 1
      %1874 = vperm.xlu0 %1873, %v1839
      %v1875 = vpop.permute.xlu0 %1874
      %1876 = vset.pattern.permute.xlu0 1
      %1877 = vperm.xlu0 %1876, %v1840
      %v1878 = vpop.permute.xlu0 %1877
      %1879 = vset.pattern.permute.xlu0 1
      %1880 = vperm.xlu0 %1879, %v1841
      %v1881 = vpop.permute.xlu0 %1880
      %1882 = vset.pattern.permute.xlu0 1
      %1883 = vperm.xlu0 %1882, %v1842
      %v1884 = vpop.permute.xlu0 %1883
      %1885 = vset.pattern.permute.xlu0 1
      %1886 = vperm.xlu0 %1885, %v1843
      %v1887 = vpop.permute.xlu0 %1886
      %1888 = vset.pattern.permute.xlu0 1
      %1889 = vperm.xlu0 %1888, %v1844
      %v1890 = vpop.permute.xlu0 %1889
      %1891 = vset.pattern.permute.xlu0 1
      %1892 = vperm.xlu0 %1891, %v1845
      %v1893 = vpop.permute.xlu0 %1892
      %1894 = vset.pattern.permute.xlu0 1
      %1895 = vperm.xlu0 %1894, %v1846
      %v1896 = vpop.permute.xlu0 %1895
      %1897 = vset.pattern.permute.xlu0 1
      %1898 = vperm.xlu0 %1897, %v1847
      %v1899 = vpop.permute.xlu0 %1898
      %1900 = vset.pattern.permute.xlu0 1
      %1901 = vperm.xlu0 %1900, %v1848
      %v1902 = vpop.permute.xlu0 %1901
      %1903 = vset.pattern.permute.xlu0 1
      %1904 = vperm.xlu0 %1903, %v1849
      %v1905 = vpop.permute.xlu0 %1904
      %1906 = vset.pattern.permute.xlu0 1
      %1907 = vperm.xlu0 %1906, %v1850
      %v1908 = vpop.permute.xlu0 %1907
      %1909 = vset.pattern.permute.xlu0 1
      %1910 = vperm.xlu0 %1909, %v1851
      %v1911 = vpop.permute.xlu0 %1910
      %1912 = vset.pattern.permute.xlu0 1
      %1913 = vperm.xlu0 %1912, %v1852
      %v1914 = vpop.permute.xlu0 %1913
      %1915 = vset.pattern.permute.xlu0 1
      %1916 = vperm.xlu0 %1915, %v1853
      %v1917 = vpop.permute.xlu0 %1916
      %v1918 = vlaneseq
      %v1919 = vshrl.u32 %v1918, 7
      %v1920 = vsub.s32 %v537, %v1919
      %v1921 = vrot.slane %v1872, %v1920
      %v1922 = vlaneseq
      %v1923 = vshrl.u32 %v1922, 7
      %v1924 = vsub.s32 %v542, %v1923
      %v1925 = vrot.slane %v1875, %v1924
      %v1926 = vsel %vm547, %v1925, %v1921
      %v1927 = vlaneseq
      %v1928 = vshrl.u32 %v1927, 7
      %v1929 = vsub.s32 %v537, %v1928
      %v1930 = vrot.slane %v1878, %v1929
      %v1931 = vlaneseq
      %v1932 = vshrl.u32 %v1931, 7
      %v1933 = vsub.s32 %v542, %v1932
      %v1934 = vrot.slane %v1881, %v1933
      %v1935 = vsel %vm547, %v1934, %v1930
      %v1936 = vlaneseq
      %v1937 = vshrl.u32 %v1936, 7
      %v1938 = vsub.s32 %v537, %v1937
      %v1939 = vrot.slane %v1884, %v1938
      %v1940 = vlaneseq
      %v1941 = vshrl.u32 %v1940, 7
      %v1942 = vsub.s32 %v542, %v1941
      %v1943 = vrot.slane %v1887, %v1942
      %v1944 = vsel %vm547, %v1943, %v1939
      %v1945 = vlaneseq
      %v1946 = vshrl.u32 %v1945, 7
      %v1947 = vsub.s32 %v537, %v1946
      %v1948 = vrot.slane %v1890, %v1947
      %v1949 = vlaneseq
      %v1950 = vshrl.u32 %v1949, 7
      %v1951 = vsub.s32 %v542, %v1950
      %v1952 = vrot.slane %v1893, %v1951
      %v1953 = vsel %vm547, %v1952, %v1948
      %v1954 = vlaneseq
      %v1955 = vshrl.u32 %v1954, 7
      %v1956 = vsub.s32 %v537, %v1955
      %v1957 = vrot.slane %v1896, %v1956
      %v1958 = vlaneseq
      %v1959 = vshrl.u32 %v1958, 7
      %v1960 = vsub.s32 %v542, %v1959
      %v1961 = vrot.slane %v1899, %v1960
      %v1962 = vsel %vm547, %v1961, %v1957
      %v1963 = vlaneseq
      %v1964 = vshrl.u32 %v1963, 7
      %v1965 = vsub.s32 %v537, %v1964
      %v1966 = vrot.slane %v1902, %v1965
      %v1967 = vlaneseq
      %v1968 = vshrl.u32 %v1967, 7
      %v1969 = vsub.s32 %v542, %v1968
      %v1970 = vrot.slane %v1905, %v1969
      %v1971 = vsel %vm547, %v1970, %v1966
      %v1972 = vlaneseq
      %v1973 = vshrl.u32 %v1972, 7
      %v1974 = vsub.s32 %v537, %v1973
      %v1975 = vrot.slane %v1908, %v1974
      %v1976 = vlaneseq
      %v1977 = vshrl.u32 %v1976, 7
      %v1978 = vsub.s32 %v542, %v1977
      %v1979 = vrot.slane %v1911, %v1978
      %v1980 = vsel %vm547, %v1979, %v1975
      %v1981 = vlaneseq
      %v1982 = vshrl.u32 %v1981, 7
      %v1983 = vsub.s32 %v537, %v1982
      %v1984 = vrot.slane %v1914, %v1983
      %v1985 = vlaneseq
      %v1986 = vshrl.u32 %v1985, 7
      %v1987 = vsub.s32 %v542, %v1986
      %v1988 = vrot.slane %v1917, %v1987
      %v1989 = vsel %vm547, %v1988, %v1984
      %v1990 = vsel %vm612, %v1935, %v1926
      %v1991 = vsel %vm614, %v1944, %v1990
      %v1992 = vsel %vm616, %v1953, %v1991
      %v1993 = vsel %vm618, %v1962, %v1992
      %v1994 = vsel %vm620, %v1971, %v1993
      %v1995 = vsel %vm622, %v1980, %v1994
      %v1996 = vsel %vm624, %v1989, %v1995
      %1998 = vst.msk [vmem:[%s246] sm:$0xff] %vm627, %v1996
      %p1999 = scmp.lt.s32.totalorder %s19, 2
      %s2000 = scalar_select %p1999, %s19, 2
      %p2001 = scmp.lt.s32.totalorder %s20, 0
      %s2002 = scalar_select %p2001, %s20, 0
      %s2003 = sadd.s32 %s2002, %s2000
      %s2004 = smul.addr %s2003, 8
      %s2005 = scalar_lea.vmem %s2, %s2004
      %p2006 = scmp.lt.s32.totalorder %s19, 2
      %s2007 = scalar_select %p2006, %s19, 2
      %p2008 = scmp.lt.s32.totalorder %s20, 0
      %s2009 = scalar_select %p2008, %s20, 0
      %s2010 = sadd.s32 %s2009, %s2007
      %s2011 = smul.addr %s2010, 8
      %s2012 = scalar_lea.vmem %s3, %s2011
      // Predicated region
      $region29: #{tran_hgat_forward.2} parent=27 // pred_check
        %p2013 = pneg %p101
      $region30: #{tran_hgat_forward.2} parent=27 // pred_check_branch
        %2015 = sbr.rel (%p2013) target = $region32
      $region31: #{tran_hgat_forward.2} parent=27 // pred_region
        _
      $region32: #{tran_hgat_forward.2} parent=27 // pred_fallthru
        _
      // Predicated region
      $region33: #{tran_hgat_forward.2} parent=27 // pred_check
        %p2016 = pneg %p129
      $region34: #{tran_hgat_forward.2} parent=27 // pred_check_branch
        %2018 = sbr.rel (%p2016) target = $region36
      $region35: #{tran_hgat_forward.2} parent=27 // pred_region
        _
      $region36: #{tran_hgat_forward.2} parent=27 // pred_fallthru
        _
    $region28: #{tran_hgat_forward.2} parent=5 // pred_fallthru
      _
    %p2019 = scmp.le.s32.totalorder 2, %s10
    // Predicated region
    $region37: #{tran_hgat_forward.2} parent=5 // pred_check
      %p2020 = pneg %p2019
    $region38: #{tran_hgat_forward.2} parent=5 // pred_check_branch
      %2022 = sbr.rel (%p2020) target = $region40
    $region39: #{tran_hgat_forward.2} parent=5 // pred_region
      %s2023 = ssub.s32 %s10, 2
      // Predicated region
      $region41: #{tran_hgat_forward.2} parent=39 // pred_check
        %p2024 = pneg %p107
      $region42: #{tran_hgat_forward.2} parent=39 // pred_check_branch
        %2026 = sbr.rel (%p2024) target = $region44
      $region43: #{tran_hgat_forward.2} parent=39 // pred_region
        %p2027 = scmp.lt.s32.totalorder %s21, 2
        %s2028 = scalar_select %p2027, %s21, 2
        %p2029 = scmp.lt.s32.totalorder %s22, 0
        %s2030 = scalar_select %p2029, %s22, 0
        %s2031 = sadd.s32 %s2030, %s2028
        %s2032 = smul.addr %s2031, 8
        %s2033 = scalar_lea.vmem %s2, %s2032
      $region44: #{tran_hgat_forward.2} parent=39 // pred_fallthru
        _
      // Predicated region
      $region45: #{tran_hgat_forward.2} parent=39 // pred_check
        %p2034 = pneg %p135
      $region46: #{tran_hgat_forward.2} parent=39 // pred_check_branch
        %2036 = sbr.rel (%p2034) target = $region48
      $region47: #{tran_hgat_forward.2} parent=39 // pred_region
        %p2037 = scmp.lt.s32.totalorder %s21, 2
        %s2038 = scalar_select %p2037, %s21, 2
        %p2039 = scmp.lt.s32.totalorder %s22, 0
        %s2040 = scalar_select %p2039, %s22, 0
        %s2041 = sadd.s32 %s2040, %s2038
        %s2042 = smul.addr %s2041, 8
        %s2043 = scalar_lea.vmem %s3, %s2042
      $region48: #{tran_hgat_forward.2} parent=39 // pred_fallthru
        _
    $region40: #{tran_hgat_forward.2} parent=5 // pred_fallthru
      _
  $region6: #{tran_hgat_forward.2} parent=0 // loop_footer
    %s14 = sadd.s32 1, %s10
  $region7: #{tran_hgat_forward.2} parent=0 // loop_footer_branch
    %9 = sbr.rel target = $region3
  $region8: #{tran_hgat_forward.2} parent=0 // loop_exit
    _

// kernel: tran_hgat_forward.3
$region0: #{tran_hgat_forward.3}
  #allocation0 [shape = 'u32[]', space=smem, size = 0x4, offset = 0x4, fixed_abs, tag = 'smem constant byte address 0x4 - core index']
  #allocation1 [shape = 'u32[144,128]{1,0:T(1,128)}', space=vmem, size = 0x12000, scoped, tag = 'internal scratch']
  #allocation2 [shape = 'f32[3,8,128]{2,1,0:T(8,128)}', space=vmem, size = 0x3000, scoped, tag = 'scratch operand']
  %s0 = inlined_call_operand.vmem [shape: f32[3,8,16,128], index: 0, kind: input, shape index: {}]
  %s1 = inlined_call_operand.vmem [shape: s32[3,8,16], index: 1, kind: input, shape index: {}]
  %s2 = inlined_call_operand.vmem [shape: f32[3,8,16], index: 2, kind: input, shape index: {}]
  %s3 = inlined_call_operand.vmem [shape: f32[3,8,16,3], index: 3, kind: input, shape index: {}]
  %s4 = inlined_call_operand.vmem [shape: f32[8,3,128], index: 4, kind: input, shape index: {}]
  %s5 = inlined_call_operand.vmem [shape: bf16[128,128], index: 5, kind: input, shape index: {}]
  %s6 = inlined_call_operand.vmem [shape: bf16[128,256], index: 6, kind: input, shape index: {}]
  %s7 = inlined_call_operand.vmem [shape: bf16[128,256], index: 7, kind: input, shape index: {}]
  %s8 = inlined_call_operand.vmem [shape: bf16[256,128], index: 8, kind: input, shape index: {}]
  %s9 = inlined_call_operand.vmem [shape: f32[4,128], index: 9, kind: input, shape index: {}]
  %s10 = inlined_call_operand.vmem [shape: f32[128,128], index: 10, kind: input, shape index: {}]
  %s11 = inlined_call_operand.vmem [shape: f32[1,128], index: 11, kind: input, shape index: {}]
  %s12 = inlined_call_operand.vmem [shape: f32[8,128], index: 12, kind: output, shape index: {}]
  %s13 = sld [smem:[#allocation0]]
  $region85: #{tran_hgat_forward.3} parent=0
    _
  %s15 = ssub.s32 1, %s13
  %s16 = scalar_select 0, %s15, %s13
  loop: start=0, step=1, limit=5
  $region2: #{tran_hgat_forward.3} parent=0 // loop_pre_header
    _
  $region3: #{tran_hgat_forward.3} parent=0 // loop_header
    %s18 = sphi 0, %s22
    %p19 = scmp.ge.s32.totalorder %s18, 5
    %s25 = sphi 0, %s37
    %s26 = sphi 0, %s33
    %s27 = sphi 0, %s25
    %s28 = sphi 0, %s26
    %s29 = sphi 0, %s27
    %s30 = sphi 0, %s28
    %s42 = sphi 0, %s44
    %s45 = sphi 0, %s42
    %s46 = sphi 0, %s45
    %s62 = sphi 0, %s46
    %s68 = sphi 0, %s70
    %s71 = sphi 0, %s68
    %s72 = sphi 0, %s71
    %s88 = sphi 0, %s72
    %s94 = sphi 0, %s96
    %s97 = sphi 0, %s94
    %s98 = sphi 0, %s97
    %s114 = sphi 0, %s98
    %s122 = sphi 0, %s124
    %s125 = sphi 0, %s122
    %s126 = sphi 0, %s125
    %s142 = sphi 0, %s126
    %s148 = sphi 0, %s150
    %s151 = sphi 0, %s148
    %s152 = sphi 0, %s151
    %s168 = sphi 0, %s152
    %s172 = sphi 0, %s172
    %s174 = sphi 0, %s172
    %s175 = sphi 0, %s174
    %s189 = sphi 0, %s175
    %s193 = sphi 0, %s193
    %s195 = sphi 0, %s193
    %s196 = sphi 0, %s195
    %s210 = sphi 0, %s196
    %s214 = sphi 0, %s214
    %s216 = sphi 0, %s214
    %s217 = sphi 0, %s216
    %s231 = sphi 0, %s217
    %s235 = sphi 0, %s235
    %s237 = sphi 0, %s235
    %s238 = sphi 0, %s237
    %s252 = sphi 0, %s238
    %s256 = sphi 0, %s256
    %s258 = sphi 0, %s256
    %s259 = sphi 0, %s258
    %s273 = sphi 0, %s259
    %s277 = sphi 0, %s277
    %s279 = sphi 0, %s277
    %s280 = sphi 0, %s279
    %s294 = sphi 0, %s280
    %s298 = sphi 0, %s298
    %s300 = sphi 0, %s298
    %s301 = sphi 0, %s300
    %s315 = sphi 0, %s301
    %s321 = sphi 0, %s323
    %s324 = sphi 0, %s321
    %s325 = sphi 0, %s324
    %s341 = sphi 0, %s325
  $region4: #{tran_hgat_forward.3} parent=0 // loop_header_branch
    %21 = sbr.rel (%p19) target = $region8
  $region5: #{tran_hgat_forward.3} parent=0 // loop_body
    %s23 = ssub.s32 %s18, 1
    %s24 = ssub.s32 %s18, 2
    %s31 = sadd.s32 1, %s26
    %p32 = scmp.ge.s32.totalorder %s31, 3
    %s33 = scalar_select %p32, 0, %s31
    %s34 = sadd.s32 1, %s25
    %s35 = scalar_select %p32, %s34, %s25
    %p36 = scmp.ge.s32.totalorder %s35, 1
    %s37 = scalar_select %p36, 0, %s35
    %s38 = ssub.s32 %s26, %s33
    %s39 = ssub.s32 %s25, %s37
    %s40 = sor.u32 %s38, %s39
    %p41 = scmp.eq.s32.totalorder %s40, 0
    %s43 = sadd.s32 %s42, 1
    %s44 = scalar_select %p41, %s42, %s43
    %p47 = pneg %p41
    %p48 = scmp.eq.s32.totalorder %s18, 2
    %p49 = por %p47, %p48
    %p50 = scmp.ne.s32.totalorder %s42, %s45
    %p51 = scmp.eq.s32.totalorder %s18, 0
    %p52 = por %p50, %p51
    %p53 = scmp.ne.s32.totalorder %s42, %s45
    %p54 = scmp.eq.s32.totalorder %s23, 2
    %p55 = por %p53, %p54
    %p56 = scmp.ne.s32.totalorder %s45, %s46
    %p57 = scmp.eq.s32.totalorder %s23, 0
    %p58 = por %p56, %p57
    %p59 = scmp.ne.s32.totalorder %s45, %s46
    %p60 = scmp.eq.s32.totalorder %s24, 2
    %p61 = por %p59, %p60
    %p63 = scmp.ne.s32.totalorder %s46, %s62
    %p64 = scmp.eq.s32.totalorder %s24, 0
    %p65 = por %p63, %p64
    %s66 = ssub.s32 %s25, %s37
    %p67 = scmp.eq.s32.totalorder %s66, 0
    %s69 = sadd.s32 %s68, 1
    %s70 = scalar_select %p67, %s68, %s69
    %p73 = pneg %p67
    %p74 = scmp.eq.s32.totalorder %s18, 2
    %p75 = por %p73, %p74
    %p76 = scmp.ne.s32.totalorder %s68, %s71
    %p77 = scmp.eq.s32.totalorder %s18, 0
    %p78 = por %p76, %p77
    %p79 = scmp.ne.s32.totalorder %s68, %s71
    %p80 = scmp.eq.s32.totalorder %s23, 2
    %p81 = por %p79, %p80
    %p82 = scmp.ne.s32.totalorder %s71, %s72
    %p83 = scmp.eq.s32.totalorder %s23, 0
    %p84 = por %p82, %p83
    %p85 = scmp.ne.s32.totalorder %s71, %s72
    %p86 = scmp.eq.s32.totalorder %s24, 2
    %p87 = por %p85, %p86
    %p89 = scmp.ne.s32.totalorder %s72, %s88
    %p90 = scmp.eq.s32.totalorder %s24, 0
    %p91 = por %p89, %p90
    %s92 = ssub.s32 %s25, %s37
    %p93 = scmp.eq.s32.totalorder %s92, 0
    %s95 = sadd.s32 %s94, 1
    %s96 = scalar_select %p93, %s94, %s95
    %p99 = pneg %p93
    %p100 = scmp.eq.s32.totalorder %s18, 2
    %p101 = por %p99, %p100
    %p102 = scmp.ne.s32.totalorder %s94, %s97
    %p103 = scmp.eq.s32.totalorder %s18, 0
    %p104 = por %p102, %p103
    %p105 = scmp.ne.s32.totalorder %s94, %s97
    %p106 = scmp.eq.s32.totalorder %s23, 2
    %p107 = por %p105, %p106
    %p108 = scmp.ne.s32.totalorder %s97, %s98
    %p109 = scmp.eq.s32.totalorder %s23, 0
    %p110 = por %p108, %p109
    %p111 = scmp.ne.s32.totalorder %s97, %s98
    %p112 = scmp.eq.s32.totalorder %s24, 2
    %p113 = por %p111, %p112
    %p115 = scmp.ne.s32.totalorder %s98, %s114
    %p116 = scmp.eq.s32.totalorder %s24, 0
    %p117 = por %p115, %p116
    %s118 = ssub.s32 %s26, %s33
    %s119 = ssub.s32 %s25, %s37
    %s120 = sor.u32 %s118, %s119
    %p121 = scmp.eq.s32.totalorder %s120, 0
    %s123 = sadd.s32 %s122, 1
    %s124 = scalar_select %p121, %s122, %s123
    %p127 = pneg %p121
    %p128 = scmp.eq.s32.totalorder %s18, 2
    %p129 = por %p127, %p128
    %p130 = scmp.ne.s32.totalorder %s122, %s125
    %p131 = scmp.eq.s32.totalorder %s18, 0
    %p132 = por %p130, %p131
    %p133 = scmp.ne.s32.totalorder %s122, %s125
    %p134 = scmp.eq.s32.totalorder %s23, 2
    %p135 = por %p133, %p134
    %p136 = scmp.ne.s32.totalorder %s125, %s126
    %p137 = scmp.eq.s32.totalorder %s23, 0
    %p138 = por %p136, %p137
    %p139 = scmp.ne.s32.totalorder %s125, %s126
    %p140 = scmp.eq.s32.totalorder %s24, 2
    %p141 = por %p139, %p140
    %p143 = scmp.ne.s32.totalorder %s126, %s142
    %p144 = scmp.eq.s32.totalorder %s24, 0
    %p145 = por %p143, %p144
    %s146 = ssub.s32 %s25, %s37
    %p147 = scmp.eq.s32.totalorder %s146, 0
    %s149 = sadd.s32 %s148, 1
    %s150 = scalar_select %p147, %s148, %s149
    %p153 = pneg %p147
    %p154 = scmp.eq.s32.totalorder %s18, 2
    %p155 = por %p153, %p154
    %p156 = scmp.ne.s32.totalorder %s148, %s151
    %p157 = scmp.eq.s32.totalorder %s18, 0
    %p158 = por %p156, %p157
    %p159 = scmp.ne.s32.totalorder %s148, %s151
    %p160 = scmp.eq.s32.totalorder %s23, 2
    %p161 = por %p159, %p160
    %p162 = scmp.ne.s32.totalorder %s151, %s152
    %p163 = scmp.eq.s32.totalorder %s23, 0
    %p164 = por %p162, %p163
    %p165 = scmp.ne.s32.totalorder %s151, %s152
    %p166 = scmp.eq.s32.totalorder %s24, 2
    %p167 = por %p165, %p166
    %p169 = scmp.ne.s32.totalorder %s152, %s168
    %p170 = scmp.eq.s32.totalorder %s24, 0
    %p171 = por %p169, %p170
    %s173 = sadd.s32 %s172, 1
    %p176 = scmp.eq.s32.totalorder %s18, 2
    %p177 = scmp.ne.s32.totalorder %s172, %s174
    %p178 = scmp.eq.s32.totalorder %s18, 0
    %p179 = por %p177, %p178
    %p180 = scmp.ne.s32.totalorder %s172, %s174
    %p181 = scmp.eq.s32.totalorder %s23, 2
    %p182 = por %p180, %p181
    %p183 = scmp.ne.s32.totalorder %s174, %s175
    %p184 = scmp.eq.s32.totalorder %s23, 0
    %p185 = por %p183, %p184
    %p186 = scmp.ne.s32.totalorder %s174, %s175
    %p187 = scmp.eq.s32.totalorder %s24, 2
    %p188 = por %p186, %p187
    %p190 = scmp.ne.s32.totalorder %s175, %s189
    %p191 = scmp.eq.s32.totalorder %s24, 0
    %p192 = por %p190, %p191
    %s194 = sadd.s32 %s193, 1
    %p197 = scmp.eq.s32.totalorder %s18, 2
    %p198 = scmp.ne.s32.totalorder %s193, %s195
    %p199 = scmp.eq.s32.totalorder %s18, 0
    %p200 = por %p198, %p199
    %p201 = scmp.ne.s32.totalorder %s193, %s195
    %p202 = scmp.eq.s32.totalorder %s23, 2
    %p203 = por %p201, %p202
    %p204 = scmp.ne.s32.totalorder %s195, %s196
    %p205 = scmp.eq.s32.totalorder %s23, 0
    %p206 = por %p204, %p205
    %p207 = scmp.ne.s32.totalorder %s195, %s196
    %p208 = scmp.eq.s32.totalorder %s24, 2
    %p209 = por %p207, %p208
    %p211 = scmp.ne.s32.totalorder %s196, %s210
    %p212 = scmp.eq.s32.totalorder %s24, 0
    %p213 = por %p211, %p212
    %s215 = sadd.s32 %s214, 1
    %p218 = scmp.eq.s32.totalorder %s18, 2
    %p219 = scmp.ne.s32.totalorder %s214, %s216
    %p220 = scmp.eq.s32.totalorder %s18, 0
    %p221 = por %p219, %p220
    %p222 = scmp.ne.s32.totalorder %s214, %s216
    %p223 = scmp.eq.s32.totalorder %s23, 2
    %p224 = por %p222, %p223
    %p225 = scmp.ne.s32.totalorder %s216, %s217
    %p226 = scmp.eq.s32.totalorder %s23, 0
    %p227 = por %p225, %p226
    %p228 = scmp.ne.s32.totalorder %s216, %s217
    %p229 = scmp.eq.s32.totalorder %s24, 2
    %p230 = por %p228, %p229
    %p232 = scmp.ne.s32.totalorder %s217, %s231
    %p233 = scmp.eq.s32.totalorder %s24, 0
    %p234 = por %p232, %p233
    %s236 = sadd.s32 %s235, 1
    %p239 = scmp.eq.s32.totalorder %s18, 2
    %p240 = scmp.ne.s32.totalorder %s235, %s237
    %p241 = scmp.eq.s32.totalorder %s18, 0
    %p242 = por %p240, %p241
    %p243 = scmp.ne.s32.totalorder %s235, %s237
    %p244 = scmp.eq.s32.totalorder %s23, 2
    %p245 = por %p243, %p244
    %p246 = scmp.ne.s32.totalorder %s237, %s238
    %p247 = scmp.eq.s32.totalorder %s23, 0
    %p248 = por %p246, %p247
    %p249 = scmp.ne.s32.totalorder %s237, %s238
    %p250 = scmp.eq.s32.totalorder %s24, 2
    %p251 = por %p249, %p250
    %p253 = scmp.ne.s32.totalorder %s238, %s252
    %p254 = scmp.eq.s32.totalorder %s24, 0
    %p255 = por %p253, %p254
    %s257 = sadd.s32 %s256, 1
    %p260 = scmp.eq.s32.totalorder %s18, 2
    %p261 = scmp.ne.s32.totalorder %s256, %s258
    %p262 = scmp.eq.s32.totalorder %s18, 0
    %p263 = por %p261, %p262
    %p264 = scmp.ne.s32.totalorder %s256, %s258
    %p265 = scmp.eq.s32.totalorder %s23, 2
    %p266 = por %p264, %p265
    %p267 = scmp.ne.s32.totalorder %s258, %s259
    %p268 = scmp.eq.s32.totalorder %s23, 0
    %p269 = por %p267, %p268
    %p270 = scmp.ne.s32.totalorder %s258, %s259
    %p271 = scmp.eq.s32.totalorder %s24, 2
    %p272 = por %p270, %p271
    %p274 = scmp.ne.s32.totalorder %s259, %s273
    %p275 = scmp.eq.s32.totalorder %s24, 0
    %p276 = por %p274, %p275
    %s278 = sadd.s32 %s277, 1
    %p281 = scmp.eq.s32.totalorder %s18, 2
    %p282 = scmp.ne.s32.totalorder %s277, %s279
    %p283 = scmp.eq.s32.totalorder %s18, 0
    %p284 = por %p282, %p283
    %p285 = scmp.ne.s32.totalorder %s277, %s279
    %p286 = scmp.eq.s32.totalorder %s23, 2
    %p287 = por %p285, %p286
    %p288 = scmp.ne.s32.totalorder %s279, %s280
    %p289 = scmp.eq.s32.totalorder %s23, 0
    %p290 = por %p288, %p289
    %p291 = scmp.ne.s32.totalorder %s279, %s280
    %p292 = scmp.eq.s32.totalorder %s24, 2
    %p293 = por %p291, %p292
    %p295 = scmp.ne.s32.totalorder %s280, %s294
    %p296 = scmp.eq.s32.totalorder %s24, 0
    %p297 = por %p295, %p296
    %s299 = sadd.s32 %s298, 1
    %p302 = scmp.eq.s32.totalorder %s18, 2
    %p303 = scmp.ne.s32.totalorder %s298, %s300
    %p304 = scmp.eq.s32.totalorder %s18, 0
    %p305 = por %p303, %p304
    %p306 = scmp.ne.s32.totalorder %s298, %s300
    %p307 = scmp.eq.s32.totalorder %s23, 2
    %p308 = por %p306, %p307
    %p309 = scmp.ne.s32.totalorder %s300, %s301
    %p310 = scmp.eq.s32.totalorder %s23, 0
    %p311 = por %p309, %p310
    %p312 = scmp.ne.s32.totalorder %s300, %s301
    %p313 = scmp.eq.s32.totalorder %s24, 2
    %p314 = por %p312, %p313
    %p316 = scmp.ne.s32.totalorder %s301, %s315
    %p317 = scmp.eq.s32.totalorder %s24, 0
    %p318 = por %p316, %p317
    %s319 = ssub.s32 %s25, %s37
    %p320 = scmp.eq.s32.totalorder %s319, 0
    %s322 = sadd.s32 %s321, 1
    %s323 = scalar_select %p320, %s321, %s322
    %p326 = pneg %p320
    %p327 = scmp.eq.s32.totalorder %s18, 2
    %p328 = por %p326, %p327
    %p329 = scmp.ne.s32.totalorder %s321, %s324
    %p330 = scmp.eq.s32.totalorder %s18, 0
    %p331 = por %p329, %p330
    %p332 = scmp.ne.s32.totalorder %s321, %s324
    %p333 = scmp.eq.s32.totalorder %s23, 2
    %p334 = por %p332, %p333
    %p335 = scmp.ne.s32.totalorder %s324, %s325
    %p336 = scmp.eq.s32.totalorder %s23, 0
    %p337 = por %p335, %p336
    %p338 = scmp.ne.s32.totalorder %s324, %s325
    %p339 = scmp.eq.s32.totalorder %s24, 2
    %p340 = por %p338, %p339
    %p342 = scmp.ne.s32.totalorder %s325, %s341
    %p343 = scmp.eq.s32.totalorder %s24, 0
    %p344 = por %p342, %p343
    %p345 = scmp.le.s32.totalorder 1, %s18
    %p346 = scmp.lt.s32.totalorder %s18, 4
    %p347 = pnand %p345, %p346
    %p348 = pneg %p347
    // Predicated region
    $region9: #{tran_hgat_forward.3} parent=5 // pred_check
      _
    $region10: #{tran_hgat_forward.3} parent=5 // pred_check_branch
      %350 = sbr.rel (%p347) target = $region12
    $region11: #{tran_hgat_forward.3} parent=5 // pred_region
      %s351 = ssub.s32 %s18, 1
      // Predicated region
      $region13: #{tran_hgat_forward.3} parent=11 // pred_check
        %p352 = pneg %p84
      $region14: #{tran_hgat_forward.3} parent=11 // pred_check_branch
        %354 = sbr.rel (%p352) target = $region16
      $region15: #{tran_hgat_forward.3} parent=11 // pred_region
        %p355 = scmp.lt.s32.totalorder %s27, 0
        %s356 = scalar_select %p355, %s27, 0
        %s357 = smul.addr %s356, 8
        %s358 = scalar_lea.vmem %s1, %s357
      $region16: #{tran_hgat_forward.3} parent=11 // pred_fallthru
        _
      // Predicated region
      $region17: #{tran_hgat_forward.3} parent=11 // pred_check
        %p359 = pneg %p110
      $region18: #{tran_hgat_forward.3} parent=11 // pred_check_branch
        %361 = sbr.rel (%p359) target = $region20
      $region19: #{tran_hgat_forward.3} parent=11 // pred_region
        %p362 = scmp.lt.s32.totalorder %s27, 0
        %s363 = scalar_select %p362, %s27, 0
        %s364 = smul.addr %s363, 8
        %s365 = scalar_lea.vmem %s2, %s364
      $region20: #{tran_hgat_forward.3} parent=11 // pred_fallthru
        _
      // Predicated region
      $region21: #{tran_hgat_forward.3} parent=11 // pred_check
        %p366 = pneg %p164
      $region22: #{tran_hgat_forward.3} parent=11 // pred_check_branch
        %368 = sbr.rel (%p366) target = $region24
      $region23: #{tran_hgat_forward.3} parent=11 // pred_region
        %s369 = smul.u32 8, %s27
        %p370 = scmp.lt.s32.totalorder %s369, 7
        %s371 = scalar_select %p370, %s369, 7
        %s372 = smul.addr %s371, 4
        %s373 = scalar_lea.vmem %s4, %s372
        %s374 = smul.u32 8, %s27
      $region24: #{tran_hgat_forward.3} parent=11 // pred_fallthru
        _
      // Predicated region
      $region25: #{tran_hgat_forward.3} parent=11 // pred_check
        %p375 = pneg %p185
      $region26: #{tran_hgat_forward.3} parent=11 // pred_check_branch
        %377 = sbr.rel (%p375) target = $region28
      $region27: #{tran_hgat_forward.3} parent=11 // pred_region
        _
      $region28: #{tran_hgat_forward.3} parent=11 // pred_fallthru
        _
      // Predicated region
      $region29: #{tran_hgat_forward.3} parent=11 // pred_check
        %p378 = pneg %p206
      $region30: #{tran_hgat_forward.3} parent=11 // pred_check_branch
        %380 = sbr.rel (%p378) target = $region32
      $region31: #{tran_hgat_forward.3} parent=11 // pred_region
        _
      $region32: #{tran_hgat_forward.3} parent=11 // pred_fallthru
        _
      // Predicated region
      $region33: #{tran_hgat_forward.3} parent=11 // pred_check
        %p381 = pneg %p227
      $region34: #{tran_hgat_forward.3} parent=11 // pred_check_branch
        %383 = sbr.rel (%p381) target = $region36
      $region35: #{tran_hgat_forward.3} parent=11 // pred_region
        _
      $region36: #{tran_hgat_forward.3} parent=11 // pred_fallthru
        _
      // Predicated region
      $region37: #{tran_hgat_forward.3} parent=11 // pred_check
        %p384 = pneg %p248
      $region38: #{tran_hgat_forward.3} parent=11 // pred_check_branch
        %386 = sbr.rel (%p384) target = $region40
      $region39: #{tran_hgat_forward.3} parent=11 // pred_region
        _
      $region40: #{tran_hgat_forward.3} parent=11 // pred_fallthru
        _
      // Predicated region
      $region41: #{tran_hgat_forward.3} parent=11 // pred_check
        %p387 = pneg %p269
      $region42: #{tran_hgat_forward.3} parent=11 // pred_check_branch
        %389 = sbr.rel (%p387) target = $region44
      $region43: #{tran_hgat_forward.3} parent=11 // pred_region
        _
      $region44: #{tran_hgat_forward.3} parent=11 // pred_fallthru
        _
      // Predicated region
      $region45: #{tran_hgat_forward.3} parent=11 // pred_check
        %p390 = pneg %p290
      $region46: #{tran_hgat_forward.3} parent=11 // pred_check_branch
        %392 = sbr.rel (%p390) target = $region48
      $region47: #{tran_hgat_forward.3} parent=11 // pred_region
        _
      $region48: #{tran_hgat_forward.3} parent=11 // pred_fallthru
        _
      // Predicated region
      $region49: #{tran_hgat_forward.3} parent=11 // pred_check
        %p393 = pneg %p311
      $region50: #{tran_hgat_forward.3} parent=11 // pred_check_branch
        %395 = sbr.rel (%p393) target = $region52
      $region51: #{tran_hgat_forward.3} parent=11 // pred_region
        _
      $region52: #{tran_hgat_forward.3} parent=11 // pred_fallthru
        _
    $region12: #{tran_hgat_forward.3} parent=5 // pred_fallthru
      _
    %p396 = scmp.lt.s32.totalorder %s18, 3
    // Predicated region
    $region53: #{tran_hgat_forward.3} parent=5 // pred_check
      %p397 = pneg %p396
    $region54: #{tran_hgat_forward.3} parent=5 // pred_check_branch
      %399 = sbr.rel (%p397) target = $region56
    $region55: #{tran_hgat_forward.3} parent=5 // pred_region
      // Predicated region
      $region57: #{tran_hgat_forward.3} parent=55 // pred_check
        %p400 = pneg %p52
      $region58: #{tran_hgat_forward.3} parent=55 // pred_check_branch
        %402 = sbr.rel (%p400) target = $region60
      $region59: #{tran_hgat_forward.3} parent=55 // pred_region
        %s403 = smul.u32 8, %s25
        %p404 = scmp.lt.s32.totalorder %s26, 2
        %s405 = scalar_select %p404, %s26, 2
        %p406 = scmp.lt.s32.totalorder %s403, 7
        %s407 = scalar_select %p406, %s403, 7
        %s408 = smul.addr %s407, 2
        %s409 = smul.addr %s405, 16
        %s410 = sadd.s32 %s408, %s409
        %s411 = smul.addr %s410, 8
        %s412 = scalar_lea.vmem %s0, %s411
        %s413 = smul.u32 8, %s25
      $region60: #{tran_hgat_forward.3} parent=55 // pred_fallthru
        _
      // Predicated region
      $region61: #{tran_hgat_forward.3} parent=55 // pred_check
        %p414 = pneg %p132
      $region62: #{tran_hgat_forward.3} parent=55 // pred_check_branch
        %416 = sbr.rel (%p414) target = $region64
      $region63: #{tran_hgat_forward.3} parent=55 // pred_region
        %s417 = smul.u32 8, %s25
        %p418 = scmp.lt.s32.totalorder %s26, 2
        %s419 = scalar_select %p418, %s26, 2
        %p420 = scmp.lt.s32.totalorder %s417, 7
        %s421 = scalar_select %p420, %s417, 7
        %s422 = smul.addr %s421, 2
        %s423 = smul.addr %s419, 16
        %s424 = sadd.s32 %s422, %s423
        %s425 = smul.addr %s424, 8
        %s426 = scalar_lea.vmem %s3, %s425
        %s427 = smul.u32 8, %s25
      $region64: #{tran_hgat_forward.3} parent=55 // pred_fallthru
        _
    $region56: #{tran_hgat_forward.3} parent=5 // pred_fallthru
      _
    %p428 = scmp.le.s32.totalorder 1, %s18
    %p429 = scmp.lt.s32.totalorder %s18, 4
    %p430 = pnand %p428, %p429
    %p431 = pneg %p430
    // Predicated region
    $region65: #{tran_hgat_forward.3} parent=5 // pred_check
      _
    $region66: #{tran_hgat_forward.3} parent=5 // pred_check_branch
      %433 = sbr.rel (%p430) target = $region68
    $region67: #{tran_hgat_forward.3} parent=5 // pred_region
      %s434 = ssub.s32 %s18, 1
      %s435 = smul.u32 8, %s27
      %p436 = scmp.lt.s32.totalorder %s28, 2
      %s437 = scalar_select %p436, %s28, 2
      %p438 = scmp.lt.s32.totalorder %s435, 7
      %s439 = scalar_select %p438, %s435, 7
      %s440 = smul.addr %s439, 2
      %s441 = smul.addr %s437, 16
      %s442 = sadd.s32 %s440, %s441
      %s443 = smul.addr %s442, 8
      %s444 = scalar_lea.vmem %s0, %s443
      %p445 = pneg %p58
      %p446 = pneg %p55
      %p447 = scmp.lt.s32.totalorder %s27, 0
      %s448 = scalar_select %p447, %s27, 0
      %s449 = smul.addr %s448, 8
      %s450 = scalar_lea.vmem %s1, %s449
      %p451 = pneg %p84
      %p452 = pneg %p81
      %p453 = scmp.lt.s32.totalorder %s27, 0
      %s454 = scalar_select %p453, %s27, 0
      %s455 = smul.addr %s454, 8
      %s456 = scalar_lea.vmem %s2, %s455
      %p457 = pneg %p110
      %p458 = pneg %p107
      %s459 = smul.u32 8, %s27
      %p460 = scmp.lt.s32.totalorder %s28, 2
      %s461 = scalar_select %p460, %s28, 2
      %p462 = scmp.lt.s32.totalorder %s459, 7
      %s463 = scalar_select %p462, %s459, 7
      %s464 = smul.addr %s463, 2
      %s465 = smul.addr %s461, 16
      %s466 = sadd.s32 %s464, %s465
      %s467 = smul.addr %s466, 8
      %s468 = scalar_lea.vmem %s3, %s467
      %p469 = pneg %p138
      %p470 = pneg %p135
      %s471 = smul.u32 8, %s27
      %p472 = scmp.lt.s32.totalorder %s471, 7
      %s473 = scalar_select %p472, %s471, 7
      %s474 = smul.addr %s473, 4
      %s475 = scalar_lea.vmem %s4, %s474
      %p476 = pneg %p164
      %p477 = pneg %p161
      %p478 = pneg %p185
      %p479 = pneg %p182
      %p480 = pneg %p206
      %p481 = pneg %p203
      %p482 = pneg %p227
      %p483 = pneg %p224
      %p484 = pneg %p248
      %p485 = pneg %p245
      %p486 = pneg %p269
      %p487 = pneg %p266
      %p488 = pneg %p290
      %p489 = pneg %p287
      %p490 = pneg %p311
      %p491 = pneg %p308
      %p492 = pneg %p337
      %p493 = pneg %p334
      %p494 = scmp.lt.s32.totalorder %s27, 0
      %s495 = scalar_select %p494, %s27, 0
      %s496 = smul.addr %s495, 8
      %s497 = scalar_lea.vmem %s12, %s496
      %s498 = smul.u32 8, %s27
      %p499 = scmp.lt.s32.totalorder %s28, 2
      %s500 = scalar_select %p499, %s28, 2
      %p501 = scmp.lt.s32.totalorder %s498, 7
      %s502 = scalar_select %p501, %s498, 7
      %s503 = smul.addr %s502, 2
      %s504 = smul.addr %s500, 16
      %s505 = sadd.s32 %s503, %s504
      %s506 = smul.addr %s505, 8
      %s507 = scalar_lea.vmem %s0, %s506
      %s508 = smul.u32 8, %s27
      %p509 = scmp.lt.s32.totalorder %s27, 0
      %s510 = scalar_select %p509, %s27, 0
      %s511 = smul.addr %s510, 8
      %s512 = scalar_lea.vmem %s1, %s511
      %p513 = scmp.lt.s32.totalorder %s27, 0
      %s514 = scalar_select %p513, %s27, 0
      %s515 = smul.addr %s514, 8
      %s516 = scalar_lea.vmem %s2, %s515
      %s517 = smul.u32 8, %s27
      %p518 = scmp.lt.s32.totalorder %s28, 2
      %s519 = scalar_select %p518, %s28, 2
      %p520 = scmp.lt.s32.totalorder %s517, 7
      %s521 = scalar_select %p520, %s517, 7
      %s522 = smul.addr %s521, 2
      %s523 = smul.addr %s519, 16
      %s524 = sadd.s32 %s522, %s523
      %s525 = smul.addr %s524, 8
      %s526 = scalar_lea.vmem %s3, %s525
      %s527 = smul.u32 8, %s27
      %s528 = smul.u32 8, %s27
      %p529 = scmp.lt.s32.totalorder %s528, 7
      %s530 = scalar_select %p529, %s528, 7
      %s531 = smul.addr %s530, 4
      %s532 = scalar_lea.vmem %s4, %s531
      %s533 = smul.u32 8, %s27
      %p534 = scmp.lt.s32.totalorder %s27, 0
      %s535 = scalar_select %p534, %s27, 0
      %s536 = smul.addr %s535, 8
      %s537 = scalar_lea.vmem %s12, %s536
      %v539 = vld [vmem:[%s507] sm:$0xff]
      %v540 = vld [vmem:[%s507 + $0x8] sm:$0xff]
      %v541 = vld [vmem:[%s507 + $0x10] sm:$0xff]
      %v542 = vld [vmem:[%s507 + $0x18] sm:$0xff]
      %v543 = vld [vmem:[%s507 + $0x20] sm:$0xff]
      %v544 = vld [vmem:[%s507 + $0x28] sm:$0xff]
      %v545 = vld [vmem:[%s507 + $0x30] sm:$0xff]
      %v546 = vld [vmem:[%s507 + $0x38] sm:$0xff]
      %v547 = vld [vmem:[%s507 + $0x40] sm:$0xff]
      %v548 = vld [vmem:[%s507 + $0x48] sm:$0xff]
      %v549 = vld [vmem:[%s507 + $0x50] sm:$0xff]
      %v550 = vld [vmem:[%s507 + $0x58] sm:$0xff]
      %v551 = vld [vmem:[%s507 + $0x60] sm:$0xff]
      %v552 = vld [vmem:[%s507 + $0x68] sm:$0xff]
      %v553 = vld [vmem:[%s507 + $0x70] sm:$0xff]
      %v554 = vld [vmem:[%s507 + $0x78] sm:$0xff]
      %s555 = smul.u32 %s28, 8
      %s556 = scalar_lea.vmem %s512, %s555
      %v557 = vld [vmem:[%s556] sm:$0xff]
      %v558 = vlaneseq
      %v559 = vand.u32 %v558, 127
      %v560 = vld [vmem:[%s512] sm:$0xff]
      %v561 = vld [vmem:[%s516] sm:$0xff]
      %v562 = vlaneseq
      %v563 = vshrl.u32 %v562, 7
      %v564 = vsub.s32 0, %v563
      %v565 = vrot.slane %v557, %v564
      %567 = vbcast.lane.b32.xlu0 %v565, 256
      %v568 = vpop.permute.xlu0 %567
      %s570 = sor.u32 256, 8
      %571 = vbcast.lane.b32.xlu0 %v565, %s570
      %v572 = vpop.permute.xlu0 %571
      %v573 = vlaneseq
      %v574 = vshrl.u32 %v573, 7
      %v575 = vsub.s32 1, %v574
      %v576 = vrot.slane %v557, %v575
      %578 = vbcast.lane.b32.xlu0 %v576, 256
      %v579 = vpop.permute.xlu0 %578
      %s581 = sor.u32 256, 8
      %582 = vbcast.lane.b32.xlu0 %v576, %s581
      %v583 = vpop.permute.xlu0 %582
      %v584 = vlaneseq
      %v585 = vshrl.u32 %v584, 7
      %v586 = vsub.s32 2, %v585
      %v587 = vrot.slane %v557, %v586
      %589 = vbcast.lane.b32.xlu0 %v587, 256
      %v590 = vpop.permute.xlu0 %589
      %s592 = sor.u32 256, 8
      %593 = vbcast.lane.b32.xlu0 %v587, %s592
      %v594 = vpop.permute.xlu0 %593
      %v595 = vlaneseq
      %v596 = vshrl.u32 %v595, 7
      %v597 = vsub.s32 3, %v596
      %v598 = vrot.slane %v557, %v597
      %600 = vbcast.lane.b32.xlu0 %v598, 256
      %v601 = vpop.permute.xlu0 %600
      %s603 = sor.u32 256, 8
      %604 = vbcast.lane.b32.xlu0 %v598, %s603
      %v605 = vpop.permute.xlu0 %604
      %v606 = vlaneseq
      %v607 = vshrl.u32 %v606, 7
      %v608 = vsub.s32 4, %v607
      %v609 = vrot.slane %v557, %v608
      %611 = vbcast.lane.b32.xlu0 %v609, 256
      %v612 = vpop.permute.xlu0 %611
      %s614 = sor.u32 256, 8
      %615 = vbcast.lane.b32.xlu0 %v609, %s614
      %v616 = vpop.permute.xlu0 %615
      %v617 = vlaneseq
      %v618 = vshrl.u32 %v617, 7
      %v619 = vsub.s32 5, %v618
      %v620 = vrot.slane %v557, %v619
      %622 = vbcast.lane.b32.xlu0 %v620, 256
      %v623 = vpop.permute.xlu0 %622
      %s625 = sor.u32 256, 8
      %626 = vbcast.lane.b32.xlu0 %v620, %s625
      %v627 = vpop.permute.xlu0 %626
      %v628 = vlaneseq
      %v629 = vshrl.u32 %v628, 7
      %v630 = vsub.s32 6, %v629
      %v631 = vrot.slane %v557, %v630
      %633 = vbcast.lane.b32.xlu0 %v631, 256
      %v634 = vpop.permute.xlu0 %633
      %s636 = sor.u32 256, 8
      %637 = vbcast.lane.b32.xlu0 %v631, %s636
      %v638 = vpop.permute.xlu0 %637
      %v639 = vlaneseq
      %v640 = vshrl.u32 %v639, 7
      %v641 = vsub.s32 7, %v640
      %v642 = vrot.slane %v557, %v641
      %644 = vbcast.lane.b32.xlu0 %v642, 256
      %v645 = vpop.permute.xlu0 %644
      %s647 = sor.u32 256, 8
      %648 = vbcast.lane.b32.xlu0 %v642, %s647
      %v649 = vpop.permute.xlu0 %648
      %v650 = vcombine.high %v560, %v560
      %v652 = vunpack.c.l.s4 1966171168
      %v653 = vunpack.c.0.s8 %v652
      %v654 = vlaneseq
      %v655 = vshrl.u32 %v654, 7
      %v656 = vsub.s32 %v653, %v655
      %v657 = vrot.slane %v560, %v656
      %v659 = vunpack.c.l.s4 1966171168
      %v660 = vunpack.c.0.s8 %v659
      %v661 = vlaneseq
      %v662 = vshrl.u32 %v661, 7
      %v663 = vsub.s32 %v660, %v662
      %v664 = vrot.slane %v650, %v663
      %v665 = vcombine.high %v657, %v657
      %v666 = vcombine.high %v664, %v664
      %v668 = vunpack.c.l.s4 1966171168
      %v669 = vunpack.c.0.s8 %v668
      %v670 = vlaneseq
      %v671 = vshrl.u32 %v670, 7
      %v672 = vsub.s32 %v669, %v671
      %v673 = vrot.slane %v657, %v672
      %v675 = vunpack.c.l.s4 1966171168
      %v676 = vunpack.c.0.s8 %v675
      %v677 = vlaneseq
      %v678 = vshrl.u32 %v677, 7
      %v679 = vsub.s32 %v676, %v678
      %v680 = vrot.slane %v664, %v679
      %v682 = vunpack.c.l.s4 1966171168
      %v683 = vunpack.c.0.s8 %v682
      %v684 = vlaneseq
      %v685 = vshrl.u32 %v684, 7
      %v686 = vsub.s32 %v683, %v685
      %v687 = vrot.slane %v665, %v686
      %v689 = vunpack.c.l.s4 1966171168
      %v690 = vunpack.c.0.s8 %v689
      %v691 = vlaneseq
      %v692 = vshrl.u32 %v691, 7
      %v693 = vsub.s32 %v690, %v692
      %v694 = vrot.slane %v666, %v693
      %v695 = vcombine.high %v673, %v673
      %v696 = vcombine.high %v680, %v680
      %v697 = vcombine.high %v687, %v687
      %v698 = vcombine.high %v694, %v694
      %v699 = vlaneseq
      %v700 = vshrl.u32 %v699, 7
      %v701 = vsub.s32 0, %v700
      %v702 = vrot.slane %v673, %v701
      %v703 = vlaneseq
      %v704 = vshrl.u32 %v703, 7
      %v705 = vsub.s32 0, %v704
      %v706 = vrot.slane %v687, %v705
      %v707 = vlaneseq
      %v708 = vshrl.u32 %v707, 7
      %v709 = vsub.s32 0, %v708
      %v710 = vrot.slane %v695, %v709
      %v711 = vlaneseq
      %v712 = vshrl.u32 %v711, 7
      %v713 = vsub.s32 0, %v712
      %v714 = vrot.slane %v697, %v713
      %v715 = vlaneseq
      %v716 = vshrl.u32 %v715, 7
      %v717 = vsub.s32 0, %v716
      %v718 = vrot.slane %v680, %v717
      %v719 = vlaneseq
      %v720 = vshrl.u32 %v719, 7
      %v721 = vsub.s32 0, %v720
      %v722 = vrot.slane %v694, %v721
      %v723 = vlaneseq
      %v724 = vshrl.u32 %v723, 7
      %v725 = vsub.s32 0, %v724
      %v726 = vrot.slane %v696, %v725
      %v727 = vlaneseq
      %v728 = vshrl.u32 %v727, 7
      %v729 = vsub.s32 0, %v728
      %v730 = vrot.slane %v698, %v729
      %vm731 = vcmp.eq.s32.totalorder %v568, %v702
      %vm732 = vcmp.eq.s32.totalorder %v572, %v702
      %vm733 = vcmp.eq.s32.totalorder %v579, %v706
      %vm734 = vcmp.eq.s32.totalorder %v583, %v706
      %vm735 = vcmp.eq.s32.totalorder %v590, %v710
      %vm736 = vcmp.eq.s32.totalorder %v594, %v710
      %vm737 = vcmp.eq.s32.totalorder %v601, %v714
      %vm738 = vcmp.eq.s32.totalorder %v605, %v714
      %vm739 = vcmp.eq.s32.totalorder %v612, %v718
      %vm740 = vcmp.eq.s32.totalorder %v616, %v718
      %vm741 = vcmp.eq.s32.totalorder %v623, %v722
      %vm742 = vcmp.eq.s32.totalorder %v627, %v722
      %vm743 = vcmp.eq.s32.totalorder %v634, %v726
      %vm744 = vcmp.eq.s32.totalorder %v638, %v726
      %vm745 = vcmp.eq.s32.totalorder %v645, %v730
      %vm746 = vcmp.eq.s32.totalorder %v649, %v730
      %v747 = vsel %vm731, %v559, 4294967295
      %v748 = vsel %vm732, %v559, 4294967295
      %v749 = vsel %vm733, %v559, 4294967295
      %v750 = vsel %vm734, %v559, 4294967295
      %v751 = vsel %vm735, %v559, 4294967295
      %v752 = vsel %vm736, %v559, 4294967295
      %v753 = vsel %vm737, %v559, 4294967295
      %v754 = vsel %vm738, %v559, 4294967295
      %v755 = vsel %vm739, %v559, 4294967295
      %v756 = vsel %vm740, %v559, 4294967295
      %v757 = vsel %vm741, %v559, 4294967295
      %v758 = vsel %vm742, %v559, 4294967295
      %v759 = vsel %vm743, %v559, 4294967295
      %v760 = vsel %vm744, %v559, 4294967295
      %v761 = vsel %vm745, %v559, 4294967295
      %v762 = vsel %vm746, %v559, 4294967295
      %vm763 = vcmask 130048
      %v764 = vsel %vm763, %v747, 2147483648
      %v765 = vand.u32 %v764, 65535
      %v766 = vshra.s32 %v764, 16
      %v767 = vcvt.s32.f32 %v765
      %v768 = vcvt.s32.f32 %v766
      %769 = vmax.xlane.f32.xlu0 %v768
      %v770 = vpop.xlane.xlu0 %769
      %vm771 = vcmp.eq.f32.partialorder %v768, %v770
      %v772 = vsel %vm771, %v767, -inf
      %773 = vmax.xlane.f32.xlu0 %v772
      %v774 = vpop.xlane.xlu0 %773
      %v775 = vcvt.f32.s32 %v774
      %v776 = vcvt.f32.s32 %v770
      %v777 = vshll.u32 %v776, 16
      %v778 = vadd.s32 %v777, %v775
      %v779 = vsel %vm763, %v748, 2147483648
      %v780 = vand.u32 %v779, 65535
      %v781 = vshra.s32 %v779, 16
      %v782 = vcvt.s32.f32 %v780
      %v783 = vcvt.s32.f32 %v781
      %784 = vmax.xlane.f32.xlu0 %v783
      %v785 = vpop.xlane.xlu0 %784
      %vm786 = vcmp.eq.f32.partialorder %v783, %v785
      %v787 = vsel %vm786, %v782, -inf
      %788 = vmax.xlane.f32.xlu0 %v787
      %v789 = vpop.xlane.xlu0 %788
      %v790 = vcvt.f32.s32 %v789
      %v791 = vcvt.f32.s32 %v785
      %v792 = vshll.u32 %v791, 16
      %v793 = vadd.s32 %v792, %v790
      %v794 = vsel %vm763, %v749, 2147483648
      %v795 = vand.u32 %v794, 65535
      %v796 = vshra.s32 %v794, 16
      %v797 = vcvt.s32.f32 %v795
      %v798 = vcvt.s32.f32 %v796
      %799 = vmax.xlane.f32.xlu0 %v798
      %v800 = vpop.xlane.xlu0 %799
      %vm801 = vcmp.eq.f32.partialorder %v798, %v800
      %v802 = vsel %vm801, %v797, -inf
      %803 = vmax.xlane.f32.xlu0 %v802
      %v804 = vpop.xlane.xlu0 %803
      %v805 = vcvt.f32.s32 %v804
      %v806 = vcvt.f32.s32 %v800
      %v807 = vshll.u32 %v806, 16
      %v808 = vadd.s32 %v807, %v805
      %v809 = vsel %vm763, %v750, 2147483648
      %v810 = vand.u32 %v809, 65535
      %v811 = vshra.s32 %v809, 16
      %v812 = vcvt.s32.f32 %v810
      %v813 = vcvt.s32.f32 %v811
      %814 = vmax.xlane.f32.xlu0 %v813
      %v815 = vpop.xlane.xlu0 %814
      %vm816 = vcmp.eq.f32.partialorder %v813, %v815
      %v817 = vsel %vm816, %v812, -inf
      %818 = vmax.xlane.f32.xlu0 %v817
      %v819 = vpop.xlane.xlu0 %818
      %v820 = vcvt.f32.s32 %v819
      %v821 = vcvt.f32.s32 %v815
      %v822 = vshll.u32 %v821, 16
      %v823 = vadd.s32 %v822, %v820
      %v824 = vsel %vm763, %v751, 2147483648
      %v825 = vand.u32 %v824, 65535
      %v826 = vshra.s32 %v824, 16
      %v827 = vcvt.s32.f32 %v825
      %v828 = vcvt.s32.f32 %v826
      %829 = vmax.xlane.f32.xlu0 %v828
      %v830 = vpop.xlane.xlu0 %829
      %vm831 = vcmp.eq.f32.partialorder %v828, %v830
      %v832 = vsel %vm831, %v827, -inf
      %833 = vmax.xlane.f32.xlu0 %v832
      %v834 = vpop.xlane.xlu0 %833
      %v835 = vcvt.f32.s32 %v834
      %v836 = vcvt.f32.s32 %v830
      %v837 = vshll.u32 %v836, 16
      %v838 = vadd.s32 %v837, %v835
      %v839 = vsel %vm763, %v752, 2147483648
      %v840 = vand.u32 %v839, 65535
      %v841 = vshra.s32 %v839, 16
      %v842 = vcvt.s32.f32 %v840
      %v843 = vcvt.s32.f32 %v841
      %844 = vmax.xlane.f32.xlu0 %v843
      %v845 = vpop.xlane.xlu0 %844
      %vm846 = vcmp.eq.f32.partialorder %v843, %v845
      %v847 = vsel %vm846, %v842, -inf
      %848 = vmax.xlane.f32.xlu0 %v847
      %v849 = vpop.xlane.xlu0 %848
      %v850 = vcvt.f32.s32 %v849
      %v851 = vcvt.f32.s32 %v845
      %v852 = vshll.u32 %v851, 16
      %v853 = vadd.s32 %v852, %v850
      %v854 = vsel %vm763, %v753, 2147483648
      %v855 = vand.u32 %v854, 65535
      %v856 = vshra.s32 %v854, 16
      %v857 = vcvt.s32.f32 %v855
      %v858 = vcvt.s32.f32 %v856
      %859 = vmax.xlane.f32.xlu0 %v858
      %v860 = vpop.xlane.xlu0 %859
      %vm861 = vcmp.eq.f32.partialorder %v858, %v860
      %v862 = vsel %vm861, %v857, -inf
      %863 = vmax.xlane.f32.xlu0 %v862
      %v864 = vpop.xlane.xlu0 %863
      %v865 = vcvt.f32.s32 %v864
      %v866 = vcvt.f32.s32 %v860
      %v867 = vshll.u32 %v866, 16
      %v868 = vadd.s32 %v867, %v865
      %v869 = vsel %vm763, %v754, 2147483648
      %v870 = vand.u32 %v869, 65535
      %v871 = vshra.s32 %v869, 16
      %v872 = vcvt.s32.f32 %v870
      %v873 = vcvt.s32.f32 %v871
      %874 = vmax.xlane.f32.xlu0 %v873
      %v875 = vpop.xlane.xlu0 %874
      %vm876 = vcmp.eq.f32.partialorder %v873, %v875
      %v877 = vsel %vm876, %v872, -inf
      %878 = vmax.xlane.f32.xlu0 %v877
      %v879 = vpop.xlane.xlu0 %878
      %v880 = vcvt.f32.s32 %v879
      %v881 = vcvt.f32.s32 %v875
      %v882 = vshll.u32 %v881, 16
      %v883 = vadd.s32 %v882, %v880
      %v884 = vsel %vm763, %v755, 2147483648
      %v885 = vand.u32 %v884, 65535
      %v886 = vshra.s32 %v884, 16
      %v887 = vcvt.s32.f32 %v885
      %v888 = vcvt.s32.f32 %v886
      %889 = vmax.xlane.f32.xlu0 %v888
      %v890 = vpop.xlane.xlu0 %889
      %vm891 = vcmp.eq.f32.partialorder %v888, %v890
      %v892 = vsel %vm891, %v887, -inf
      %893 = vmax.xlane.f32.xlu0 %v892
      %v894 = vpop.xlane.xlu0 %893
      %v895 = vcvt.f32.s32 %v894
      %v896 = vcvt.f32.s32 %v890
      %v897 = vshll.u32 %v896, 16
      %v898 = vadd.s32 %v897, %v895
      %v899 = vsel %vm763, %v756, 2147483648
      %v900 = vand.u32 %v899, 65535
      %v901 = vshra.s32 %v899, 16
      %v902 = vcvt.s32.f32 %v900
      %v903 = vcvt.s32.f32 %v901
      %904 = vmax.xlane.f32.xlu0 %v903
      %v905 = vpop.xlane.xlu0 %904
      %vm906 = vcmp.eq.f32.partialorder %v903, %v905
      %v907 = vsel %vm906, %v902, -inf
      %908 = vmax.xlane.f32.xlu0 %v907
      %v909 = vpop.xlane.xlu0 %908
      %v910 = vcvt.f32.s32 %v909
      %v911 = vcvt.f32.s32 %v905
      %v912 = vshll.u32 %v911, 16
      %v913 = vadd.s32 %v912, %v910
      %v914 = vsel %vm763, %v757, 2147483648
      %v915 = vand.u32 %v914, 65535
      %v916 = vshra.s32 %v914, 16
      %v917 = vcvt.s32.f32 %v915
      %v918 = vcvt.s32.f32 %v916
      %919 = vmax.xlane.f32.xlu0 %v918
      %v920 = vpop.xlane.xlu0 %919
      %vm921 = vcmp.eq.f32.partialorder %v918, %v920
      %v922 = vsel %vm921, %v917, -inf
      %923 = vmax.xlane.f32.xlu0 %v922
      %v924 = vpop.xlane.xlu0 %923
      %v925 = vcvt.f32.s32 %v924
      %v926 = vcvt.f32.s32 %v920
      %v927 = vshll.u32 %v926, 16
      %v928 = vadd.s32 %v927, %v925
      %v929 = vsel %vm763, %v758, 2147483648
      %v930 = vand.u32 %v929, 65535
      %v931 = vshra.s32 %v929, 16
      %v932 = vcvt.s32.f32 %v930
      %v933 = vcvt.s32.f32 %v931
      %934 = vmax.xlane.f32.xlu0 %v933
      %v935 = vpop.xlane.xlu0 %934
      %vm936 = vcmp.eq.f32.partialorder %v933, %v935
      %v937 = vsel %vm936, %v932, -inf
      %938 = vmax.xlane.f32.xlu0 %v937
      %v939 = vpop.xlane.xlu0 %938
      %v940 = vcvt.f32.s32 %v939
      %v941 = vcvt.f32.s32 %v935
      %v942 = vshll.u32 %v941, 16
      %v943 = vadd.s32 %v942, %v940
      %v944 = vsel %vm763, %v759, 2147483648
      %v945 = vand.u32 %v944, 65535
      %v946 = vshra.s32 %v944, 16
      %v947 = vcvt.s32.f32 %v945
      %v948 = vcvt.s32.f32 %v946
      %949 = vmax.xlane.f32.xlu0 %v948
      %v950 = vpop.xlane.xlu0 %949
      %vm951 = vcmp.eq.f32.partialorder %v948, %v950
      %v952 = vsel %vm951, %v947, -inf
      %953 = vmax.xlane.f32.xlu0 %v952
      %v954 = vpop.xlane.xlu0 %953
      %v955 = vcvt.f32.s32 %v954
      %v956 = vcvt.f32.s32 %v950
      %v957 = vshll.u32 %v956, 16
      %v958 = vadd.s32 %v957, %v955
      %v959 = vsel %vm763, %v760, 2147483648
      %v960 = vand.u32 %v959, 65535
      %v961 = vshra.s32 %v959, 16
      %v962 = vcvt.s32.f32 %v960
      %v963 = vcvt.s32.f32 %v961
      %964 = vmax.xlane.f32.xlu0 %v963
      %v965 = vpop.xlane.xlu0 %964
      %vm966 = vcmp.eq.f32.partialorder %v963, %v965
      %v967 = vsel %vm966, %v962, -inf
      %968 = vmax.xlane.f32.xlu0 %v967
      %v969 = vpop.xlane.xlu0 %968
      %v970 = vcvt.f32.s32 %v969
      %v971 = vcvt.f32.s32 %v965
      %v972 = vshll.u32 %v971, 16
      %v973 = vadd.s32 %v972, %v970
      %v974 = vsel %vm763, %v761, 2147483648
      %v975 = vand.u32 %v974, 65535
      %v976 = vshra.s32 %v974, 16
      %v977 = vcvt.s32.f32 %v975
      %v978 = vcvt.s32.f32 %v976
      %979 = vmax.xlane.f32.xlu0 %v978
      %v980 = vpop.xlane.xlu0 %979
      %vm981 = vcmp.eq.f32.partialorder %v978, %v980
      %v982 = vsel %vm981, %v977, -inf
      %983 = vmax.xlane.f32.xlu0 %v982
      %v984 = vpop.xlane.xlu0 %983
      %v985 = vcvt.f32.s32 %v984
      %v986 = vcvt.f32.s32 %v980
      %v987 = vshll.u32 %v986, 16
      %v988 = vadd.s32 %v987, %v985
      %v989 = vsel %vm763, %v762, 2147483648
      %v990 = vand.u32 %v989, 65535
      %v991 = vshra.s32 %v989, 16
      %v992 = vcvt.s32.f32 %v990
      %v993 = vcvt.s32.f32 %v991
      %994 = vmax.xlane.f32.xlu0 %v993
      %v995 = vpop.xlane.xlu0 %994
      %vm996 = vcmp.eq.f32.partialorder %v993, %v995
      %v997 = vsel %vm996, %v992, -inf
      %998 = vmax.xlane.f32.xlu0 %v997
      %v999 = vpop.xlane.xlu0 %998
      %v1000 = vcvt.f32.s32 %v999
      %v1001 = vcvt.f32.s32 %v995
      %v1002 = vshll.u32 %v1001, 16
      %v1003 = vadd.s32 %v1002, %v1000
      %vm1004 = vcmp.eq.s32.totalorder %v559, %v778
      %vm1005 = vcmp.eq.s32.totalorder %v559, %v793
      %vm1006 = vcmp.eq.s32.totalorder %v559, %v808
      %vm1007 = vcmp.eq.s32.totalorder %v559, %v823
      %vm1008 = vcmp.eq.s32.totalorder %v559, %v838
      %vm1009 = vcmp.eq.s32.totalorder %v559, %v853
      %vm1010 = vcmp.eq.s32.totalorder %v559, %v868
      %vm1011 = vcmp.eq.s32.totalorder %v559, %v883
      %vm1012 = vcmp.eq.s32.totalorder %v559, %v898
      %vm1013 = vcmp.eq.s32.totalorder %v559, %v913
      %vm1014 = vcmp.eq.s32.totalorder %v559, %v928
      %vm1015 = vcmp.eq.s32.totalorder %v559, %v943
      %vm1016 = vcmp.eq.s32.totalorder %v559, %v958
      %vm1017 = vcmp.eq.s32.totalorder %v559, %v973
      %vm1018 = vcmp.eq.s32.totalorder %v559, %v988
      %vm1019 = vcmp.eq.s32.totalorder %v559, %v1003
      %v1020 = vsel %vm1004, 1, 0
      %v1021 = vsel %vm1005, 1, 0
      %v1022 = vsel %vm1006, 1, 0
      %v1023 = vsel %vm1007, 1, 0
      %v1024 = vsel %vm1008, 1, 0
      %v1025 = vsel %vm1009, 1, 0
      %v1026 = vsel %vm1010, 1, 0
      %v1027 = vsel %vm1011, 1, 0
      %v1028 = vsel %vm1012, 1, 0
      %v1029 = vsel %vm1013, 1, 0
      %v1030 = vsel %vm1014, 1, 0
      %v1031 = vsel %vm1015, 1, 0
      %v1032 = vsel %vm1016, 1, 0
      %v1033 = vsel %vm1017, 1, 0
      %v1034 = vsel %vm1018, 1, 0
      %v1035 = vsel %vm1019, 1, 0
      %v1036 = vcvt.s32.f32 %v1020
      %v1037 = vcvt.s32.f32 %v1021
      %v1038 = vcvt.s32.f32 %v1022
      %v1039 = vcvt.s32.f32 %v1023
      %v1040 = vcvt.s32.f32 %v1024
      %v1041 = vcvt.s32.f32 %v1025
      %v1042 = vcvt.s32.f32 %v1026
      %v1043 = vcvt.s32.f32 %v1027
      %v1044 = vcvt.s32.f32 %v1028
      %v1045 = vcvt.s32.f32 %v1029
      %v1046 = vcvt.s32.f32 %v1030
      %v1047 = vcvt.s32.f32 %v1031
      %v1048 = vcvt.s32.f32 %v1032
      %v1049 = vcvt.s32.f32 %v1033
      %v1050 = vcvt.s32.f32 %v1034
      %v1051 = vcvt.s32.f32 %v1035
      %v1053 = vcombine.high %v561, %v561
      %v1055 = vunpack.c.l.s4 1966171168
      %v1056 = vunpack.c.0.s8 %v1055
      %v1057 = vlaneseq
      %v1058 = vshrl.u32 %v1057, 7
      %v1059 = vsub.s32 %v1056, %v1058
      %v1060 = vrot.slane %v561, %v1059
      %v1062 = vunpack.c.l.s4 1966171168
      %v1063 = vunpack.c.0.s8 %v1062
      %v1064 = vlaneseq
      %v1065 = vshrl.u32 %v1064, 7
      %v1066 = vsub.s32 %v1063, %v1065
      %v1067 = vrot.slane %v1053, %v1066
      %v1068 = vcombine.high %v1060, %v1060
      %v1069 = vcombine.high %v1067, %v1067
      %v1071 = vunpack.c.l.s4 1966171168
      %v1072 = vunpack.c.0.s8 %v1071
      %v1073 = vlaneseq
      %v1074 = vshrl.u32 %v1073, 7
      %v1075 = vsub.s32 %v1072, %v1074
      %v1076 = vrot.slane %v1060, %v1075
      %v1078 = vunpack.c.l.s4 1966171168
      %v1079 = vunpack.c.0.s8 %v1078
      %v1080 = vlaneseq
      %v1081 = vshrl.u32 %v1080, 7
      %v1082 = vsub.s32 %v1079, %v1081
      %v1083 = vrot.slane %v1067, %v1082
      %v1085 = vunpack.c.l.s4 1966171168
      %v1086 = vunpack.c.0.s8 %v1085
      %v1087 = vlaneseq
      %v1088 = vshrl.u32 %v1087, 7
      %v1089 = vsub.s32 %v1086, %v1088
      %v1090 = vrot.slane %v1068, %v1089
      %v1092 = vunpack.c.l.s4 1966171168
      %v1093 = vunpack.c.0.s8 %v1092
      %v1094 = vlaneseq
      %v1095 = vshrl.u32 %v1094, 7
      %v1096 = vsub.s32 %v1093, %v1095
      %v1097 = vrot.slane %v1069, %v1096
      %v1098 = vcombine.high %v1076, %v1076
      %v1099 = vcombine.high %v1083, %v1083
      %v1100 = vcombine.high %v1090, %v1090
      %v1101 = vcombine.high %v1097, %v1097
      %v1102 = vlaneseq
      %v1103 = vshrl.u32 %v1102, 7
      %v1104 = vsub.s32 0, %v1103
      %v1105 = vrot.slane %v1076, %v1104
      %v1106 = vlaneseq
      %v1107 = vshrl.u32 %v1106, 7
      %v1108 = vsub.s32 0, %v1107
      %v1109 = vrot.slane %v1090, %v1108
      %v1110 = vlaneseq
      %v1111 = vshrl.u32 %v1110, 7
      %v1112 = vsub.s32 0, %v1111
      %v1113 = vrot.slane %v1098, %v1112
      %v1114 = vlaneseq
      %v1115 = vshrl.u32 %v1114, 7
      %v1116 = vsub.s32 0, %v1115
      %v1117 = vrot.slane %v1100, %v1116
      %v1118 = vlaneseq
      %v1119 = vshrl.u32 %v1118, 7
      %v1120 = vsub.s32 0, %v1119
      %v1121 = vrot.slane %v1083, %v1120
      %v1122 = vlaneseq
      %v1123 = vshrl.u32 %v1122, 7
      %v1124 = vsub.s32 0, %v1123
      %v1125 = vrot.slane %v1097, %v1124
      %v1126 = vlaneseq
      %v1127 = vshrl.u32 %v1126, 7
      %v1128 = vsub.s32 0, %v1127
      %v1129 = vrot.slane %v1099, %v1128
      %v1130 = vlaneseq
      %v1131 = vshrl.u32 %v1130, 7
      %v1132 = vsub.s32 0, %v1131
      %v1133 = vrot.slane %v1101, %v1132
      %v1142 = vmul.f32 %v1036, %v1105
      %v1143 = vmul.f32 %v1037, %v1105
      %v1144 = vmul.f32 %v1038, %v1109
      %v1145 = vmul.f32 %v1039, %v1109
      %v1146 = vmul.f32 %v1040, %v1113
      %v1147 = vmul.f32 %v1041, %v1113
      %v1148 = vmul.f32 %v1042, %v1117
      %v1149 = vmul.f32 %v1043, %v1117
      %v1150 = vmul.f32 %v1044, %v1121
      %v1151 = vmul.f32 %v1045, %v1121
      %v1152 = vmul.f32 %v1046, %v1125
      %v1153 = vmul.f32 %v1047, %v1125
      %v1154 = vmul.f32 %v1048, %v1129
      %v1155 = vmul.f32 %v1049, %v1129
      %v1156 = vmul.f32 %v1050, %v1133
      %v1157 = vmul.f32 %v1051, %v1133
      %v1158 = vsel %vm763, %v1142, 0.0
      %1159 = vadd.xlane.f32.xlu0 %v1158
      %v1160 = vpop.xlane.xlu0 %1159
      %v1161 = vsel %vm763, %v1143, 0.0
      %1162 = vadd.xlane.f32.xlu0 %v1161
      %v1163 = vpop.xlane.xlu0 %1162
      %v1164 = vsel %vm763, %v1144, 0.0
      %1165 = vadd.xlane.f32.xlu0 %v1164
      %v1166 = vpop.xlane.xlu0 %1165
      %v1167 = vsel %vm763, %v1145, 0.0
      %1168 = vadd.xlane.f32.xlu0 %v1167
      %v1169 = vpop.xlane.xlu0 %1168
      %v1170 = vsel %vm763, %v1146, 0.0
      %1171 = vadd.xlane.f32.xlu0 %v1170
      %v1172 = vpop.xlane.xlu0 %1171
      %v1173 = vsel %vm763, %v1147, 0.0
      %1174 = vadd.xlane.f32.xlu0 %v1173
      %v1175 = vpop.xlane.xlu0 %1174
      %v1176 = vsel %vm763, %v1148, 0.0
      %1177 = vadd.xlane.f32.xlu0 %v1176
      %v1178 = vpop.xlane.xlu0 %1177
      %v1179 = vsel %vm763, %v1149, 0.0
      %1180 = vadd.xlane.f32.xlu0 %v1179
      %v1181 = vpop.xlane.xlu0 %1180
      %v1182 = vsel %vm763, %v1150, 0.0
      %1183 = vadd.xlane.f32.xlu0 %v1182
      %v1184 = vpop.xlane.xlu0 %1183
      %v1185 = vsel %vm763, %v1151, 0.0
      %1186 = vadd.xlane.f32.xlu0 %v1185
      %v1187 = vpop.xlane.xlu0 %1186
      %v1188 = vsel %vm763, %v1152, 0.0
      %1189 = vadd.xlane.f32.xlu0 %v1188
      %v1190 = vpop.xlane.xlu0 %1189
      %v1191 = vsel %vm763, %v1153, 0.0
      %1192 = vadd.xlane.f32.xlu0 %v1191
      %v1193 = vpop.xlane.xlu0 %1192
      %v1194 = vsel %vm763, %v1154, 0.0
      %1195 = vadd.xlane.f32.xlu0 %v1194
      %v1196 = vpop.xlane.xlu0 %1195
      %v1197 = vsel %vm763, %v1155, 0.0
      %1198 = vadd.xlane.f32.xlu0 %v1197
      %v1199 = vpop.xlane.xlu0 %1198
      %v1200 = vsel %vm763, %v1156, 0.0
      %1201 = vadd.xlane.f32.xlu0 %v1200
      %v1202 = vpop.xlane.xlu0 %1201
      %v1203 = vsel %vm763, %v1157, 0.0
      %1204 = vadd.xlane.f32.xlu0 %v1203
      %v1205 = vpop.xlane.xlu0 %1204
      %s1206 = scalar_lea.vmem %s512, 8
      %v1207 = vld [vmem:[%s1206] sm:$0xff]
      %s1208 = scalar_lea.vmem %s516, 8
      %v1209 = vld [vmem:[%s1208] sm:$0xff]
      %v1210 = vcombine.high %v1207, %v1207
      %v1212 = vunpack.c.l.s4 1966171168
      %v1213 = vunpack.c.0.s8 %v1212
      %v1214 = vlaneseq
      %v1215 = vshrl.u32 %v1214, 7
      %v1216 = vsub.s32 %v1213, %v1215
      %v1217 = vrot.slane %v1207, %v1216
      %v1219 = vunpack.c.l.s4 1966171168
      %v1220 = vunpack.c.0.s8 %v1219
      %v1221 = vlaneseq
      %v1222 = vshrl.u32 %v1221, 7
      %v1223 = vsub.s32 %v1220, %v1222
      %v1224 = vrot.slane %v1210, %v1223
      %v1225 = vcombine.high %v1217, %v1217
      %v1226 = vcombine.high %v1224, %v1224
      %v1228 = vunpack.c.l.s4 1966171168
      %v1229 = vunpack.c.0.s8 %v1228
      %v1230 = vlaneseq
      %v1231 = vshrl.u32 %v1230, 7
      %v1232 = vsub.s32 %v1229, %v1231
      %v1233 = vrot.slane %v1217, %v1232
      %v1235 = vunpack.c.l.s4 1966171168
      %v1236 = vunpack.c.0.s8 %v1235
      %v1237 = vlaneseq
      %v1238 = vshrl.u32 %v1237, 7
      %v1239 = vsub.s32 %v1236, %v1238
      %v1240 = vrot.slane %v1224, %v1239
      %v1242 = vunpack.c.l.s4 1966171168
      %v1243 = vunpack.c.0.s8 %v1242
      %v1244 = vlaneseq
      %v1245 = vshrl.u32 %v1244, 7
      %v1246 = vsub.s32 %v1243, %v1245
      %v1247 = vrot.slane %v1225, %v1246
      %v1249 = vunpack.c.l.s4 1966171168
      %v1250 = vunpack.c.0.s8 %v1249
      %v1251 = vlaneseq
      %v1252 = vshrl.u32 %v1251, 7
      %v1253 = vsub.s32 %v1250, %v1252
      %v1254 = vrot.slane %v1226, %v1253
      %v1255 = vcombine.high %v1233, %v1233
      %v1256 = vcombine.high %v1240, %v1240
      %v1257 = vcombine.high %v1247, %v1247
      %v1258 = vcombine.high %v1254, %v1254
      %v1259 = vlaneseq
      %v1260 = vshrl.u32 %v1259, 7
      %v1261 = vsub.s32 0, %v1260
      %v1262 = vrot.slane %v1233, %v1261
      %v1263 = vlaneseq
      %v1264 = vshrl.u32 %v1263, 7
      %v1265 = vsub.s32 0, %v1264
      %v1266 = vrot.slane %v1247, %v1265
      %v1267 = vlaneseq
      %v1268 = vshrl.u32 %v1267, 7
      %v1269 = vsub.s32 0, %v1268
      %v1270 = vrot.slane %v1255, %v1269
      %v1271 = vlaneseq
      %v1272 = vshrl.u32 %v1271, 7
      %v1273 = vsub.s32 0, %v1272
      %v1274 = vrot.slane %v1257, %v1273
      %v1275 = vlaneseq
      %v1276 = vshrl.u32 %v1275, 7
      %v1277 = vsub.s32 0, %v1276
      %v1278 = vrot.slane %v1240, %v1277
      %v1279 = vlaneseq
      %v1280 = vshrl.u32 %v1279, 7
      %v1281 = vsub.s32 0, %v1280
      %v1282 = vrot.slane %v1254, %v1281
      %v1283 = vlaneseq
      %v1284 = vshrl.u32 %v1283, 7
      %v1285 = vsub.s32 0, %v1284
      %v1286 = vrot.slane %v1256, %v1285
      %v1287 = vlaneseq
      %v1288 = vshrl.u32 %v1287, 7
      %v1289 = vsub.s32 0, %v1288
      %v1290 = vrot.slane %v1258, %v1289
      %vm1291 = vcmp.eq.s32.totalorder %v568, %v1262
      %vm1292 = vcmp.eq.s32.totalorder %v572, %v1262
      %vm1293 = vcmp.eq.s32.totalorder %v579, %v1266
      %vm1294 = vcmp.eq.s32.totalorder %v583, %v1266
      %vm1295 = vcmp.eq.s32.totalorder %v590, %v1270
      %vm1296 = vcmp.eq.s32.totalorder %v594, %v1270
      %vm1297 = vcmp.eq.s32.totalorder %v601, %v1274
      %vm1298 = vcmp.eq.s32.totalorder %v605, %v1274
      %vm1299 = vcmp.eq.s32.totalorder %v612, %v1278
      %vm1300 = vcmp.eq.s32.totalorder %v616, %v1278
      %vm1301 = vcmp.eq.s32.totalorder %v623, %v1282
      %vm1302 = vcmp.eq.s32.totalorder %v627, %v1282
      %vm1303 = vcmp.eq.s32.totalorder %v634, %v1286
      %vm1304 = vcmp.eq.s32.totalorder %v638, %v1286
      %vm1305 = vcmp.eq.s32.totalorder %v645, %v1290
      %vm1306 = vcmp.eq.s32.totalorder %v649, %v1290
      %v1307 = vsel %vm1291, %v559, 4294967295
      %v1308 = vsel %vm1292, %v559, 4294967295
      %v1309 = vsel %vm1293, %v559, 4294967295
      %v1310 = vsel %vm1294, %v559, 4294967295
      %v1311 = vsel %vm1295, %v559, 4294967295
      %v1312 = vsel %vm1296, %v559, 4294967295
      %v1313 = vsel %vm1297, %v559, 4294967295
      %v1314 = vsel %vm1298, %v559, 4294967295
      %v1315 = vsel %vm1299, %v559, 4294967295
      %v1316 = vsel %vm1300, %v559, 4294967295
      %v1317 = vsel %vm1301, %v559, 4294967295
      %v1318 = vsel %vm1302, %v559, 4294967295
      %v1319 = vsel %vm1303, %v559, 4294967295
      %v1320 = vsel %vm1304, %v559, 4294967295
      %v1321 = vsel %vm1305, %v559, 4294967295
      %v1322 = vsel %vm1306, %v559, 4294967295
      %v1323 = vsel %vm763, %v1307, 2147483648
      %v1324 = vand.u32 %v1323, 65535
      %v1325 = vshra.s32 %v1323, 16
      %v1326 = vcvt.s32.f32 %v1324
      %v1327 = vcvt.s32.f32 %v1325
      %1328 = vmax.xlane.f32.xlu0 %v1327
      %v1329 = vpop.xlane.xlu0 %1328
      %vm1330 = vcmp.eq.f32.partialorder %v1327, %v1329
      %v1331 = vsel %vm1330, %v1326, -inf
      %1332 = vmax.xlane.f32.xlu0 %v1331
      %v1333 = vpop.xlane.xlu0 %1332
      %v1334 = vcvt.f32.s32 %v1333
      %v1335 = vcvt.f32.s32 %v1329
      %v1336 = vshll.u32 %v1335, 16
      %v1337 = vadd.s32 %v1336, %v1334
      %v1338 = vsel %vm763, %v1308, 2147483648
      %v1339 = vand.u32 %v1338, 65535
      %v1340 = vshra.s32 %v1338, 16
      %v1341 = vcvt.s32.f32 %v1339
      %v1342 = vcvt.s32.f32 %v1340
      %1343 = vmax.xlane.f32.xlu0 %v1342
      %v1344 = vpop.xlane.xlu0 %1343
      %vm1345 = vcmp.eq.f32.partialorder %v1342, %v1344
      %v1346 = vsel %vm1345, %v1341, -inf
      %1347 = vmax.xlane.f32.xlu0 %v1346
      %v1348 = vpop.xlane.xlu0 %1347
      %v1349 = vcvt.f32.s32 %v1348
      %v1350 = vcvt.f32.s32 %v1344
      %v1351 = vshll.u32 %v1350, 16
      %v1352 = vadd.s32 %v1351, %v1349
      %v1353 = vsel %vm763, %v1309, 2147483648
      %v1354 = vand.u32 %v1353, 65535
      %v1355 = vshra.s32 %v1353, 16
      %v1356 = vcvt.s32.f32 %v1354
      %v1357 = vcvt.s32.f32 %v1355
      %1358 = vmax.xlane.f32.xlu0 %v1357
      %v1359 = vpop.xlane.xlu0 %1358
      %vm1360 = vcmp.eq.f32.partialorder %v1357, %v1359
      %v1361 = vsel %vm1360, %v1356, -inf
      %1362 = vmax.xlane.f32.xlu0 %v1361
      %v1363 = vpop.xlane.xlu0 %1362
      %v1364 = vcvt.f32.s32 %v1363
      %v1365 = vcvt.f32.s32 %v1359
      %v1366 = vshll.u32 %v1365, 16
      %v1367 = vadd.s32 %v1366, %v1364
      %v1368 = vsel %vm763, %v1310, 2147483648
      %v1369 = vand.u32 %v1368, 65535
      %v1370 = vshra.s32 %v1368, 16
      %v1371 = vcvt.s32.f32 %v1369
      %v1372 = vcvt.s32.f32 %v1370
      %1373 = vmax.xlane.f32.xlu0 %v1372
      %v1374 = vpop.xlane.xlu0 %1373
      %vm1375 = vcmp.eq.f32.partialorder %v1372, %v1374
      %v1376 = vsel %vm1375, %v1371, -inf
      %1377 = vmax.xlane.f32.xlu0 %v1376
      %v1378 = vpop.xlane.xlu0 %1377
      %v1379 = vcvt.f32.s32 %v1378
      %v1380 = vcvt.f32.s32 %v1374
      %v1381 = vshll.u32 %v1380, 16
      %v1382 = vadd.s32 %v1381, %v1379
      %v1383 = vsel %vm763, %v1311, 2147483648
      %v1384 = vand.u32 %v1383, 65535
      %v1385 = vshra.s32 %v1383, 16
      %v1386 = vcvt.s32.f32 %v1384
      %v1387 = vcvt.s32.f32 %v1385
      %1388 = vmax.xlane.f32.xlu0 %v1387
      %v1389 = vpop.xlane.xlu0 %1388
      %vm1390 = vcmp.eq.f32.partialorder %v1387, %v1389
      %v1391 = vsel %vm1390, %v1386, -inf
      %1392 = vmax.xlane.f32.xlu0 %v1391
      %v1393 = vpop.xlane.xlu0 %1392
      %v1394 = vcvt.f32.s32 %v1393
      %v1395 = vcvt.f32.s32 %v1389
      %v1396 = vshll.u32 %v1395, 16
      %v1397 = vadd.s32 %v1396, %v1394
      %v1398 = vsel %vm763, %v1312, 2147483648
      %v1399 = vand.u32 %v1398, 65535
      %v1400 = vshra.s32 %v1398, 16
      %v1401 = vcvt.s32.f32 %v1399
      %v1402 = vcvt.s32.f32 %v1400
      %1403 = vmax.xlane.f32.xlu0 %v1402
      %v1404 = vpop.xlane.xlu0 %1403
      %vm1405 = vcmp.eq.f32.partialorder %v1402, %v1404
      %v1406 = vsel %vm1405, %v1401, -inf
      %1407 = vmax.xlane.f32.xlu0 %v1406
      %v1408 = vpop.xlane.xlu0 %1407
      %v1409 = vcvt.f32.s32 %v1408
      %v1410 = vcvt.f32.s32 %v1404
      %v1411 = vshll.u32 %v1410, 16
      %v1412 = vadd.s32 %v1411, %v1409
      %v1413 = vsel %vm763, %v1313, 2147483648
      %v1414 = vand.u32 %v1413, 65535
      %v1415 = vshra.s32 %v1413, 16
      %v1416 = vcvt.s32.f32 %v1414
      %v1417 = vcvt.s32.f32 %v1415
      %1418 = vmax.xlane.f32.xlu0 %v1417
      %v1419 = vpop.xlane.xlu0 %1418
      %vm1420 = vcmp.eq.f32.partialorder %v1417, %v1419
      %v1421 = vsel %vm1420, %v1416, -inf
      %1422 = vmax.xlane.f32.xlu0 %v1421
      %v1423 = vpop.xlane.xlu0 %1422
      %v1424 = vcvt.f32.s32 %v1423
      %v1425 = vcvt.f32.s32 %v1419
      %v1426 = vshll.u32 %v1425, 16
      %v1427 = vadd.s32 %v1426, %v1424
      %v1428 = vsel %vm763, %v1314, 2147483648
      %v1429 = vand.u32 %v1428, 65535
      %v1430 = vshra.s32 %v1428, 16
      %v1431 = vcvt.s32.f32 %v1429
      %v1432 = vcvt.s32.f32 %v1430
      %1433 = vmax.xlane.f32.xlu0 %v1432
      %v1434 = vpop.xlane.xlu0 %1433
      %vm1435 = vcmp.eq.f32.partialorder %v1432, %v1434
      %v1436 = vsel %vm1435, %v1431, -inf
      %1437 = vmax.xlane.f32.xlu0 %v1436
      %v1438 = vpop.xlane.xlu0 %1437
      %v1439 = vcvt.f32.s32 %v1438
      %v1440 = vcvt.f32.s32 %v1434
      %v1441 = vshll.u32 %v1440, 16
      %v1442 = vadd.s32 %v1441, %v1439
      %v1443 = vsel %vm763, %v1315, 2147483648
      %v1444 = vand.u32 %v1443, 65535
      %v1445 = vshra.s32 %v1443, 16
      %v1446 = vcvt.s32.f32 %v1444
      %v1447 = vcvt.s32.f32 %v1445
      %1448 = vmax.xlane.f32.xlu0 %v1447
      %v1449 = vpop.xlane.xlu0 %1448
      %vm1450 = vcmp.eq.f32.partialorder %v1447, %v1449
      %v1451 = vsel %vm1450, %v1446, -inf
      %1452 = vmax.xlane.f32.xlu0 %v1451
      %v1453 = vpop.xlane.xlu0 %1452
      %v1454 = vcvt.f32.s32 %v1453
      %v1455 = vcvt.f32.s32 %v1449
      %v1456 = vshll.u32 %v1455, 16
      %v1457 = vadd.s32 %v1456, %v1454
      %v1458 = vsel %vm763, %v1316, 2147483648
      %v1459 = vand.u32 %v1458, 65535
      %v1460 = vshra.s32 %v1458, 16
      %v1461 = vcvt.s32.f32 %v1459
      %v1462 = vcvt.s32.f32 %v1460
      %1463 = vmax.xlane.f32.xlu0 %v1462
      %v1464 = vpop.xlane.xlu0 %1463
      %vm1465 = vcmp.eq.f32.partialorder %v1462, %v1464
      %v1466 = vsel %vm1465, %v1461, -inf
      %1467 = vmax.xlane.f32.xlu0 %v1466
      %v1468 = vpop.xlane.xlu0 %1467
      %v1469 = vcvt.f32.s32 %v1468
      %v1470 = vcvt.f32.s32 %v1464
      %v1471 = vshll.u32 %v1470, 16
      %v1472 = vadd.s32 %v1471, %v1469
      %v1473 = vsel %vm763, %v1317, 2147483648
      %v1474 = vand.u32 %v1473, 65535
      %v1475 = vshra.s32 %v1473, 16
      %v1476 = vcvt.s32.f32 %v1474
      %v1477 = vcvt.s32.f32 %v1475
      %1478 = vmax.xlane.f32.xlu0 %v1477
      %v1479 = vpop.xlane.xlu0 %1478
      %vm1480 = vcmp.eq.f32.partialorder %v1477, %v1479
      %v1481 = vsel %vm1480, %v1476, -inf
      %1482 = vmax.xlane.f32.xlu0 %v1481
      %v1483 = vpop.xlane.xlu0 %1482
      %v1484 = vcvt.f32.s32 %v1483
      %v1485 = vcvt.f32.s32 %v1479
      %v1486 = vshll.u32 %v1485, 16
      %v1487 = vadd.s32 %v1486, %v1484
      %v1488 = vsel %vm763, %v1318, 2147483648
      %v1489 = vand.u32 %v1488, 65535
      %v1490 = vshra.s32 %v1488, 16
      %v1491 = vcvt.s32.f32 %v1489
      %v1492 = vcvt.s32.f32 %v1490
      %1493 = vmax.xlane.f32.xlu0 %v1492
      %v1494 = vpop.xlane.xlu0 %1493
      %vm1495 = vcmp.eq.f32.partialorder %v1492, %v1494
      %v1496 = vsel %vm1495, %v1491, -inf
      %1497 = vmax.xlane.f32.xlu0 %v1496
      %v1498 = vpop.xlane.xlu0 %1497
      %v1499 = vcvt.f32.s32 %v1498
      %v1500 = vcvt.f32.s32 %v1494
      %v1501 = vshll.u32 %v1500, 16
      %v1502 = vadd.s32 %v1501, %v1499
      %v1503 = vsel %vm763, %v1319, 2147483648
      %v1504 = vand.u32 %v1503, 65535
      %v1505 = vshra.s32 %v1503, 16
      %v1506 = vcvt.s32.f32 %v1504
      %v1507 = vcvt.s32.f32 %v1505
      %1508 = vmax.xlane.f32.xlu0 %v1507
      %v1509 = vpop.xlane.xlu0 %1508
      %vm1510 = vcmp.eq.f32.partialorder %v1507, %v1509
      %v1511 = vsel %vm1510, %v1506, -inf
      %1512 = vmax.xlane.f32.xlu0 %v1511
      %v1513 = vpop.xlane.xlu0 %1512
      %v1514 = vcvt.f32.s32 %v1513
      %v1515 = vcvt.f32.s32 %v1509
      %v1516 = vshll.u32 %v1515, 16
      %v1517 = vadd.s32 %v1516, %v1514
      %v1518 = vsel %vm763, %v1320, 2147483648
      %v1519 = vand.u32 %v1518, 65535
      %v1520 = vshra.s32 %v1518, 16
      %v1521 = vcvt.s32.f32 %v1519
      %v1522 = vcvt.s32.f32 %v1520
      %1523 = vmax.xlane.f32.xlu0 %v1522
      %v1524 = vpop.xlane.xlu0 %1523
      %vm1525 = vcmp.eq.f32.partialorder %v1522, %v1524
      %v1526 = vsel %vm1525, %v1521, -inf
      %1527 = vmax.xlane.f32.xlu0 %v1526
      %v1528 = vpop.xlane.xlu0 %1527
      %v1529 = vcvt.f32.s32 %v1528
      %v1530 = vcvt.f32.s32 %v1524
      %v1531 = vshll.u32 %v1530, 16
      %v1532 = vadd.s32 %v1531, %v1529
      %v1533 = vsel %vm763, %v1321, 2147483648
      %v1534 = vand.u32 %v1533, 65535
      %v1535 = vshra.s32 %v1533, 16
      %v1536 = vcvt.s32.f32 %v1534
      %v1537 = vcvt.s32.f32 %v1535
      %1538 = vmax.xlane.f32.xlu0 %v1537
      %v1539 = vpop.xlane.xlu0 %1538
      %vm1540 = vcmp.eq.f32.partialorder %v1537, %v1539
      %v1541 = vsel %vm1540, %v1536, -inf
      %1542 = vmax.xlane.f32.xlu0 %v1541
      %v1543 = vpop.xlane.xlu0 %1542
      %v1544 = vcvt.f32.s32 %v1543
      %v1545 = vcvt.f32.s32 %v1539
      %v1546 = vshll.u32 %v1545, 16
      %v1547 = vadd.s32 %v1546, %v1544
      %v1548 = vsel %vm763, %v1322, 2147483648
      %v1549 = vand.u32 %v1548, 65535
      %v1550 = vshra.s32 %v1548, 16
      %v1551 = vcvt.s32.f32 %v1549
      %v1552 = vcvt.s32.f32 %v1550
      %1553 = vmax.xlane.f32.xlu0 %v1552
      %v1554 = vpop.xlane.xlu0 %1553
      %vm1555 = vcmp.eq.f32.partialorder %v1552, %v1554
      %v1556 = vsel %vm1555, %v1551, -inf
      %1557 = vmax.xlane.f32.xlu0 %v1556
      %v1558 = vpop.xlane.xlu0 %1557
      %v1559 = vcvt.f32.s32 %v1558
      %v1560 = vcvt.f32.s32 %v1554
      %v1561 = vshll.u32 %v1560, 16
      %v1562 = vadd.s32 %v1561, %v1559
      %vm1563 = vcmp.eq.s32.totalorder %v559, %v1337
      %vm1564 = vcmp.eq.s32.totalorder %v559, %v1352
      %vm1565 = vcmp.eq.s32.totalorder %v559, %v1367
      %vm1566 = vcmp.eq.s32.totalorder %v559, %v1382
      %vm1567 = vcmp.eq.s32.totalorder %v559, %v1397
      %vm1568 = vcmp.eq.s32.totalorder %v559, %v1412
      %vm1569 = vcmp.eq.s32.totalorder %v559, %v1427
      %vm1570 = vcmp.eq.s32.totalorder %v559, %v1442
      %vm1571 = vcmp.eq.s32.totalorder %v559, %v1457
      %vm1572 = vcmp.eq.s32.totalorder %v559, %v1472
      %vm1573 = vcmp.eq.s32.totalorder %v559, %v1487
      %vm1574 = vcmp.eq.s32.totalorder %v559, %v1502
      %vm1575 = vcmp.eq.s32.totalorder %v559, %v1517
      %vm1576 = vcmp.eq.s32.totalorder %v559, %v1532
      %vm1577 = vcmp.eq.s32.totalorder %v559, %v1547
      %vm1578 = vcmp.eq.s32.totalorder %v559, %v1562
      %v1579 = vsel %vm1563, 1, 0
      %v1580 = vsel %vm1564, 1, 0
      %v1581 = vsel %vm1565, 1, 0
      %v1582 = vsel %vm1566, 1, 0
      %v1583 = vsel %vm1567, 1, 0
      %v1584 = vsel %vm1568, 1, 0
      %v1585 = vsel %vm1569, 1, 0
      %v1586 = vsel %vm1570, 1, 0
      %v1587 = vsel %vm1571, 1, 0
      %v1588 = vsel %vm1572, 1, 0
      %v1589 = vsel %vm1573, 1, 0
      %v1590 = vsel %vm1574, 1, 0
      %v1591 = vsel %vm1575, 1, 0
      %v1592 = vsel %vm1576, 1, 0
      %v1593 = vsel %vm1577, 1, 0
      %v1594 = vsel %vm1578, 1, 0
      %v1595 = vcvt.s32.f32 %v1579
      %v1596 = vcvt.s32.f32 %v1580
      %v1597 = vcvt.s32.f32 %v1581
      %v1598 = vcvt.s32.f32 %v1582
      %v1599 = vcvt.s32.f32 %v1583
      %v1600 = vcvt.s32.f32 %v1584
      %v1601 = vcvt.s32.f32 %v1585
      %v1602 = vcvt.s32.f32 %v1586
      %v1603 = vcvt.s32.f32 %v1587
      %v1604 = vcvt.s32.f32 %v1588
      %v1605 = vcvt.s32.f32 %v1589
      %v1606 = vcvt.s32.f32 %v1590
      %v1607 = vcvt.s32.f32 %v1591
      %v1608 = vcvt.s32.f32 %v1592
      %v1609 = vcvt.s32.f32 %v1593
      %v1610 = vcvt.s32.f32 %v1594
      %v1612 = vcombine.high %v1209, %v1209
      %v1614 = vunpack.c.l.s4 1966171168
      %v1615 = vunpack.c.0.s8 %v1614
      %v1616 = vlaneseq
      %v1617 = vshrl.u32 %v1616, 7
      %v1618 = vsub.s32 %v1615, %v1617
      %v1619 = vrot.slane %v1209, %v1618
      %v1621 = vunpack.c.l.s4 1966171168
      %v1622 = vunpack.c.0.s8 %v1621
      %v1623 = vlaneseq
      %v1624 = vshrl.u32 %v1623, 7
      %v1625 = vsub.s32 %v1622, %v1624
      %v1626 = vrot.slane %v1612, %v1625
      %v1627 = vcombine.high %v1619, %v1619
      %v1628 = vcombine.high %v1626, %v1626
      %v1630 = vunpack.c.l.s4 1966171168
      %v1631 = vunpack.c.0.s8 %v1630
      %v1632 = vlaneseq
      %v1633 = vshrl.u32 %v1632, 7
      %v1634 = vsub.s32 %v1631, %v1633
      %v1635 = vrot.slane %v1619, %v1634
      %v1637 = vunpack.c.l.s4 1966171168
      %v1638 = vunpack.c.0.s8 %v1637
      %v1639 = vlaneseq
      %v1640 = vshrl.u32 %v1639, 7
      %v1641 = vsub.s32 %v1638, %v1640
      %v1642 = vrot.slane %v1626, %v1641
      %v1644 = vunpack.c.l.s4 1966171168
      %v1645 = vunpack.c.0.s8 %v1644
      %v1646 = vlaneseq
      %v1647 = vshrl.u32 %v1646, 7
      %v1648 = vsub.s32 %v1645, %v1647
      %v1649 = vrot.slane %v1627, %v1648
      %v1651 = vunpack.c.l.s4 1966171168
      %v1652 = vunpack.c.0.s8 %v1651
      %v1653 = vlaneseq
      %v1654 = vshrl.u32 %v1653, 7
      %v1655 = vsub.s32 %v1652, %v1654
      %v1656 = vrot.slane %v1628, %v1655
      %v1657 = vcombine.high %v1635, %v1635
      %v1658 = vcombine.high %v1642, %v1642
      %v1659 = vcombine.high %v1649, %v1649
      %v1660 = vcombine.high %v1656, %v1656
      %v1661 = vlaneseq
      %v1662 = vshrl.u32 %v1661, 7
      %v1663 = vsub.s32 0, %v1662
      %v1664 = vrot.slane %v1635, %v1663
      %v1665 = vlaneseq
      %v1666 = vshrl.u32 %v1665, 7
      %v1667 = vsub.s32 0, %v1666
      %v1668 = vrot.slane %v1649, %v1667
      %v1669 = vlaneseq
      %v1670 = vshrl.u32 %v1669, 7
      %v1671 = vsub.s32 0, %v1670
      %v1672 = vrot.slane %v1657, %v1671
      %v1673 = vlaneseq
      %v1674 = vshrl.u32 %v1673, 7
      %v1675 = vsub.s32 0, %v1674
      %v1676 = vrot.slane %v1659, %v1675
      %v1677 = vlaneseq
      %v1678 = vshrl.u32 %v1677, 7
      %v1679 = vsub.s32 0, %v1678
      %v1680 = vrot.slane %v1642, %v1679
      %v1681 = vlaneseq
      %v1682 = vshrl.u32 %v1681, 7
      %v1683 = vsub.s32 0, %v1682
      %v1684 = vrot.slane %v1656, %v1683
      %v1685 = vlaneseq
      %v1686 = vshrl.u32 %v1685, 7
      %v1687 = vsub.s32 0, %v1686
      %v1688 = vrot.slane %v1658, %v1687
      %v1689 = vlaneseq
      %v1690 = vshrl.u32 %v1689, 7
      %v1691 = vsub.s32 0, %v1690
      %v1692 = vrot.slane %v1660, %v1691
      %v1701 = vmul.f32 %v1595, %v1664
      %v1702 = vmul.f32 %v1596, %v1664
      %v1703 = vmul.f32 %v1597, %v1668
      %v1704 = vmul.f32 %v1598, %v1668
      %v1705 = vmul.f32 %v1599, %v1672
      %v1706 = vmul.f32 %v1600, %v1672
      %v1707 = vmul.f32 %v1601, %v1676
      %v1708 = vmul.f32 %v1602, %v1676
      %v1709 = vmul.f32 %v1603, %v1680
      %v1710 = vmul.f32 %v1604, %v1680
      %v1711 = vmul.f32 %v1605, %v1684
      %v1712 = vmul.f32 %v1606, %v1684
      %v1713 = vmul.f32 %v1607, %v1688
      %v1714 = vmul.f32 %v1608, %v1688
      %v1715 = vmul.f32 %v1609, %v1692
      %v1716 = vmul.f32 %v1610, %v1692
      %v1717 = vsel %vm763, %v1701, 0.0
      %1718 = vadd.xlane.f32.xlu0 %v1717
      %v1719 = vpop.xlane.xlu0 %1718
      %v1720 = vsel %vm763, %v1702, 0.0
      %1721 = vadd.xlane.f32.xlu0 %v1720
      %v1722 = vpop.xlane.xlu0 %1721
      %v1723 = vsel %vm763, %v1703, 0.0
      %1724 = vadd.xlane.f32.xlu0 %v1723
      %v1725 = vpop.xlane.xlu0 %1724
      %v1726 = vsel %vm763, %v1704, 0.0
      %1727 = vadd.xlane.f32.xlu0 %v1726
      %v1728 = vpop.xlane.xlu0 %1727
      %v1729 = vsel %vm763, %v1705, 0.0
      %1730 = vadd.xlane.f32.xlu0 %v1729
      %v1731 = vpop.xlane.xlu0 %1730
      %v1732 = vsel %vm763, %v1706, 0.0
      %1733 = vadd.xlane.f32.xlu0 %v1732
      %v1734 = vpop.xlane.xlu0 %1733
      %v1735 = vsel %vm763, %v1707, 0.0
      %1736 = vadd.xlane.f32.xlu0 %v1735
      %v1737 = vpop.xlane.xlu0 %1736
      %v1738 = vsel %vm763, %v1708, 0.0
      %1739 = vadd.xlane.f32.xlu0 %v1738
      %v1740 = vpop.xlane.xlu0 %1739
      %v1741 = vsel %vm763, %v1709, 0.0
      %1742 = vadd.xlane.f32.xlu0 %v1741
      %v1743 = vpop.xlane.xlu0 %1742
      %v1744 = vsel %vm763, %v1710, 0.0
      %1745 = vadd.xlane.f32.xlu0 %v1744
      %v1746 = vpop.xlane.xlu0 %1745
      %v1747 = vsel %vm763, %v1711, 0.0
      %1748 = vadd.xlane.f32.xlu0 %v1747
      %v1749 = vpop.xlane.xlu0 %1748
      %v1750 = vsel %vm763, %v1712, 0.0
      %1751 = vadd.xlane.f32.xlu0 %v1750
      %v1752 = vpop.xlane.xlu0 %1751
      %v1753 = vsel %vm763, %v1713, 0.0
      %1754 = vadd.xlane.f32.xlu0 %v1753
      %v1755 = vpop.xlane.xlu0 %1754
      %v1756 = vsel %vm763, %v1714, 0.0
      %1757 = vadd.xlane.f32.xlu0 %v1756
      %v1758 = vpop.xlane.xlu0 %1757
      %v1759 = vsel %vm763, %v1715, 0.0
      %1760 = vadd.xlane.f32.xlu0 %v1759
      %v1761 = vpop.xlane.xlu0 %1760
      %v1762 = vsel %vm763, %v1716, 0.0
      %1763 = vadd.xlane.f32.xlu0 %v1762
      %v1764 = vpop.xlane.xlu0 %1763
      %s1765 = scalar_lea.vmem %s512, 16
      %v1766 = vld [vmem:[%s1765] sm:$0xff]
      %s1767 = scalar_lea.vmem %s516, 16
      %v1768 = vld [vmem:[%s1767] sm:$0xff]
      %v1769 = vcombine.high %v1766, %v1766
      %v1771 = vunpack.c.l.s4 1966171168
      %v1772 = vunpack.c.0.s8 %v1771
      %v1773 = vlaneseq
      %v1774 = vshrl.u32 %v1773, 7
      %v1775 = vsub.s32 %v1772, %v1774
      %v1776 = vrot.slane %v1766, %v1775
      %v1778 = vunpack.c.l.s4 1966171168
      %v1779 = vunpack.c.0.s8 %v1778
      %v1780 = vlaneseq
      %v1781 = vshrl.u32 %v1780, 7
      %v1782 = vsub.s32 %v1779, %v1781
      %v1783 = vrot.slane %v1769, %v1782
      %v1784 = vcombine.high %v1776, %v1776
      %v1785 = vcombine.high %v1783, %v1783
      %v1787 = vunpack.c.l.s4 1966171168
      %v1788 = vunpack.c.0.s8 %v1787
      %v1789 = vlaneseq
      %v1790 = vshrl.u32 %v1789, 7
      %v1791 = vsub.s32 %v1788, %v1790
      %v1792 = vrot.slane %v1776, %v1791
      %v1794 = vunpack.c.l.s4 1966171168
      %v1795 = vunpack.c.0.s8 %v1794
      %v1796 = vlaneseq
      %v1797 = vshrl.u32 %v1796, 7
      %v1798 = vsub.s32 %v1795, %v1797
      %v1799 = vrot.slane %v1783, %v1798
      %v1801 = vunpack.c.l.s4 1966171168
      %v1802 = vunpack.c.0.s8 %v1801
      %v1803 = vlaneseq
      %v1804 = vshrl.u32 %v1803, 7
      %v1805 = vsub.s32 %v1802, %v1804
      %v1806 = vrot.slane %v1784, %v1805
      %v1808 = vunpack.c.l.s4 1966171168
      %v1809 = vunpack.c.0.s8 %v1808
      %v1810 = vlaneseq
      %v1811 = vshrl.u32 %v1810, 7
      %v1812 = vsub.s32 %v1809, %v1811
      %v1813 = vrot.slane %v1785, %v1812
      %v1814 = vcombine.high %v1792, %v1792
      %v1815 = vcombine.high %v1799, %v1799
      %v1816 = vcombine.high %v1806, %v1806
      %v1817 = vcombine.high %v1813, %v1813
      %v1818 = vlaneseq
      %v1819 = vshrl.u32 %v1818, 7
      %v1820 = vsub.s32 0, %v1819
      %v1821 = vrot.slane %v1792, %v1820
      %v1822 = vlaneseq
      %v1823 = vshrl.u32 %v1822, 7
      %v1824 = vsub.s32 0, %v1823
      %v1825 = vrot.slane %v1806, %v1824
      %v1826 = vlaneseq
      %v1827 = vshrl.u32 %v1826, 7
      %v1828 = vsub.s32 0, %v1827
      %v1829 = vrot.slane %v1814, %v1828
      %v1830 = vlaneseq
      %v1831 = vshrl.u32 %v1830, 7
      %v1832 = vsub.s32 0, %v1831
      %v1833 = vrot.slane %v1816, %v1832
      %v1834 = vlaneseq
      %v1835 = vshrl.u32 %v1834, 7
      %v1836 = vsub.s32 0, %v1835
      %v1837 = vrot.slane %v1799, %v1836
      %v1838 = vlaneseq
      %v1839 = vshrl.u32 %v1838, 7
      %v1840 = vsub.s32 0, %v1839
      %v1841 = vrot.slane %v1813, %v1840
      %v1842 = vlaneseq
      %v1843 = vshrl.u32 %v1842, 7
      %v1844 = vsub.s32 0, %v1843
      %v1845 = vrot.slane %v1815, %v1844
      %v1846 = vlaneseq
      %v1847 = vshrl.u32 %v1846, 7
      %v1848 = vsub.s32 0, %v1847
      %v1849 = vrot.slane %v1817, %v1848
      %vm1850 = vcmp.eq.s32.totalorder %v568, %v1821
      %vm1851 = vcmp.eq.s32.totalorder %v572, %v1821
      %vm1852 = vcmp.eq.s32.totalorder %v579, %v1825
      %vm1853 = vcmp.eq.s32.totalorder %v583, %v1825
      %vm1854 = vcmp.eq.s32.totalorder %v590, %v1829
      %vm1855 = vcmp.eq.s32.totalorder %v594, %v1829
      %vm1856 = vcmp.eq.s32.totalorder %v601, %v1833
      %vm1857 = vcmp.eq.s32.totalorder %v605, %v1833
      %vm1858 = vcmp.eq.s32.totalorder %v612, %v1837
      %vm1859 = vcmp.eq.s32.totalorder %v616, %v1837
      %vm1860 = vcmp.eq.s32.totalorder %v623, %v1841
      %vm1861 = vcmp.eq.s32.totalorder %v627, %v1841
      %vm1862 = vcmp.eq.s32.totalorder %v634, %v1845
      %vm1863 = vcmp.eq.s32.totalorder %v638, %v1845
      %vm1864 = vcmp.eq.s32.totalorder %v645, %v1849
      %vm1865 = vcmp.eq.s32.totalorder %v649, %v1849
      %v1866 = vsel %vm1850, %v559, 4294967295
      %v1867 = vsel %vm1851, %v559, 4294967295
      %v1868 = vsel %vm1852, %v559, 4294967295
      %v1869 = vsel %vm1853, %v559, 4294967295
      %v1870 = vsel %vm1854, %v559, 4294967295
      %v1871 = vsel %vm1855, %v559, 4294967295
      %v1872 = vsel %vm1856, %v559, 4294967295
      %v1873 = vsel %vm1857, %v559, 4294967295
      %v1874 = vsel %vm1858, %v559, 4294967295
      %v1875 = vsel %vm1859, %v559, 4294967295
      %v1876 = vsel %vm1860, %v559, 4294967295
      %v1877 = vsel %vm1861, %v559, 4294967295
      %v1878 = vsel %vm1862, %v559, 4294967295
      %v1879 = vsel %vm1863, %v559, 4294967295
      %v1880 = vsel %vm1864, %v559, 4294967295
      %v1881 = vsel %vm1865, %v559, 4294967295
      %v1882 = vsel %vm763, %v1866, 2147483648
      %v1883 = vand.u32 %v1882, 65535
      %v1884 = vshra.s32 %v1882, 16
      %v1885 = vcvt.s32.f32 %v1883
      %v1886 = vcvt.s32.f32 %v1884
      %1887 = vmax.xlane.f32.xlu0 %v1886
      %v1888 = vpop.xlane.xlu0 %1887
      %vm1889 = vcmp.eq.f32.partialorder %v1886, %v1888
      %v1890 = vsel %vm1889, %v1885, -inf
      %1891 = vmax.xlane.f32.xlu0 %v1890
      %v1892 = vpop.xlane.xlu0 %1891
      %v1893 = vcvt.f32.s32 %v1892
      %v1894 = vcvt.f32.s32 %v1888
      %v1895 = vshll.u32 %v1894, 16
      %v1896 = vadd.s32 %v1895, %v1893
      %v1897 = vsel %vm763, %v1867, 2147483648
      %v1898 = vand.u32 %v1897, 65535
      %v1899 = vshra.s32 %v1897, 16
      %v1900 = vcvt.s32.f32 %v1898
      %v1901 = vcvt.s32.f32 %v1899
      %1902 = vmax.xlane.f32.xlu0 %v1901
      %v1903 = vpop.xlane.xlu0 %1902
      %vm1904 = vcmp.eq.f32.partialorder %v1901, %v1903
      %v1905 = vsel %vm1904, %v1900, -inf
      %1906 = vmax.xlane.f32.xlu0 %v1905
      %v1907 = vpop.xlane.xlu0 %1906
      %v1908 = vcvt.f32.s32 %v1907
      %v1909 = vcvt.f32.s32 %v1903
      %v1910 = vshll.u32 %v1909, 16
      %v1911 = vadd.s32 %v1910, %v1908
      %v1912 = vsel %vm763, %v1868, 2147483648
      %v1913 = vand.u32 %v1912, 65535
      %v1914 = vshra.s32 %v1912, 16
      %v1915 = vcvt.s32.f32 %v1913
      %v1916 = vcvt.s32.f32 %v1914
      %1917 = vmax.xlane.f32.xlu0 %v1916
      %v1918 = vpop.xlane.xlu0 %1917
      %vm1919 = vcmp.eq.f32.partialorder %v1916, %v1918
      %v1920 = vsel %vm1919, %v1915, -inf
      %1921 = vmax.xlane.f32.xlu0 %v1920
      %v1922 = vpop.xlane.xlu0 %1921
      %v1923 = vcvt.f32.s32 %v1922
      %v1924 = vcvt.f32.s32 %v1918
      %v1925 = vshll.u32 %v1924, 16
      %v1926 = vadd.s32 %v1925, %v1923
      %v1927 = vsel %vm763, %v1869, 2147483648
      %v1928 = vand.u32 %v1927, 65535
      %v1929 = vshra.s32 %v1927, 16
      %v1930 = vcvt.s32.f32 %v1928
      %v1931 = vcvt.s32.f32 %v1929
      %1932 = vmax.xlane.f32.xlu0 %v1931
      %v1933 = vpop.xlane.xlu0 %1932
      %vm1934 = vcmp.eq.f32.partialorder %v1931, %v1933
      %v1935 = vsel %vm1934, %v1930, -inf
      %1936 = vmax.xlane.f32.xlu0 %v1935
      %v1937 = vpop.xlane.xlu0 %1936
      %v1938 = vcvt.f32.s32 %v1937
      %v1939 = vcvt.f32.s32 %v1933
      %v1940 = vshll.u32 %v1939, 16
      %v1941 = vadd.s32 %v1940, %v1938
      %v1942 = vsel %vm763, %v1870, 2147483648
      %v1943 = vand.u32 %v1942, 65535
      %v1944 = vshra.s32 %v1942, 16
      %v1945 = vcvt.s32.f32 %v1943
      %v1946 = vcvt.s32.f32 %v1944
      %1947 = vmax.xlane.f32.xlu0 %v1946
      %v1948 = vpop.xlane.xlu0 %1947
      %vm1949 = vcmp.eq.f32.partialorder %v1946, %v1948
      %v1950 = vsel %vm1949, %v1945, -inf
      %1951 = vmax.xlane.f32.xlu0 %v1950
      %v1952 = vpop.xlane.xlu0 %1951
      %v1953 = vcvt.f32.s32 %v1952
      %v1954 = vcvt.f32.s32 %v1948
      %v1955 = vshll.u32 %v1954, 16
      %v1956 = vadd.s32 %v1955, %v1953
      %v1957 = vsel %vm763, %v1871, 2147483648
      %v1958 = vand.u32 %v1957, 65535
      %v1959 = vshra.s32 %v1957, 16
      %v1960 = vcvt.s32.f32 %v1958
      %v1961 = vcvt.s32.f32 %v1959
      %1962 = vmax.xlane.f32.xlu0 %v1961
      %v1963 = vpop.xlane.xlu0 %1962
      %vm1964 = vcmp.eq.f32.partialorder %v1961, %v1963
      %v1965 = vsel %vm1964, %v1960, -inf
      %1966 = vmax.xlane.f32.xlu0 %v1965
      %v1967 = vpop.xlane.xlu0 %1966
      %v1968 = vcvt.f32.s32 %v1967
      %v1969 = vcvt.f32.s32 %v1963
      %v1970 = vshll.u32 %v1969, 16
      %v1971 = vadd.s32 %v1970, %v1968
      %v1972 = vsel %vm763, %v1872, 2147483648
      %v1973 = vand.u32 %v1972, 65535
      %v1974 = vshra.s32 %v1972, 16
      %v1975 = vcvt.s32.f32 %v1973
      %v1976 = vcvt.s32.f32 %v1974
      %1977 = vmax.xlane.f32.xlu0 %v1976
      %v1978 = vpop.xlane.xlu0 %1977
      %vm1979 = vcmp.eq.f32.partialorder %v1976, %v1978
      %v1980 = vsel %vm1979, %v1975, -inf
      %1981 = vmax.xlane.f32.xlu0 %v1980
      %v1982 = vpop.xlane.xlu0 %1981
      %v1983 = vcvt.f32.s32 %v1982
      %v1984 = vcvt.f32.s32 %v1978
      %v1985 = vshll.u32 %v1984, 16
      %v1986 = vadd.s32 %v1985, %v1983
      %v1987 = vsel %vm763, %v1873, 2147483648
      %v1988 = vand.u32 %v1987, 65535
      %v1989 = vshra.s32 %v1987, 16
      %v1990 = vcvt.s32.f32 %v1988
      %v1991 = vcvt.s32.f32 %v1989
      %1992 = vmax.xlane.f32.xlu0 %v1991
      %v1993 = vpop.xlane.xlu0 %1992
      %vm1994 = vcmp.eq.f32.partialorder %v1991, %v1993
      %v1995 = vsel %vm1994, %v1990, -inf
      %1996 = vmax.xlane.f32.xlu0 %v1995
      %v1997 = vpop.xlane.xlu0 %1996
      %v1998 = vcvt.f32.s32 %v1997
      %v1999 = vcvt.f32.s32 %v1993
      %v2000 = vshll.u32 %v1999, 16
      %v2001 = vadd.s32 %v2000, %v1998
      %v2002 = vsel %vm763, %v1874, 2147483648
      %v2003 = vand.u32 %v2002, 65535
      %v2004 = vshra.s32 %v2002, 16
      %v2005 = vcvt.s32.f32 %v2003
      %v2006 = vcvt.s32.f32 %v2004
      %2007 = vmax.xlane.f32.xlu0 %v2006
      %v2008 = vpop.xlane.xlu0 %2007
      %vm2009 = vcmp.eq.f32.partialorder %v2006, %v2008
      %v2010 = vsel %vm2009, %v2005, -inf
      %2011 = vmax.xlane.f32.xlu0 %v2010
      %v2012 = vpop.xlane.xlu0 %2011
      %v2013 = vcvt.f32.s32 %v2012
      %v2014 = vcvt.f32.s32 %v2008
      %v2015 = vshll.u32 %v2014, 16
      %v2016 = vadd.s32 %v2015, %v2013
      %v2017 = vsel %vm763, %v1875, 2147483648
      %v2018 = vand.u32 %v2017, 65535
      %v2019 = vshra.s32 %v2017, 16
      %v2020 = vcvt.s32.f32 %v2018
      %v2021 = vcvt.s32.f32 %v2019
      %2022 = vmax.xlane.f32.xlu0 %v2021
      %v2023 = vpop.xlane.xlu0 %2022
      %vm2024 = vcmp.eq.f32.partialorder %v2021, %v2023
      %v2025 = vsel %vm2024, %v2020, -inf
      %2026 = vmax.xlane.f32.xlu0 %v2025
      %v2027 = vpop.xlane.xlu0 %2026
      %v2028 = vcvt.f32.s32 %v2027
      %v2029 = vcvt.f32.s32 %v2023
      %v2030 = vshll.u32 %v2029, 16
      %v2031 = vadd.s32 %v2030, %v2028
      %v2032 = vsel %vm763, %v1876, 2147483648
      %v2033 = vand.u32 %v2032, 65535
      %v2034 = vshra.s32 %v2032, 16
      %v2035 = vcvt.s32.f32 %v2033
      %v2036 = vcvt.s32.f32 %v2034
      %2037 = vmax.xlane.f32.xlu0 %v2036
      %v2038 = vpop.xlane.xlu0 %2037
      %vm2039 = vcmp.eq.f32.partialorder %v2036, %v2038
      %v2040 = vsel %vm2039, %v2035, -inf
      %2041 = vmax.xlane.f32.xlu0 %v2040
      %v2042 = vpop.xlane.xlu0 %2041
      %v2043 = vcvt.f32.s32 %v2042
      %v2044 = vcvt.f32.s32 %v2038
      %v2045 = vshll.u32 %v2044, 16
      %v2046 = vadd.s32 %v2045, %v2043
      %v2047 = vsel %vm763, %v1877, 2147483648
      %v2048 = vand.u32 %v2047, 65535
      %v2049 = vshra.s32 %v2047, 16
      %v2050 = vcvt.s32.f32 %v2048
      %v2051 = vcvt.s32.f32 %v2049
      %2052 = vmax.xlane.f32.xlu0 %v2051
      %v2053 = vpop.xlane.xlu0 %2052
      %vm2054 = vcmp.eq.f32.partialorder %v2051, %v2053
      %v2055 = vsel %vm2054, %v2050, -inf
      %2056 = vmax.xlane.f32.xlu0 %v2055
      %v2057 = vpop.xlane.xlu0 %2056
      %v2058 = vcvt.f32.s32 %v2057
      %v2059 = vcvt.f32.s32 %v2053
      %v2060 = vshll.u32 %v2059, 16
      %v2061 = vadd.s32 %v2060, %v2058
      %v2062 = vsel %vm763, %v1878, 2147483648
      %v2063 = vand.u32 %v2062, 65535
      %v2064 = vshra.s32 %v2062, 16
      %v2065 = vcvt.s32.f32 %v2063
      %v2066 = vcvt.s32.f32 %v2064
      %2067 = vmax.xlane.f32.xlu0 %v2066
      %v2068 = vpop.xlane.xlu0 %2067
      %vm2069 = vcmp.eq.f32.partialorder %v2066, %v2068
      %v2070 = vsel %vm2069, %v2065, -inf
      %2071 = vmax.xlane.f32.xlu0 %v2070
      %v2072 = vpop.xlane.xlu0 %2071
      %v2073 = vcvt.f32.s32 %v2072
      %v2074 = vcvt.f32.s32 %v2068
      %v2075 = vshll.u32 %v2074, 16
      %v2076 = vadd.s32 %v2075, %v2073
      %v2077 = vsel %vm763, %v1879, 2147483648
      %v2078 = vand.u32 %v2077, 65535
      %v2079 = vshra.s32 %v2077, 16
      %v2080 = vcvt.s32.f32 %v2078
      %v2081 = vcvt.s32.f32 %v2079
      %2082 = vmax.xlane.f32.xlu0 %v2081
      %v2083 = vpop.xlane.xlu0 %2082
      %vm2084 = vcmp.eq.f32.partialorder %v2081, %v2083
      %v2085 = vsel %vm2084, %v2080, -inf
      %2086 = vmax.xlane.f32.xlu0 %v2085
      %v2087 = vpop.xlane.xlu0 %2086
      %v2088 = vcvt.f32.s32 %v2087
      %v2089 = vcvt.f32.s32 %v2083
      %v2090 = vshll.u32 %v2089, 16
      %v2091 = vadd.s32 %v2090, %v2088
      %v2092 = vsel %vm763, %v1880, 2147483648
      %v2093 = vand.u32 %v2092, 65535
      %v2094 = vshra.s32 %v2092, 16
      %v2095 = vcvt.s32.f32 %v2093
      %v2096 = vcvt.s32.f32 %v2094
      %2097 = vmax.xlane.f32.xlu0 %v2096
      %v2098 = vpop.xlane.xlu0 %2097
      %vm2099 = vcmp.eq.f32.partialorder %v2096, %v2098
      %v2100 = vsel %vm2099, %v2095, -inf
      %2101 = vmax.xlane.f32.xlu0 %v2100
      %v2102 = vpop.xlane.xlu0 %2101
      %v2103 = vcvt.f32.s32 %v2102
      %v2104 = vcvt.f32.s32 %v2098
      %v2105 = vshll.u32 %v2104, 16
      %v2106 = vadd.s32 %v2105, %v2103
      %v2107 = vsel %vm763, %v1881, 2147483648
      %v2108 = vand.u32 %v2107, 65535
      %v2109 = vshra.s32 %v2107, 16
      %v2110 = vcvt.s32.f32 %v2108
      %v2111 = vcvt.s32.f32 %v2109
      %2112 = vmax.xlane.f32.xlu0 %v2111
      %v2113 = vpop.xlane.xlu0 %2112
      %vm2114 = vcmp.eq.f32.partialorder %v2111, %v2113
      %v2115 = vsel %vm2114, %v2110, -inf
      %2116 = vmax.xlane.f32.xlu0 %v2115
      %v2117 = vpop.xlane.xlu0 %2116
      %v2118 = vcvt.f32.s32 %v2117
      %v2119 = vcvt.f32.s32 %v2113
      %v2120 = vshll.u32 %v2119, 16
      %v2121 = vadd.s32 %v2120, %v2118
      %vm2122 = vcmp.eq.s32.totalorder %v559, %v1896
      %vm2123 = vcmp.eq.s32.totalorder %v559, %v1911
      %vm2124 = vcmp.eq.s32.totalorder %v559, %v1926
      %vm2125 = vcmp.eq.s32.totalorder %v559, %v1941
      %vm2126 = vcmp.eq.s32.totalorder %v559, %v1956
      %vm2127 = vcmp.eq.s32.totalorder %v559, %v1971
      %vm2128 = vcmp.eq.s32.totalorder %v559, %v1986
      %vm2129 = vcmp.eq.s32.totalorder %v559, %v2001
      %vm2130 = vcmp.eq.s32.totalorder %v559, %v2016
      %vm2131 = vcmp.eq.s32.totalorder %v559, %v2031
      %vm2132 = vcmp.eq.s32.totalorder %v559, %v2046
      %vm2133 = vcmp.eq.s32.totalorder %v559, %v2061
      %vm2134 = vcmp.eq.s32.totalorder %v559, %v2076
      %vm2135 = vcmp.eq.s32.totalorder %v559, %v2091
      %vm2136 = vcmp.eq.s32.totalorder %v559, %v2106
      %vm2137 = vcmp.eq.s32.totalorder %v559, %v2121
      %v2138 = vsel %vm2122, 1, 0
      %v2139 = vsel %vm2123, 1, 0
      %v2140 = vsel %vm2124, 1, 0
      %v2141 = vsel %vm2125, 1, 0
      %v2142 = vsel %vm2126, 1, 0
      %v2143 = vsel %vm2127, 1, 0
      %v2144 = vsel %vm2128, 1, 0
      %v2145 = vsel %vm2129, 1, 0
      %v2146 = vsel %vm2130, 1, 0
      %v2147 = vsel %vm2131, 1, 0
      %v2148 = vsel %vm2132, 1, 0
      %v2149 = vsel %vm2133, 1, 0
      %v2150 = vsel %vm2134, 1, 0
      %v2151 = vsel %vm2135, 1, 0
      %v2152 = vsel %vm2136, 1, 0
      %v2153 = vsel %vm2137, 1, 0
      %v2154 = vcvt.s32.f32 %v2138
      %v2155 = vcvt.s32.f32 %v2139
      %v2156 = vcvt.s32.f32 %v2140
      %v2157 = vcvt.s32.f32 %v2141
      %v2158 = vcvt.s32.f32 %v2142
      %v2159 = vcvt.s32.f32 %v2143
      %v2160 = vcvt.s32.f32 %v2144
      %v2161 = vcvt.s32.f32 %v2145
      %v2162 = vcvt.s32.f32 %v2146
      %v2163 = vcvt.s32.f32 %v2147
      %v2164 = vcvt.s32.f32 %v2148
      %v2165 = vcvt.s32.f32 %v2149
      %v2166 = vcvt.s32.f32 %v2150
      %v2167 = vcvt.s32.f32 %v2151
      %v2168 = vcvt.s32.f32 %v2152
      %v2169 = vcvt.s32.f32 %v2153
      %v2171 = vcombine.high %v1768, %v1768
      %v2173 = vunpack.c.l.s4 1966171168
      %v2174 = vunpack.c.0.s8 %v2173
      %v2175 = vlaneseq
      %v2176 = vshrl.u32 %v2175, 7
      %v2177 = vsub.s32 %v2174, %v2176
      %v2178 = vrot.slane %v1768, %v2177
      %v2180 = vunpack.c.l.s4 1966171168
      %v2181 = vunpack.c.0.s8 %v2180
      %v2182 = vlaneseq
      %v2183 = vshrl.u32 %v2182, 7
      %v2184 = vsub.s32 %v2181, %v2183
      %v2185 = vrot.slane %v2171, %v2184
      %v2186 = vcombine.high %v2178, %v2178
      %v2187 = vcombine.high %v2185, %v2185
      %v2189 = vunpack.c.l.s4 1966171168
      %v2190 = vunpack.c.0.s8 %v2189
      %v2191 = vlaneseq
      %v2192 = vshrl.u32 %v2191, 7
      %v2193 = vsub.s32 %v2190, %v2192
      %v2194 = vrot.slane %v2178, %v2193
      %v2196 = vunpack.c.l.s4 1966171168
      %v2197 = vunpack.c.0.s8 %v2196
      %v2198 = vlaneseq
      %v2199 = vshrl.u32 %v2198, 7
      %v2200 = vsub.s32 %v2197, %v2199
      %v2201 = vrot.slane %v2185, %v2200
      %v2203 = vunpack.c.l.s4 1966171168
      %v2204 = vunpack.c.0.s8 %v2203
      %v2205 = vlaneseq
      %v2206 = vshrl.u32 %v2205, 7
      %v2207 = vsub.s32 %v2204, %v2206
      %v2208 = vrot.slane %v2186, %v2207
      %v2210 = vunpack.c.l.s4 1966171168
      %v2211 = vunpack.c.0.s8 %v2210
      %v2212 = vlaneseq
      %v2213 = vshrl.u32 %v2212, 7
      %v2214 = vsub.s32 %v2211, %v2213
      %v2215 = vrot.slane %v2187, %v2214
      %v2216 = vcombine.high %v2194, %v2194
      %v2217 = vcombine.high %v2201, %v2201
      %v2218 = vcombine.high %v2208, %v2208
      %v2219 = vcombine.high %v2215, %v2215
      %v2220 = vlaneseq
      %v2221 = vshrl.u32 %v2220, 7
      %v2222 = vsub.s32 0, %v2221
      %v2223 = vrot.slane %v2194, %v2222
      %v2224 = vlaneseq
      %v2225 = vshrl.u32 %v2224, 7
      %v2226 = vsub.s32 0, %v2225
      %v2227 = vrot.slane %v2208, %v2226
      %v2228 = vlaneseq
      %v2229 = vshrl.u32 %v2228, 7
      %v2230 = vsub.s32 0, %v2229
      %v2231 = vrot.slane %v2216, %v2230
      %v2232 = vlaneseq
      %v2233 = vshrl.u32 %v2232, 7
      %v2234 = vsub.s32 0, %v2233
      %v2235 = vrot.slane %v2218, %v2234
      %v2236 = vlaneseq
      %v2237 = vshrl.u32 %v2236, 7
      %v2238 = vsub.s32 0, %v2237
      %v2239 = vrot.slane %v2201, %v2238
      %v2240 = vlaneseq
      %v2241 = vshrl.u32 %v2240, 7
      %v2242 = vsub.s32 0, %v2241
      %v2243 = vrot.slane %v2215, %v2242
      %v2244 = vlaneseq
      %v2245 = vshrl.u32 %v2244, 7
      %v2246 = vsub.s32 0, %v2245
      %v2247 = vrot.slane %v2217, %v2246
      %v2248 = vlaneseq
      %v2249 = vshrl.u32 %v2248, 7
      %v2250 = vsub.s32 0, %v2249
      %v2251 = vrot.slane %v2219, %v2250
      %v2260 = vmul.f32 %v2154, %v2223
      %v2261 = vmul.f32 %v2155, %v2223
      %v2262 = vmul.f32 %v2156, %v2227
      %v2263 = vmul.f32 %v2157, %v2227
      %v2264 = vmul.f32 %v2158, %v2231
      %v2265 = vmul.f32 %v2159, %v2231
      %v2266 = vmul.f32 %v2160, %v2235
      %v2267 = vmul.f32 %v2161, %v2235
      %v2268 = vmul.f32 %v2162, %v2239
      %v2269 = vmul.f32 %v2163, %v2239
      %v2270 = vmul.f32 %v2164, %v2243
      %v2271 = vmul.f32 %v2165, %v2243
      %v2272 = vmul.f32 %v2166, %v2247
      %v2273 = vmul.f32 %v2167, %v2247
      %v2274 = vmul.f32 %v2168, %v2251
      %v2275 = vmul.f32 %v2169, %v2251
      %v2276 = vsel %vm763, %v2260, 0.0
      %2277 = vadd.xlane.f32.xlu0 %v2276
      %v2278 = vpop.xlane.xlu0 %2277
      %v2279 = vsel %vm763, %v2261, 0.0
      %2280 = vadd.xlane.f32.xlu0 %v2279
      %v2281 = vpop.xlane.xlu0 %2280
      %v2282 = vsel %vm763, %v2262, 0.0
      %2283 = vadd.xlane.f32.xlu0 %v2282
      %v2284 = vpop.xlane.xlu0 %2283
      %v2285 = vsel %vm763, %v2263, 0.0
      %2286 = vadd.xlane.f32.xlu0 %v2285
      %v2287 = vpop.xlane.xlu0 %2286
      %v2288 = vsel %vm763, %v2264, 0.0
      %2289 = vadd.xlane.f32.xlu0 %v2288
      %v2290 = vpop.xlane.xlu0 %2289
      %v2291 = vsel %vm763, %v2265, 0.0
      %2292 = vadd.xlane.f32.xlu0 %v2291
      %v2293 = vpop.xlane.xlu0 %2292
      %v2294 = vsel %vm763, %v2266, 0.0
      %2295 = vadd.xlane.f32.xlu0 %v2294
      %v2296 = vpop.xlane.xlu0 %2295
      %v2297 = vsel %vm763, %v2267, 0.0
      %2298 = vadd.xlane.f32.xlu0 %v2297
      %v2299 = vpop.xlane.xlu0 %2298
      %v2300 = vsel %vm763, %v2268, 0.0
      %2301 = vadd.xlane.f32.xlu0 %v2300
      %v2302 = vpop.xlane.xlu0 %2301
      %v2303 = vsel %vm763, %v2269, 0.0
      %2304 = vadd.xlane.f32.xlu0 %v2303
      %v2305 = vpop.xlane.xlu0 %2304
      %v2306 = vsel %vm763, %v2270, 0.0
      %2307 = vadd.xlane.f32.xlu0 %v2306
      %v2308 = vpop.xlane.xlu0 %2307
      %v2309 = vsel %vm763, %v2271, 0.0
      %2310 = vadd.xlane.f32.xlu0 %v2309
      %v2311 = vpop.xlane.xlu0 %2310
      %v2312 = vsel %vm763, %v2272, 0.0
      %2313 = vadd.xlane.f32.xlu0 %v2312
      %v2314 = vpop.xlane.xlu0 %2313
      %v2315 = vsel %vm763, %v2273, 0.0
      %2316 = vadd.xlane.f32.xlu0 %v2315
      %v2317 = vpop.xlane.xlu0 %2316
      %v2318 = vsel %vm763, %v2274, 0.0
      %2319 = vadd.xlane.f32.xlu0 %v2318
      %v2320 = vpop.xlane.xlu0 %2319
      %v2321 = vsel %vm763, %v2275, 0.0
      %2322 = vadd.xlane.f32.xlu0 %v2321
      %v2323 = vpop.xlane.xlu0 %2322
      %vm2324 = vcmp.eq.s32.totalorder %v559, 0
      %v2325 = vsel %vm2324, %v1160, 0.0
      %v2326 = vsel %vm2324, %v1163, 0.0
      %v2327 = vsel %vm2324, %v1166, 0.0
      %v2328 = vsel %vm2324, %v1169, 0.0
      %v2329 = vsel %vm2324, %v1172, 0.0
      %v2330 = vsel %vm2324, %v1175, 0.0
      %v2331 = vsel %vm2324, %v1178, 0.0
      %v2332 = vsel %vm2324, %v1181, 0.0
      %v2333 = vsel %vm2324, %v1184, 0.0
      %v2334 = vsel %vm2324, %v1187, 0.0
      %v2335 = vsel %vm2324, %v1190, 0.0
      %v2336 = vsel %vm2324, %v1193, 0.0
      %v2337 = vsel %vm2324, %v1196, 0.0
      %v2338 = vsel %vm2324, %v1199, 0.0
      %v2339 = vsel %vm2324, %v1202, 0.0
      %v2340 = vsel %vm2324, %v1205, 0.0
      %vm2341 = vcmp.eq.s32.totalorder %v559, 1
      %v2342 = vsel %vm2341, %v1719, %v2325
      %v2343 = vsel %vm2341, %v1722, %v2326
      %v2344 = vsel %vm2341, %v1725, %v2327
      %v2345 = vsel %vm2341, %v1728, %v2328
      %v2346 = vsel %vm2341, %v1731, %v2329
      %v2347 = vsel %vm2341, %v1734, %v2330
      %v2348 = vsel %vm2341, %v1737, %v2331
      %v2349 = vsel %vm2341, %v1740, %v2332
      %v2350 = vsel %vm2341, %v1743, %v2333
      %v2351 = vsel %vm2341, %v1746, %v2334
      %v2352 = vsel %vm2341, %v1749, %v2335
      %v2353 = vsel %vm2341, %v1752, %v2336
      %v2354 = vsel %vm2341, %v1755, %v2337
      %v2355 = vsel %vm2341, %v1758, %v2338
      %v2356 = vsel %vm2341, %v1761, %v2339
      %v2357 = vsel %vm2341, %v1764, %v2340
      %vm2358 = vcmp.eq.s32.totalorder %v559, 2
      %v2359 = vsel %vm2358, %v2278, %v2342
      %v2360 = vsel %vm2358, %v2281, %v2343
      %v2361 = vsel %vm2358, %v2284, %v2344
      %v2362 = vsel %vm2358, %v2287, %v2345
      %v2363 = vsel %vm2358, %v2290, %v2346
      %v2364 = vsel %vm2358, %v2293, %v2347
      %v2365 = vsel %vm2358, %v2296, %v2348
      %v2366 = vsel %vm2358, %v2299, %v2349
      %v2367 = vsel %vm2358, %v2302, %v2350
      %v2368 = vsel %vm2358, %v2305, %v2351
      %v2369 = vsel %vm2358, %v2308, %v2352
      %v2370 = vsel %vm2358, %v2311, %v2353
      %v2371 = vsel %vm2358, %v2314, %v2354
      %v2372 = vsel %vm2358, %v2317, %v2355
      %v2373 = vsel %vm2358, %v2320, %v2356
      %v2374 = vsel %vm2358, %v2323, %v2357
      %vm2375 = vcmask 23552
      %v2376 = vsel %vm2375, %v2359, -inf
      %2377 = vmax.xlane.f32.xlu0 %v2376
      %v2378 = vpop.xlane.xlu0 %2377
      %v2379 = vsel %vm2375, %v2360, -inf
      %2380 = vmax.xlane.f32.xlu0 %v2379
      %v2381 = vpop.xlane.xlu0 %2380
      %v2382 = vsel %vm2375, %v2361, -inf
      %2383 = vmax.xlane.f32.xlu0 %v2382
      %v2384 = vpop.xlane.xlu0 %2383
      %v2385 = vsel %vm2375, %v2362, -inf
      %2386 = vmax.xlane.f32.xlu0 %v2385
      %v2387 = vpop.xlane.xlu0 %2386
      %v2388 = vsel %vm2375, %v2363, -inf
      %2389 = vmax.xlane.f32.xlu0 %v2388
      %v2390 = vpop.xlane.xlu0 %2389
      %v2391 = vsel %vm2375, %v2364, -inf
      %2392 = vmax.xlane.f32.xlu0 %v2391
      %v2393 = vpop.xlane.xlu0 %2392
      %v2394 = vsel %vm2375, %v2365, -inf
      %2395 = vmax.xlane.f32.xlu0 %v2394
      %v2396 = vpop.xlane.xlu0 %2395
      %v2397 = vsel %vm2375, %v2366, -inf
      %2398 = vmax.xlane.f32.xlu0 %v2397
      %v2399 = vpop.xlane.xlu0 %2398
      %v2400 = vsel %vm2375, %v2367, -inf
      %2401 = vmax.xlane.f32.xlu0 %v2400
      %v2402 = vpop.xlane.xlu0 %2401
      %v2403 = vsel %vm2375, %v2368, -inf
      %2404 = vmax.xlane.f32.xlu0 %v2403
      %v2405 = vpop.xlane.xlu0 %2404
      %v2406 = vsel %vm2375, %v2369, -inf
      %2407 = vmax.xlane.f32.xlu0 %v2406
      %v2408 = vpop.xlane.xlu0 %2407
      %v2409 = vsel %vm2375, %v2370, -inf
      %2410 = vmax.xlane.f32.xlu0 %v2409
      %v2411 = vpop.xlane.xlu0 %2410
      %v2412 = vsel %vm2375, %v2371, -inf
      %2413 = vmax.xlane.f32.xlu0 %v2412
      %v2414 = vpop.xlane.xlu0 %2413
      %v2415 = vsel %vm2375, %v2372, -inf
      %2416 = vmax.xlane.f32.xlu0 %v2415
      %v2417 = vpop.xlane.xlu0 %2416
      %v2418 = vsel %vm2375, %v2373, -inf
      %2419 = vmax.xlane.f32.xlu0 %v2418
      %v2420 = vpop.xlane.xlu0 %2419
      %v2421 = vsel %vm2375, %v2374, -inf
      %2422 = vmax.xlane.f32.xlu0 %v2421
      %v2423 = vpop.xlane.xlu0 %2422
      %v2424 = vsub.f32 %v2359, %v2378
      %v2425 = vsub.f32 %v2360, %v2381
      %v2426 = vsub.f32 %v2361, %v2384
      %v2427 = vsub.f32 %v2362, %v2387
      %v2428 = vsub.f32 %v2363, %v2390
      %v2429 = vsub.f32 %v2364, %v2393
      %v2430 = vsub.f32 %v2365, %v2396
      %v2431 = vsub.f32 %v2366, %v2399
      %v2432 = vsub.f32 %v2367, %v2402
      %v2433 = vsub.f32 %v2368, %v2405
      %v2434 = vsub.f32 %v2369, %v2408
      %v2435 = vsub.f32 %v2370, %v2411
      %v2436 = vsub.f32 %v2371, %v2414
      %v2437 = vsub.f32 %v2372, %v2417
      %v2438 = vsub.f32 %v2373, %v2420
      %v2439 = vsub.f32 %v2374, %v2423
      %v2440 = vmul.f32 %v2424, 1.442695
      %v2441 = vpow.pop %v2440
      %v2442 = vmul.f32 %v2425, 1.442695
      %v2443 = vpow.pop %v2442
      %v2444 = vmul.f32 %v2426, 1.442695
      %v2445 = vpow.pop %v2444
      %v2446 = vmul.f32 %v2427, 1.442695
      %v2447 = vpow.pop %v2446
      %v2448 = vmul.f32 %v2428, 1.442695
      %v2449 = vpow.pop %v2448
      %v2450 = vmul.f32 %v2429, 1.442695
      %v2451 = vpow.pop %v2450
      %v2452 = vmul.f32 %v2430, 1.442695
      %v2453 = vpow.pop %v2452
      %v2454 = vmul.f32 %v2431, 1.442695
      %v2455 = vpow.pop %v2454
      %v2456 = vmul.f32 %v2432, 1.442695
      %v2457 = vpow.pop %v2456
      %v2458 = vmul.f32 %v2433, 1.442695
      %v2459 = vpow.pop %v2458
      %v2460 = vmul.f32 %v2434, 1.442695
      %v2461 = vpow.pop %v2460
      %v2462 = vmul.f32 %v2435, 1.442695
      %v2463 = vpow.pop %v2462
      %v2464 = vmul.f32 %v2436, 1.442695
      %v2465 = vpow.pop %v2464
      %v2466 = vmul.f32 %v2437, 1.442695
      %v2467 = vpow.pop %v2466
      %v2468 = vmul.f32 %v2438, 1.442695
      %v2469 = vpow.pop %v2468
      %v2470 = vmul.f32 %v2439, 1.442695
      %v2471 = vpow.pop %v2470
      %v2472 = vsel %vm2375, %v2441, 0.0
      %2473 = vadd.xlane.f32.xlu0 %v2472
      %v2474 = vpop.xlane.xlu0 %2473
      %v2475 = vsel %vm2375, %v2443, 0.0
      %2476 = vadd.xlane.f32.xlu0 %v2475
      %v2477 = vpop.xlane.xlu0 %2476
      %v2478 = vsel %vm2375, %v2445, 0.0
      %2479 = vadd.xlane.f32.xlu0 %v2478
      %v2480 = vpop.xlane.xlu0 %2479
      %v2481 = vsel %vm2375, %v2447, 0.0
      %2482 = vadd.xlane.f32.xlu0 %v2481
      %v2483 = vpop.xlane.xlu0 %2482
      %v2484 = vsel %vm2375, %v2449, 0.0
      %2485 = vadd.xlane.f32.xlu0 %v2484
      %v2486 = vpop.xlane.xlu0 %2485
      %v2487 = vsel %vm2375, %v2451, 0.0
      %2488 = vadd.xlane.f32.xlu0 %v2487
      %v2489 = vpop.xlane.xlu0 %2488
      %v2490 = vsel %vm2375, %v2453, 0.0
      %2491 = vadd.xlane.f32.xlu0 %v2490
      %v2492 = vpop.xlane.xlu0 %2491
      %v2493 = vsel %vm2375, %v2455, 0.0
      %2494 = vadd.xlane.f32.xlu0 %v2493
      %v2495 = vpop.xlane.xlu0 %2494
      %v2496 = vsel %vm2375, %v2457, 0.0
      %2497 = vadd.xlane.f32.xlu0 %v2496
      %v2498 = vpop.xlane.xlu0 %2497
      %v2499 = vsel %vm2375, %v2459, 0.0
      %2500 = vadd.xlane.f32.xlu0 %v2499
      %v2501 = vpop.xlane.xlu0 %2500
      %v2502 = vsel %vm2375, %v2461, 0.0
      %2503 = vadd.xlane.f32.xlu0 %v2502
      %v2504 = vpop.xlane.xlu0 %2503
      %v2505 = vsel %vm2375, %v2463, 0.0
      %2506 = vadd.xlane.f32.xlu0 %v2505
      %v2507 = vpop.xlane.xlu0 %2506
      %v2508 = vsel %vm2375, %v2465, 0.0
      %2509 = vadd.xlane.f32.xlu0 %v2508
      %v2510 = vpop.xlane.xlu0 %2509
      %v2511 = vsel %vm2375, %v2467, 0.0
      %2512 = vadd.xlane.f32.xlu0 %v2511
      %v2513 = vpop.xlane.xlu0 %2512
      %v2514 = vsel %vm2375, %v2469, 0.0
      %2515 = vadd.xlane.f32.xlu0 %v2514
      %v2516 = vpop.xlane.xlu0 %2515
      %v2517 = vsel %vm2375, %v2471, 0.0
      %2518 = vadd.xlane.f32.xlu0 %v2517
      %v2519 = vpop.xlane.xlu0 %2518
      %v2520 = vrcp.pop %v2474
      %v2521 = vmul.f32 %v2441, %v2520
      %v2522 = vrcp.pop %v2477
      %v2523 = vmul.f32 %v2443, %v2522
      %v2524 = vrcp.pop %v2480
      %v2525 = vmul.f32 %v2445, %v2524
      %v2526 = vrcp.pop %v2483
      %v2527 = vmul.f32 %v2447, %v2526
      %v2528 = vrcp.pop %v2486
      %v2529 = vmul.f32 %v2449, %v2528
      %v2530 = vrcp.pop %v2489
      %v2531 = vmul.f32 %v2451, %v2530
      %v2532 = vrcp.pop %v2492
      %v2533 = vmul.f32 %v2453, %v2532
      %v2534 = vrcp.pop %v2495
      %v2535 = vmul.f32 %v2455, %v2534
      %v2536 = vrcp.pop %v2498
      %v2537 = vmul.f32 %v2457, %v2536
      %v2538 = vrcp.pop %v2501
      %v2539 = vmul.f32 %v2459, %v2538
      %v2540 = vrcp.pop %v2504
      %v2541 = vmul.f32 %v2461, %v2540
      %v2542 = vrcp.pop %v2507
      %v2543 = vmul.f32 %v2463, %v2542
      %v2544 = vrcp.pop %v2510
      %v2545 = vmul.f32 %v2465, %v2544
      %v2546 = vrcp.pop %v2513
      %v2547 = vmul.f32 %v2467, %v2546
      %v2548 = vrcp.pop %v2516
      %v2549 = vmul.f32 %v2469, %v2548
      %v2550 = vrcp.pop %v2519
      %v2551 = vmul.f32 %v2471, %v2550
      %v2552 = vld [vmem:[%s526] sm:$0xff]
      %v2553 = vld [vmem:[%s526 + $0x8] sm:$0xff]
      %v2554 = vld [vmem:[%s526 + $0x10] sm:$0xff]
      %v2555 = vld [vmem:[%s526 + $0x18] sm:$0xff]
      %v2556 = vld [vmem:[%s526 + $0x20] sm:$0xff]
      %v2557 = vld [vmem:[%s526 + $0x28] sm:$0xff]
      %v2558 = vld [vmem:[%s526 + $0x30] sm:$0xff]
      %v2559 = vld [vmem:[%s526 + $0x38] sm:$0xff]
      %v2560 = vld [vmem:[%s526 + $0x40] sm:$0xff]
      %v2561 = vld [vmem:[%s526 + $0x48] sm:$0xff]
      %v2562 = vld [vmem:[%s526 + $0x50] sm:$0xff]
      %v2563 = vld [vmem:[%s526 + $0x58] sm:$0xff]
      %v2564 = vld [vmem:[%s526 + $0x60] sm:$0xff]
      %v2565 = vld [vmem:[%s526 + $0x68] sm:$0xff]
      %v2566 = vld [vmem:[%s526 + $0x70] sm:$0xff]
      %v2567 = vld [vmem:[%s526 + $0x78] sm:$0xff]
      %v2568 = vmul.f32 %v2521, %v2552
      %v2569 = vmul.f32 %v2523, %v2553
      %v2570 = vmul.f32 %v2525, %v2554
      %v2571 = vmul.f32 %v2527, %v2555
      %v2572 = vmul.f32 %v2529, %v2556
      %v2573 = vmul.f32 %v2531, %v2557
      %v2574 = vmul.f32 %v2533, %v2558
      %v2575 = vmul.f32 %v2535, %v2559
      %v2576 = vmul.f32 %v2537, %v2560
      %v2577 = vmul.f32 %v2539, %v2561
      %v2578 = vmul.f32 %v2541, %v2562
      %v2579 = vmul.f32 %v2543, %v2563
      %v2580 = vmul.f32 %v2545, %v2564
      %v2581 = vmul.f32 %v2547, %v2565
      %v2582 = vmul.f32 %v2549, %v2566
      %v2583 = vmul.f32 %v2551, %v2567
      %v2584 = vld [vmem:[%s532] sm:$0x7]
      %v2585 = vld [vmem:[%s532 + $0x4] sm:$0x7]
      %v2586 = vld [vmem:[%s532 + $0x8] sm:$0x7]
      %v2587 = vld [vmem:[%s532 + $0xc] sm:$0x7]
      %v2588 = vld [vmem:[%s532 + $0x10] sm:$0x7]
      %v2589 = vld [vmem:[%s532 + $0x14] sm:$0x7]
      %v2590 = vld [vmem:[%s532 + $0x18] sm:$0x7]
      %v2591 = vld [vmem:[%s532 + $0x1c] sm:$0x7]
      %v2593 = vsel %vm2375, %v2568, 0
      %v2596 = vsel %vm2375, %v2569, 0
      %vm2598 = vcmask 1042432
      %v2600 = vsel %vm2598, %v2584, 0
      %2602 = vmatprep.subr.mxu0 0.0
      %2603 = vmatpush1.msra.mxu0 %v2600
      %2604 = vmatprep.subr.mxu0 0.0
      %2605 = vmatpush1.msra.mxu0 0.0
      %2606 = vmatprep.subr.mxu0 0.0
      %2607 = vmatpush1.msra.mxu0 0.0
      %2608 = vmatprep.subr.mxu0 0.0
      %2609 = vmatpush1.msra.mxu0 0.0
      %2610 = vmatprep.subr.mxu0 0.0
      %2611 = vmatpush1.msra.mxu0 0.0
      %2612 = vmatprep.subr.mxu0 0.0
      %2613 = vmatpush1.msra.mxu0 0.0
      %2614 = vmatprep.subr.mxu0 0.0
      %2615 = vmatpush1.msra.mxu0 0.0
      %2616 = vmatprep.subr.mxu0 0.0
      %2617 = vmatpush1.msra.mxu0 0.0
      %2618 = vmatprep.subr.mxu0 0.0
      %2619 = vmatpush1.msra.mxu0 0.0
      %2620 = vmatprep.subr.mxu0 0.0
      %2621 = vmatpush1.msra.mxu0 0.0
      %2622 = vmatprep.subr.mxu0 0.0
      %2623 = vmatpush1.msra.mxu0 0.0
      %2624 = vmatprep.subr.mxu0 0.0
      %2625 = vmatpush1.msra.mxu0 0.0
      %2626 = vmatprep.subr.mxu0 0.0
      %2627 = vmatpush1.msra.mxu0 0.0
      %2628 = vmatprep.subr.mxu0 0.0
      %2629 = vmatpush1.msra.mxu0 0.0
      %2630 = vmatprep.subr.mxu0 0.0
      %2631 = vmatpush1.msra.mxu0 0.0
      %2632 = vmatprep.subr.mxu0 0.0
      %2633 = vmatpush1.msra.mxu0 0.0
      %2634 = vmatprep.subr.mxu0 0.0
      %2635 = vmatpush1.msra.mxu0 0.0
      %2636 = vmatprep.subr.mxu0 0.0
      %2637 = vmatpush1.msra.mxu0 0.0
      %2638 = vmatprep.subr.mxu0 0.0
      %2639 = vmatpush1.msra.mxu0 0.0
      %2640 = vmatprep.subr.mxu0 0.0
      %2641 = vmatpush1.msra.mxu0 0.0
      %2642 = vmatprep.subr.mxu0 0.0
      %2643 = vmatpush1.msra.mxu0 0.0
      %2644 = vmatprep.subr.mxu0 0.0
      %2645 = vmatpush1.msra.mxu0 0.0
      %2646 = vmatprep.subr.mxu0 0.0
      %2647 = vmatpush1.msra.mxu0 0.0
      %2648 = vmatprep.subr.mxu0 0.0
      %2649 = vmatpush1.msra.mxu0 0.0
      %2650 = vmatprep.subr.mxu0 0.0
      %2651 = vmatpush1.msra.mxu0 0.0
      %2652 = vmatprep.subr.mxu0 0.0
      %2653 = vmatpush1.msra.mxu0 0.0
      %2654 = vmatprep.subr.mxu0 0.0
      %2655 = vmatpush1.msra.mxu0 0.0
      %2656 = vmatprep.subr.mxu0 0.0
      %2657 = vmatpush1.msra.mxu0 0.0
      %2658 = vmatprep.subr.mxu0 0.0
      %2659 = vmatpush1.msra.mxu0 0.0
      %2660 = vmatprep.subr.mxu0 0.0
      %2661 = vmatpush1.msra.mxu0 0.0
      %2662 = vmatprep.subr.mxu0 0.0
      %2663 = vmatpush1.msra.mxu0 0.0
      %2664 = vmatprep.subr.mxu0 0.0
      %2665 = vmatpush1.msra.mxu0 0.0
      %2666 = vmatprep.mubr.f32.mxu0 0.0
      %2667 = vmatmul.mubr.f32.gmra.mrb[0].mxu0 %v2593
      %v2668 = vpop.f32.mrb[0].mxu0
      %v2669 = vadd.f32 0.0, %v2668
      %v2670 = vpop.f32.mrb[0].mxu0
      %2671 = vmatprep.mubr.f32.mxu0 0.0
      %2672 = vmatmul.mubr.f32.gmra.mrb[0].mxu0 %v2596
      %v2673 = vpop.f32.mrb[0].mxu0
      %v2674 = vadd.f32 0.0, %v2673
      %v2675 = vpop.f32.mrb[0].mxu0
      %2676 = vdwg.mxu0
      %v2678 = vsel %vm2375, %v2570, 0
      %v2681 = vsel %vm2375, %v2571, 0
      %v2684 = vsel %vm2598, %v2585, 0
      %2686 = vmatprep.subr.mxu0 0.0
      %2687 = vmatpush1.msra.mxu0 %v2684
      %2688 = vmatprep.subr.mxu0 0.0
      %2689 = vmatpush1.msra.mxu0 0.0
      %2690 = vmatprep.subr.mxu0 0.0
      %2691 = vmatpush1.msra.mxu0 0.0
      %2692 = vmatprep.subr.mxu0 0.0
      %2693 = vmatpush1.msra.mxu0 0.0
      %2694 = vmatprep.subr.mxu0 0.0
      %2695 = vmatpush1.msra.mxu0 0.0
      %2696 = vmatprep.subr.mxu0 0.0
      %2697 = vmatpush1.msra.mxu0 0.0
      %2698 = vmatprep.subr.mxu0 0.0
      %2699 = vmatpush1.msra.mxu0 0.0
      %2700 = vmatprep.subr.mxu0 0.0
      %2701 = vmatpush1.msra.mxu0 0.0
      %2702 = vmatprep.subr.mxu0 0.0
      %2703 = vmatpush1.msra.mxu0 0.0
      %2704 = vmatprep.subr.mxu0 0.0
      %2705 = vmatpush1.msra.mxu0 0.0
      %2706 = vmatprep.subr.mxu0 0.0
      %2707 = vmatpush1.msra.mxu0 0.0
      %2708 = vmatprep.subr.mxu0 0.0
      %2709 = vmatpush1.msra.mxu0 0.0
      %2710 = vmatprep.subr.mxu0 0.0
      %2711 = vmatpush1.msra.mxu0 0.0
      %2712 = vmatprep.subr.mxu0 0.0
      %2713 = vmatpush1.msra.mxu0 0.0
      %2714 = vmatprep.subr.mxu0 0.0
      %2715 = vmatpush1.msra.mxu0 0.0
      %2716 = vmatprep.subr.mxu0 0.0
      %2717 = vmatpush1.msra.mxu0 0.0
      %2718 = vmatprep.subr.mxu0 0.0
      %2719 = vmatpush1.msra.mxu0 0.0
      %2720 = vmatprep.subr.mxu0 0.0
      %2721 = vmatpush1.msra.mxu0 0.0
      %2722 = vmatprep.subr.mxu0 0.0
      %2723 = vmatpush1.msra.mxu0 0.0
      %2724 = vmatprep.subr.mxu0 0.0
      %2725 = vmatpush1.msra.mxu0 0.0
      %2726 = vmatprep.subr.mxu0 0.0
      %2727 = vmatpush1.msra.mxu0 0.0
      %2728 = vmatprep.subr.mxu0 0.0
      %2729 = vmatpush1.msra.mxu0 0.0
      %2730 = vmatprep.subr.mxu0 0.0
      %2731 = vmatpush1.msra.mxu0 0.0
      %2732 = vmatprep.subr.mxu0 0.0
      %2733 = vmatpush1.msra.mxu0 0.0
      %2734 = vmatprep.subr.mxu0 0.0
      %2735 = vmatpush1.msra.mxu0 0.0
      %2736 = vmatprep.subr.mxu0 0.0
      %2737 = vmatpush1.msra.mxu0 0.0
      %2738 = vmatprep.subr.mxu0 0.0
      %2739 = vmatpush1.msra.mxu0 0.0
      %2740 = vmatprep.subr.mxu0 0.0
      %2741 = vmatpush1.msra.mxu0 0.0
      %2742 = vmatprep.subr.mxu0 0.0
      %2743 = vmatpush1.msra.mxu0 0.0
      %2744 = vmatprep.subr.mxu0 0.0
      %2745 = vmatpush1.msra.mxu0 0.0
      %2746 = vmatprep.subr.mxu0 0.0
      %2747 = vmatpush1.msra.mxu0 0.0
      %2748 = vmatprep.subr.mxu0 0.0
      %2749 = vmatpush1.msra.mxu0 0.0
      %2750 = vmatprep.mubr.f32.mxu0 0.0
      %2751 = vmatmul.mubr.f32.gmra.mrb[0].mxu0 %v2678
      %v2752 = vpop.f32.mrb[0].mxu0
      %v2753 = vadd.f32 0.0, %v2752
      %v2754 = vpop.f32.mrb[0].mxu0
      %2755 = vmatprep.mubr.f32.mxu0 0.0
      %2756 = vmatmul.mubr.f32.gmra.mrb[0].mxu0 %v2681
      %v2757 = vpop.f32.mrb[0].mxu0
      %v2758 = vadd.f32 0.0, %v2757
      %v2759 = vpop.f32.mrb[0].mxu0
      %2760 = vdwg.mxu0
      %v2762 = vsel %vm2375, %v2572, 0
      %v2765 = vsel %vm2375, %v2573, 0
      %v2768 = vsel %vm2598, %v2586, 0
      %2770 = vmatprep.subr.mxu0 0.0
      %2771 = vmatpush1.msra.mxu0 %v2768
      %2772 = vmatprep.subr.mxu0 0.0
      %2773 = vmatpush1.msra.mxu0 0.0
      %2774 = vmatprep.subr.mxu0 0.0
      %2775 = vmatpush1.msra.mxu0 0.0
      %2776 = vmatprep.subr.mxu0 0.0
      %2777 = vmatpush1.msra.mxu0 0.0
      %2778 = vmatprep.subr.mxu0 0.0
      %2779 = vmatpush1.msra.mxu0 0.0
      %2780 = vmatprep.subr.mxu0 0.0
      %2781 = vmatpush1.msra.mxu0 0.0
      %2782 = vmatprep.subr.mxu0 0.0
      %2783 = vmatpush1.msra.mxu0 0.0
      %2784 = vmatprep.subr.mxu0 0.0
      %2785 = vmatpush1.msra.mxu0 0.0
      %2786 = vmatprep.subr.mxu0 0.0
      %2787 = vmatpush1.msra.mxu0 0.0
      %2788 = vmatprep.subr.mxu0 0.0
      %2789 = vmatpush1.msra.mxu0 0.0
      %2790 = vmatprep.subr.mxu0 0.0
      %2791 = vmatpush1.msra.mxu0 0.0
      %2792 = vmatprep.subr.mxu0 0.0
      %2793 = vmatpush1.msra.mxu0 0.0
      %2794 = vmatprep.subr.mxu0 0.0
      %2795 = vmatpush1.msra.mxu0 0.0
      %2796 = vmatprep.subr.mxu0 0.0
      %2797 = vmatpush1.msra.mxu0 0.0
      %2798 = vmatprep.subr.mxu0 0.0
      %2799 = vmatpush1.msra.mxu0 0.0
      %2800 = vmatprep.subr.mxu0 0.0
      %2801 = vmatpush1.msra.mxu0 0.0
      %2802 = vmatprep.subr.mxu0 0.0
      %2803 = vmatpush1.msra.mxu0 0.0
      %2804 = vmatprep.subr.mxu0 0.0
      %2805 = vmatpush1.msra.mxu0 0.0
      %2806 = vmatprep.subr.mxu0 0.0
      %2807 = vmatpush1.msra.mxu0 0.0
      %2808 = vmatprep.subr.mxu0 0.0
      %2809 = vmatpush1.msra.mxu0 0.0
      %2810 = vmatprep.subr.mxu0 0.0
      %2811 = vmatpush1.msra.mxu0 0.0
      %2812 = vmatprep.subr.mxu0 0.0
      %2813 = vmatpush1.msra.mxu0 0.0
      %2814 = vmatprep.subr.mxu0 0.0
      %2815 = vmatpush1.msra.mxu0 0.0
      %2816 = vmatprep.subr.mxu0 0.0
      %2817 = vmatpush1.msra.mxu0 0.0
      %2818 = vmatprep.subr.mxu0 0.0
      %2819 = vmatpush1.msra.mxu0 0.0
      %2820 = vmatprep.subr.mxu0 0.0
      %2821 = vmatpush1.msra.mxu0 0.0
      %2822 = vmatprep.subr.mxu0 0.0
      %2823 = vmatpush1.msra.mxu0 0.0
      %2824 = vmatprep.subr.mxu0 0.0
      %2825 = vmatpush1.msra.mxu0 0.0
      %2826 = vmatprep.subr.mxu0 0.0
      %2827 = vmatpush1.msra.mxu0 0.0
      %2828 = vmatprep.subr.mxu0 0.0
      %2829 = vmatpush1.msra.mxu0 0.0
      %2830 = vmatprep.subr.mxu0 0.0
      %2831 = vmatpush1.msra.mxu0 0.0
      %2832 = vmatprep.subr.mxu0 0.0
      %2833 = vmatpush1.msra.mxu0 0.0
      %2834 = vmatprep.mubr.f32.mxu0 0.0
      %2835 = vmatmul.mubr.f32.gmra.mrb[0].mxu0 %v2762
      %v2836 = vpop.f32.mrb[0].mxu0
      %v2837 = vadd.f32 0.0, %v2836
      %v2838 = vpop.f32.mrb[0].mxu0
      %2839 = vmatprep.mubr.f32.mxu0 0.0
      %2840 = vmatmul.mubr.f32.gmra.mrb[0].mxu0 %v2765
      %v2841 = vpop.f32.mrb[0].mxu0
      %v2842 = vadd.f32 0.0, %v2841
      %v2843 = vpop.f32.mrb[0].mxu0
      %2844 = vdwg.mxu0
      %v2846 = vsel %vm2375, %v2574, 0
      %v2849 = vsel %vm2375, %v2575, 0
      %v2852 = vsel %vm2598, %v2587, 0
      %2854 = vmatprep.subr.mxu0 0.0
      %2855 = vmatpush1.msra.mxu0 %v2852
      %2856 = vmatprep.subr.mxu0 0.0
      %2857 = vmatpush1.msra.mxu0 0.0
      %2858 = vmatprep.subr.mxu0 0.0
      %2859 = vmatpush1.msra.mxu0 0.0
      %2860 = vmatprep.subr.mxu0 0.0
      %2861 = vmatpush1.msra.mxu0 0.0
      %2862 = vmatprep.subr.mxu0 0.0
      %2863 = vmatpush1.msra.mxu0 0.0
      %2864 = vmatprep.subr.mxu0 0.0
      %2865 = vmatpush1.msra.mxu0 0.0
      %2866 = vmatprep.subr.mxu0 0.0
      %2867 = vmatpush1.msra.mxu0 0.0
      %2868 = vmatprep.subr.mxu0 0.0
      %2869 = vmatpush1.msra.mxu0 0.0
      %2870 = vmatprep.subr.mxu0 0.0
      %2871 = vmatpush1.msra.mxu0 0.0
      %2872 = vmatprep.subr.mxu0 0.0
      %2873 = vmatpush1.msra.mxu0 0.0
      %2874 = vmatprep.subr.mxu0 0.0
      %2875 = vmatpush1.msra.mxu0 0.0
      %2876 = vmatprep.subr.mxu0 0.0
      %2877 = vmatpush1.msra.mxu0 0.0
      %2878 = vmatprep.subr.mxu0 0.0
      %2879 = vmatpush1.msra.mxu0 0.0
      %2880 = vmatprep.subr.mxu0 0.0
      %2881 = vmatpush1.msra.mxu0 0.0
      %2882 = vmatprep.subr.mxu0 0.0
      %2883 = vmatpush1.msra.mxu0 0.0
      %2884 = vmatprep.subr.mxu0 0.0
      %2885 = vmatpush1.msra.mxu0 0.0
      %2886 = vmatprep.subr.mxu0 0.0
      %2887 = vmatpush1.msra.mxu0 0.0
      %2888 = vmatprep.subr.mxu0 0.0
      %2889 = vmatpush1.msra.mxu0 0.0
      %2890 = vmatprep.subr.mxu0 0.0
      %2891 = vmatpush1.msra.mxu0 0.0
      %2892 = vmatprep.subr.mxu0 0.0
      %2893 = vmatpush1.msra.mxu0 0.0
      %2894 = vmatprep.subr.mxu0 0.0
      %2895 = vmatpush1.msra.mxu0 0.0
      %2896 = vmatprep.subr.mxu0 0.0
      %2897 = vmatpush1.msra.mxu0 0.0
      %2898 = vmatprep.subr.mxu0 0.0
      %2899 = vmatpush1.msra.mxu0 0.0
      %2900 = vmatprep.subr.mxu0 0.0
      %2901 = vmatpush1.msra.mxu0 0.0
      %2902 = vmatprep.subr.mxu0 0.0
      %2903 = vmatpush1.msra.mxu0 0.0
      %2904 = vmatprep.subr.mxu0 0.0
      %2905 = vmatpush1.msra.mxu0 0.0
      %2906 = vmatprep.subr.mxu0 0.0
      %2907 = vmatpush1.msra.mxu0 0.0
      %2908 = vmatprep.subr.mxu0 0.0
      %2909 = vmatpush1.msra.mxu0 0.0
      %2910 = vmatprep.subr.mxu0 0.0
      %2911 = vmatpush1.msra.mxu0 0.0
      %2912 = vmatprep.subr.mxu0 0.0
      %2913 = vmatpush1.msra.mxu0 0.0
      %2914 = vmatprep.subr.mxu0 0.0
      %2915 = vmatpush1.msra.mxu0 0.0
      %2916 = vmatprep.subr.mxu0 0.0
      %2917 = vmatpush1.msra.mxu0 0.0
      %2918 = vmatprep.mubr.f32.mxu0 0.0
      %2919 = vmatmul.mubr.f32.gmra.mrb[0].mxu0 %v2846
      %v2920 = vpop.f32.mrb[0].mxu0
      %v2921 = vadd.f32 0.0, %v2920
      %v2922 = vpop.f32.mrb[0].mxu0
      %2923 = vmatprep.mubr.f32.mxu0 0.0
      %2924 = vmatmul.mubr.f32.gmra.mrb[0].mxu0 %v2849
      %v2925 = vpop.f32.mrb[0].mxu0
      %v2926 = vadd.f32 0.0, %v2925
      %v2927 = vpop.f32.mrb[0].mxu0
      %2928 = vdwg.mxu0
      %v2930 = vsel %vm2375, %v2576, 0
      %v2933 = vsel %vm2375, %v2577, 0
      %v2936 = vsel %vm2598, %v2588, 0
      %2938 = vmatprep.subr.mxu0 0.0
      %2939 = vmatpush1.msra.mxu0 %v2936
      %2940 = vmatprep.subr.mxu0 0.0
      %2941 = vmatpush1.msra.mxu0 0.0
      %2942 = vmatprep.subr.mxu0 0.0
      %2943 = vmatpush1.msra.mxu0 0.0
      %2944 = vmatprep.subr.mxu0 0.0
      %2945 = vmatpush1.msra.mxu0 0.0
      %2946 = vmatprep.subr.mxu0 0.0
      %2947 = vmatpush1.msra.mxu0 0.0
      %2948 = vmatprep.subr.mxu0 0.0
      %2949 = vmatpush1.msra.mxu0 0.0
      %2950 = vmatprep.subr.mxu0 0.0
      %2951 = vmatpush1.msra.mxu0 0.0
      %2952 = vmatprep.subr.mxu0 0.0
      %2953 = vmatpush1.msra.mxu0 0.0
      %2954 = vmatprep.subr.mxu0 0.0
      %2955 = vmatpush1.msra.mxu0 0.0
      %2956 = vmatprep.subr.mxu0 0.0
      %2957 = vmatpush1.msra.mxu0 0.0
      %2958 = vmatprep.subr.mxu0 0.0
      %2959 = vmatpush1.msra.mxu0 0.0
      %2960 = vmatprep.subr.mxu0 0.0
      %2961 = vmatpush1.msra.mxu0 0.0
      %2962 = vmatprep.subr.mxu0 0.0
      %2963 = vmatpush1.msra.mxu0 0.0
      %2964 = vmatprep.subr.mxu0 0.0
      %2965 = vmatpush1.msra.mxu0 0.0
      %2966 = vmatprep.subr.mxu0 0.0
      %2967 = vmatpush1.msra.mxu0 0.0
      %2968 = vmatprep.subr.mxu0 0.0
      %2969 = vmatpush1.msra.mxu0 0.0
      %2970 = vmatprep.subr.mxu0 0.0
      %2971 = vmatpush1.msra.mxu0 0.0
      %2972 = vmatprep.subr.mxu0 0.0
      %2973 = vmatpush1.msra.mxu0 0.0
      %2974 = vmatprep.subr.mxu0 0.0
      %2975 = vmatpush1.msra.mxu0 0.0
      %2976 = vmatprep.subr.mxu0 0.0
      %2977 = vmatpush1.msra.mxu0 0.0
      %2978 = vmatprep.subr.mxu0 0.0
      %2979 = vmatpush1.msra.mxu0 0.0
      %2980 = vmatprep.subr.mxu0 0.0
      %2981 = vmatpush1.msra.mxu0 0.0
      %2982 = vmatprep.subr.mxu0 0.0
      %2983 = vmatpush1.msra.mxu0 0.0
      %2984 = vmatprep.subr.mxu0 0.0
      %2985 = vmatpush1.msra.mxu0 0.0
      %2986 = vmatprep.subr.mxu0 0.0
      %2987 = vmatpush1.msra.mxu0 0.0
      %2988 = vmatprep.subr.mxu0 0.0
      %2989 = vmatpush1.msra.mxu0 0.0
      %2990 = vmatprep.subr.mxu0 0.0
      %2991 = vmatpush1.msra.mxu0 0.0
      %2992 = vmatprep.subr.mxu0 0.0
      %2993 = vmatpush1.msra.mxu0 0.0
      %2994 = vmatprep.subr.mxu0 0.0
      %2995 = vmatpush1.msra.mxu0 0.0
      %2996 = vmatprep.subr.mxu0 0.0
      %2997 = vmatpush1.msra.mxu0 0.0
      %2998 = vmatprep.subr.mxu0 0.0
      %2999 = vmatpush1.msra.mxu0 0.0
      %3000 = vmatprep.subr.mxu0 0.0
      %3001 = vmatpush1.msra.mxu0 0.0
      %3002 = vmatprep.mubr.f32.mxu0 0.0
      %3003 = vmatmul.mubr.f32.gmra.mrb[0].mxu0 %v2930
      %v3004 = vpop.f32.mrb[0].mxu0
      %v3005 = vadd.f32 0.0, %v3004
      %v3006 = vpop.f32.mrb[0].mxu0
      %3007 = vmatprep.mubr.f32.mxu0 0.0
      %3008 = vmatmul.mubr.f32.gmra.mrb[0].mxu0 %v2933
      %v3009 = vpop.f32.mrb[0].mxu0
      %v3010 = vadd.f32 0.0, %v3009
      %v3011 = vpop.f32.mrb[0].mxu0
      %3012 = vdwg.mxu0
      %v3014 = vsel %vm2375, %v2578, 0
      %v3017 = vsel %vm2375, %v2579, 0
      %v3020 = vsel %vm2598, %v2589, 0
      %3022 = vmatprep.subr.mxu0 0.0
      %3023 = vmatpush1.msra.mxu0 %v3020
      %3024 = vmatprep.subr.mxu0 0.0
      %3025 = vmatpush1.msra.mxu0 0.0
      %3026 = vmatprep.subr.mxu0 0.0
      %3027 = vmatpush1.msra.mxu0 0.0
      %3028 = vmatprep.subr.mxu0 0.0
      %3029 = vmatpush1.msra.mxu0 0.0
      %3030 = vmatprep.subr.mxu0 0.0
      %3031 = vmatpush1.msra.mxu0 0.0
      %3032 = vmatprep.subr.mxu0 0.0
      %3033 = vmatpush1.msra.mxu0 0.0
      %3034 = vmatprep.subr.mxu0 0.0
      %3035 = vmatpush1.msra.mxu0 0.0
      %3036 = vmatprep.subr.mxu0 0.0
      %3037 = vmatpush1.msra.mxu0 0.0
      %3038 = vmatprep.subr.mxu0 0.0
      %3039 = vmatpush1.msra.mxu0 0.0
      %3040 = vmatprep.subr.mxu0 0.0
      %3041 = vmatpush1.msra.mxu0 0.0
      %3042 = vmatprep.subr.mxu0 0.0
      %3043 = vmatpush1.msra.mxu0 0.0
      %3044 = vmatprep.subr.mxu0 0.0
      %3045 = vmatpush1.msra.mxu0 0.0
      %3046 = vmatprep.subr.mxu0 0.0
      %3047 = vmatpush1.msra.mxu0 0.0
      %3048 = vmatprep.subr.mxu0 0.0
      %3049 = vmatpush1.msra.mxu0 0.0
      %3050 = vmatprep.subr.mxu0 0.0
      %3051 = vmatpush1.msra.mxu0 0.0
      %3052 = vmatprep.subr.mxu0 0.0
      %3053 = vmatpush1.msra.mxu0 0.0
      %3054 = vmatprep.subr.mxu0 0.0
      %3055 = vmatpush1.msra.mxu0 0.0
      %3056 = vmatprep.subr.mxu0 0.0
      %3057 = vmatpush1.msra.mxu0 0.0
      %3058 = vmatprep.subr.mxu0 0.0
      %3059 = vmatpush1.msra.mxu0 0.0
      %3060 = vmatprep.subr.mxu0 0.0
      %3061 = vmatpush1.msra.mxu0 0.0
      %3062 = vmatprep.subr.mxu0 0.0
      %3063 = vmatpush1.msra.mxu0 0.0
      %3064 = vmatprep.subr.mxu0 0.0
      %3065 = vmatpush1.msra.mxu0 0.0
      %3066 = vmatprep.subr.mxu0 0.0
      %3067 = vmatpush1.msra.mxu0 0.0
      %3068 = vmatprep.subr.mxu0 0.0
      %3069 = vmatpush1.msra.mxu0 0.0
      %3070 = vmatprep.subr.mxu0 0.0
      %3071 = vmatpush1.msra.mxu0 0.0
      %3072 = vmatprep.subr.mxu0 0.0
      %3073 = vmatpush1.msra.mxu0 0.0
      %3074 = vmatprep.subr.mxu0 0.0
      %3075 = vmatpush1.msra.mxu0 0.0
      %3076 = vmatprep.subr.mxu0 0.0
      %3077 = vmatpush1.msra.mxu0 0.0
      %3078 = vmatprep.subr.mxu0 0.0
      %3079 = vmatpush1.msra.mxu0 0.0
      %3080 = vmatprep.subr.mxu0 0.0
      %3081 = vmatpush1.msra.mxu0 0.0
      %3082 = vmatprep.subr.mxu0 0.0
      %3083 = vmatpush1.msra.mxu0 0.0
      %3084 = vmatprep.subr.mxu0 0.0
      %3085 = vmatpush1.msra.mxu0 0.0
      %3086 = vmatprep.mubr.f32.mxu0 0.0
      %3087 = vmatmul.mubr.f32.gmra.mrb[0].mxu0 %v3014
      %v3088 = vpop.f32.mrb[0].mxu0
      %v3089 = vadd.f32 0.0, %v3088
      %v3090 = vpop.f32.mrb[0].mxu0
      %3091 = vmatprep.mubr.f32.mxu0 0.0
      %3092 = vmatmul.mubr.f32.gmra.mrb[0].mxu0 %v3017
      %v3093 = vpop.f32.mrb[0].mxu0
      %v3094 = vadd.f32 0.0, %v3093
      %v3095 = vpop.f32.mrb[0].mxu0
      %3096 = vdwg.mxu0
      %v3098 = vsel %vm2375, %v2580, 0
      %v3101 = vsel %vm2375, %v2581, 0
      %v3104 = vsel %vm2598, %v2590, 0
      %3106 = vmatprep.subr.mxu0 0.0
      %3107 = vmatpush1.msra.mxu0 %v3104
      %3108 = vmatprep.subr.mxu0 0.0
      %3109 = vmatpush1.msra.mxu0 0.0
      %3110 = vmatprep.subr.mxu0 0.0
      %3111 = vmatpush1.msra.mxu0 0.0
      %3112 = vmatprep.subr.mxu0 0.0
      %3113 = vmatpush1.msra.mxu0 0.0
      %3114 = vmatprep.subr.mxu0 0.0
      %3115 = vmatpush1.msra.mxu0 0.0
      %3116 = vmatprep.subr.mxu0 0.0
      %3117 = vmatpush1.msra.mxu0 0.0
      %3118 = vmatprep.subr.mxu0 0.0
      %3119 = vmatpush1.msra.mxu0 0.0
      %3120 = vmatprep.subr.mxu0 0.0
      %3121 = vmatpush1.msra.mxu0 0.0
      %3122 = vmatprep.subr.mxu0 0.0
      %3123 = vmatpush1.msra.mxu0 0.0
      %3124 = vmatprep.subr.mxu0 0.0
      %3125 = vmatpush1.msra.mxu0 0.0
      %3126 = vmatprep.subr.mxu0 0.0
      %3127 = vmatpush1.msra.mxu0 0.0
      %3128 = vmatprep.subr.mxu0 0.0
      %3129 = vmatpush1.msra.mxu0 0.0
      %3130 = vmatprep.subr.mxu0 0.0
      %3131 = vmatpush1.msra.mxu0 0.0
      %3132 = vmatprep.subr.mxu0 0.0
      %3133 = vmatpush1.msra.mxu0 0.0
      %3134 = vmatprep.subr.mxu0 0.0
      %3135 = vmatpush1.msra.mxu0 0.0
      %3136 = vmatprep.subr.mxu0 0.0
      %3137 = vmatpush1.msra.mxu0 0.0
      %3138 = vmatprep.subr.mxu0 0.0
      %3139 = vmatpush1.msra.mxu0 0.0
      %3140 = vmatprep.subr.mxu0 0.0
      %3141 = vmatpush1.msra.mxu0 0.0
      %3142 = vmatprep.subr.mxu0 0.0
      %3143 = vmatpush1.msra.mxu0 0.0
      %3144 = vmatprep.subr.mxu0 0.0
      %3145 = vmatpush1.msra.mxu0 0.0
      %3146 = vmatprep.subr.mxu0 0.0
      %3147 = vmatpush1.msra.mxu0 0.0
      %3148 = vmatprep.subr.mxu0 0.0
      %3149 = vmatpush1.msra.mxu0 0.0
      %3150 = vmatprep.subr.mxu0 0.0
      %3151 = vmatpush1.msra.mxu0 0.0
      %3152 = vmatprep.subr.mxu0 0.0
      %3153 = vmatpush1.msra.mxu0 0.0
      %3154 = vmatprep.subr.mxu0 0.0
      %3155 = vmatpush1.msra.mxu0 0.0
      %3156 = vmatprep.subr.mxu0 0.0
      %3157 = vmatpush1.msra.mxu0 0.0
      %3158 = vmatprep.subr.mxu0 0.0
      %3159 = vmatpush1.msra.mxu0 0.0
      %3160 = vmatprep.subr.mxu0 0.0
      %3161 = vmatpush1.msra.mxu0 0.0
      %3162 = vmatprep.subr.mxu0 0.0
      %3163 = vmatpush1.msra.mxu0 0.0
      %3164 = vmatprep.subr.mxu0 0.0
      %3165 = vmatpush1.msra.mxu0 0.0
      %3166 = vmatprep.subr.mxu0 0.0
      %3167 = vmatpush1.msra.mxu0 0.0
      %3168 = vmatprep.subr.mxu0 0.0
      %3169 = vmatpush1.msra.mxu0 0.0
      %3170 = vmatprep.mubr.f32.mxu0 0.0
      %3171 = vmatmul.mubr.f32.gmra.mrb[0].mxu0 %v3098
      %v3172 = vpop.f32.mrb[0].mxu0
      %v3173 = vadd.f32 0.0, %v3172
      %v3174 = vpop.f32.mrb[0].mxu0
      %3175 = vmatprep.mubr.f32.mxu0 0.0
      %3176 = vmatmul.mubr.f32.gmra.mrb[0].mxu0 %v3101
      %v3177 = vpop.f32.mrb[0].mxu0
      %v3178 = vadd.f32 0.0, %v3177
      %v3179 = vpop.f32.mrb[0].mxu0
      %3180 = vdwg.mxu0
      %v3182 = vsel %vm2375, %v2582, 0
      %v3185 = vsel %vm2375, %v2583, 0
      %v3188 = vsel %vm2598, %v2591, 0
      %3190 = vmatprep.subr.mxu0 0.0
      %3191 = vmatpush1.msra.mxu0 %v3188
      %3192 = vmatprep.subr.mxu0 0.0
      %3193 = vmatpush1.msra.mxu0 0.0
      %3194 = vmatprep.subr.mxu0 0.0
      %3195 = vmatpush1.msra.mxu0 0.0
      %3196 = vmatprep.subr.mxu0 0.0
      %3197 = vmatpush1.msra.mxu0 0.0
      %3198 = vmatprep.subr.mxu0 0.0
      %3199 = vmatpush1.msra.mxu0 0.0
      %3200 = vmatprep.subr.mxu0 0.0
      %3201 = vmatpush1.msra.mxu0 0.0
      %3202 = vmatprep.subr.mxu0 0.0
      %3203 = vmatpush1.msra.mxu0 0.0
      %3204 = vmatprep.subr.mxu0 0.0
      %3205 = vmatpush1.msra.mxu0 0.0
      %3206 = vmatprep.subr.mxu0 0.0
      %3207 = vmatpush1.msra.mxu0 0.0
      %3208 = vmatprep.subr.mxu0 0.0
      %3209 = vmatpush1.msra.mxu0 0.0
      %3210 = vmatprep.subr.mxu0 0.0
      %3211 = vmatpush1.msra.mxu0 0.0
      %3212 = vmatprep.subr.mxu0 0.0
      %3213 = vmatpush1.msra.mxu0 0.0
      %3214 = vmatprep.subr.mxu0 0.0
      %3215 = vmatpush1.msra.mxu0 0.0
      %3216 = vmatprep.subr.mxu0 0.0
      %3217 = vmatpush1.msra.mxu0 0.0
      %3218 = vmatprep.subr.mxu0 0.0
      %3219 = vmatpush1.msra.mxu0 0.0
      %3220 = vmatprep.subr.mxu0 0.0
      %3221 = vmatpush1.msra.mxu0 0.0
      %3222 = vmatprep.subr.mxu0 0.0
      %3223 = vmatpush1.msra.mxu0 0.0
      %3224 = vmatprep.subr.mxu0 0.0
      %3225 = vmatpush1.msra.mxu0 0.0
      %3226 = vmatprep.subr.mxu0 0.0
      %3227 = vmatpush1.msra.mxu0 0.0
      %3228 = vmatprep.subr.mxu0 0.0
      %3229 = vmatpush1.msra.mxu0 0.0
      %3230 = vmatprep.subr.mxu0 0.0
      %3231 = vmatpush1.msra.mxu0 0.0
      %3232 = vmatprep.subr.mxu0 0.0
      %3233 = vmatpush1.msra.mxu0 0.0
      %3234 = vmatprep.subr.mxu0 0.0
      %3235 = vmatpush1.msra.mxu0 0.0
      %3236 = vmatprep.subr.mxu0 0.0
      %3237 = vmatpush1.msra.mxu0 0.0
      %3238 = vmatprep.subr.mxu0 0.0
      %3239 = vmatpush1.msra.mxu0 0.0
      %3240 = vmatprep.subr.mxu0 0.0
      %3241 = vmatpush1.msra.mxu0 0.0
      %3242 = vmatprep.subr.mxu0 0.0
      %3243 = vmatpush1.msra.mxu0 0.0
      %3244 = vmatprep.subr.mxu0 0.0
      %3245 = vmatpush1.msra.mxu0 0.0
      %3246 = vmatprep.subr.mxu0 0.0
      %3247 = vmatpush1.msra.mxu0 0.0
      %3248 = vmatprep.subr.mxu0 0.0
      %3249 = vmatpush1.msra.mxu0 0.0
      %3250 = vmatprep.subr.mxu0 0.0
      %3251 = vmatpush1.msra.mxu0 0.0
      %3252 = vmatprep.subr.mxu0 0.0
      %3253 = vmatpush1.msra.mxu0 0.0
      %3254 = vmatprep.mubr.f32.mxu0 0.0
      %3255 = vmatmul.mubr.f32.gmra.mrb[0].mxu0 %v3182
      %v3256 = vpop.f32.mrb[0].mxu0
      %v3257 = vadd.f32 0.0, %v3256
      %v3258 = vpop.f32.mrb[0].mxu0
      %3259 = vmatprep.mubr.f32.mxu0 0.0
      %3260 = vmatmul.mubr.f32.gmra.mrb[0].mxu0 %v3185
      %v3261 = vpop.f32.mrb[0].mxu0
      %v3262 = vadd.f32 0.0, %v3261
      %v3263 = vpop.f32.mrb[0].mxu0
      %3264 = vdwg.mxu0
      %v3265 = vadd.f32 %v539, %v2669
      %v3266 = vadd.f32 %v540, %v2674
      %v3267 = vadd.f32 %v541, %v2753
      %v3268 = vadd.f32 %v542, %v2758
      %v3269 = vadd.f32 %v543, %v2837
      %v3270 = vadd.f32 %v544, %v2842
      %v3271 = vadd.f32 %v545, %v2921
      %v3272 = vadd.f32 %v546, %v2926
      %v3273 = vadd.f32 %v547, %v3005
      %v3274 = vadd.f32 %v548, %v3010
      %v3275 = vadd.f32 %v549, %v3089
      %v3276 = vadd.f32 %v550, %v3094
      %v3277 = vadd.f32 %v551, %v3173
      %v3278 = vadd.f32 %v552, %v3178
      %v3279 = vadd.f32 %v553, %v3257
      %v3280 = vadd.f32 %v554, %v3262
      %v3281 = vpack.c.bf16 %v3266, %v3265
      %v3282 = vpack.c.bf16 %v3268, %v3267
      %v3283 = vpack.c.bf16 %v3270, %v3269
      %v3284 = vpack.c.bf16 %v3272, %v3271
      %v3285 = vpack.c.bf16 %v3274, %v3273
      %v3286 = vpack.c.bf16 %v3276, %v3275
      %v3287 = vpack.c.bf16 %v3278, %v3277
      %v3288 = vpack.c.bf16 %v3280, %v3279
      %v3289 = vld [vmem:[%s6] sm:$0xff]
      %v3290 = vld [vmem:[%s6 + $0x8] sm:$0xff]
      %v3291 = vld [vmem:[%s6 + $0x10] sm:$0xff]
      %v3292 = vld [vmem:[%s6 + $0x18] sm:$0xff]
      %v3293 = vld [vmem:[%s6 + $0x20] sm:$0xff]
      %v3294 = vld [vmem:[%s6 + $0x28] sm:$0xff]
      %v3295 = vld [vmem:[%s6 + $0x30] sm:$0xff]
      %v3296 = vld [vmem:[%s6 + $0x38] sm:$0xff]
      %v3297 = vld [vmem:[%s6 + $0x40] sm:$0xff]
      %v3298 = vld [vmem:[%s6 + $0x48] sm:$0xff]
      %v3299 = vld [vmem:[%s6 + $0x50] sm:$0xff]
      %v3300 = vld [vmem:[%s6 + $0x58] sm:$0xff]
      %v3301 = vld [vmem:[%s6 + $0x60] sm:$0xff]
      %v3302 = vld [vmem:[%s6 + $0x68] sm:$0xff]
      %v3303 = vld [vmem:[%s6 + $0x70] sm:$0xff]
      %v3304 = vld [vmem:[%s6 + $0x78] sm:$0xff]
      %v3321 = vunpack.c.l.b16 %v3289
      %v3322 = vunpack.c.h.b16 %v3289
      %v3323 = vunpack.c.l.b16 %v3290
      %v3324 = vunpack.c.h.b16 %v3290
      %v3325 = vunpack.c.l.b16 %v3291
      %v3326 = vunpack.c.h.b16 %v3291
      %v3327 = vunpack.c.l.b16 %v3292
      %v3328 = vunpack.c.h.b16 %v3292
      %v3329 = vunpack.c.l.b16 %v3293
      %v3330 = vunpack.c.h.b16 %v3293
      %v3331 = vunpack.c.l.b16 %v3294
      %v3332 = vunpack.c.h.b16 %v3294
      %v3333 = vunpack.c.l.b16 %v3295
      %v3334 = vunpack.c.h.b16 %v3295
      %v3335 = vunpack.c.l.b16 %v3296
      %v3336 = vunpack.c.h.b16 %v3296
      %v3337 = vunpack.c.l.b16 %v3297
      %v3338 = vunpack.c.h.b16 %v3297
      %v3339 = vunpack.c.l.b16 %v3298
      %v3340 = vunpack.c.h.b16 %v3298
      %v3341 = vunpack.c.l.b16 %v3299
      %v3342 = vunpack.c.h.b16 %v3299
      %v3343 = vunpack.c.l.b16 %v3300
      %v3344 = vunpack.c.h.b16 %v3300
      %v3345 = vunpack.c.l.b16 %v3301
      %v3346 = vunpack.c.h.b16 %v3301
      %v3347 = vunpack.c.l.b16 %v3302
      %v3348 = vunpack.c.h.b16 %v3302
      %v3349 = vunpack.c.l.b16 %v3303
      %v3350 = vunpack.c.h.b16 %v3303
      %v3351 = vunpack.c.l.b16 %v3304
      %v3352 = vunpack.c.h.b16 %v3304
      %v3353 = vpack.c.b16 %v3323, %v3321
      %v3354 = vpack.c.b16 %v3324, %v3322
      %v3355 = vpack.c.b16 %v3327, %v3325
      %v3356 = vpack.c.b16 %v3328, %v3326
      %v3357 = vpack.c.b16 %v3331, %v3329
      %v3358 = vpack.c.b16 %v3332, %v3330
      %v3359 = vpack.c.b16 %v3335, %v3333
      %v3360 = vpack.c.b16 %v3336, %v3334
      %v3361 = vpack.c.b16 %v3339, %v3337
      %v3362 = vpack.c.b16 %v3340, %v3338
      %v3363 = vpack.c.b16 %v3343, %v3341
      %v3364 = vpack.c.b16 %v3344, %v3342
      %v3365 = vpack.c.b16 %v3347, %v3345
      %v3366 = vpack.c.b16 %v3348, %v3346
      %v3367 = vpack.c.b16 %v3351, %v3349
      %v3368 = vpack.c.b16 %v3352, %v3350
      %3385 = vmatprep.subr.bf16.mxu0 %v3354
      %3386 = vmatpush1.bf16.msra.mxu0 %v3353
      %3387 = vmatprep.subr.bf16.mxu0 %v3356
      %3388 = vmatpush1.bf16.msra.mxu0 %v3355
      %3389 = vmatprep.subr.bf16.mxu0 %v3358
      %3390 = vmatpush1.bf16.msra.mxu0 %v3357
      %3391 = vmatprep.subr.bf16.mxu0 %v3360
      %3392 = vmatpush1.bf16.msra.mxu0 %v3359
      %3393 = vmatprep.subr.bf16.mxu0 %v3362
      %3394 = vmatpush1.bf16.msra.mxu0 %v3361
      %3395 = vmatprep.subr.bf16.mxu0 %v3364
      %3396 = vmatpush1.bf16.msra.mxu0 %v3363
      %3397 = vmatprep.subr.bf16.mxu0 %v3366
      %3398 = vmatpush1.bf16.msra.mxu0 %v3365
      %3399 = vmatprep.subr.bf16.mxu0 %v3368
      %3400 = vmatpush1.bf16.msra.mxu0 %v3367
      %3401 = vmatprep.subr.bf16.mxu0 0
      %3402 = vmatpush1.bf16.msra.mxu0 0
      %3403 = vmatprep.subr.bf16.mxu0 0
      %3404 = vmatpush1.bf16.msra.mxu0 0
      %3405 = vmatprep.subr.bf16.mxu0 0
      %3406 = vmatpush1.bf16.msra.mxu0 0
      %3407 = vmatprep.subr.bf16.mxu0 0
      %3408 = vmatpush1.bf16.msra.mxu0 0
      %3409 = vmatprep.subr.bf16.mxu0 0
      %3410 = vmatpush1.bf16.msra.mxu0 0
      %3411 = vmatprep.subr.bf16.mxu0 0
      %3412 = vmatpush1.bf16.msra.mxu0 0
      %3413 = vmatprep.subr.bf16.mxu0 0
      %3414 = vmatpush1.bf16.msra.mxu0 0
      %3415 = vmatprep.subr.bf16.mxu0 0
      %3416 = vmatpush1.bf16.msra.mxu0 0
      %3417 = vmatprep.mubr.bf16.mxu0 0
      %3418 = vmatmul.mubr.bf16.gmra.mrb[0].mxu0 %v3281
      %v3419 = vpop.f32.mrb[0].mxu0
      %v3420 = vadd.f32 0.0, %v3419
      %v3421 = vpop.f32.mrb[0].mxu0
      %v3422 = vadd.f32 0.0, %v3421
      %v3423 = vpop.f32.mrb[0].mxu0
      %v3424 = vadd.f32 0.0, %v3423
      %v3425 = vpop.f32.mrb[0].mxu0
      %v3426 = vadd.f32 0.0, %v3425
      %3427 = vmatprep.mubr.bf16.mxu0 0
      %3428 = vmatmul.mubr.bf16.gmra.mrb[0].mxu0 %v3282
      %v3429 = vpop.f32.mrb[0].mxu0
      %v3430 = vadd.f32 0.0, %v3429
      %v3431 = vpop.f32.mrb[0].mxu0
      %v3432 = vadd.f32 0.0, %v3431
      %v3433 = vpop.f32.mrb[0].mxu0
      %v3434 = vadd.f32 0.0, %v3433
      %v3435 = vpop.f32.mrb[0].mxu0
      %v3436 = vadd.f32 0.0, %v3435
      %3437 = vmatprep.mubr.bf16.mxu0 0
      %3438 = vmatmul.mubr.bf16.gmra.mrb[0].mxu0 %v3283
      %v3439 = vpop.f32.mrb[0].mxu0
      %v3440 = vadd.f32 0.0, %v3439
      %v3441 = vpop.f32.mrb[0].mxu0
      %v3442 = vadd.f32 0.0, %v3441
      %v3443 = vpop.f32.mrb[0].mxu0
      %v3444 = vadd.f32 0.0, %v3443
      %v3445 = vpop.f32.mrb[0].mxu0
      %v3446 = vadd.f32 0.0, %v3445
      %3447 = vmatprep.mubr.bf16.mxu0 0
      %3448 = vmatmul.mubr.bf16.gmra.mrb[0].mxu0 %v3284
      %v3449 = vpop.f32.mrb[0].mxu0
      %v3450 = vadd.f32 0.0, %v3449
      %v3451 = vpop.f32.mrb[0].mxu0
      %v3452 = vadd.f32 0.0, %v3451
      %v3453 = vpop.f32.mrb[0].mxu0
      %v3454 = vadd.f32 0.0, %v3453
      %v3455 = vpop.f32.mrb[0].mxu0
      %v3456 = vadd.f32 0.0, %v3455
      %3457 = vmatprep.mubr.bf16.mxu0 0
      %3458 = vmatmul.mubr.bf16.gmra.mrb[0].mxu0 %v3285
      %v3459 = vpop.f32.mrb[0].mxu0
      %v3460 = vadd.f32 0.0, %v3459
      %v3461 = vpop.f32.mrb[0].mxu0
      %v3462 = vadd.f32 0.0, %v3461
      %v3463 = vpop.f32.mrb[0].mxu0
      %v3464 = vadd.f32 0.0, %v3463
      %v3465 = vpop.f32.mrb[0].mxu0
      %v3466 = vadd.f32 0.0, %v3465
      %3467 = vmatprep.mubr.bf16.mxu0 0
      %3468 = vmatmul.mubr.bf16.gmra.mrb[0].mxu0 %v3286
      %v3469 = vpop.f32.mrb[0].mxu0
      %v3470 = vadd.f32 0.0, %v3469
      %v3471 = vpop.f32.mrb[0].mxu0
      %v3472 = vadd.f32 0.0, %v3471
      %v3473 = vpop.f32.mrb[0].mxu0
      %v3474 = vadd.f32 0.0, %v3473
      %v3475 = vpop.f32.mrb[0].mxu0
      %v3476 = vadd.f32 0.0, %v3475
      %3477 = vmatprep.mubr.bf16.mxu0 0
      %3478 = vmatmul.mubr.bf16.gmra.mrb[0].mxu0 %v3287
      %v3479 = vpop.f32.mrb[0].mxu0
      %v3480 = vadd.f32 0.0, %v3479
      %v3481 = vpop.f32.mrb[0].mxu0
      %v3482 = vadd.f32 0.0, %v3481
      %v3483 = vpop.f32.mrb[0].mxu0
      %v3484 = vadd.f32 0.0, %v3483
      %v3485 = vpop.f32.mrb[0].mxu0
      %v3486 = vadd.f32 0.0, %v3485
      %3487 = vmatprep.mubr.bf16.mxu0 0
      %3488 = vmatmul.mubr.bf16.gmra.mrb[0].mxu0 %v3288
      %v3489 = vpop.f32.mrb[0].mxu0
      %v3490 = vadd.f32 0.0, %v3489
      %v3491 = vpop.f32.mrb[0].mxu0
      %v3492 = vadd.f32 0.0, %v3491
      %v3493 = vpop.f32.mrb[0].mxu0
      %v3494 = vadd.f32 0.0, %v3493
      %v3495 = vpop.f32.mrb[0].mxu0
      %v3496 = vadd.f32 0.0, %v3495
      %3497 = vdwg.mxu0
      %v3498 = vpack.c.bf16 %v3265, %v3265
      %v3499 = vpack.c.bf16 %v3267, %v3267
      %v3500 = vpack.c.bf16 %v3269, %v3269
      %v3501 = vpack.c.bf16 %v3271, %v3271
      %v3502 = vpack.c.bf16 %v3273, %v3273
      %v3503 = vpack.c.bf16 %v3275, %v3275
      %v3504 = vpack.c.bf16 %v3277, %v3277
      %v3505 = vpack.c.bf16 %v3279, %v3279
      %v3506 = vld [vmem:[%s5] sm:$0xf]
      %v3507 = vld [vmem:[%s5 + $0x4] sm:$0xf]
      %v3508 = vld [vmem:[%s5 + $0x8] sm:$0xf]
      %v3509 = vld [vmem:[%s5 + $0xc] sm:$0xf]
      %v3510 = vld [vmem:[%s5 + $0x10] sm:$0xf]
      %v3511 = vld [vmem:[%s5 + $0x14] sm:$0xf]
      %v3512 = vld [vmem:[%s5 + $0x18] sm:$0xf]
      %v3513 = vld [vmem:[%s5 + $0x1c] sm:$0xf]
      %v3514 = vld [vmem:[%s5 + $0x20] sm:$0xf]
      %v3515 = vld [vmem:[%s5 + $0x24] sm:$0xf]
      %v3516 = vld [vmem:[%s5 + $0x28] sm:$0xf]
      %v3517 = vld [vmem:[%s5 + $0x2c] sm:$0xf]
      %v3518 = vld [vmem:[%s5 + $0x30] sm:$0xf]
      %v3519 = vld [vmem:[%s5 + $0x34] sm:$0xf]
      %v3520 = vld [vmem:[%s5 + $0x38] sm:$0xf]
      %v3521 = vld [vmem:[%s5 + $0x3c] sm:$0xf]
      %v3530 = vunpack.c.l.b16 %v3498
      %v3531 = vunpack.c.l.b16 %v3499
      %v3532 = vunpack.c.l.b16 %v3500
      %v3533 = vunpack.c.l.b16 %v3501
      %v3534 = vunpack.c.l.b16 %v3502
      %v3535 = vunpack.c.l.b16 %v3503
      %v3536 = vunpack.c.l.b16 %v3504
      %v3537 = vunpack.c.l.b16 %v3505
      %v3538 = vrot.slane %v3531, 7
      %vm3539 = vcmask 1041409
      %v3540 = vsel %vm3539, %v3538, %v3530
      %v3541 = vrot.slane %v3532, 6
      %vm3542 = vcmask 1042434
      %v3543 = vsel %vm3542, %v3541, %v3540
      %v3544 = vrot.slane %v3533, 5
      %vm3545 = vcmask 1043459
      %v3546 = vsel %vm3545, %v3544, %v3543
      %v3547 = vrot.slane %v3534, 4
      %vm3548 = vcmask 1044484
      %v3549 = vsel %vm3548, %v3547, %v3546
      %v3550 = vrot.slane %v3535, 3
      %vm3551 = vcmask 1045509
      %v3552 = vsel %vm3551, %v3550, %v3549
      %v3553 = vrot.slane %v3536, 2
      %vm3554 = vcmask 1046534
      %v3555 = vsel %vm3554, %v3553, %v3552
      %v3556 = vrot.slane %v3537, 1
      %vm3557 = vcmask 1047559
      %v3558 = vsel %vm3557, %v3556, %v3555
      %v3559 = vpack.c.b16 %v3558, %v3558
      %v3577 = vunpack.c.l.b16 %v3506
      %v3578 = vunpack.c.l.b16 %v3507
      %v3579 = vunpack.c.l.b16 %v3508
      %v3580 = vunpack.c.l.b16 %v3509
      %v3581 = vunpack.c.l.b16 %v3510
      %v3582 = vunpack.c.l.b16 %v3511
      %v3583 = vunpack.c.l.b16 %v3512
      %v3584 = vunpack.c.l.b16 %v3513
      %v3585 = vunpack.c.l.b16 %v3514
      %v3586 = vunpack.c.l.b16 %v3515
      %v3587 = vunpack.c.l.b16 %v3516
      %v3588 = vunpack.c.l.b16 %v3517
      %v3589 = vunpack.c.l.b16 %v3518
      %v3590 = vunpack.c.l.b16 %v3519
      %v3591 = vunpack.c.l.b16 %v3520
      %v3592 = vunpack.c.l.b16 %v3521
      %v3593 = vpack.c.b16 %v3578, %v3577
      %v3594 = vpack.c.b16 %v3580, %v3579
      %v3595 = vpack.c.b16 %v3582, %v3581
      %v3596 = vpack.c.b16 %v3584, %v3583
      %v3597 = vpack.c.b16 %v3586, %v3585
      %v3598 = vpack.c.b16 %v3588, %v3587
      %v3599 = vpack.c.b16 %v3590, %v3589
      %v3600 = vpack.c.b16 %v3592, %v3591
      %3609 = vmatprep.subr.bf16.mxu0 0
      %3610 = vmatpush1.bf16.msra.mxu0 %v3593
      %3611 = vmatprep.subr.bf16.mxu0 0
      %3612 = vmatpush1.bf16.msra.mxu0 %v3594
      %3613 = vmatprep.subr.bf16.mxu0 0
      %3614 = vmatpush1.bf16.msra.mxu0 %v3595
      %3615 = vmatprep.subr.bf16.mxu0 0
      %3616 = vmatpush1.bf16.msra.mxu0 %v3596
      %3617 = vmatprep.subr.bf16.mxu0 0
      %3618 = vmatpush1.bf16.msra.mxu0 %v3597
      %3619 = vmatprep.subr.bf16.mxu0 0
      %3620 = vmatpush1.bf16.msra.mxu0 %v3598
      %3621 = vmatprep.subr.bf16.mxu0 0
      %3622 = vmatpush1.bf16.msra.mxu0 %v3599
      %3623 = vmatprep.subr.bf16.mxu0 0
      %3624 = vmatpush1.bf16.msra.mxu0 %v3600
      %3625 = vmatprep.subr.bf16.mxu0 0
      %3626 = vmatpush1.bf16.msra.mxu0 0
      %3627 = vmatprep.subr.bf16.mxu0 0
      %3628 = vmatpush1.bf16.msra.mxu0 0
      %3629 = vmatprep.subr.bf16.mxu0 0
      %3630 = vmatpush1.bf16.msra.mxu0 0
      %3631 = vmatprep.subr.bf16.mxu0 0
      %3632 = vmatpush1.bf16.msra.mxu0 0
      %3633 = vmatprep.subr.bf16.mxu0 0
      %3634 = vmatpush1.bf16.msra.mxu0 0
      %3635 = vmatprep.subr.bf16.mxu0 0
      %3636 = vmatpush1.bf16.msra.mxu0 0
      %3637 = vmatprep.subr.bf16.mxu0 0
      %3638 = vmatpush1.bf16.msra.mxu0 0
      %3639 = vmatprep.subr.bf16.mxu0 0
      %3640 = vmatpush1.bf16.msra.mxu0 0
      %3641 = vmatprep.mubr.bf16.mxu0 0
      %3642 = vmatmul.mubr.bf16.gmra.mrb[0].mxu0 %v3559
      %v3643 = vpop.f32.mrb[0].mxu0
      %v3644 = vadd.f32 0.0, %v3643
      %v3645 = vpop.f32.mrb[0].mxu0
      %v3646 = vpop.f32.mrb[0].mxu0
      %v3647 = vpop.f32.mrb[0].mxu0
      %3648 = vdwg.mxu0
      %v3650 = vcombine.high %v3644, %v3644
      %v3652 = vunpack.c.l.s4 1966171168
      %v3653 = vunpack.c.0.s8 %v3652
      %v3654 = vlaneseq
      %v3655 = vshrl.u32 %v3654, 7
      %v3656 = vsub.s32 %v3653, %v3655
      %v3657 = vrot.slane %v3644, %v3656
      %v3659 = vunpack.c.l.s4 1966171168
      %v3660 = vunpack.c.0.s8 %v3659
      %v3661 = vlaneseq
      %v3662 = vshrl.u32 %v3661, 7
      %v3663 = vsub.s32 %v3660, %v3662
      %v3664 = vrot.slane %v3650, %v3663
      %v3665 = vcombine.high %v3657, %v3657
      %v3666 = vcombine.high %v3664, %v3664
      %v3668 = vunpack.c.l.s4 1966171168
      %v3669 = vunpack.c.0.s8 %v3668
      %v3670 = vlaneseq
      %v3671 = vshrl.u32 %v3670, 7
      %v3672 = vsub.s32 %v3669, %v3671
      %v3673 = vrot.slane %v3657, %v3672
      %v3675 = vunpack.c.l.s4 1966171168
      %v3676 = vunpack.c.0.s8 %v3675
      %v3677 = vlaneseq
      %v3678 = vshrl.u32 %v3677, 7
      %v3679 = vsub.s32 %v3676, %v3678
      %v3680 = vrot.slane %v3664, %v3679
      %v3682 = vunpack.c.l.s4 1966171168
      %v3683 = vunpack.c.0.s8 %v3682
      %v3684 = vlaneseq
      %v3685 = vshrl.u32 %v3684, 7
      %v3686 = vsub.s32 %v3683, %v3685
      %v3687 = vrot.slane %v3665, %v3686
      %v3689 = vunpack.c.l.s4 1966171168
      %v3690 = vunpack.c.0.s8 %v3689
      %v3691 = vlaneseq
      %v3692 = vshrl.u32 %v3691, 7
      %v3693 = vsub.s32 %v3690, %v3692
      %v3694 = vrot.slane %v3666, %v3693
      %v3695 = vcombine.high %v3673, %v3673
      %v3696 = vcombine.high %v3680, %v3680
      %v3697 = vcombine.high %v3687, %v3687
      %v3698 = vcombine.high %v3694, %v3694
      %3707 = vmatprep.subr.mxu0 0.0
      %3708 = vmatpush1.xpose.msra.mxu0 %v3420
      %3709 = vmatprep.subr.mxu0 0.0
      %3710 = vmatpush1.xpose.msra.mxu0 %v3424
      %3711 = vmatprep.subr.mxu0 0.0
      %3712 = vmatpush1.xpose.msra.mxu0 0.0
      %3713 = vmatprep.subr.mxu0 0.0
      %3714 = vmatpush1.xpose.msra.mxu0 0.0
      %3715 = vmatprep.subr.mxu0 0.0
      %3716 = vmatpush1.xpose.msra.mxu0 0.0
      %3717 = vmatprep.subr.mxu0 0.0
      %3718 = vmatpush1.xpose.msra.mxu0 0.0
      %3719 = vmatprep.subr.mxu0 0.0
      %3720 = vmatpush1.xpose.msra.mxu0 0.0
      %3721 = vmatprep.subr.mxu0 0.0
      %3722 = vmatpush1.xpose.msra.mxu0 0.0
      %3723 = vmatprep.subr.mxu0 0.0
      %3724 = vmatpush1.xpose.msra.mxu0 0.0
      %3725 = vmatprep.subr.mxu0 0.0
      %3726 = vmatpush1.xpose.msra.mxu0 0.0
      %3727 = vmatprep.subr.mxu0 0.0
      %3728 = vmatpush1.xpose.msra.mxu0 0.0
      %3729 = vmatprep.subr.mxu0 0.0
      %3730 = vmatpush1.xpose.msra.mxu0 0.0
      %3731 = vmatprep.subr.mxu0 0.0
      %3732 = vmatpush1.xpose.msra.mxu0 0.0
      %3733 = vmatprep.subr.mxu0 0.0
      %3734 = vmatpush1.xpose.msra.mxu0 0.0
      %3735 = vmatprep.subr.mxu0 0.0
      %3736 = vmatpush1.xpose.msra.mxu0 0.0
      %3737 = vmatprep.subr.mxu0 0.0
      %3738 = vmatpush1.xpose.msra.mxu0 0.0
      %3739 = vmatprep.subr.mxu0 0.0
      %3740 = vmatpush1.xpose.msra.mxu0 0.0
      %3741 = vmatprep.subr.mxu0 0.0
      %3742 = vmatpush1.xpose.msra.mxu0 0.0
      %3743 = vmatprep.subr.mxu0 0.0
      %3744 = vmatpush1.xpose.msra.mxu0 0.0
      %3745 = vmatprep.subr.mxu0 0.0
      %3746 = vmatpush1.xpose.msra.mxu0 0.0
      %3747 = vmatprep.subr.mxu0 0.0
      %3748 = vmatpush1.xpose.msra.mxu0 0.0
      %3749 = vmatprep.subr.mxu0 0.0
      %3750 = vmatpush1.xpose.msra.mxu0 0.0
      %3751 = vmatprep.subr.mxu0 0.0
      %3752 = vmatpush1.xpose.msra.mxu0 0.0
      %3753 = vmatprep.subr.mxu0 0.0
      %3754 = vmatpush1.xpose.msra.mxu0 0.0
      %3755 = vmatprep.subr.mxu0 0.0
      %3756 = vmatpush1.xpose.msra.mxu0 0.0
      %3757 = vmatprep.subr.mxu0 0.0
      %3758 = vmatpush1.xpose.msra.mxu0 0.0
      %3759 = vmatprep.subr.mxu0 0.0
      %3760 = vmatpush1.xpose.msra.mxu0 0.0
      %3761 = vmatprep.subr.mxu0 0.0
      %3762 = vmatpush1.xpose.msra.mxu0 0.0
      %3763 = vmatprep.subr.mxu0 0.0
      %3764 = vmatpush1.xpose.msra.mxu0 0.0
      %3765 = vmatprep.subr.mxu0 0.0
      %3766 = vmatpush1.xpose.msra.mxu0 0.0
      %3767 = vmatprep.subr.mxu0 0.0
      %3768 = vmatpush1.xpose.msra.mxu0 0.0
      %3769 = vmatprep.subr.mxu0 0.0
      %3770 = vmatpush1.xpose.msra.mxu0 0.0
      %3771 = vmatprep.mubr.f32.mxu0 0.0
      %3772 = vmatmul.mubr.f32.gmra.mrb[0].mxu0 %v3673
      %v3773 = vpop.f32.mrb[0].mxu0
      %v3774 = vadd.f32 0.0, %v3773
      %v3775 = vpop.f32.mrb[0].mxu0
      %3776 = vdwg.mxu0
      %3777 = vmatprep.subr.mxu0 0.0
      %3778 = vmatpush1.xpose.msra.mxu0 %v3430
      %3779 = vmatprep.subr.mxu0 0.0
      %3780 = vmatpush1.xpose.msra.mxu0 %v3434
      %3781 = vmatprep.subr.mxu0 0.0
      %3782 = vmatpush1.xpose.msra.mxu0 0.0
      %3783 = vmatprep.subr.mxu0 0.0
      %3784 = vmatpush1.xpose.msra.mxu0 0.0
      %3785 = vmatprep.subr.mxu0 0.0
      %3786 = vmatpush1.xpose.msra.mxu0 0.0
      %3787 = vmatprep.subr.mxu0 0.0
      %3788 = vmatpush1.xpose.msra.mxu0 0.0
      %3789 = vmatprep.subr.mxu0 0.0
      %3790 = vmatpush1.xpose.msra.mxu0 0.0
      %3791 = vmatprep.subr.mxu0 0.0
      %3792 = vmatpush1.xpose.msra.mxu0 0.0
      %3793 = vmatprep.subr.mxu0 0.0
      %3794 = vmatpush1.xpose.msra.mxu0 0.0
      %3795 = vmatprep.subr.mxu0 0.0
      %3796 = vmatpush1.xpose.msra.mxu0 0.0
      %3797 = vmatprep.subr.mxu0 0.0
      %3798 = vmatpush1.xpose.msra.mxu0 0.0
      %3799 = vmatprep.subr.mxu0 0.0
      %3800 = vmatpush1.xpose.msra.mxu0 0.0
      %3801 = vmatprep.subr.mxu0 0.0
      %3802 = vmatpush1.xpose.msra.mxu0 0.0
      %3803 = vmatprep.subr.mxu0 0.0
      %3804 = vmatpush1.xpose.msra.mxu0 0.0
      %3805 = vmatprep.subr.mxu0 0.0
      %3806 = vmatpush1.xpose.msra.mxu0 0.0
      %3807 = vmatprep.subr.mxu0 0.0
      %3808 = vmatpush1.xpose.msra.mxu0 0.0
      %3809 = vmatprep.subr.mxu0 0.0
      %3810 = vmatpush1.xpose.msra.mxu0 0.0
      %3811 = vmatprep.subr.mxu0 0.0
      %3812 = vmatpush1.xpose.msra.mxu0 0.0
      %3813 = vmatprep.subr.mxu0 0.0
      %3814 = vmatpush1.xpose.msra.mxu0 0.0
      %3815 = vmatprep.subr.mxu0 0.0
      %3816 = vmatpush1.xpose.msra.mxu0 0.0
      %3817 = vmatprep.subr.mxu0 0.0
      %3818 = vmatpush1.xpose.msra.mxu0 0.0
      %3819 = vmatprep.subr.mxu0 0.0
      %3820 = vmatpush1.xpose.msra.mxu0 0.0
      %3821 = vmatprep.subr.mxu0 0.0
      %3822 = vmatpush1.xpose.msra.mxu0 0.0
      %3823 = vmatprep.subr.mxu0 0.0
      %3824 = vmatpush1.xpose.msra.mxu0 0.0
      %3825 = vmatprep.subr.mxu0 0.0
      %3826 = vmatpush1.xpose.msra.mxu0 0.0
      %3827 = vmatprep.subr.mxu0 0.0
      %3828 = vmatpush1.xpose.msra.mxu0 0.0
      %3829 = vmatprep.subr.mxu0 0.0
      %3830 = vmatpush1.xpose.msra.mxu0 0.0
      %3831 = vmatprep.subr.mxu0 0.0
      %3832 = vmatpush1.xpose.msra.mxu0 0.0
      %3833 = vmatprep.subr.mxu0 0.0
      %3834 = vmatpush1.xpose.msra.mxu0 0.0
      %3835 = vmatprep.subr.mxu0 0.0
      %3836 = vmatpush1.xpose.msra.mxu0 0.0
      %3837 = vmatprep.subr.mxu0 0.0
      %3838 = vmatpush1.xpose.msra.mxu0 0.0
      %3839 = vmatprep.subr.mxu0 0.0
      %3840 = vmatpush1.xpose.msra.mxu0 0.0
      %3841 = vmatprep.mubr.f32.mxu0 0.0
      %3842 = vmatmul.mubr.f32.gmra.mrb[0].mxu0 %v3687
      %v3843 = vpop.f32.mrb[0].mxu0
      %v3844 = vadd.f32 0.0, %v3843
      %v3845 = vpop.f32.mrb[0].mxu0
      %3846 = vdwg.mxu0
      %3847 = vmatprep.subr.mxu0 0.0
      %3848 = vmatpush1.xpose.msra.mxu0 %v3440
      %3849 = vmatprep.subr.mxu0 0.0
      %3850 = vmatpush1.xpose.msra.mxu0 %v3444
      %3851 = vmatprep.subr.mxu0 0.0
      %3852 = vmatpush1.xpose.msra.mxu0 0.0
      %3853 = vmatprep.subr.mxu0 0.0
      %3854 = vmatpush1.xpose.msra.mxu0 0.0
      %3855 = vmatprep.subr.mxu0 0.0
      %3856 = vmatpush1.xpose.msra.mxu0 0.0
      %3857 = vmatprep.subr.mxu0 0.0
      %3858 = vmatpush1.xpose.msra.mxu0 0.0
      %3859 = vmatprep.subr.mxu0 0.0
      %3860 = vmatpush1.xpose.msra.mxu0 0.0
      %3861 = vmatprep.subr.mxu0 0.0
      %3862 = vmatpush1.xpose.msra.mxu0 0.0
      %3863 = vmatprep.subr.mxu0 0.0
      %3864 = vmatpush1.xpose.msra.mxu0 0.0
      %3865 = vmatprep.subr.mxu0 0.0
      %3866 = vmatpush1.xpose.msra.mxu0 0.0
      %3867 = vmatprep.subr.mxu0 0.0
      %3868 = vmatpush1.xpose.msra.mxu0 0.0
      %3869 = vmatprep.subr.mxu0 0.0
      %3870 = vmatpush1.xpose.msra.mxu0 0.0
      %3871 = vmatprep.subr.mxu0 0.0
      %3872 = vmatpush1.xpose.msra.mxu0 0.0
      %3873 = vmatprep.subr.mxu0 0.0
      %3874 = vmatpush1.xpose.msra.mxu0 0.0
      %3875 = vmatprep.subr.mxu0 0.0
      %3876 = vmatpush1.xpose.msra.mxu0 0.0
      %3877 = vmatprep.subr.mxu0 0.0
      %3878 = vmatpush1.xpose.msra.mxu0 0.0
      %3879 = vmatprep.subr.mxu0 0.0
      %3880 = vmatpush1.xpose.msra.mxu0 0.0
      %3881 = vmatprep.subr.mxu0 0.0
      %3882 = vmatpush1.xpose.msra.mxu0 0.0
      %3883 = vmatprep.subr.mxu0 0.0
      %3884 = vmatpush1.xpose.msra.mxu0 0.0
      %3885 = vmatprep.subr.mxu0 0.0
      %3886 = vmatpush1.xpose.msra.mxu0 0.0
      %3887 = vmatprep.subr.mxu0 0.0
      %3888 = vmatpush1.xpose.msra.mxu0 0.0
      %3889 = vmatprep.subr.mxu0 0.0
      %3890 = vmatpush1.xpose.msra.mxu0 0.0
      %3891 = vmatprep.subr.mxu0 0.0
      %3892 = vmatpush1.xpose.msra.mxu0 0.0
      %3893 = vmatprep.subr.mxu0 0.0
      %3894 = vmatpush1.xpose.msra.mxu0 0.0
      %3895 = vmatprep.subr.mxu0 0.0
      %3896 = vmatpush1.xpose.msra.mxu0 0.0
      %3897 = vmatprep.subr.mxu0 0.0
      %3898 = vmatpush1.xpose.msra.mxu0 0.0
      %3899 = vmatprep.subr.mxu0 0.0
      %3900 = vmatpush1.xpose.msra.mxu0 0.0
      %3901 = vmatprep.subr.mxu0 0.0
      %3902 = vmatpush1.xpose.msra.mxu0 0.0
      %3903 = vmatprep.subr.mxu0 0.0
      %3904 = vmatpush1.xpose.msra.mxu0 0.0
      %3905 = vmatprep.subr.mxu0 0.0
      %3906 = vmatpush1.xpose.msra.mxu0 0.0
      %3907 = vmatprep.subr.mxu0 0.0
      %3908 = vmatpush1.xpose.msra.mxu0 0.0
      %3909 = vmatprep.subr.mxu0 0.0
      %3910 = vmatpush1.xpose.msra.mxu0 0.0
      %3911 = vmatprep.mubr.f32.mxu0 0.0
      %3912 = vmatmul.mubr.f32.gmra.mrb[0].mxu0 %v3695
      %v3913 = vpop.f32.mrb[0].mxu0
      %v3914 = vadd.f32 0.0, %v3913
      %v3915 = vpop.f32.mrb[0].mxu0
      %3916 = vdwg.mxu0
      %3917 = vmatprep.subr.mxu0 0.0
      %3918 = vmatpush1.xpose.msra.mxu0 %v3450
      %3919 = vmatprep.subr.mxu0 0.0
      %3920 = vmatpush1.xpose.msra.mxu0 %v3454
      %3921 = vmatprep.subr.mxu0 0.0
      %3922 = vmatpush1.xpose.msra.mxu0 0.0
      %3923 = vmatprep.subr.mxu0 0.0
      %3924 = vmatpush1.xpose.msra.mxu0 0.0
      %3925 = vmatprep.subr.mxu0 0.0
      %3926 = vmatpush1.xpose.msra.mxu0 0.0
      %3927 = vmatprep.subr.mxu0 0.0
      %3928 = vmatpush1.xpose.msra.mxu0 0.0
      %3929 = vmatprep.subr.mxu0 0.0
      %3930 = vmatpush1.xpose.msra.mxu0 0.0
      %3931 = vmatprep.subr.mxu0 0.0
      %3932 = vmatpush1.xpose.msra.mxu0 0.0
      %3933 = vmatprep.subr.mxu0 0.0
      %3934 = vmatpush1.xpose.msra.mxu0 0.0
      %3935 = vmatprep.subr.mxu0 0.0
      %3936 = vmatpush1.xpose.msra.mxu0 0.0
      %3937 = vmatprep.subr.mxu0 0.0
      %3938 = vmatpush1.xpose.msra.mxu0 0.0
      %3939 = vmatprep.subr.mxu0 0.0
      %3940 = vmatpush1.xpose.msra.mxu0 0.0
      %3941 = vmatprep.subr.mxu0 0.0
      %3942 = vmatpush1.xpose.msra.mxu0 0.0
      %3943 = vmatprep.subr.mxu0 0.0
      %3944 = vmatpush1.xpose.msra.mxu0 0.0
      %3945 = vmatprep.subr.mxu0 0.0
      %3946 = vmatpush1.xpose.msra.mxu0 0.0
      %3947 = vmatprep.subr.mxu0 0.0
      %3948 = vmatpush1.xpose.msra.mxu0 0.0
      %3949 = vmatprep.subr.mxu0 0.0
      %3950 = vmatpush1.xpose.msra.mxu0 0.0
      %3951 = vmatprep.subr.mxu0 0.0
      %3952 = vmatpush1.xpose.msra.mxu0 0.0
      %3953 = vmatprep.subr.mxu0 0.0
      %3954 = vmatpush1.xpose.msra.mxu0 0.0
      %3955 = vmatprep.subr.mxu0 0.0
      %3956 = vmatpush1.xpose.msra.mxu0 0.0
      %3957 = vmatprep.subr.mxu0 0.0
      %3958 = vmatpush1.xpose.msra.mxu0 0.0
      %3959 = vmatprep.subr.mxu0 0.0
      %3960 = vmatpush1.xpose.msra.mxu0 0.0
      %3961 = vmatprep.subr.mxu0 0.0
      %3962 = vmatpush1.xpose.msra.mxu0 0.0
      %3963 = vmatprep.subr.mxu0 0.0
      %3964 = vmatpush1.xpose.msra.mxu0 0.0
      %3965 = vmatprep.subr.mxu0 0.0
      %3966 = vmatpush1.xpose.msra.mxu0 0.0
      %3967 = vmatprep.subr.mxu0 0.0
      %3968 = vmatpush1.xpose.msra.mxu0 0.0
      %3969 = vmatprep.subr.mxu0 0.0
      %3970 = vmatpush1.xpose.msra.mxu0 0.0
      %3971 = vmatprep.subr.mxu0 0.0
      %3972 = vmatpush1.xpose.msra.mxu0 0.0
      %3973 = vmatprep.subr.mxu0 0.0
      %3974 = vmatpush1.xpose.msra.mxu0 0.0
      %3975 = vmatprep.subr.mxu0 0.0
      %3976 = vmatpush1.xpose.msra.mxu0 0.0
      %3977 = vmatprep.subr.mxu0 0.0
      %3978 = vmatpush1.xpose.msra.mxu0 0.0
      %3979 = vmatprep.subr.mxu0 0.0
      %3980 = vmatpush1.xpose.msra.mxu0 0.0
      %3981 = vmatprep.mubr.f32.mxu0 0.0
      %3982 = vmatmul.mubr.f32.gmra.mrb[0].mxu0 %v3697
      %v3983 = vpop.f32.mrb[0].mxu0
      %v3984 = vadd.f32 0.0, %v3983
      %v3985 = vpop.f32.mrb[0].mxu0
      %3986 = vdwg.mxu0
      %3987 = vmatprep.subr.mxu0 0.0
      %3988 = vmatpush1.xpose.msra.mxu0 %v3460
      %3989 = vmatprep.subr.mxu0 0.0
      %3990 = vmatpush1.xpose.msra.mxu0 %v3464
      %3991 = vmatprep.subr.mxu0 0.0
      %3992 = vmatpush1.xpose.msra.mxu0 0.0
      %3993 = vmatprep.subr.mxu0 0.0
      %3994 = vmatpush1.xpose.msra.mxu0 0.0
      %3995 = vmatprep.subr.mxu0 0.0
      %3996 = vmatpush1.xpose.msra.mxu0 0.0
      %3997 = vmatprep.subr.mxu0 0.0
      %3998 = vmatpush1.xpose.msra.mxu0 0.0
      %3999 = vmatprep.subr.mxu0 0.0
      %4000 = vmatpush1.xpose.msra.mxu0 0.0
      %4001 = vmatprep.subr.mxu0 0.0
      %4002 = vmatpush1.xpose.msra.mxu0 0.0
      %4003 = vmatprep.subr.mxu0 0.0
      %4004 = vmatpush1.xpose.msra.mxu0 0.0
      %4005 = vmatprep.subr.mxu0 0.0
      %4006 = vmatpush1.xpose.msra.mxu0 0.0
      %4007 = vmatprep.subr.mxu0 0.0
      %4008 = vmatpush1.xpose.msra.mxu0 0.0
      %4009 = vmatprep.subr.mxu0 0.0
      %4010 = vmatpush1.xpose.msra.mxu0 0.0
      %4011 = vmatprep.subr.mxu0 0.0
      %4012 = vmatpush1.xpose.msra.mxu0 0.0
      %4013 = vmatprep.subr.mxu0 0.0
      %4014 = vmatpush1.xpose.msra.mxu0 0.0
      %4015 = vmatprep.subr.mxu0 0.0
      %4016 = vmatpush1.xpose.msra.mxu0 0.0
      %4017 = vmatprep.subr.mxu0 0.0
      %4018 = vmatpush1.xpose.msra.mxu0 0.0
      %4019 = vmatprep.subr.mxu0 0.0
      %4020 = vmatpush1.xpose.msra.mxu0 0.0
      %4021 = vmatprep.subr.mxu0 0.0
      %4022 = vmatpush1.xpose.msra.mxu0 0.0
      %4023 = vmatprep.subr.mxu0 0.0
      %4024 = vmatpush1.xpose.msra.mxu0 0.0
      %4025 = vmatprep.subr.mxu0 0.0
      %4026 = vmatpush1.xpose.msra.mxu0 0.0
      %4027 = vmatprep.subr.mxu0 0.0
      %4028 = vmatpush1.xpose.msra.mxu0 0.0
      %4029 = vmatprep.subr.mxu0 0.0
      %4030 = vmatpush1.xpose.msra.mxu0 0.0
      %4031 = vmatprep.subr.mxu0 0.0
      %4032 = vmatpush1.xpose.msra.mxu0 0.0
      %4033 = vmatprep.subr.mxu0 0.0
      %4034 = vmatpush1.xpose.msra.mxu0 0.0
      %4035 = vmatprep.subr.mxu0 0.0
      %4036 = vmatpush1.xpose.msra.mxu0 0.0
      %4037 = vmatprep.subr.mxu0 0.0
      %4038 = vmatpush1.xpose.msra.mxu0 0.0
      %4039 = vmatprep.subr.mxu0 0.0
      %4040 = vmatpush1.xpose.msra.mxu0 0.0
      %4041 = vmatprep.subr.mxu0 0.0
      %4042 = vmatpush1.xpose.msra.mxu0 0.0
      %4043 = vmatprep.subr.mxu0 0.0
      %4044 = vmatpush1.xpose.msra.mxu0 0.0
      %4045 = vmatprep.subr.mxu0 0.0
      %4046 = vmatpush1.xpose.msra.mxu0 0.0
      %4047 = vmatprep.subr.mxu0 0.0
      %4048 = vmatpush1.xpose.msra.mxu0 0.0
      %4049 = vmatprep.subr.mxu0 0.0
      %4050 = vmatpush1.xpose.msra.mxu0 0.0
      %4051 = vmatprep.mubr.f32.mxu0 0.0
      %4052 = vmatmul.mubr.f32.gmra.mrb[0].mxu0 %v3680
      %v4053 = vpop.f32.mrb[0].mxu0
      %v4054 = vadd.f32 0.0, %v4053
      %v4055 = vpop.f32.mrb[0].mxu0
      %4056 = vdwg.mxu0
      %4057 = vmatprep.subr.mxu0 0.0
      %4058 = vmatpush1.xpose.msra.mxu0 %v3470
      %4059 = vmatprep.subr.mxu0 0.0
      %4060 = vmatpush1.xpose.msra.mxu0 %v3474
      %4061 = vmatprep.subr.mxu0 0.0
      %4062 = vmatpush1.xpose.msra.mxu0 0.0
      %4063 = vmatprep.subr.mxu0 0.0
      %4064 = vmatpush1.xpose.msra.mxu0 0.0
      %4065 = vmatprep.subr.mxu0 0.0
      %4066 = vmatpush1.xpose.msra.mxu0 0.0
      %4067 = vmatprep.subr.mxu0 0.0
      %4068 = vmatpush1.xpose.msra.mxu0 0.0
      %4069 = vmatprep.subr.mxu0 0.0
      %4070 = vmatpush1.xpose.msra.mxu0 0.0
      %4071 = vmatprep.subr.mxu0 0.0
      %4072 = vmatpush1.xpose.msra.mxu0 0.0
      %4073 = vmatprep.subr.mxu0 0.0
      %4074 = vmatpush1.xpose.msra.mxu0 0.0
      %4075 = vmatprep.subr.mxu0 0.0
      %4076 = vmatpush1.xpose.msra.mxu0 0.0
      %4077 = vmatprep.subr.mxu0 0.0
      %4078 = vmatpush1.xpose.msra.mxu0 0.0
      %4079 = vmatprep.subr.mxu0 0.0
      %4080 = vmatpush1.xpose.msra.mxu0 0.0
      %4081 = vmatprep.subr.mxu0 0.0
      %4082 = vmatpush1.xpose.msra.mxu0 0.0
      %4083 = vmatprep.subr.mxu0 0.0
      %4084 = vmatpush1.xpose.msra.mxu0 0.0
      %4085 = vmatprep.subr.mxu0 0.0
      %4086 = vmatpush1.xpose.msra.mxu0 0.0
      %4087 = vmatprep.subr.mxu0 0.0
      %4088 = vmatpush1.xpose.msra.mxu0 0.0
      %4089 = vmatprep.subr.mxu0 0.0
      %4090 = vmatpush1.xpose.msra.mxu0 0.0
      %4091 = vmatprep.subr.mxu0 0.0
      %4092 = vmatpush1.xpose.msra.mxu0 0.0
      %4093 = vmatprep.subr.mxu0 0.0
      %4094 = vmatpush1.xpose.msra.mxu0 0.0
      %4095 = vmatprep.subr.mxu0 0.0
      %4096 = vmatpush1.xpose.msra.mxu0 0.0
      %4097 = vmatprep.subr.mxu0 0.0
      %4098 = vmatpush1.xpose.msra.mxu0 0.0
      %4099 = vmatprep.subr.mxu0 0.0
      %4100 = vmatpush1.xpose.msra.mxu0 0.0
      %4101 = vmatprep.subr.mxu0 0.0
      %4102 = vmatpush1.xpose.msra.mxu0 0.0
      %4103 = vmatprep.subr.mxu0 0.0
      %4104 = vmatpush1.xpose.msra.mxu0 0.0
      %4105 = vmatprep.subr.mxu0 0.0
      %4106 = vmatpush1.xpose.msra.mxu0 0.0
      %4107 = vmatprep.subr.mxu0 0.0
      %4108 = vmatpush1.xpose.msra.mxu0 0.0
      %4109 = vmatprep.subr.mxu0 0.0
      %4110 = vmatpush1.xpose.msra.mxu0 0.0
      %4111 = vmatprep.subr.mxu0 0.0
      %4112 = vmatpush1.xpose.msra.mxu0 0.0
      %4113 = vmatprep.subr.mxu0 0.0
      %4114 = vmatpush1.xpose.msra.mxu0 0.0
      %4115 = vmatprep.subr.mxu0 0.0
      %4116 = vmatpush1.xpose.msra.mxu0 0.0
      %4117 = vmatprep.subr.mxu0 0.0
      %4118 = vmatpush1.xpose.msra.mxu0 0.0
      %4119 = vmatprep.subr.mxu0 0.0
      %4120 = vmatpush1.xpose.msra.mxu0 0.0
      %4121 = vmatprep.mubr.f32.mxu0 0.0
      %4122 = vmatmul.mubr.f32.gmra.mrb[0].mxu0 %v3694
      %v4123 = vpop.f32.mrb[0].mxu0
      %v4124 = vadd.f32 0.0, %v4123
      %v4125 = vpop.f32.mrb[0].mxu0
      %4126 = vdwg.mxu0
      %4127 = vmatprep.subr.mxu0 0.0
      %4128 = vmatpush1.xpose.msra.mxu0 %v3480
      %4129 = vmatprep.subr.mxu0 0.0
      %4130 = vmatpush1.xpose.msra.mxu0 %v3484
      %4131 = vmatprep.subr.mxu0 0.0
      %4132 = vmatpush1.xpose.msra.mxu0 0.0
      %4133 = vmatprep.subr.mxu0 0.0
      %4134 = vmatpush1.xpose.msra.mxu0 0.0
      %4135 = vmatprep.subr.mxu0 0.0
      %4136 = vmatpush1.xpose.msra.mxu0 0.0
      %4137 = vmatprep.subr.mxu0 0.0
      %4138 = vmatpush1.xpose.msra.mxu0 0.0
      %4139 = vmatprep.subr.mxu0 0.0
      %4140 = vmatpush1.xpose.msra.mxu0 0.0
      %4141 = vmatprep.subr.mxu0 0.0
      %4142 = vmatpush1.xpose.msra.mxu0 0.0
      %4143 = vmatprep.subr.mxu0 0.0
      %4144 = vmatpush1.xpose.msra.mxu0 0.0
      %4145 = vmatprep.subr.mxu0 0.0
      %4146 = vmatpush1.xpose.msra.mxu0 0.0
      %4147 = vmatprep.subr.mxu0 0.0
      %4148 = vmatpush1.xpose.msra.mxu0 0.0
      %4149 = vmatprep.subr.mxu0 0.0
      %4150 = vmatpush1.xpose.msra.mxu0 0.0
      %4151 = vmatprep.subr.mxu0 0.0
      %4152 = vmatpush1.xpose.msra.mxu0 0.0
      %4153 = vmatprep.subr.mxu0 0.0
      %4154 = vmatpush1.xpose.msra.mxu0 0.0
      %4155 = vmatprep.subr.mxu0 0.0
      %4156 = vmatpush1.xpose.msra.mxu0 0.0
      %4157 = vmatprep.subr.mxu0 0.0
      %4158 = vmatpush1.xpose.msra.mxu0 0.0
      %4159 = vmatprep.subr.mxu0 0.0
      %4160 = vmatpush1.xpose.msra.mxu0 0.0
      %4161 = vmatprep.subr.mxu0 0.0
      %4162 = vmatpush1.xpose.msra.mxu0 0.0
      %4163 = vmatprep.subr.mxu0 0.0
      %4164 = vmatpush1.xpose.msra.mxu0 0.0
      %4165 = vmatprep.subr.mxu0 0.0
      %4166 = vmatpush1.xpose.msra.mxu0 0.0
      %4167 = vmatprep.subr.mxu0 0.0
      %4168 = vmatpush1.xpose.msra.mxu0 0.0
      %4169 = vmatprep.subr.mxu0 0.0
      %4170 = vmatpush1.xpose.msra.mxu0 0.0
      %4171 = vmatprep.subr.mxu0 0.0
      %4172 = vmatpush1.xpose.msra.mxu0 0.0
      %4173 = vmatprep.subr.mxu0 0.0
      %4174 = vmatpush1.xpose.msra.mxu0 0.0
      %4175 = vmatprep.subr.mxu0 0.0
      %4176 = vmatpush1.xpose.msra.mxu0 0.0
      %4177 = vmatprep.subr.mxu0 0.0
      %4178 = vmatpush1.xpose.msra.mxu0 0.0
      %4179 = vmatprep.subr.mxu0 0.0
      %4180 = vmatpush1.xpose.msra.mxu0 0.0
      %4181 = vmatprep.subr.mxu0 0.0
      %4182 = vmatpush1.xpose.msra.mxu0 0.0
      %4183 = vmatprep.subr.mxu0 0.0
      %4184 = vmatpush1.xpose.msra.mxu0 0.0
      %4185 = vmatprep.subr.mxu0 0.0
      %4186 = vmatpush1.xpose.msra.mxu0 0.0
      %4187 = vmatprep.subr.mxu0 0.0
      %4188 = vmatpush1.xpose.msra.mxu0 0.0
      %4189 = vmatprep.subr.mxu0 0.0
      %4190 = vmatpush1.xpose.msra.mxu0 0.0
      %4191 = vmatprep.mubr.f32.mxu0 0.0
      %4192 = vmatmul.mubr.f32.gmra.mrb[0].mxu0 %v3696
      %v4193 = vpop.f32.mrb[0].mxu0
      %v4194 = vadd.f32 0.0, %v4193
      %v4195 = vpop.f32.mrb[0].mxu0
      %4196 = vdwg.mxu0
      %4197 = vmatprep.subr.mxu0 0.0
      %4198 = vmatpush1.xpose.msra.mxu0 %v3490
      %4199 = vmatprep.subr.mxu0 0.0
      %4200 = vmatpush1.xpose.msra.mxu0 %v3494
      %4201 = vmatprep.subr.mxu0 0.0
      %4202 = vmatpush1.xpose.msra.mxu0 0.0
      %4203 = vmatprep.subr.mxu0 0.0
      %4204 = vmatpush1.xpose.msra.mxu0 0.0
      %4205 = vmatprep.subr.mxu0 0.0
      %4206 = vmatpush1.xpose.msra.mxu0 0.0
      %4207 = vmatprep.subr.mxu0 0.0
      %4208 = vmatpush1.xpose.msra.mxu0 0.0
      %4209 = vmatprep.subr.mxu0 0.0
      %4210 = vmatpush1.xpose.msra.mxu0 0.0
      %4211 = vmatprep.subr.mxu0 0.0
      %4212 = vmatpush1.xpose.msra.mxu0 0.0
      %4213 = vmatprep.subr.mxu0 0.0
      %4214 = vmatpush1.xpose.msra.mxu0 0.0
      %4215 = vmatprep.subr.mxu0 0.0
      %4216 = vmatpush1.xpose.msra.mxu0 0.0
      %4217 = vmatprep.subr.mxu0 0.0
      %4218 = vmatpush1.xpose.msra.mxu0 0.0
      %4219 = vmatprep.subr.mxu0 0.0
      %4220 = vmatpush1.xpose.msra.mxu0 0.0
      %4221 = vmatprep.subr.mxu0 0.0
      %4222 = vmatpush1.xpose.msra.mxu0 0.0
      %4223 = vmatprep.subr.mxu0 0.0
      %4224 = vmatpush1.xpose.msra.mxu0 0.0
      %4225 = vmatprep.subr.mxu0 0.0
      %4226 = vmatpush1.xpose.msra.mxu0 0.0
      %4227 = vmatprep.subr.mxu0 0.0
      %4228 = vmatpush1.xpose.msra.mxu0 0.0
      %4229 = vmatprep.subr.mxu0 0.0
      %4230 = vmatpush1.xpose.msra.mxu0 0.0
      %4231 = vmatprep.subr.mxu0 0.0
      %4232 = vmatpush1.xpose.msra.mxu0 0.0
      %4233 = vmatprep.subr.mxu0 0.0
      %4234 = vmatpush1.xpose.msra.mxu0 0.0
      %4235 = vmatprep.subr.mxu0 0.0
      %4236 = vmatpush1.xpose.msra.mxu0 0.0
      %4237 = vmatprep.subr.mxu0 0.0
      %4238 = vmatpush1.xpose.msra.mxu0 0.0
      %4239 = vmatprep.subr.mxu0 0.0
      %4240 = vmatpush1.xpose.msra.mxu0 0.0
      %4241 = vmatprep.subr.mxu0 0.0
      %4242 = vmatpush1.xpose.msra.mxu0 0.0
      %4243 = vmatprep.subr.mxu0 0.0
      %4244 = vmatpush1.xpose.msra.mxu0 0.0
      %4245 = vmatprep.subr.mxu0 0.0
      %4246 = vmatpush1.xpose.msra.mxu0 0.0
      %4247 = vmatprep.subr.mxu0 0.0
      %4248 = vmatpush1.xpose.msra.mxu0 0.0
      %4249 = vmatprep.subr.mxu0 0.0
      %4250 = vmatpush1.xpose.msra.mxu0 0.0
      %4251 = vmatprep.subr.mxu0 0.0
      %4252 = vmatpush1.xpose.msra.mxu0 0.0
      %4253 = vmatprep.subr.mxu0 0.0
      %4254 = vmatpush1.xpose.msra.mxu0 0.0
      %4255 = vmatprep.subr.mxu0 0.0
      %4256 = vmatpush1.xpose.msra.mxu0 0.0
      %4257 = vmatprep.subr.mxu0 0.0
      %4258 = vmatpush1.xpose.msra.mxu0 0.0
      %4259 = vmatprep.subr.mxu0 0.0
      %4260 = vmatpush1.xpose.msra.mxu0 0.0
      %4261 = vmatprep.mubr.f32.mxu0 0.0
      %4262 = vmatmul.mubr.f32.gmra.mrb[0].mxu0 %v3698
      %v4263 = vpop.f32.mrb[0].mxu0
      %v4264 = vadd.f32 0.0, %v4263
      %v4265 = vpop.f32.mrb[0].mxu0
      %4266 = vdwg.mxu0
      %v4267 = vmul.f32 %v3774, 0.088388346
      %v4268 = vmul.f32 %v3844, 0.088388346
      %v4269 = vmul.f32 %v3914, 0.088388346
      %v4270 = vmul.f32 %v3984, 0.088388346
      %v4271 = vmul.f32 %v4054, 0.088388346
      %v4272 = vmul.f32 %v4124, 0.088388346
      %v4273 = vmul.f32 %v4194, 0.088388346
      %v4274 = vmul.f32 %v4264, 0.088388346
      %vm4275 = vcmask 122880
      %v4276 = vsel %vm4275, %v4267, -inf
      %4277 = vmax.xlane.f32.xlu0 %v4276
      %v4278 = vpop.xlane.xlu0 %4277
      %v4279 = vsel %vm4275, %v4268, -inf
      %4280 = vmax.xlane.f32.xlu0 %v4279
      %v4281 = vpop.xlane.xlu0 %4280
      %v4282 = vsel %vm4275, %v4269, -inf
      %4283 = vmax.xlane.f32.xlu0 %v4282
      %v4284 = vpop.xlane.xlu0 %4283
      %v4285 = vsel %vm4275, %v4270, -inf
      %4286 = vmax.xlane.f32.xlu0 %v4285
      %v4287 = vpop.xlane.xlu0 %4286
      %v4288 = vsel %vm4275, %v4271, -inf
      %4289 = vmax.xlane.f32.xlu0 %v4288
      %v4290 = vpop.xlane.xlu0 %4289
      %v4291 = vsel %vm4275, %v4272, -inf
      %4292 = vmax.xlane.f32.xlu0 %v4291
      %v4293 = vpop.xlane.xlu0 %4292
      %v4294 = vsel %vm4275, %v4273, -inf
      %4295 = vmax.xlane.f32.xlu0 %v4294
      %v4296 = vpop.xlane.xlu0 %4295
      %v4297 = vsel %vm4275, %v4274, -inf
      %4298 = vmax.xlane.f32.xlu0 %v4297
      %v4299 = vpop.xlane.xlu0 %4298
      %v4300 = vsub.f32 %v4267, %v4278
      %v4301 = vsub.f32 %v4268, %v4281
      %v4302 = vsub.f32 %v4269, %v4284
      %v4303 = vsub.f32 %v4270, %v4287
      %v4304 = vsub.f32 %v4271, %v4290
      %v4305 = vsub.f32 %v4272, %v4293
      %v4306 = vsub.f32 %v4273, %v4296
      %v4307 = vsub.f32 %v4274, %v4299
      %v4308 = vmul.f32 %v4300, 1.442695
      %v4309 = vpow.pop %v4308
      %v4310 = vmul.f32 %v4301, 1.442695
      %v4311 = vpow.pop %v4310
      %v4312 = vmul.f32 %v4302, 1.442695
      %v4313 = vpow.pop %v4312
      %v4314 = vmul.f32 %v4303, 1.442695
      %v4315 = vpow.pop %v4314
      %v4316 = vmul.f32 %v4304, 1.442695
      %v4317 = vpow.pop %v4316
      %v4318 = vmul.f32 %v4305, 1.442695
      %v4319 = vpow.pop %v4318
      %v4320 = vmul.f32 %v4306, 1.442695
      %v4321 = vpow.pop %v4320
      %v4322 = vmul.f32 %v4307, 1.442695
      %v4323 = vpow.pop %v4322
      %v4324 = vsel %vm4275, %v4309, 0.0
      %4325 = vadd.xlane.f32.xlu0 %v4324
      %v4326 = vpop.xlane.xlu0 %4325
      %v4327 = vsel %vm4275, %v4311, 0.0
      %4328 = vadd.xlane.f32.xlu0 %v4327
      %v4329 = vpop.xlane.xlu0 %4328
      %v4330 = vsel %vm4275, %v4313, 0.0
      %4331 = vadd.xlane.f32.xlu0 %v4330
      %v4332 = vpop.xlane.xlu0 %4331
      %v4333 = vsel %vm4275, %v4315, 0.0
      %4334 = vadd.xlane.f32.xlu0 %v4333
      %v4335 = vpop.xlane.xlu0 %4334
      %v4336 = vsel %vm4275, %v4317, 0.0
      %4337 = vadd.xlane.f32.xlu0 %v4336
      %v4338 = vpop.xlane.xlu0 %4337
      %v4339 = vsel %vm4275, %v4319, 0.0
      %4340 = vadd.xlane.f32.xlu0 %v4339
      %v4341 = vpop.xlane.xlu0 %4340
      %v4342 = vsel %vm4275, %v4321, 0.0
      %4343 = vadd.xlane.f32.xlu0 %v4342
      %v4344 = vpop.xlane.xlu0 %4343
      %v4345 = vsel %vm4275, %v4323, 0.0
      %4346 = vadd.xlane.f32.xlu0 %v4345
      %v4347 = vpop.xlane.xlu0 %4346
      %v4348 = vrcp.pop %v4326
      %v4349 = vmul.f32 %v4309, %v4348
      %v4350 = vrcp.pop %v4329
      %v4351 = vmul.f32 %v4311, %v4350
      %v4352 = vrcp.pop %v4332
      %v4353 = vmul.f32 %v4313, %v4352
      %v4354 = vrcp.pop %v4335
      %v4355 = vmul.f32 %v4315, %v4354
      %v4356 = vrcp.pop %v4338
      %v4357 = vmul.f32 %v4317, %v4356
      %v4358 = vrcp.pop %v4341
      %v4359 = vmul.f32 %v4319, %v4358
      %v4360 = vrcp.pop %v4344
      %v4361 = vmul.f32 %v4321, %v4360
      %v4362 = vrcp.pop %v4347
      %v4363 = vmul.f32 %v4323, %v4362
      %v4365 = vsel %vm763, %v4349, 0
      %4367 = vmatprep.subr.mxu0 0.0
      %4368 = vmatpush1.msra.mxu0 %v3422
      %4369 = vmatprep.subr.mxu0 0.0
      %4370 = vmatpush1.msra.mxu0 %v3426
      %4371 = vmatprep.subr.mxu0 0.0
      %4372 = vmatpush1.msra.mxu0 0.0
      %4373 = vmatprep.subr.mxu0 0.0
      %4374 = vmatpush1.msra.mxu0 0.0
      %4375 = vmatprep.subr.mxu0 0.0
      %4376 = vmatpush1.msra.mxu0 0.0
      %4377 = vmatprep.subr.mxu0 0.0
      %4378 = vmatpush1.msra.mxu0 0.0
      %4379 = vmatprep.subr.mxu0 0.0
      %4380 = vmatpush1.msra.mxu0 0.0
      %4381 = vmatprep.subr.mxu0 0.0
      %4382 = vmatpush1.msra.mxu0 0.0
      %4383 = vmatprep.subr.mxu0 0.0
      %4384 = vmatpush1.msra.mxu0 0.0
      %4385 = vmatprep.subr.mxu0 0.0
      %4386 = vmatpush1.msra.mxu0 0.0
      %4387 = vmatprep.subr.mxu0 0.0
      %4388 = vmatpush1.msra.mxu0 0.0
      %4389 = vmatprep.subr.mxu0 0.0
      %4390 = vmatpush1.msra.mxu0 0.0
      %4391 = vmatprep.subr.mxu0 0.0
      %4392 = vmatpush1.msra.mxu0 0.0
      %4393 = vmatprep.subr.mxu0 0.0
      %4394 = vmatpush1.msra.mxu0 0.0
      %4395 = vmatprep.subr.mxu0 0.0
      %4396 = vmatpush1.msra.mxu0 0.0
      %4397 = vmatprep.subr.mxu0 0.0
      %4398 = vmatpush1.msra.mxu0 0.0
      %4399 = vmatprep.subr.mxu0 0.0
      %4400 = vmatpush1.msra.mxu0 0.0
      %4401 = vmatprep.subr.mxu0 0.0
      %4402 = vmatpush1.msra.mxu0 0.0
      %4403 = vmatprep.subr.mxu0 0.0
      %4404 = vmatpush1.msra.mxu0 0.0
      %4405 = vmatprep.subr.mxu0 0.0
      %4406 = vmatpush1.msra.mxu0 0.0
      %4407 = vmatprep.subr.mxu0 0.0
      %4408 = vmatpush1.msra.mxu0 0.0
      %4409 = vmatprep.subr.mxu0 0.0
      %4410 = vmatpush1.msra.mxu0 0.0
      %4411 = vmatprep.subr.mxu0 0.0
      %4412 = vmatpush1.msra.mxu0 0.0
      %4413 = vmatprep.subr.mxu0 0.0
      %4414 = vmatpush1.msra.mxu0 0.0
      %4415 = vmatprep.subr.mxu0 0.0
      %4416 = vmatpush1.msra.mxu0 0.0
      %4417 = vmatprep.subr.mxu0 0.0
      %4418 = vmatpush1.msra.mxu0 0.0
      %4419 = vmatprep.subr.mxu0 0.0
      %4420 = vmatpush1.msra.mxu0 0.0
      %4421 = vmatprep.subr.mxu0 0.0
      %4422 = vmatpush1.msra.mxu0 0.0
      %4423 = vmatprep.subr.mxu0 0.0
      %4424 = vmatpush1.msra.mxu0 0.0
      %4425 = vmatprep.subr.mxu0 0.0
      %4426 = vmatpush1.msra.mxu0 0.0
      %4427 = vmatprep.subr.mxu0 0.0
      %4428 = vmatpush1.msra.mxu0 0.0
      %4429 = vmatprep.subr.mxu0 0.0
      %4430 = vmatpush1.msra.mxu0 0.0
      %4431 = vmatprep.mubr.f32.mxu0 0.0
      %4432 = vmatmul.mubr.f32.gmra.mrb[0].mxu0 %v4365
      %v4433 = vpop.f32.mrb[0].mxu0
      %v4434 = vadd.f32 0.0, %v4433
      %v4435 = vpop.f32.mrb[0].mxu0
      %4436 = vdwg.mxu0
      %v4438 = vsel %vm763, %v4351, 0
      %4440 = vmatprep.subr.mxu0 0.0
      %4441 = vmatpush1.msra.mxu0 %v3432
      %4442 = vmatprep.subr.mxu0 0.0
      %4443 = vmatpush1.msra.mxu0 %v3436
      %4444 = vmatprep.subr.mxu0 0.0
      %4445 = vmatpush1.msra.mxu0 0.0
      %4446 = vmatprep.subr.mxu0 0.0
      %4447 = vmatpush1.msra.mxu0 0.0
      %4448 = vmatprep.subr.mxu0 0.0
      %4449 = vmatpush1.msra.mxu0 0.0
      %4450 = vmatprep.subr.mxu0 0.0
      %4451 = vmatpush1.msra.mxu0 0.0
      %4452 = vmatprep.subr.mxu0 0.0
      %4453 = vmatpush1.msra.mxu0 0.0
      %4454 = vmatprep.subr.mxu0 0.0
      %4455 = vmatpush1.msra.mxu0 0.0
      %4456 = vmatprep.subr.mxu0 0.0
      %4457 = vmatpush1.msra.mxu0 0.0
      %4458 = vmatprep.subr.mxu0 0.0
      %4459 = vmatpush1.msra.mxu0 0.0
      %4460 = vmatprep.subr.mxu0 0.0
      %4461 = vmatpush1.msra.mxu0 0.0
      %4462 = vmatprep.subr.mxu0 0.0
      %4463 = vmatpush1.msra.mxu0 0.0
      %4464 = vmatprep.subr.mxu0 0.0
      %4465 = vmatpush1.msra.mxu0 0.0
      %4466 = vmatprep.subr.mxu0 0.0
      %4467 = vmatpush1.msra.mxu0 0.0
      %4468 = vmatprep.subr.mxu0 0.0
      %4469 = vmatpush1.msra.mxu0 0.0
      %4470 = vmatprep.subr.mxu0 0.0
      %4471 = vmatpush1.msra.mxu0 0.0
      %4472 = vmatprep.subr.mxu0 0.0
      %4473 = vmatpush1.msra.mxu0 0.0
      %4474 = vmatprep.subr.mxu0 0.0
      %4475 = vmatpush1.msra.mxu0 0.0
      %4476 = vmatprep.subr.mxu0 0.0
      %4477 = vmatpush1.msra.mxu0 0.0
      %4478 = vmatprep.subr.mxu0 0.0
      %4479 = vmatpush1.msra.mxu0 0.0
      %4480 = vmatprep.subr.mxu0 0.0
      %4481 = vmatpush1.msra.mxu0 0.0
      %4482 = vmatprep.subr.mxu0 0.0
      %4483 = vmatpush1.msra.mxu0 0.0
      %4484 = vmatprep.subr.mxu0 0.0
      %4485 = vmatpush1.msra.mxu0 0.0
      %4486 = vmatprep.subr.mxu0 0.0
      %4487 = vmatpush1.msra.mxu0 0.0
      %4488 = vmatprep.subr.mxu0 0.0
      %4489 = vmatpush1.msra.mxu0 0.0
      %4490 = vmatprep.subr.mxu0 0.0
      %4491 = vmatpush1.msra.mxu0 0.0
      %4492 = vmatprep.subr.mxu0 0.0
      %4493 = vmatpush1.msra.mxu0 0.0
      %4494 = vmatprep.subr.mxu0 0.0
      %4495 = vmatpush1.msra.mxu0 0.0
      %4496 = vmatprep.subr.mxu0 0.0
      %4497 = vmatpush1.msra.mxu0 0.0
      %4498 = vmatprep.subr.mxu0 0.0
      %4499 = vmatpush1.msra.mxu0 0.0
      %4500 = vmatprep.subr.mxu0 0.0
      %4501 = vmatpush1.msra.mxu0 0.0
      %4502 = vmatprep.subr.mxu0 0.0
      %4503 = vmatpush1.msra.mxu0 0.0
      %4504 = vmatprep.mubr.f32.mxu0 0.0
      %4505 = vmatmul.mubr.f32.gmra.mrb[0].mxu0 %v4438
      %v4506 = vpop.f32.mrb[0].mxu0
      %v4507 = vadd.f32 0.0, %v4506
      %v4508 = vpop.f32.mrb[0].mxu0
      %4509 = vdwg.mxu0
      %v4511 = vsel %vm763, %v4353, 0
      %4513 = vmatprep.subr.mxu0 0.0
      %4514 = vmatpush1.msra.mxu0 %v3442
      %4515 = vmatprep.subr.mxu0 0.0
      %4516 = vmatpush1.msra.mxu0 %v3446
      %4517 = vmatprep.subr.mxu0 0.0
      %4518 = vmatpush1.msra.mxu0 0.0
      %4519 = vmatprep.subr.mxu0 0.0
      %4520 = vmatpush1.msra.mxu0 0.0
      %4521 = vmatprep.subr.mxu0 0.0
      %4522 = vmatpush1.msra.mxu0 0.0
      %4523 = vmatprep.subr.mxu0 0.0
      %4524 = vmatpush1.msra.mxu0 0.0
      %4525 = vmatprep.subr.mxu0 0.0
      %4526 = vmatpush1.msra.mxu0 0.0
      %4527 = vmatprep.subr.mxu0 0.0
      %4528 = vmatpush1.msra.mxu0 0.0
      %4529 = vmatprep.subr.mxu0 0.0
      %4530 = vmatpush1.msra.mxu0 0.0
      %4531 = vmatprep.subr.mxu0 0.0
      %4532 = vmatpush1.msra.mxu0 0.0
      %4533 = vmatprep.subr.mxu0 0.0
      %4534 = vmatpush1.msra.mxu0 0.0
      %4535 = vmatprep.subr.mxu0 0.0
      %4536 = vmatpush1.msra.mxu0 0.0
      %4537 = vmatprep.subr.mxu0 0.0
      %4538 = vmatpush1.msra.mxu0 0.0
      %4539 = vmatprep.subr.mxu0 0.0
      %4540 = vmatpush1.msra.mxu0 0.0
      %4541 = vmatprep.subr.mxu0 0.0
      %4542 = vmatpush1.msra.mxu0 0.0
      %4543 = vmatprep.subr.mxu0 0.0
      %4544 = vmatpush1.msra.mxu0 0.0
      %4545 = vmatprep.subr.mxu0 0.0
      %4546 = vmatpush1.msra.mxu0 0.0
      %4547 = vmatprep.subr.mxu0 0.0
      %4548 = vmatpush1.msra.mxu0 0.0
      %4549 = vmatprep.subr.mxu0 0.0
      %4550 = vmatpush1.msra.mxu0 0.0
      %4551 = vmatprep.subr.mxu0 0.0
      %4552 = vmatpush1.msra.mxu0 0.0
      %4553 = vmatprep.subr.mxu0 0.0
      %4554 = vmatpush1.msra.mxu0 0.0
      %4555 = vmatprep.subr.mxu0 0.0
      %4556 = vmatpush1.msra.mxu0 0.0
      %4557 = vmatprep.subr.mxu0 0.0
      %4558 = vmatpush1.msra.mxu0 0.0
      %4559 = vmatprep.subr.mxu0 0.0
      %4560 = vmatpush1.msra.mxu0 0.0
      %4561 = vmatprep.subr.mxu0 0.0
      %4562 = vmatpush1.msra.mxu0 0.0
      %4563 = vmatprep.subr.mxu0 0.0
      %4564 = vmatpush1.msra.mxu0 0.0
      %4565 = vmatprep.subr.mxu0 0.0
      %4566 = vmatpush1.msra.mxu0 0.0
      %4567 = vmatprep.subr.mxu0 0.0
      %4568 = vmatpush1.msra.mxu0 0.0
      %4569 = vmatprep.subr.mxu0 0.0
      %4570 = vmatpush1.msra.mxu0 0.0
      %4571 = vmatprep.subr.mxu0 0.0
      %4572 = vmatpush1.msra.mxu0 0.0
      %4573 = vmatprep.subr.mxu0 0.0
      %4574 = vmatpush1.msra.mxu0 0.0
      %4575 = vmatprep.subr.mxu0 0.0
      %4576 = vmatpush1.msra.mxu0 0.0
      %4577 = vmatprep.mubr.f32.mxu0 0.0
      %4578 = vmatmul.mubr.f32.gmra.mrb[0].mxu0 %v4511
      %v4579 = vpop.f32.mrb[0].mxu0
      %v4580 = vadd.f32 0.0, %v4579
      %v4581 = vpop.f32.mrb[0].mxu0
      %4582 = vdwg.mxu0
      %v4584 = vsel %vm763, %v4355, 0
      %4586 = vmatprep.subr.mxu0 0.0
      %4587 = vmatpush1.msra.mxu0 %v3452
      %4588 = vmatprep.subr.mxu0 0.0
      %4589 = vmatpush1.msra.mxu0 %v3456
      %4590 = vmatprep.subr.mxu0 0.0
      %4591 = vmatpush1.msra.mxu0 0.0
      %4592 = vmatprep.subr.mxu0 0.0
      %4593 = vmatpush1.msra.mxu0 0.0
      %4594 = vmatprep.subr.mxu0 0.0
      %4595 = vmatpush1.msra.mxu0 0.0
      %4596 = vmatprep.subr.mxu0 0.0
      %4597 = vmatpush1.msra.mxu0 0.0
      %4598 = vmatprep.subr.mxu0 0.0
      %4599 = vmatpush1.msra.mxu0 0.0
      %4600 = vmatprep.subr.mxu0 0.0
      %4601 = vmatpush1.msra.mxu0 0.0
      %4602 = vmatprep.subr.mxu0 0.0
      %4603 = vmatpush1.msra.mxu0 0.0
      %4604 = vmatprep.subr.mxu0 0.0
      %4605 = vmatpush1.msra.mxu0 0.0
      %4606 = vmatprep.subr.mxu0 0.0
      %4607 = vmatpush1.msra.mxu0 0.0
      %4608 = vmatprep.subr.mxu0 0.0
      %4609 = vmatpush1.msra.mxu0 0.0
      %4610 = vmatprep.subr.mxu0 0.0
      %4611 = vmatpush1.msra.mxu0 0.0
      %4612 = vmatprep.subr.mxu0 0.0
      %4613 = vmatpush1.msra.mxu0 0.0
      %4614 = vmatprep.subr.mxu0 0.0
      %4615 = vmatpush1.msra.mxu0 0.0
      %4616 = vmatprep.subr.mxu0 0.0
      %4617 = vmatpush1.msra.mxu0 0.0
      %4618 = vmatprep.subr.mxu0 0.0
      %4619 = vmatpush1.msra.mxu0 0.0
      %4620 = vmatprep.subr.mxu0 0.0
      %4621 = vmatpush1.msra.mxu0 0.0
      %4622 = vmatprep.subr.mxu0 0.0
      %4623 = vmatpush1.msra.mxu0 0.0
      %4624 = vmatprep.subr.mxu0 0.0
      %4625 = vmatpush1.msra.mxu0 0.0
      %4626 = vmatprep.subr.mxu0 0.0
      %4627 = vmatpush1.msra.mxu0 0.0
      %4628 = vmatprep.subr.mxu0 0.0
      %4629 = vmatpush1.msra.mxu0 0.0
      %4630 = vmatprep.subr.mxu0 0.0
      %4631 = vmatpush1.msra.mxu0 0.0
      %4632 = vmatprep.subr.mxu0 0.0
      %4633 = vmatpush1.msra.mxu0 0.0
      %4634 = vmatprep.subr.mxu0 0.0
      %4635 = vmatpush1.msra.mxu0 0.0
      %4636 = vmatprep.subr.mxu0 0.0
      %4637 = vmatpush1.msra.mxu0 0.0
      %4638 = vmatprep.subr.mxu0 0.0
      %4639 = vmatpush1.msra.mxu0 0.0
      %4640 = vmatprep.subr.mxu0 0.0
      %4641 = vmatpush1.msra.mxu0 0.0
      %4642 = vmatprep.subr.mxu0 0.0
      %4643 = vmatpush1.msra.mxu0 0.0
      %4644 = vmatprep.subr.mxu0 0.0
      %4645 = vmatpush1.msra.mxu0 0.0
      %4646 = vmatprep.subr.mxu0 0.0
      %4647 = vmatpush1.msra.mxu0 0.0
      %4648 = vmatprep.subr.mxu0 0.0
      %4649 = vmatpush1.msra.mxu0 0.0
      %4650 = vmatprep.mubr.f32.mxu0 0.0
      %4651 = vmatmul.mubr.f32.gmra.mrb[0].mxu0 %v4584
      %v4652 = vpop.f32.mrb[0].mxu0
      %v4653 = vadd.f32 0.0, %v4652
      %v4654 = vpop.f32.mrb[0].mxu0
      %4655 = vdwg.mxu0
      %v4657 = vsel %vm763, %v4357, 0
      %4659 = vmatprep.subr.mxu0 0.0
      %4660 = vmatpush1.msra.mxu0 %v3462
      %4661 = vmatprep.subr.mxu0 0.0
      %4662 = vmatpush1.msra.mxu0 %v3466
      %4663 = vmatprep.subr.mxu0 0.0
      %4664 = vmatpush1.msra.mxu0 0.0
      %4665 = vmatprep.subr.mxu0 0.0
      %4666 = vmatpush1.msra.mxu0 0.0
      %4667 = vmatprep.subr.mxu0 0.0
      %4668 = vmatpush1.msra.mxu0 0.0
      %4669 = vmatprep.subr.mxu0 0.0
      %4670 = vmatpush1.msra.mxu0 0.0
      %4671 = vmatprep.subr.mxu0 0.0
      %4672 = vmatpush1.msra.mxu0 0.0
      %4673 = vmatprep.subr.mxu0 0.0
      %4674 = vmatpush1.msra.mxu0 0.0
      %4675 = vmatprep.subr.mxu0 0.0
      %4676 = vmatpush1.msra.mxu0 0.0
      %4677 = vmatprep.subr.mxu0 0.0
      %4678 = vmatpush1.msra.mxu0 0.0
      %4679 = vmatprep.subr.mxu0 0.0
      %4680 = vmatpush1.msra.mxu0 0.0
      %4681 = vmatprep.subr.mxu0 0.0
      %4682 = vmatpush1.msra.mxu0 0.0
      %4683 = vmatprep.subr.mxu0 0.0
      %4684 = vmatpush1.msra.mxu0 0.0
      %4685 = vmatprep.subr.mxu0 0.0
      %4686 = vmatpush1.msra.mxu0 0.0
      %4687 = vmatprep.subr.mxu0 0.0
      %4688 = vmatpush1.msra.mxu0 0.0
      %4689 = vmatprep.subr.mxu0 0.0
      %4690 = vmatpush1.msra.mxu0 0.0
      %4691 = vmatprep.subr.mxu0 0.0
      %4692 = vmatpush1.msra.mxu0 0.0
      %4693 = vmatprep.subr.mxu0 0.0
      %4694 = vmatpush1.msra.mxu0 0.0
      %4695 = vmatprep.subr.mxu0 0.0
      %4696 = vmatpush1.msra.mxu0 0.0
      %4697 = vmatprep.subr.mxu0 0.0
      %4698 = vmatpush1.msra.mxu0 0.0
      %4699 = vmatprep.subr.mxu0 0.0
      %4700 = vmatpush1.msra.mxu0 0.0
      %4701 = vmatprep.subr.mxu0 0.0
      %4702 = vmatpush1.msra.mxu0 0.0
      %4703 = vmatprep.subr.mxu0 0.0
      %4704 = vmatpush1.msra.mxu0 0.0
      %4705 = vmatprep.subr.mxu0 0.0
      %4706 = vmatpush1.msra.mxu0 0.0
      %4707 = vmatprep.subr.mxu0 0.0
      %4708 = vmatpush1.msra.mxu0 0.0
      %4709 = vmatprep.subr.mxu0 0.0
      %4710 = vmatpush1.msra.mxu0 0.0
      %4711 = vmatprep.subr.mxu0 0.0
      %4712 = vmatpush1.msra.mxu0 0.0
      %4713 = vmatprep.subr.mxu0 0.0
      %4714 = vmatpush1.msra.mxu0 0.0
      %4715 = vmatprep.subr.mxu0 0.0
      %4716 = vmatpush1.msra.mxu0 0.0
      %4717 = vmatprep.subr.mxu0 0.0
      %4718 = vmatpush1.msra.mxu0 0.0
      %4719 = vmatprep.subr.mxu0 0.0
      %4720 = vmatpush1.msra.mxu0 0.0
      %4721 = vmatprep.subr.mxu0 0.0
      %4722 = vmatpush1.msra.mxu0 0.0
      %4723 = vmatprep.mubr.f32.mxu0 0.0
      %4724 = vmatmul.mubr.f32.gmra.mrb[0].mxu0 %v4657
      %v4725 = vpop.f32.mrb[0].mxu0
      %v4726 = vadd.f32 0.0, %v4725
      %v4727 = vpop.f32.mrb[0].mxu0
      %4728 = vdwg.mxu0
      %v4730 = vsel %vm763, %v4359, 0
      %4732 = vmatprep.subr.mxu0 0.0
      %4733 = vmatpush1.msra.mxu0 %v3472
      %4734 = vmatprep.subr.mxu0 0.0
      %4735 = vmatpush1.msra.mxu0 %v3476
      %4736 = vmatprep.subr.mxu0 0.0
      %4737 = vmatpush1.msra.mxu0 0.0
      %4738 = vmatprep.subr.mxu0 0.0
      %4739 = vmatpush1.msra.mxu0 0.0
      %4740 = vmatprep.subr.mxu0 0.0
      %4741 = vmatpush1.msra.mxu0 0.0
      %4742 = vmatprep.subr.mxu0 0.0
      %4743 = vmatpush1.msra.mxu0 0.0
      %4744 = vmatprep.subr.mxu0 0.0
      %4745 = vmatpush1.msra.mxu0 0.0
      %4746 = vmatprep.subr.mxu0 0.0
      %4747 = vmatpush1.msra.mxu0 0.0
      %4748 = vmatprep.subr.mxu0 0.0
      %4749 = vmatpush1.msra.mxu0 0.0
      %4750 = vmatprep.subr.mxu0 0.0
      %4751 = vmatpush1.msra.mxu0 0.0
      %4752 = vmatprep.subr.mxu0 0.0
      %4753 = vmatpush1.msra.mxu0 0.0
      %4754 = vmatprep.subr.mxu0 0.0
      %4755 = vmatpush1.msra.mxu0 0.0
      %4756 = vmatprep.subr.mxu0 0.0
      %4757 = vmatpush1.msra.mxu0 0.0
      %4758 = vmatprep.subr.mxu0 0.0
      %4759 = vmatpush1.msra.mxu0 0.0
      %4760 = vmatprep.subr.mxu0 0.0
      %4761 = vmatpush1.msra.mxu0 0.0
      %4762 = vmatprep.subr.mxu0 0.0
      %4763 = vmatpush1.msra.mxu0 0.0
      %4764 = vmatprep.subr.mxu0 0.0
      %4765 = vmatpush1.msra.mxu0 0.0
      %4766 = vmatprep.subr.mxu0 0.0
      %4767 = vmatpush1.msra.mxu0 0.0
      %4768 = vmatprep.subr.mxu0 0.0
      %4769 = vmatpush1.msra.mxu0 0.0
      %4770 = vmatprep.subr.mxu0 0.0
      %4771 = vmatpush1.msra.mxu0 0.0
      %4772 = vmatprep.subr.mxu0 0.0
      %4773 = vmatpush1.msra.mxu0 0.0
      %4774 = vmatprep.subr.mxu0 0.0
      %4775 = vmatpush1.msra.mxu0 0.0
      %4776 = vmatprep.subr.mxu0 0.0
      %4777 = vmatpush1.msra.mxu0 0.0
      %4778 = vmatprep.subr.mxu0 0.0
      %4779 = vmatpush1.msra.mxu0 0.0
      %4780 = vmatprep.subr.mxu0 0.0
      %4781 = vmatpush1.msra.mxu0 0.0
      %4782 = vmatprep.subr.mxu0 0.0
      %4783 = vmatpush1.msra.mxu0 0.0
      %4784 = vmatprep.subr.mxu0 0.0
      %4785 = vmatpush1.msra.mxu0 0.0
      %4786 = vmatprep.subr.mxu0 0.0
      %4787 = vmatpush1.msra.mxu0 0.0
      %4788 = vmatprep.subr.mxu0 0.0
      %4789 = vmatpush1.msra.mxu0 0.0
      %4790 = vmatprep.subr.mxu0 0.0
      %4791 = vmatpush1.msra.mxu0 0.0
      %4792 = vmatprep.subr.mxu0 0.0
      %4793 = vmatpush1.msra.mxu0 0.0
      %4794 = vmatprep.subr.mxu0 0.0
      %4795 = vmatpush1.msra.mxu0 0.0
      %4796 = vmatprep.mubr.f32.mxu0 0.0
      %4797 = vmatmul.mubr.f32.gmra.mrb[0].mxu0 %v4730
      %v4798 = vpop.f32.mrb[0].mxu0
      %v4799 = vadd.f32 0.0, %v4798
      %v4800 = vpop.f32.mrb[0].mxu0
      %4801 = vdwg.mxu0
      %v4803 = vsel %vm763, %v4361, 0
      %4805 = vmatprep.subr.mxu0 0.0
      %4806 = vmatpush1.msra.mxu0 %v3482
      %4807 = vmatprep.subr.mxu0 0.0
      %4808 = vmatpush1.msra.mxu0 %v3486
      %4809 = vmatprep.subr.mxu0 0.0
      %4810 = vmatpush1.msra.mxu0 0.0
      %4811 = vmatprep.subr.mxu0 0.0
      %4812 = vmatpush1.msra.mxu0 0.0
      %4813 = vmatprep.subr.mxu0 0.0
      %4814 = vmatpush1.msra.mxu0 0.0
      %4815 = vmatprep.subr.mxu0 0.0
      %4816 = vmatpush1.msra.mxu0 0.0
      %4817 = vmatprep.subr.mxu0 0.0
      %4818 = vmatpush1.msra.mxu0 0.0
      %4819 = vmatprep.subr.mxu0 0.0
      %4820 = vmatpush1.msra.mxu0 0.0
      %4821 = vmatprep.subr.mxu0 0.0
      %4822 = vmatpush1.msra.mxu0 0.0
      %4823 = vmatprep.subr.mxu0 0.0
      %4824 = vmatpush1.msra.mxu0 0.0
      %4825 = vmatprep.subr.mxu0 0.0
      %4826 = vmatpush1.msra.mxu0 0.0
      %4827 = vmatprep.subr.mxu0 0.0
      %4828 = vmatpush1.msra.mxu0 0.0
      %4829 = vmatprep.subr.mxu0 0.0
      %4830 = vmatpush1.msra.mxu0 0.0
      %4831 = vmatprep.subr.mxu0 0.0
      %4832 = vmatpush1.msra.mxu0 0.0
      %4833 = vmatprep.subr.mxu0 0.0
      %4834 = vmatpush1.msra.mxu0 0.0
      %4835 = vmatprep.subr.mxu0 0.0
      %4836 = vmatpush1.msra.mxu0 0.0
      %4837 = vmatprep.subr.mxu0 0.0
      %4838 = vmatpush1.msra.mxu0 0.0
      %4839 = vmatprep.subr.mxu0 0.0
      %4840 = vmatpush1.msra.mxu0 0.0
      %4841 = vmatprep.subr.mxu0 0.0
      %4842 = vmatpush1.msra.mxu0 0.0
      %4843 = vmatprep.subr.mxu0 0.0
      %4844 = vmatpush1.msra.mxu0 0.0
      %4845 = vmatprep.subr.mxu0 0.0
      %4846 = vmatpush1.msra.mxu0 0.0
      %4847 = vmatprep.subr.mxu0 0.0
      %4848 = vmatpush1.msra.mxu0 0.0
      %4849 = vmatprep.subr.mxu0 0.0
      %4850 = vmatpush1.msra.mxu0 0.0
      %4851 = vmatprep.subr.mxu0 0.0
      %4852 = vmatpush1.msra.mxu0 0.0
      %4853 = vmatprep.subr.mxu0 0.0
      %4854 = vmatpush1.msra.mxu0 0.0
      %4855 = vmatprep.subr.mxu0 0.0
      %4856 = vmatpush1.msra.mxu0 0.0
      %4857 = vmatprep.subr.mxu0 0.0
      %4858 = vmatpush1.msra.mxu0 0.0
      %4859 = vmatprep.subr.mxu0 0.0
      %4860 = vmatpush1.msra.mxu0 0.0
      %4861 = vmatprep.subr.mxu0 0.0
      %4862 = vmatpush1.msra.mxu0 0.0
      %4863 = vmatprep.subr.mxu0 0.0
      %4864 = vmatpush1.msra.mxu0 0.0
      %4865 = vmatprep.subr.mxu0 0.0
      %4866 = vmatpush1.msra.mxu0 0.0
      %4867 = vmatprep.subr.mxu0 0.0
      %4868 = vmatpush1.msra.mxu0 0.0
      %4869 = vmatprep.mubr.f32.mxu0 0.0
      %4870 = vmatmul.mubr.f32.gmra.mrb[0].mxu0 %v4803
      %v4871 = vpop.f32.mrb[0].mxu0
      %v4872 = vadd.f32 0.0, %v4871
      %v4873 = vpop.f32.mrb[0].mxu0
      %4874 = vdwg.mxu0
      %v4876 = vsel %vm763, %v4363, 0
      %4878 = vmatprep.subr.mxu0 0.0
      %4879 = vmatpush1.msra.mxu0 %v3492
      %4880 = vmatprep.subr.mxu0 0.0
      %4881 = vmatpush1.msra.mxu0 %v3496
      %4882 = vmatprep.subr.mxu0 0.0
      %4883 = vmatpush1.msra.mxu0 0.0
      %4884 = vmatprep.subr.mxu0 0.0
      %4885 = vmatpush1.msra.mxu0 0.0
      %4886 = vmatprep.subr.mxu0 0.0
      %4887 = vmatpush1.msra.mxu0 0.0
      %4888 = vmatprep.subr.mxu0 0.0
      %4889 = vmatpush1.msra.mxu0 0.0
      %4890 = vmatprep.subr.mxu0 0.0
      %4891 = vmatpush1.msra.mxu0 0.0
      %4892 = vmatprep.subr.mxu0 0.0
      %4893 = vmatpush1.msra.mxu0 0.0
      %4894 = vmatprep.subr.mxu0 0.0
      %4895 = vmatpush1.msra.mxu0 0.0
      %4896 = vmatprep.subr.mxu0 0.0
      %4897 = vmatpush1.msra.mxu0 0.0
      %4898 = vmatprep.subr.mxu0 0.0
      %4899 = vmatpush1.msra.mxu0 0.0
      %4900 = vmatprep.subr.mxu0 0.0
      %4901 = vmatpush1.msra.mxu0 0.0
      %4902 = vmatprep.subr.mxu0 0.0
      %4903 = vmatpush1.msra.mxu0 0.0
      %4904 = vmatprep.subr.mxu0 0.0
      %4905 = vmatpush1.msra.mxu0 0.0
      %4906 = vmatprep.subr.mxu0 0.0
      %4907 = vmatpush1.msra.mxu0 0.0
      %4908 = vmatprep.subr.mxu0 0.0
      %4909 = vmatpush1.msra.mxu0 0.0
      %4910 = vmatprep.subr.mxu0 0.0
      %4911 = vmatpush1.msra.mxu0 0.0
      %4912 = vmatprep.subr.mxu0 0.0
      %4913 = vmatpush1.msra.mxu0 0.0
      %4914 = vmatprep.subr.mxu0 0.0
      %4915 = vmatpush1.msra.mxu0 0.0
      %4916 = vmatprep.subr.mxu0 0.0
      %4917 = vmatpush1.msra.mxu0 0.0
      %4918 = vmatprep.subr.mxu0 0.0
      %4919 = vmatpush1.msra.mxu0 0.0
      %4920 = vmatprep.subr.mxu0 0.0
      %4921 = vmatpush1.msra.mxu0 0.0
      %4922 = vmatprep.subr.mxu0 0.0
      %4923 = vmatpush1.msra.mxu0 0.0
      %4924 = vmatprep.subr.mxu0 0.0
      %4925 = vmatpush1.msra.mxu0 0.0
      %4926 = vmatprep.subr.mxu0 0.0
      %4927 = vmatpush1.msra.mxu0 0.0
      %4928 = vmatprep.subr.mxu0 0.0
      %4929 = vmatpush1.msra.mxu0 0.0
      %4930 = vmatprep.subr.mxu0 0.0
      %4931 = vmatpush1.msra.mxu0 0.0
      %4932 = vmatprep.subr.mxu0 0.0
      %4933 = vmatpush1.msra.mxu0 0.0
      %4934 = vmatprep.subr.mxu0 0.0
      %4935 = vmatpush1.msra.mxu0 0.0
      %4936 = vmatprep.subr.mxu0 0.0
      %4937 = vmatpush1.msra.mxu0 0.0
      %4938 = vmatprep.subr.mxu0 0.0
      %4939 = vmatpush1.msra.mxu0 0.0
      %4940 = vmatprep.subr.mxu0 0.0
      %4941 = vmatpush1.msra.mxu0 0.0
      %4942 = vmatprep.mubr.f32.mxu0 0.0
      %4943 = vmatmul.mubr.f32.gmra.mrb[0].mxu0 %v4876
      %v4944 = vpop.f32.mrb[0].mxu0
      %v4945 = vadd.f32 0.0, %v4944
      %v4946 = vpop.f32.mrb[0].mxu0
      %4947 = vdwg.mxu0
      %v4948 = vadd.f32 %v3265, %v4434
      %v4949 = vadd.f32 %v3267, %v4507
      %v4950 = vadd.f32 %v3269, %v4580
      %v4951 = vadd.f32 %v3271, %v4653
      %v4952 = vadd.f32 %v3273, %v4726
      %v4953 = vadd.f32 %v3275, %v4799
      %v4954 = vadd.f32 %v3277, %v4872
      %v4955 = vadd.f32 %v3279, %v4945
      %v4956 = vpack.c.bf16 %v4948, %v4948
      %v4957 = vpack.c.bf16 %v4949, %v4949
      %v4958 = vpack.c.bf16 %v4950, %v4950
      %v4959 = vpack.c.bf16 %v4951, %v4951
      %v4960 = vpack.c.bf16 %v4952, %v4952
      %v4961 = vpack.c.bf16 %v4953, %v4953
      %v4962 = vpack.c.bf16 %v4954, %v4954
      %v4963 = vpack.c.bf16 %v4955, %v4955
      %v4964 = vld [vmem:[%s7] sm:$0xff]
      %v4965 = vld [vmem:[%s7 + $0x8] sm:$0xff]
      %v4966 = vld [vmem:[%s7 + $0x10] sm:$0xff]
      %v4967 = vld [vmem:[%s7 + $0x18] sm:$0xff]
      %v4968 = vld [vmem:[%s7 + $0x20] sm:$0xff]
      %v4969 = vld [vmem:[%s7 + $0x28] sm:$0xff]
      %v4970 = vld [vmem:[%s7 + $0x30] sm:$0xff]
      %v4971 = vld [vmem:[%s7 + $0x38] sm:$0xff]
      %v4972 = vld [vmem:[%s7 + $0x40] sm:$0xff]
      %v4973 = vld [vmem:[%s7 + $0x48] sm:$0xff]
      %v4974 = vld [vmem:[%s7 + $0x50] sm:$0xff]
      %v4975 = vld [vmem:[%s7 + $0x58] sm:$0xff]
      %v4976 = vld [vmem:[%s7 + $0x60] sm:$0xff]
      %v4977 = vld [vmem:[%s7 + $0x68] sm:$0xff]
      %v4978 = vld [vmem:[%s7 + $0x70] sm:$0xff]
      %v4979 = vld [vmem:[%s7 + $0x78] sm:$0xff]
      %v4988 = vunpack.c.l.b16 %v4956
      %v4989 = vunpack.c.l.b16 %v4957
      %v4990 = vunpack.c.l.b16 %v4958
      %v4991 = vunpack.c.l.b16 %v4959
      %v4992 = vunpack.c.l.b16 %v4960
      %v4993 = vunpack.c.l.b16 %v4961
      %v4994 = vunpack.c.l.b16 %v4962
      %v4995 = vunpack.c.l.b16 %v4963
      %v4996 = vrot.slane %v4989, 7
      %v4997 = vsel %vm3539, %v4996, %v4988
      %v4998 = vrot.slane %v4990, 6
      %v4999 = vsel %vm3542, %v4998, %v4997
      %v5000 = vrot.slane %v4991, 5
      %v5001 = vsel %vm3545, %v5000, %v4999
      %v5002 = vrot.slane %v4992, 4
      %v5003 = vsel %vm3548, %v5002, %v5001
      %v5004 = vrot.slane %v4993, 3
      %v5005 = vsel %vm3551, %v5004, %v5003
      %v5006 = vrot.slane %v4994, 2
      %v5007 = vsel %vm3554, %v5006, %v5005
      %v5008 = vrot.slane %v4995, 1
      %v5009 = vsel %vm3557, %v5008, %v5007
      %v5010 = vpack.c.b16 %v5009, %v5009
      %v5028 = vunpack.c.l.b16 %v4964
      %v5029 = vunpack.c.h.b16 %v4964
      %v5030 = vunpack.c.l.b16 %v4965
      %v5031 = vunpack.c.h.b16 %v4965
      %v5032 = vunpack.c.l.b16 %v4966
      %v5033 = vunpack.c.h.b16 %v4966
      %v5034 = vunpack.c.l.b16 %v4967
      %v5035 = vunpack.c.h.b16 %v4967
      %v5036 = vunpack.c.l.b16 %v4968
      %v5037 = vunpack.c.h.b16 %v4968
      %v5038 = vunpack.c.l.b16 %v4969
      %v5039 = vunpack.c.h.b16 %v4969
      %v5040 = vunpack.c.l.b16 %v4970
      %v5041 = vunpack.c.h.b16 %v4970
      %v5042 = vunpack.c.l.b16 %v4971
      %v5043 = vunpack.c.h.b16 %v4971
      %v5044 = vunpack.c.l.b16 %v4972
      %v5045 = vunpack.c.h.b16 %v4972
      %v5046 = vunpack.c.l.b16 %v4973
      %v5047 = vunpack.c.h.b16 %v4973
      %v5048 = vunpack.c.l.b16 %v4974
      %v5049 = vunpack.c.h.b16 %v4974
      %v5050 = vunpack.c.l.b16 %v4975
      %v5051 = vunpack.c.h.b16 %v4975
      %v5052 = vunpack.c.l.b16 %v4976
      %v5053 = vunpack.c.h.b16 %v4976
      %v5054 = vunpack.c.l.b16 %v4977
      %v5055 = vunpack.c.h.b16 %v4977
      %v5056 = vunpack.c.l.b16 %v4978
      %v5057 = vunpack.c.h.b16 %v4978
      %v5058 = vunpack.c.l.b16 %v4979
      %v5059 = vunpack.c.h.b16 %v4979
      %v5060 = vpack.c.b16 %v5030, %v5028
      %v5061 = vpack.c.b16 %v5031, %v5029
      %v5062 = vpack.c.b16 %v5034, %v5032
      %v5063 = vpack.c.b16 %v5035, %v5033
      %v5064 = vpack.c.b16 %v5038, %v5036
      %v5065 = vpack.c.b16 %v5039, %v5037
      %v5066 = vpack.c.b16 %v5042, %v5040
      %v5067 = vpack.c.b16 %v5043, %v5041
      %v5068 = vpack.c.b16 %v5046, %v5044
      %v5069 = vpack.c.b16 %v5047, %v5045
      %v5070 = vpack.c.b16 %v5050, %v5048
      %v5071 = vpack.c.b16 %v5051, %v5049
      %v5072 = vpack.c.b16 %v5054, %v5052
      %v5073 = vpack.c.b16 %v5055, %v5053
      %v5074 = vpack.c.b16 %v5058, %v5056
      %v5075 = vpack.c.b16 %v5059, %v5057
      %5092 = vmatprep.subr.bf16.mxu0 %v5061
      %5093 = vmatpush1.bf16.msra.mxu0 %v5060
      %5094 = vmatprep.subr.bf16.mxu0 %v5063
      %5095 = vmatpush1.bf16.msra.mxu0 %v5062
      %5096 = vmatprep.subr.bf16.mxu0 %v5065
      %5097 = vmatpush1.bf16.msra.mxu0 %v5064
      %5098 = vmatprep.subr.bf16.mxu0 %v5067
      %5099 = vmatpush1.bf16.msra.mxu0 %v5066
      %5100 = vmatprep.subr.bf16.mxu0 %v5069
      %5101 = vmatpush1.bf16.msra.mxu0 %v5068
      %5102 = vmatprep.subr.bf16.mxu0 %v5071
      %5103 = vmatpush1.bf16.msra.mxu0 %v5070
      %5104 = vmatprep.subr.bf16.mxu0 %v5073
      %5105 = vmatpush1.bf16.msra.mxu0 %v5072
      %5106 = vmatprep.subr.bf16.mxu0 %v5075
      %5107 = vmatpush1.bf16.msra.mxu0 %v5074
      %5108 = vmatprep.subr.bf16.mxu0 0
      %5109 = vmatpush1.bf16.msra.mxu0 0
      %5110 = vmatprep.subr.bf16.mxu0 0
      %5111 = vmatpush1.bf16.msra.mxu0 0
      %5112 = vmatprep.subr.bf16.mxu0 0
      %5113 = vmatpush1.bf16.msra.mxu0 0
      %5114 = vmatprep.subr.bf16.mxu0 0
      %5115 = vmatpush1.bf16.msra.mxu0 0
      %5116 = vmatprep.subr.bf16.mxu0 0
      %5117 = vmatpush1.bf16.msra.mxu0 0
      %5118 = vmatprep.subr.bf16.mxu0 0
      %5119 = vmatpush1.bf16.msra.mxu0 0
      %5120 = vmatprep.subr.bf16.mxu0 0
      %5121 = vmatpush1.bf16.msra.mxu0 0
      %5122 = vmatprep.subr.bf16.mxu0 0
      %5123 = vmatpush1.bf16.msra.mxu0 0
      %5124 = vmatprep.mubr.bf16.mxu0 0
      %5125 = vmatmul.mubr.bf16.gmra.mrb[0].mxu0 %v5010
      %v5126 = vpop.f32.mrb[0].mxu0
      %v5127 = vadd.f32 0.0, %v5126
      %v5128 = vpop.f32.mrb[0].mxu0
      %v5129 = vadd.f32 0.0, %v5128
      %v5130 = vpop.f32.mrb[0].mxu0
      %v5131 = vpop.f32.mrb[0].mxu0
      %5132 = vdwg.mxu0
      %v5133 = vmul.f32 %v5127, %v5127
      %v5134 = vmul.f32 %v5129, %v5129
      %v5135 = vmul.f32 %v5127, %v5133
      %v5136 = vmul.f32 %v5129, %v5134
      %v5137 = vmul.f32 %v5135, 0.044715
      %v5138 = vmul.f32 %v5136, 0.044715
      %v5139 = vadd.f32 %v5127, %v5137
      %v5140 = vadd.f32 %v5129, %v5138
      %v5141 = vmul.f32 %v5139, 0.7978846
      %v5142 = vmul.f32 %v5140, 0.7978846
      %v5143 = vtanh.pop %v5141
      %v5144 = vtanh.pop %v5142
      %v5145 = vadd.f32 %v5143, 1.0
      %v5146 = vadd.f32 %v5144, 1.0
      %v5147 = vmul.f32 %v5145, 0.5
      %v5148 = vmul.f32 %v5146, 0.5
      %v5149 = vmul.f32 %v5127, %v5147
      %v5150 = vmul.f32 %v5129, %v5148
      %v5151 = vpack.c.bf16 %v5149, %v5149
      %v5152 = vpack.c.bf16 %v5150, %v5150
      %v5153 = vld [vmem:[%s8] sm:$0xf]
      %v5154 = vld [vmem:[%s8 + $0x4] sm:$0xf]
      %v5155 = vld [vmem:[%s8 + $0x8] sm:$0xf]
      %v5156 = vld [vmem:[%s8 + $0xc] sm:$0xf]
      %v5157 = vld [vmem:[%s8 + $0x10] sm:$0xf]
      %v5158 = vld [vmem:[%s8 + $0x14] sm:$0xf]
      %v5159 = vld [vmem:[%s8 + $0x18] sm:$0xf]
      %v5160 = vld [vmem:[%s8 + $0x1c] sm:$0xf]
      %v5161 = vld [vmem:[%s8 + $0x20] sm:$0xf]
      %v5162 = vld [vmem:[%s8 + $0x24] sm:$0xf]
      %v5163 = vld [vmem:[%s8 + $0x28] sm:$0xf]
      %v5164 = vld [vmem:[%s8 + $0x2c] sm:$0xf]
      %v5165 = vld [vmem:[%s8 + $0x30] sm:$0xf]
      %v5166 = vld [vmem:[%s8 + $0x34] sm:$0xf]
      %v5167 = vld [vmem:[%s8 + $0x38] sm:$0xf]
      %v5168 = vld [vmem:[%s8 + $0x3c] sm:$0xf]
      %v5169 = vld [vmem:[%s8 + $0x40] sm:$0xf]
      %v5170 = vld [vmem:[%s8 + $0x44] sm:$0xf]
      %v5171 = vld [vmem:[%s8 + $0x48] sm:$0xf]
      %v5172 = vld [vmem:[%s8 + $0x4c] sm:$0xf]
      %v5173 = vld [vmem:[%s8 + $0x50] sm:$0xf]
      %v5174 = vld [vmem:[%s8 + $0x54] sm:$0xf]
      %v5175 = vld [vmem:[%s8 + $0x58] sm:$0xf]
      %v5176 = vld [vmem:[%s8 + $0x5c] sm:$0xf]
      %v5177 = vld [vmem:[%s8 + $0x60] sm:$0xf]
      %v5178 = vld [vmem:[%s8 + $0x64] sm:$0xf]
      %v5179 = vld [vmem:[%s8 + $0x68] sm:$0xf]
      %v5180 = vld [vmem:[%s8 + $0x6c] sm:$0xf]
      %v5181 = vld [vmem:[%s8 + $0x70] sm:$0xf]
      %v5182 = vld [vmem:[%s8 + $0x74] sm:$0xf]
      %v5183 = vld [vmem:[%s8 + $0x78] sm:$0xf]
      %v5184 = vld [vmem:[%s8 + $0x7c] sm:$0xf]
      %v5217 = vunpack.c.l.b16 %v5153
      %v5218 = vunpack.c.l.b16 %v5154
      %v5219 = vunpack.c.l.b16 %v5155
      %v5220 = vunpack.c.l.b16 %v5156
      %v5221 = vunpack.c.l.b16 %v5157
      %v5222 = vunpack.c.l.b16 %v5158
      %v5223 = vunpack.c.l.b16 %v5159
      %v5224 = vunpack.c.l.b16 %v5160
      %v5225 = vunpack.c.l.b16 %v5161
      %v5226 = vunpack.c.l.b16 %v5162
      %v5227 = vunpack.c.l.b16 %v5163
      %v5228 = vunpack.c.l.b16 %v5164
      %v5229 = vunpack.c.l.b16 %v5165
      %v5230 = vunpack.c.l.b16 %v5166
      %v5231 = vunpack.c.l.b16 %v5167
      %v5232 = vunpack.c.l.b16 %v5168
      %v5233 = vunpack.c.l.b16 %v5169
      %v5234 = vunpack.c.l.b16 %v5170
      %v5235 = vunpack.c.l.b16 %v5171
      %v5236 = vunpack.c.l.b16 %v5172
      %v5237 = vunpack.c.l.b16 %v5173
      %v5238 = vunpack.c.l.b16 %v5174
      %v5239 = vunpack.c.l.b16 %v5175
      %v5240 = vunpack.c.l.b16 %v5176
      %v5241 = vunpack.c.l.b16 %v5177
      %v5242 = vunpack.c.l.b16 %v5178
      %v5243 = vunpack.c.l.b16 %v5179
      %v5244 = vunpack.c.l.b16 %v5180
      %v5245 = vunpack.c.l.b16 %v5181
      %v5246 = vunpack.c.l.b16 %v5182
      %v5247 = vunpack.c.l.b16 %v5183
      %v5248 = vunpack.c.l.b16 %v5184
      %v5249 = vpack.c.b16 %v5218, %v5217
      %v5250 = vpack.c.b16 %v5220, %v5219
      %v5251 = vpack.c.b16 %v5222, %v5221
      %v5252 = vpack.c.b16 %v5224, %v5223
      %v5253 = vpack.c.b16 %v5226, %v5225
      %v5254 = vpack.c.b16 %v5228, %v5227
      %v5255 = vpack.c.b16 %v5230, %v5229
      %v5256 = vpack.c.b16 %v5232, %v5231
      %v5257 = vpack.c.b16 %v5234, %v5233
      %v5258 = vpack.c.b16 %v5236, %v5235
      %v5259 = vpack.c.b16 %v5238, %v5237
      %v5260 = vpack.c.b16 %v5240, %v5239
      %v5261 = vpack.c.b16 %v5242, %v5241
      %v5262 = vpack.c.b16 %v5244, %v5243
      %v5263 = vpack.c.b16 %v5246, %v5245
      %v5264 = vpack.c.b16 %v5248, %v5247
      %5281 = vmatprep.subr.bf16.mxu0 0
      %5282 = vmatpush1.bf16.msra.mxu0 %v5249
      %5283 = vmatprep.subr.bf16.mxu0 0
      %5284 = vmatpush1.bf16.msra.mxu0 %v5250
      %5285 = vmatprep.subr.bf16.mxu0 0
      %5286 = vmatpush1.bf16.msra.mxu0 %v5251
      %5287 = vmatprep.subr.bf16.mxu0 0
      %5288 = vmatpush1.bf16.msra.mxu0 %v5252
      %5289 = vmatprep.subr.bf16.mxu0 0
      %5290 = vmatpush1.bf16.msra.mxu0 %v5253
      %5291 = vmatprep.subr.bf16.mxu0 0
      %5292 = vmatpush1.bf16.msra.mxu0 %v5254
      %5293 = vmatprep.subr.bf16.mxu0 0
      %5294 = vmatpush1.bf16.msra.mxu0 %v5255
      %5295 = vmatprep.subr.bf16.mxu0 0
      %5296 = vmatpush1.bf16.msra.mxu0 %v5256
      %5297 = vmatprep.subr.bf16.mxu0 0
      %5298 = vmatpush1.bf16.msra.mxu0 %v5257
      %5299 = vmatprep.subr.bf16.mxu0 0
      %5300 = vmatpush1.bf16.msra.mxu0 %v5258
      %5301 = vmatprep.subr.bf16.mxu0 0
      %5302 = vmatpush1.bf16.msra.mxu0 %v5259
      %5303 = vmatprep.subr.bf16.mxu0 0
      %5304 = vmatpush1.bf16.msra.mxu0 %v5260
      %5305 = vmatprep.subr.bf16.mxu0 0
      %5306 = vmatpush1.bf16.msra.mxu0 %v5261
      %5307 = vmatprep.subr.bf16.mxu0 0
      %5308 = vmatpush1.bf16.msra.mxu0 %v5262
      %5309 = vmatprep.subr.bf16.mxu0 0
      %5310 = vmatpush1.bf16.msra.mxu0 %v5263
      %5311 = vmatprep.subr.bf16.mxu0 0
      %5312 = vmatpush1.bf16.msra.mxu0 %v5264
      %5313 = vmatprep.mubr.bf16.mxu0 %v5152
      %5314 = vmatmul.mubr.bf16.gmra.mrb[0].mxu0 %v5151
      %v5315 = vpop.f32.mrb[0].mxu0
      %v5316 = vadd.f32 0.0, %v5315
      %v5317 = vpop.f32.mrb[0].mxu0
      %v5318 = vpop.f32.mrb[0].mxu0
      %v5319 = vpop.f32.mrb[0].mxu0
      %5320 = vdwg.mxu0
      %v5322 = vrot.slane %v5316, 1
      %v5323 = vrot.slane %v5316, 2
      %v5324 = vrot.slane %v5316, 3
      %v5325 = vrot.slane %v5316, 4
      %v5326 = vrot.slane %v5316, 5
      %v5327 = vrot.slane %v5316, 6
      %v5328 = vrot.slane %v5316, 7
      %v5337 = vadd.f32 %v4948, %v5316
      %v5338 = vadd.f32 %v4949, %v5322
      %v5339 = vadd.f32 %v4950, %v5323
      %v5340 = vadd.f32 %v4951, %v5324
      %v5341 = vadd.f32 %v4952, %v5325
      %v5342 = vadd.f32 %v4953, %v5326
      %v5343 = vadd.f32 %v4954, %v5327
      %v5344 = vadd.f32 %v4955, %v5328
      %v5353 = vrot.slane %v5338, 7
      %v5354 = vsel %vm3539, %v5353, %v5337
      %v5355 = vrot.slane %v5339, 6
      %v5356 = vsel %vm3542, %v5355, %v5354
      %v5357 = vrot.slane %v5340, 5
      %v5358 = vsel %vm3545, %v5357, %v5356
      %v5359 = vrot.slane %v5341, 4
      %v5360 = vsel %vm3548, %v5359, %v5358
      %v5361 = vrot.slane %v5342, 3
      %v5362 = vsel %vm3551, %v5361, %v5360
      %v5363 = vrot.slane %v5343, 2
      %v5364 = vsel %vm3554, %v5363, %v5362
      %v5365 = vrot.slane %v5344, 1
      %v5366 = vsel %vm3557, %v5365, %v5364
      %s5368 = scalar_lea.vmem [#allocation2], %s555
      %5369 = vst [vmem:[%s5368] sm:$0xff] %v5366
      %p5370 = scmp.eq.s32.totalorder %s28, 2
      // Predicated region
      $region69: #{tran_hgat_forward.3} parent=67 // pred_check
        %p5371 = pneg %p5370
      $region70: #{tran_hgat_forward.3} parent=67 // pred_check_branch
        %5373 = sbr.rel (%p5371) target = $region72
      $region71: #{tran_hgat_forward.3} parent=67 // pred_region
        %v5374 = vld [vmem:[%s9] sm:$0xf]
        %v5375 = vld [vmem:[#allocation2] sm:$0xff]
        %v5376 = vlaneseq
        %v5377 = vshrl.u32 %v5376, 7
        %v5378 = vsub.s32 0, %v5377
        %v5379 = vrot.slane %v5374, %v5378
        %v5380 = vmul.f32 %v5375, %v5379
        %5381 = vadd.xlane.f32.xlu0 %v5380
        %v5382 = vpop.xlane.xlu0 %5381
        %v5383 = vlaneseq
        %v5384 = vshrl.u32 %v5383, 7
        %v5385 = vsub.s32 1, %v5384
        %v5386 = vrot.slane %v5374, %v5385
        %v5387 = vmul.f32 %v5375, %v5386
        %5388 = vadd.xlane.f32.xlu0 %v5387
        %v5389 = vpop.xlane.xlu0 %5388
        %v5390 = vadd.f32 %v5389, 0.0
        %s5391 = scalar_lea.vmem [#allocation2], 8
        %v5392 = vld [vmem:[%s5391] sm:$0xff]
        %v5393 = vmul.f32 %v5392, %v5379
        %5394 = vadd.xlane.f32.xlu0 %v5393
        %v5395 = vpop.xlane.xlu0 %5394
        %v5396 = vlaneseq
        %v5397 = vshrl.u32 %v5396, 7
        %v5398 = vsub.s32 2, %v5397
        %v5399 = vrot.slane %v5374, %v5398
        %v5400 = vmul.f32 %v5392, %v5399
        %5401 = vadd.xlane.f32.xlu0 %v5400
        %v5402 = vpop.xlane.xlu0 %5401
        %v5403 = vadd.f32 %v5390, %v5402
        %s5404 = scalar_lea.vmem [#allocation2], 16
        %v5405 = vld [vmem:[%s5404] sm:$0xff]
        %v5406 = vmul.f32 %v5405, %v5379
        %5407 = vadd.xlane.f32.xlu0 %v5406
        %v5408 = vpop.xlane.xlu0 %5407
        %v5409 = vlaneseq
        %v5410 = vshrl.u32 %v5409, 7
        %v5411 = vsub.s32 3, %v5410
        %v5412 = vrot.slane %v5374, %v5411
        %v5413 = vmul.f32 %v5405, %v5412
        %5414 = vadd.xlane.f32.xlu0 %v5413
        %v5415 = vpop.xlane.xlu0 %5414
        %v5416 = vadd.f32 %v5403, %v5415
        %v5417 = vadd.f32 %v5382, %v5416
        %vm5418 = vcmp.gt.f32.partialorder %v5417, 0.0
        %v5419 = vmul.f32 %v5417, 0.2
        %v5420 = vsel %vm5418, %v5417, %v5419
        %v5421 = vadd.f32 %v5395, %v5416
        %vm5422 = vcmp.gt.f32.partialorder %v5421, 0.0
        %v5423 = vmul.f32 %v5421, 0.2
        %v5424 = vsel %vm5422, %v5421, %v5423
        %v5425 = vadd.f32 %v5408, %v5416
        %vm5426 = vcmp.gt.f32.partialorder %v5425, 0.0
        %v5427 = vmul.f32 %v5425, 0.2
        %v5428 = vsel %vm5426, %v5425, %v5427
        %v5429 = vmax.f32 %v5420, %v5424
        %v5430 = vmax.f32 %v5429, %v5428
        %v5431 = vsub.f32 %v5420, %v5430
        %v5432 = vmul.f32 %v5431, 1.442695
        %v5433 = vpow.pop %v5432
        %v5434 = vsub.f32 %v5424, %v5430
        %v5435 = vmul.f32 %v5434, 1.442695
        %v5436 = vpow.pop %v5435
        %v5437 = vsub.f32 %v5428, %v5430
        %v5438 = vmul.f32 %v5437, 1.442695
        %v5439 = vpow.pop %v5438
        %v5440 = vadd.f32 %v5433, %v5436
        %v5441 = vadd.f32 %v5440, %v5439
        %v5442 = vrcp.pop %v5441
        %v5443 = vmul.f32 1.0, %v5442
        %v5444 = vmul.f32 %v5433, %v5443
        %v5445 = vmul.f32 %v5444, %v5375
        %v5446 = vadd.f32 %v5445, 0.0
        %v5447 = vmul.f32 %v5436, %v5443
        %v5448 = vmul.f32 %v5447, %v5392
        %v5449 = vadd.f32 %v5446, %v5448
        %v5450 = vmul.f32 %v5439, %v5443
        %v5451 = vmul.f32 %v5450, %v5405
        %v5452 = vadd.f32 %v5449, %v5451
        %v5453 = vld [vmem:[%s10] sm:$0xff]
        %v5454 = vld [vmem:[%s10 + $0x8] sm:$0xff]
        %v5455 = vld [vmem:[%s10 + $0x10] sm:$0xff]
        %v5456 = vld [vmem:[%s10 + $0x18] sm:$0xff]
        %v5457 = vld [vmem:[%s10 + $0x20] sm:$0xff]
        %v5458 = vld [vmem:[%s10 + $0x28] sm:$0xff]
        %v5459 = vld [vmem:[%s10 + $0x30] sm:$0xff]
        %v5460 = vld [vmem:[%s10 + $0x38] sm:$0xff]
        %v5461 = vld [vmem:[%s10 + $0x40] sm:$0xff]
        %v5462 = vld [vmem:[%s10 + $0x48] sm:$0xff]
        %v5463 = vld [vmem:[%s10 + $0x50] sm:$0xff]
        %v5464 = vld [vmem:[%s10 + $0x58] sm:$0xff]
        %v5465 = vld [vmem:[%s10 + $0x60] sm:$0xff]
        %v5466 = vld [vmem:[%s10 + $0x68] sm:$0xff]
        %v5467 = vld [vmem:[%s10 + $0x70] sm:$0xff]
        %v5468 = vld [vmem:[%s10 + $0x78] sm:$0xff]
        %v5469 = vld [vmem:[%s11] sm:$0x1]
        %v5471 = vlaneseq
        %v5472 = vshrl.u32 %v5471, 7
        %v5473 = vsub.s32 0, %v5472
        %v5474 = vrot.slane %v5469, %v5473
        %5476 = vmatprep.subr.mxu0 0.0
        %5477 = vmatpush1.msra.mxu0 %v5453
        %5478 = vmatprep.subr.mxu0 0.0
        %5479 = vmatpush1.msra.mxu0 %v5454
        %5480 = vmatprep.subr.mxu0 0.0
        %5481 = vmatpush1.msra.mxu0 %v5455
        %5482 = vmatprep.subr.mxu0 0.0
        %5483 = vmatpush1.msra.mxu0 %v5456
        %5484 = vmatprep.subr.mxu0 0.0
        %5485 = vmatpush1.msra.mxu0 %v5457
        %5486 = vmatprep.subr.mxu0 0.0
        %5487 = vmatpush1.msra.mxu0 %v5458
        %5488 = vmatprep.subr.mxu0 0.0
        %5489 = vmatpush1.msra.mxu0 %v5459
        %5490 = vmatprep.subr.mxu0 0.0
        %5491 = vmatpush1.msra.mxu0 %v5460
        %5492 = vmatprep.subr.mxu0 0.0
        %5493 = vmatpush1.msra.mxu0 %v5461
        %5494 = vmatprep.subr.mxu0 0.0
        %5495 = vmatpush1.msra.mxu0 %v5462
        %5496 = vmatprep.subr.mxu0 0.0
        %5497 = vmatpush1.msra.mxu0 %v5463
        %5498 = vmatprep.subr.mxu0 0.0
        %5499 = vmatpush1.msra.mxu0 %v5464
        %5500 = vmatprep.subr.mxu0 0.0
        %5501 = vmatpush1.msra.mxu0 %v5465
        %5502 = vmatprep.subr.mxu0 0.0
        %5503 = vmatpush1.msra.mxu0 %v5466
        %5504 = vmatprep.subr.mxu0 0.0
        %5505 = vmatpush1.msra.mxu0 %v5467
        %5506 = vmatprep.subr.mxu0 0.0
        %5507 = vmatpush1.msra.mxu0 %v5468
        %5508 = vmatprep.subr.mxu0 0.0
        %5509 = vmatpush1.msra.mxu0 0.0
        %5510 = vmatprep.subr.mxu0 0.0
        %5511 = vmatpush1.msra.mxu0 0.0
        %5512 = vmatprep.subr.mxu0 0.0
        %5513 = vmatpush1.msra.mxu0 0.0
        %5514 = vmatprep.subr.mxu0 0.0
        %5515 = vmatpush1.msra.mxu0 0.0
        %5516 = vmatprep.subr.mxu0 0.0
        %5517 = vmatpush1.msra.mxu0 0.0
        %5518 = vmatprep.subr.mxu0 0.0
        %5519 = vmatpush1.msra.mxu0 0.0
        %5520 = vmatprep.subr.mxu0 0.0
        %5521 = vmatpush1.msra.mxu0 0.0
        %5522 = vmatprep.subr.mxu0 0.0
        %5523 = vmatpush1.msra.mxu0 0.0
        %5524 = vmatprep.subr.mxu0 0.0
        %5525 = vmatpush1.msra.mxu0 0.0
        %5526 = vmatprep.subr.mxu0 0.0
        %5527 = vmatpush1.msra.mxu0 0.0
        %5528 = vmatprep.subr.mxu0 0.0
        %5529 = vmatpush1.msra.mxu0 0.0
        %5530 = vmatprep.subr.mxu0 0.0
        %5531 = vmatpush1.msra.mxu0 0.0
        %5532 = vmatprep.subr.mxu0 0.0
        %5533 = vmatpush1.msra.mxu0 0.0
        %5534 = vmatprep.subr.mxu0 0.0
        %5535 = vmatpush1.msra.mxu0 0.0
        %5536 = vmatprep.subr.mxu0 0.0
        %5537 = vmatpush1.msra.mxu0 0.0
        %5538 = vmatprep.subr.mxu0 0.0
        %5539 = vmatpush1.msra.mxu0 0.0
        %5540 = vmatprep.mubr.f32.mxu0 0.0
        %5541 = vmatmul.mubr.f32.gmra.mrb[0].mxu0 %v5452
        %v5542 = vpop.f32.mrb[0].mxu0
        %v5543 = vadd.f32 %v5474, %v5542
        %v5544 = vpop.f32.mrb[0].mxu0
        %5545 = vdwg.mxu0
        %5546 = vst [vmem:[%s537] sm:$0xff] %v5543
      $region72: #{tran_hgat_forward.3} parent=67 // pred_fallthru
        _
      %p5547 = scmp.lt.s32.totalorder %s27, 0
      %s5548 = scalar_select %p5547, %s27, 0
      %s5549 = smul.addr %s5548, 8
      %s5550 = scalar_lea.vmem %s12, %s5549
      // Predicated region
      $region73: #{tran_hgat_forward.3} parent=67 // pred_check
        %p5551 = pneg %p334
      $region74: #{tran_hgat_forward.3} parent=67 // pred_check_branch
        %5553 = sbr.rel (%p5551) target = $region76
      $region75: #{tran_hgat_forward.3} parent=67 // pred_region
        _
      $region76: #{tran_hgat_forward.3} parent=67 // pred_fallthru
        _
      // Predicated region
      $region77: #{tran_hgat_forward.3} parent=67 // pred_check
        %p5554 = pneg %p334
      $region78: #{tran_hgat_forward.3} parent=67 // pred_check_branch
        %5556 = sbr.rel (%p5554) target = $region80
      $region79: #{tran_hgat_forward.3} parent=67 // pred_region
        %p5557 = scmp.lt.s32.totalorder %s27, 0
        %s5558 = scalar_select %p5557, %s27, 0
        %s5559 = smul.addr %s5558, 8
        %s5560 = scalar_lea.vmem %s12, %s5559
      $region80: #{tran_hgat_forward.3} parent=67 // pred_fallthru
        _
    $region68: #{tran_hgat_forward.3} parent=5 // pred_fallthru
      _
    %p5561 = scmp.le.s32.totalorder 2, %s18
    // Predicated region
    $region81: #{tran_hgat_forward.3} parent=5 // pred_check
      %p5562 = pneg %p5561
    $region82: #{tran_hgat_forward.3} parent=5 // pred_check_branch
      %5564 = sbr.rel (%p5562) target = $region84
    $region83: #{tran_hgat_forward.3} parent=5 // pred_region
      %s5565 = ssub.s32 %s18, 2
    $region84: #{tran_hgat_forward.3} parent=5 // pred_fallthru
      _
  $region6: #{tran_hgat_forward.3} parent=0 // loop_footer
    %s22 = sadd.s32 1, %s18
  $region7: #{tran_hgat_forward.3} parent=0 // loop_footer_branch
    %17 = sbr.rel target = $region3
  $region8: #{tran_hgat_forward.3} parent=0 // loop_exit
    _

</llo_original>
